<compile_context>
chip_gen: v7x
topology: tpu7x:2x2x1
jax: 0.10.0
libtpu: 0.0.40
codegen_flags: <defaults>
</compile_context>

<pallas_src>
import functools

import jax
import jax.numpy as jnp
from jax import lax
from jax.experimental import pallas as pl
from jax.experimental.pallas import tpu as pltpu

EPS = 1e-5

# Largest f32 activation is (B*N, 1024) = 1 MiB, bf16 weight scratch copies are
# ~3.3 MiB, inputs ~0.5 MiB -> well under 10 MiB resident.  32 MiB leaves ample
# scheduling headroom and exists physically on v5e/v6e (128 MiB) and v7x (64 MiB).
VMEM_LIMIT_BYTES = 32 * 1024 * 1024


def _relu_bn(h, aux):
    """bias + ReLU + training-mode BatchNorm, folded into one scale/shift FMA.

    aux rows: [0] = conv/linear bias, [1] = BN gamma, [2] = BN beta (each (1, C)).
    """
    b, gamma, beta = aux[0:1, :], aux[1:2, :], aux[2:3, :]
    h = jnp.maximum(h + b, 0.0)                       # ReLU before BN (as in the module)
    inv_n = 1.0 / h.shape[0]
    mean = jnp.sum(h, axis=0, keepdims=True) * inv_n          # one pass over h
    msq = jnp.sum(h * h, axis=0, keepdims=True) * inv_n
    var = msq - mean * mean                                   # biased variance
    scale = gamma * lax.rsqrt(var + EPS)
    shift = beta - mean * scale
    return h * scale + shift                                  # single FMA per element


def _block(h, w_ref, aux_ref):
    """Conv1d(k=1)/Linear -> ReLU -> BatchNorm.  Weights stored bf16, compute f32."""
    hw = jnp.dot(h, w_ref[...].astype(jnp.float32),
                 preferred_element_type=jnp.float32)
    return _relu_bn(hw, aux_ref[...])


def tnet_kernel(x_ref,
                w1_ref, a1_ref,
                w2_ref, a2_ref,
                w3_ref, a3_ref,
                wf1_hbm, a4_ref,
                wf2_hbm, a5_ref,
                wf3_hbm, bf3_ref,
                out_ref,
                wf1_v, wf2_v, wf3_v, sem,
                *, batch):
    # Kick off the large FC-weight DMAs immediately so they overlap the conv
    # blocks + max-pool compute; wait right before each use.
    cp1 = pltpu.make_async_copy(wf1_hbm, wf1_v, sem.at[0])
    cp2 = pltpu.make_async_copy(wf2_hbm, wf2_v, sem.at[1])
    cp3 = pltpu.make_async_copy(wf3_hbm, wf3_v, sem.at[2])
    cp1.start()
    cp2.start()
    cp3.start()

    x = x_ref[...]                                   # (B*N, K) f32, channels-last
    h = _block(x, w1_ref, a1_ref)                    # (B*N, 64)
    h = _block(h, w2_ref, a2_ref)                    # (B*N, 128)
    h = _block(h, w3_ref, a3_ref)                    # (B*N, 1024)

    # max_pool1d over the N points (per channel)
    rows, c = h.shape
    pooled = jnp.max(h.reshape(batch, rows // batch, c), axis=1)   # (B, 1024)

    cp1.wait()
    f = _block(pooled, wf1_v, a4_ref)                # (B, 512)
    cp2.wait()
    f = _block(f, wf2_v, a5_ref)                     # (B, 256)
    cp3.wait()
    # fc3 (no ReLU/BN); identity matrix already folded into bf3 in the wrapper.
    f = jnp.dot(f, wf3_v[...].astype(jnp.float32),
                preferred_element_type=jnp.float32) + bf3_ref[...]  # (B, k*k)
    out_ref[...] = f


def tnet_forward(x_bkn, params):
    """x_bkn: (B, k, N) float32, PyTorch NCW convention."""
    weights, auxes, wf3, bf3 = params
    w1, w2, w3, wf1, wf2 = weights
    a1, a2, a3, a4, a5 = auxes
    B, K, N = x_bkn.shape

    # Fuse the NCW->NWC transpose with the row flatten: the kernel gets a clean
    # (B*N, K) slab (single XLA copy, no in-kernel reshape).
    x2d = jnp.transpose(x_bkn, (0, 2, 1)).reshape(B * N, K)
    # Fold the identity matrix into the fc3 bias (constant data).
    bf3_eye = bf3 + jnp.eye(K, dtype=jnp.float32).reshape(1, K * K)

    vmem = pl.BlockSpec(memory_space=pltpu.MemorySpace.VMEM)
    hbm = pl.BlockSpec(memory_space=pl.ANY)   # manual DMA inside the kernel

    out = pl.pallas_call(
        functools.partial(tnet_kernel, batch=B),
        out_shape=jax.ShapeDtypeStruct((B, K * K), jnp.float32),
        in_specs=[vmem,            # x2d
                  vmem, vmem,      # w1, aux1
                  vmem, vmem,      # w2, aux2
                  vmem, vmem,      # w3, aux3
                  hbm,  vmem,      # wf1 (async-copied), aux4
                  hbm,  vmem,      # wf2 (async-copied), aux5
                  hbm,  vmem],     # wf3 (async-copied), bf3+eye
        out_specs=vmem,
        scratch_shapes=[
            pltpu.VMEM(wf1.shape, wf1.dtype),
            pltpu.VMEM(wf2.shape, wf2.dtype),
            pltpu.VMEM(wf3.shape, wf3.dtype),
            pltpu.SemaphoreType.DMA((3,)),
        ],
        compiler_params=pltpu.CompilerParams(vmem_limit_bytes=VMEM_LIMIT_BYTES),
    )(x2d, w1, a1, w2, a2, w3, a3, wf1, a4, wf2, a5, wf3, bf3_eye)
    return out.reshape(B, K, K)


def init_params(key, k=64):
    """Deterministic synthetic params.

    Weights are (Cin, Cout) stored in bfloat16 (HBM-traffic win; compute stays f32).
    Per-layer (bias, gamma, beta) are packed into a single (3, Cout) f32 array.
    """
    layer_dims = [(k, 64), (64, 128), (128, 1024), (1024, 512), (512, 256)]
    keys = jax.random.split(key, 4 * len(layer_dims) + 2)
    weights, auxes = [], []
    ki = 0
    for cin, cout in layer_dims:
        w = 0.05 * jax.random.normal(keys[ki], (cin, cout), jnp.float32); ki += 1
        b = 0.05 * jax.random.normal(keys[ki], (1, cout), jnp.float32); ki += 1
        g = 1.0 + 0.1 * jax.random.normal(keys[ki], (1, cout), jnp.float32); ki += 1
        be = 0.1 * jax.random.normal(keys[ki], (1, cout), jnp.float32); ki += 1
        weights.append(w.astype(jnp.bfloat16))
        auxes.append(jnp.concatenate([b, g, be], axis=0))         # (3, cout) f32
    # fc3: Linear(256, k*k) (no ReLU / BN)
    wf3 = (0.05 * jax.random.normal(keys[ki], (256, k * k), jnp.float32)
           ).astype(jnp.bfloat16); ki += 1
    bf3 = 0.05 * jax.random.normal(keys[ki], (1, k * k), jnp.float32); ki += 1
    return weights, auxes, wf3, bf3


def tnet_ref(x_bkn, params):
    """Pure-JAX reference of the same forward pass (uses the same stored weights)."""
    weights, auxes, wf3, bf3 = params
    B, K, N = x_bkn.shape
    x = jnp.transpose(x_bkn, (0, 2, 1)).reshape(B * N, K)

    def block(h, w, aux):
        b, g, be = aux[0:1, :], aux[1:2, :], aux[2:3, :]
        h = jnp.maximum(h @ w.astype(jnp.float32) + b, 0.0)
        m = h.mean(axis=0, keepdims=True)
        v = ((h - m) ** 2).mean(axis=0, keepdims=True)            # biased variance
        return (h - m) / jnp.sqrt(v + EPS) * g + be

    h = block(x, weights[0], auxes[0])
    h = block(h, weights[1], auxes[1])
    h = block(h, weights[2], auxes[2])
    pooled = h.reshape(B, N, -1).max(axis=1)
    f = block(pooled, weights[3], auxes[3])
    f = block(f, weights[4], auxes[4])
    f = f @ wf3.astype(jnp.float32) + bf3
    eye = jnp.eye(K, dtype=jnp.float32).reshape(1, K * K)
    return (f + eye).reshape(B, K, K)


if __name__ == "__main__":
    k, B, N = 64, 2, 128   # TNet default k=64; small batch / point count
    key = jax.random.PRNGKey(0)
    kx, kp = jax.random.split(key)
    x = jax.random.normal(kx, (B, k, N), jnp.float32)   # PyTorch-style (B, k, N)
    params = init_params(kp, k=k)

    out = jax.block_until_ready(tnet_forward(x, params))
    ref = jax.block_until_ready(tnet_ref(x, params))

    assert out.shape == (B, k, k), out.shape
    if not bool(jnp.allclose(out, ref, rtol=1e-2, atol=1e-2)):
        raise AssertionError("Pallas TNet output mismatch vs pure-JAX reference")
    print("KERNEL_OK")
</pallas_src>

<mosaic_0001>
module attributes {stable_mosaic.version = 11 : i64} {
  func.func @tnet_kernel(%arg0: memref<256x64xf32, #tpu.memory_space<vmem>>, %arg1: memref<64x64xbf16, #tpu.memory_space<vmem>>, %arg2: memref<3x64xf32, #tpu.memory_space<vmem>>, %arg3: memref<64x128xbf16, #tpu.memory_space<vmem>>, %arg4: memref<3x128xf32, #tpu.memory_space<vmem>>, %arg5: memref<128x1024xbf16, #tpu.memory_space<vmem>>, %arg6: memref<3x1024xf32, #tpu.memory_space<vmem>>, %arg7: memref<1024x512xbf16, #tpu.memory_space<any>>, %arg8: memref<3x512xf32, #tpu.memory_space<vmem>>, %arg9: memref<512x256xbf16, #tpu.memory_space<any>>, %arg10: memref<3x256xf32, #tpu.memory_space<vmem>>, %arg11: memref<256x4096xbf16, #tpu.memory_space<any>>, %arg12: memref<1x4096xf32, #tpu.memory_space<vmem>>, %arg13: memref<2x4096xf32, #tpu.memory_space<vmem>>, %arg14: memref<1024x512xbf16, #tpu.memory_space<vmem>>, %arg15: memref<512x256xbf16, #tpu.memory_space<vmem>>, %arg16: memref<256x4096xbf16, #tpu.memory_space<vmem>>, %arg17: memref<3x!tpu.dma_semaphore, #tpu.memory_space<semaphore_mem>>) attributes {dimension_semantics = [], scalar_prefetch = 0 : i64, scratch_operands = 4 : i64, tpu.core_type = #tpu.core_type<tc>} {
    %c0_i32 = arith.constant 0 : i32
    %0 = tpu.memref_slice %arg17[%c0_i32] : memref<3x!tpu.dma_semaphore, #tpu.memory_space<semaphore_mem>> -> memref<1x!tpu.dma_semaphore, #tpu.memory_space<semaphore_mem>>
    %1 = tpu.memref_squeeze %0 : memref<1x!tpu.dma_semaphore, #tpu.memory_space<semaphore_mem>> -> memref<!tpu.dma_semaphore, #tpu.memory_space<semaphore_mem>>
    tpu.enqueue_dma source(%arg7 : memref<1024x512xbf16, #tpu.memory_space<any>>) target(%arg14 : memref<1024x512xbf16, #tpu.memory_space<vmem>>) target_semaphore(%1 : memref<!tpu.dma_semaphore, #tpu.memory_space<semaphore_mem>>)
    %c1_i32 = arith.constant 1 : i32
    %2 = tpu.memref_slice %arg17[%c1_i32] : memref<3x!tpu.dma_semaphore, #tpu.memory_space<semaphore_mem>> -> memref<1x!tpu.dma_semaphore, #tpu.memory_space<semaphore_mem>>
    %3 = tpu.memref_squeeze %2 : memref<1x!tpu.dma_semaphore, #tpu.memory_space<semaphore_mem>> -> memref<!tpu.dma_semaphore, #tpu.memory_space<semaphore_mem>>
    tpu.enqueue_dma source(%arg9 : memref<512x256xbf16, #tpu.memory_space<any>>) target(%arg15 : memref<512x256xbf16, #tpu.memory_space<vmem>>) target_semaphore(%3 : memref<!tpu.dma_semaphore, #tpu.memory_space<semaphore_mem>>)
    %c2_i32 = arith.constant 2 : i32
    %4 = tpu.memref_slice %arg17[%c2_i32] : memref<3x!tpu.dma_semaphore, #tpu.memory_space<semaphore_mem>> -> memref<1x!tpu.dma_semaphore, #tpu.memory_space<semaphore_mem>>
    %5 = tpu.memref_squeeze %4 : memref<1x!tpu.dma_semaphore, #tpu.memory_space<semaphore_mem>> -> memref<!tpu.dma_semaphore, #tpu.memory_space<semaphore_mem>>
    tpu.enqueue_dma source(%arg11 : memref<256x4096xbf16, #tpu.memory_space<any>>) target(%arg16 : memref<256x4096xbf16, #tpu.memory_space<vmem>>) target_semaphore(%5 : memref<!tpu.dma_semaphore, #tpu.memory_space<semaphore_mem>>)
    %c0 = arith.constant 0 : index
    %c0_0 = arith.constant 0 : index
    %6 = vector.load %arg0[%c0, %c0_0] : memref<256x64xf32, #tpu.memory_space<vmem>>, vector<256x64xf32>
    %c0_1 = arith.constant 0 : index
    %c0_2 = arith.constant 0 : index
    %7 = vector.load %arg1[%c0_1, %c0_2] : memref<64x64xbf16, #tpu.memory_space<vmem>>, vector<64x64xbf16>
    %8 = arith.extf %7 : vector<64x64xbf16> to vector<64x64xf32>
    %cst = arith.constant dense<0.000000e+00> : vector<256x64xf32>
    %9 = tpu.matmul %6, %8, %cst {dimension_numbers = #tpu.dot_dimension_numbers<[1], [0], [0], [1], [0, 0, 1, 1], [], []>} : vector<256x64xf32>, vector<64x64xf32>, vector<256x64xf32> -> vector<256x64xf32>
    %c0_3 = arith.constant 0 : index
    %c0_4 = arith.constant 0 : index
    %10 = vector.load %arg2[%c0_3, %c0_4] : memref<3x64xf32, #tpu.memory_space<vmem>>, vector<3x64xf32>
    %11 = vector.extract_strided_slice %10 {offsets = [0, 0], sizes = [1, 64], strides = [1, 1]} : vector<3x64xf32> to vector<1x64xf32>
    %12 = vector.extract_strided_slice %10 {offsets = [1, 0], sizes = [1, 64], strides = [1, 1]} : vector<3x64xf32> to vector<1x64xf32>
    %13 = vector.extract_strided_slice %10 {offsets = [2, 0], sizes = [1, 64], strides = [1, 1]} : vector<3x64xf32> to vector<1x64xf32>
    %14 = vector.broadcast %11 : vector<1x64xf32> to vector<256x64xf32>
    %15 = arith.addf %9, %14 : vector<256x64xf32>
    %cst_5 = arith.constant 0.000000e+00 : f32
    %16 = vector.broadcast %cst_5 : f32 to vector<256x64xf32>
    %17 = arith.maximumf %15, %16 : vector<256x64xf32>
    %cst_6 = arith.constant dense<0.000000e+00> : vector<64xf32>
    %18 = vector.multi_reduction <add>, %17, %cst_6 [0] : vector<256x64xf32> to vector<64xf32>
    %19 = vector.shape_cast %18 : vector<64xf32> to vector<1x64xf32>
    %cst_7 = arith.constant 3.906250e-03 : f32
    %20 = vector.broadcast %cst_7 : f32 to vector<1x64xf32>
    %21 = arith.mulf %19, %20 : vector<1x64xf32>
    %22 = arith.mulf %17, %17 : vector<256x64xf32>
    %cst_8 = arith.constant dense<0.000000e+00> : vector<64xf32>
    %23 = vector.multi_reduction <add>, %22, %cst_8 [0] : vector<256x64xf32> to vector<64xf32>
    %24 = vector.shape_cast %23 : vector<64xf32> to vector<1x64xf32>
    %cst_9 = arith.constant 3.906250e-03 : f32
    %25 = vector.broadcast %cst_9 : f32 to vector<1x64xf32>
    %26 = arith.mulf %24, %25 : vector<1x64xf32>
    %27 = arith.mulf %21, %21 : vector<1x64xf32>
    %28 = arith.subf %26, %27 : vector<1x64xf32>
    %cst_10 = arith.constant 9.99999974E-6 : f32
    %29 = vector.broadcast %cst_10 : f32 to vector<1x64xf32>
    %30 = arith.addf %28, %29 : vector<1x64xf32>
    %31 = math.rsqrt %30 : vector<1x64xf32>
    %32 = arith.mulf %12, %31 : vector<1x64xf32>
    %33 = arith.mulf %21, %32 : vector<1x64xf32>
    %34 = arith.subf %13, %33 : vector<1x64xf32>
    %35 = vector.broadcast %32 : vector<1x64xf32> to vector<256x64xf32>
    %36 = arith.mulf %17, %35 : vector<256x64xf32>
    %37 = vector.broadcast %34 : vector<1x64xf32> to vector<256x64xf32>
    %38 = arith.addf %36, %37 : vector<256x64xf32>
    %c0_11 = arith.constant 0 : index
    %c0_12 = arith.constant 0 : index
    %39 = vector.load %arg3[%c0_11, %c0_12] : memref<64x128xbf16, #tpu.memory_space<vmem>>, vector<64x128xbf16>
    %40 = arith.extf %39 : vector<64x128xbf16> to vector<64x128xf32>
    %cst_13 = arith.constant dense<0.000000e+00> : vector<256x128xf32>
    %41 = tpu.matmul %38, %40, %cst_13 {dimension_numbers = #tpu.dot_dimension_numbers<[1], [0], [0], [1], [0, 0, 1, 1], [], []>} : vector<256x64xf32>, vector<64x128xf32>, vector<256x128xf32> -> vector<256x128xf32>
    %c0_14 = arith.constant 0 : index
    %c0_15 = arith.constant 0 : index
    %42 = vector.load %arg4[%c0_14, %c0_15] : memref<3x128xf32, #tpu.memory_space<vmem>>, vector<3x128xf32>
    %43 = vector.extract_strided_slice %42 {offsets = [0, 0], sizes = [1, 128], strides = [1, 1]} : vector<3x128xf32> to vector<1x128xf32>
    %44 = vector.extract_strided_slice %42 {offsets = [1, 0], sizes = [1, 128], strides = [1, 1]} : vector<3x128xf32> to vector<1x128xf32>
    %45 = vector.extract_strided_slice %42 {offsets = [2, 0], sizes = [1, 128], strides = [1, 1]} : vector<3x128xf32> to vector<1x128xf32>
    %46 = vector.broadcast %43 : vector<1x128xf32> to vector<256x128xf32>
    %47 = arith.addf %41, %46 : vector<256x128xf32>
    %cst_16 = arith.constant 0.000000e+00 : f32
    %48 = vector.broadcast %cst_16 : f32 to vector<256x128xf32>
    %49 = arith.maximumf %47, %48 : vector<256x128xf32>
    %cst_17 = arith.constant dense<0.000000e+00> : vector<128xf32>
    %50 = vector.multi_reduction <add>, %49, %cst_17 [0] : vector<256x128xf32> to vector<128xf32>
    %51 = vector.shape_cast %50 : vector<128xf32> to vector<1x128xf32>
    %cst_18 = arith.constant 3.906250e-03 : f32
    %52 = vector.broadcast %cst_18 : f32 to vector<1x128xf32>
    %53 = arith.mulf %51, %52 : vector<1x128xf32>
    %54 = arith.mulf %49, %49 : vector<256x128xf32>
    %cst_19 = arith.constant dense<0.000000e+00> : vector<128xf32>
    %55 = vector.multi_reduction <add>, %54, %cst_19 [0] : vector<256x128xf32> to vector<128xf32>
    %56 = vector.shape_cast %55 : vector<128xf32> to vector<1x128xf32>
    %cst_20 = arith.constant 3.906250e-03 : f32
    %57 = vector.broadcast %cst_20 : f32 to vector<1x128xf32>
    %58 = arith.mulf %56, %57 : vector<1x128xf32>
    %59 = arith.mulf %53, %53 : vector<1x128xf32>
    %60 = arith.subf %58, %59 : vector<1x128xf32>
    %cst_21 = arith.constant 9.99999974E-6 : f32
    %61 = vector.broadcast %cst_21 : f32 to vector<1x128xf32>
    %62 = arith.addf %60, %61 : vector<1x128xf32>
    %63 = math.rsqrt %62 : vector<1x128xf32>
    %64 = arith.mulf %44, %63 : vector<1x128xf32>
    %65 = arith.mulf %53, %64 : vector<1x128xf32>
    %66 = arith.subf %45, %65 : vector<1x128xf32>
    %67 = vector.broadcast %64 : vector<1x128xf32> to vector<256x128xf32>
    %68 = arith.mulf %49, %67 : vector<256x128xf32>
    %69 = vector.broadcast %66 : vector<1x128xf32> to vector<256x128xf32>
    %70 = arith.addf %68, %69 : vector<256x128xf32>
    %c0_22 = arith.constant 0 : index
    %c0_23 = arith.constant 0 : index
    %71 = vector.load %arg5[%c0_22, %c0_23] : memref<128x1024xbf16, #tpu.memory_space<vmem>>, vector<128x1024xbf16>
    %72 = arith.extf %71 : vector<128x1024xbf16> to vector<128x1024xf32>
    %cst_24 = arith.constant dense<0.000000e+00> : vector<256x1024xf32>
    %73 = tpu.matmul %70, %72, %cst_24 {dimension_numbers = #tpu.dot_dimension_numbers<[1], [0], [0], [1], [0, 0, 1, 1], [], []>} : vector<256x128xf32>, vector<128x1024xf32>, vector<256x1024xf32> -> vector<256x1024xf32>
    %c0_25 = arith.constant 0 : index
    %c0_26 = arith.constant 0 : index
    %74 = vector.load %arg6[%c0_25, %c0_26] : memref<3x1024xf32, #tpu.memory_space<vmem>>, vector<3x1024xf32>
    %75 = vector.extract_strided_slice %74 {offsets = [0, 0], sizes = [1, 1024], strides = [1, 1]} : vector<3x1024xf32> to vector<1x1024xf32>
    %76 = vector.extract_strided_slice %74 {offsets = [1, 0], sizes = [1, 1024], strides = [1, 1]} : vector<3x1024xf32> to vector<1x1024xf32>
    %77 = vector.extract_strided_slice %74 {offsets = [2, 0], sizes = [1, 1024], strides = [1, 1]} : vector<3x1024xf32> to vector<1x1024xf32>
    %78 = vector.broadcast %75 : vector<1x1024xf32> to vector<256x1024xf32>
    %79 = arith.addf %73, %78 : vector<256x1024xf32>
    %cst_27 = arith.constant 0.000000e+00 : f32
    %80 = vector.broadcast %cst_27 : f32 to vector<256x1024xf32>
    %81 = arith.maximumf %79, %80 : vector<256x1024xf32>
    %cst_28 = arith.constant dense<0.000000e+00> : vector<1024xf32>
    %82 = vector.multi_reduction <add>, %81, %cst_28 [0] : vector<256x1024xf32> to vector<1024xf32>
    %83 = vector.shape_cast %82 : vector<1024xf32> to vector<1x1024xf32>
    %cst_29 = arith.constant 3.906250e-03 : f32
    %84 = vector.broadcast %cst_29 : f32 to vector<1x1024xf32>
    %85 = arith.mulf %83, %84 : vector<1x1024xf32>
    %86 = arith.mulf %81, %81 : vector<256x1024xf32>
    %cst_30 = arith.constant dense<0.000000e+00> : vector<1024xf32>
    %87 = vector.multi_reduction <add>, %86, %cst_30 [0] : vector<256x1024xf32> to vector<1024xf32>
    %88 = vector.shape_cast %87 : vector<1024xf32> to vector<1x1024xf32>
    %cst_31 = arith.constant 3.906250e-03 : f32
    %89 = vector.broadcast %cst_31 : f32 to vector<1x1024xf32>
    %90 = arith.mulf %88, %89 : vector<1x1024xf32>
    %91 = arith.mulf %85, %85 : vector<1x1024xf32>
    %92 = arith.subf %90, %91 : vector<1x1024xf32>
    %cst_32 = arith.constant 9.99999974E-6 : f32
    %93 = vector.broadcast %cst_32 : f32 to vector<1x1024xf32>
    %94 = arith.addf %92, %93 : vector<1x1024xf32>
    %95 = math.rsqrt %94 : vector<1x1024xf32>
    %96 = arith.mulf %76, %95 : vector<1x1024xf32>
    %97 = arith.mulf %85, %96 : vector<1x1024xf32>
    %98 = arith.subf %77, %97 : vector<1x1024xf32>
    %99 = vector.broadcast %96 : vector<1x1024xf32> to vector<256x1024xf32>
    %100 = arith.mulf %81, %99 : vector<256x1024xf32>
    %101 = vector.broadcast %98 : vector<1x1024xf32> to vector<256x1024xf32>
    %102 = arith.addf %100, %101 : vector<256x1024xf32>
    %103 = vector.shape_cast %102 : vector<256x1024xf32> to vector<2x128x1024xf32>
    %cst_33 = arith.constant dense<0xFF800000> : vector<2x1024xf32>
    %104 = vector.multi_reduction <maximumf>, %103, %cst_33 [1] : vector<2x128x1024xf32> to vector<2x1024xf32>
    %c0_i32_34 = arith.constant 0 : i32
    %105 = tpu.memref_slice %arg17[%c0_i32_34] : memref<3x!tpu.dma_semaphore, #tpu.memory_space<semaphore_mem>> -> memref<1x!tpu.dma_semaphore, #tpu.memory_space<semaphore_mem>>
    %106 = tpu.memref_squeeze %105 : memref<1x!tpu.dma_semaphore, #tpu.memory_space<semaphore_mem>> -> memref<!tpu.dma_semaphore, #tpu.memory_space<semaphore_mem>>
    tpu.wait_dma2 semaphore(%106 : memref<!tpu.dma_semaphore, #tpu.memory_space<semaphore_mem>>) src(%arg7 : memref<1024x512xbf16, #tpu.memory_space<any>>) dst(%arg14 : memref<1024x512xbf16, #tpu.memory_space<vmem>>)
    %c0_35 = arith.constant 0 : index
    %c0_36 = arith.constant 0 : index
    %107 = vector.load %arg14[%c0_35, %c0_36] : memref<1024x512xbf16, #tpu.memory_space<vmem>>, vector<1024x512xbf16>
    %108 = arith.extf %107 : vector<1024x512xbf16> to vector<1024x512xf32>
    %cst_37 = arith.constant dense<0.000000e+00> : vector<2x512xf32>
    %109 = tpu.matmul %104, %108, %cst_37 {dimension_numbers = #tpu.dot_dimension_numbers<[1], [0], [0], [1], [0, 0, 1, 1], [], []>} : vector<2x1024xf32>, vector<1024x512xf32>, vector<2x512xf32> -> vector<2x512xf32>
    %c0_38 = arith.constant 0 : index
    %c0_39 = arith.constant 0 : index
    %110 = vector.load %arg8[%c0_38, %c0_39] : memref<3x512xf32, #tpu.memory_space<vmem>>, vector<3x512xf32>
    %111 = vector.extract_strided_slice %110 {offsets = [0, 0], sizes = [1, 512], strides = [1, 1]} : vector<3x512xf32> to vector<1x512xf32>
    %112 = vector.extract_strided_slice %110 {offsets = [1, 0], sizes = [1, 512], strides = [1, 1]} : vector<3x512xf32> to vector<1x512xf32>
    %113 = vector.extract_strided_slice %110 {offsets = [2, 0], sizes = [1, 512], strides = [1, 1]} : vector<3x512xf32> to vector<1x512xf32>
    %114 = vector.broadcast %111 : vector<1x512xf32> to vector<2x512xf32>
    %115 = arith.addf %109, %114 : vector<2x512xf32>
    %cst_40 = arith.constant 0.000000e+00 : f32
    %116 = vector.broadcast %cst_40 : f32 to vector<2x512xf32>
    %117 = arith.maximumf %115, %116 : vector<2x512xf32>
    %cst_41 = arith.constant dense<0.000000e+00> : vector<512xf32>
    %118 = vector.multi_reduction <add>, %117, %cst_41 [0] : vector<2x512xf32> to vector<512xf32>
    %119 = vector.shape_cast %118 : vector<512xf32> to vector<1x512xf32>
    %cst_42 = arith.constant 5.000000e-01 : f32
    %120 = vector.broadcast %cst_42 : f32 to vector<1x512xf32>
    %121 = arith.mulf %119, %120 : vector<1x512xf32>
    %122 = arith.mulf %117, %117 : vector<2x512xf32>
    %cst_43 = arith.constant dense<0.000000e+00> : vector<512xf32>
    %123 = vector.multi_reduction <add>, %122, %cst_43 [0] : vector<2x512xf32> to vector<512xf32>
    %124 = vector.shape_cast %123 : vector<512xf32> to vector<1x512xf32>
    %cst_44 = arith.constant 5.000000e-01 : f32
    %125 = vector.broadcast %cst_44 : f32 to vector<1x512xf32>
    %126 = arith.mulf %124, %125 : vector<1x512xf32>
    %127 = arith.mulf %121, %121 : vector<1x512xf32>
    %128 = arith.subf %126, %127 : vector<1x512xf32>
    %cst_45 = arith.constant 9.99999974E-6 : f32
    %129 = vector.broadcast %cst_45 : f32 to vector<1x512xf32>
    %130 = arith.addf %128, %129 : vector<1x512xf32>
    %131 = math.rsqrt %130 : vector<1x512xf32>
    %132 = arith.mulf %112, %131 : vector<1x512xf32>
    %133 = arith.mulf %121, %132 : vector<1x512xf32>
    %134 = arith.subf %113, %133 : vector<1x512xf32>
    %135 = vector.broadcast %132 : vector<1x512xf32> to vector<2x512xf32>
    %136 = arith.mulf %117, %135 : vector<2x512xf32>
    %137 = vector.broadcast %134 : vector<1x512xf32> to vector<2x512xf32>
    %138 = arith.addf %136, %137 : vector<2x512xf32>
    %c1_i32_46 = arith.constant 1 : i32
    %139 = tpu.memref_slice %arg17[%c1_i32_46] : memref<3x!tpu.dma_semaphore, #tpu.memory_space<semaphore_mem>> -> memref<1x!tpu.dma_semaphore, #tpu.memory_space<semaphore_mem>>
    %140 = tpu.memref_squeeze %139 : memref<1x!tpu.dma_semaphore, #tpu.memory_space<semaphore_mem>> -> memref<!tpu.dma_semaphore, #tpu.memory_space<semaphore_mem>>
    tpu.wait_dma2 semaphore(%140 : memref<!tpu.dma_semaphore, #tpu.memory_space<semaphore_mem>>) src(%arg9 : memref<512x256xbf16, #tpu.memory_space<any>>) dst(%arg15 : memref<512x256xbf16, #tpu.memory_space<vmem>>)
    %c0_47 = arith.constant 0 : index
    %c0_48 = arith.constant 0 : index
    %141 = vector.load %arg15[%c0_47, %c0_48] : memref<512x256xbf16, #tpu.memory_space<vmem>>, vector<512x256xbf16>
    %142 = arith.extf %141 : vector<512x256xbf16> to vector<512x256xf32>
    %cst_49 = arith.constant dense<0.000000e+00> : vector<2x256xf32>
    %143 = tpu.matmul %138, %142, %cst_49 {dimension_numbers = #tpu.dot_dimension_numbers<[1], [0], [0], [1], [0, 0, 1, 1], [], []>} : vector<2x512xf32>, vector<512x256xf32>, vector<2x256xf32> -> vector<2x256xf32>
    %c0_50 = arith.constant 0 : index
    %c0_51 = arith.constant 0 : index
    %144 = vector.load %arg10[%c0_50, %c0_51] : memref<3x256xf32, #tpu.memory_space<vmem>>, vector<3x256xf32>
    %145 = vector.extract_strided_slice %144 {offsets = [0, 0], sizes = [1, 256], strides = [1, 1]} : vector<3x256xf32> to vector<1x256xf32>
    %146 = vector.extract_strided_slice %144 {offsets = [1, 0], sizes = [1, 256], strides = [1, 1]} : vector<3x256xf32> to vector<1x256xf32>
    %147 = vector.extract_strided_slice %144 {offsets = [2, 0], sizes = [1, 256], strides = [1, 1]} : vector<3x256xf32> to vector<1x256xf32>
    %148 = vector.broadcast %145 : vector<1x256xf32> to vector<2x256xf32>
    %149 = arith.addf %143, %148 : vector<2x256xf32>
    %cst_52 = arith.constant 0.000000e+00 : f32
    %150 = vector.broadcast %cst_52 : f32 to vector<2x256xf32>
    %151 = arith.maximumf %149, %150 : vector<2x256xf32>
    %cst_53 = arith.constant dense<0.000000e+00> : vector<256xf32>
    %152 = vector.multi_reduction <add>, %151, %cst_53 [0] : vector<2x256xf32> to vector<256xf32>
    %153 = vector.shape_cast %152 : vector<256xf32> to vector<1x256xf32>
    %cst_54 = arith.constant 5.000000e-01 : f32
    %154 = vector.broadcast %cst_54 : f32 to vector<1x256xf32>
    %155 = arith.mulf %153, %154 : vector<1x256xf32>
    %156 = arith.mulf %151, %151 : vector<2x256xf32>
    %cst_55 = arith.constant dense<0.000000e+00> : vector<256xf32>
    %157 = vector.multi_reduction <add>, %156, %cst_55 [0] : vector<2x256xf32> to vector<256xf32>
    %158 = vector.shape_cast %157 : vector<256xf32> to vector<1x256xf32>
    %cst_56 = arith.constant 5.000000e-01 : f32
    %159 = vector.broadcast %cst_56 : f32 to vector<1x256xf32>
    %160 = arith.mulf %158, %159 : vector<1x256xf32>
    %161 = arith.mulf %155, %155 : vector<1x256xf32>
    %162 = arith.subf %160, %161 : vector<1x256xf32>
    %cst_57 = arith.constant 9.99999974E-6 : f32
    %163 = vector.broadcast %cst_57 : f32 to vector<1x256xf32>
    %164 = arith.addf %162, %163 : vector<1x256xf32>
    %165 = math.rsqrt %164 : vector<1x256xf32>
    %166 = arith.mulf %146, %165 : vector<1x256xf32>
    %167 = arith.mulf %155, %166 : vector<1x256xf32>
    %168 = arith.subf %147, %167 : vector<1x256xf32>
    %169 = vector.broadcast %166 : vector<1x256xf32> to vector<2x256xf32>
    %170 = arith.mulf %151, %169 : vector<2x256xf32>
    %171 = vector.broadcast %168 : vector<1x256xf32> to vector<2x256xf32>
    %172 = arith.addf %170, %171 : vector<2x256xf32>
    %c2_i32_58 = arith.constant 2 : i32
    %173 = tpu.memref_slice %arg17[%c2_i32_58] : memref<3x!tpu.dma_semaphore, #tpu.memory_space<semaphore_mem>> -> memref<1x!tpu.dma_semaphore, #tpu.memory_space<semaphore_mem>>
    %174 = tpu.memref_squeeze %173 : memref<1x!tpu.dma_semaphore, #tpu.memory_space<semaphore_mem>> -> memref<!tpu.dma_semaphore, #tpu.memory_space<semaphore_mem>>
    tpu.wait_dma2 semaphore(%174 : memref<!tpu.dma_semaphore, #tpu.memory_space<semaphore_mem>>) src(%arg11 : memref<256x4096xbf16, #tpu.memory_space<any>>) dst(%arg16 : memref<256x4096xbf16, #tpu.memory_space<vmem>>)
    %c0_59 = arith.constant 0 : index
    %c0_60 = arith.constant 0 : index
    %175 = vector.load %arg16[%c0_59, %c0_60] : memref<256x4096xbf16, #tpu.memory_space<vmem>>, vector<256x4096xbf16>
    %176 = arith.extf %175 : vector<256x4096xbf16> to vector<256x4096xf32>
    %cst_61 = arith.constant dense<0.000000e+00> : vector<2x4096xf32>
    %177 = tpu.matmul %172, %176, %cst_61 {dimension_numbers = #tpu.dot_dimension_numbers<[1], [0], [0], [1], [0, 0, 1, 1], [], []>} : vector<2x256xf32>, vector<256x4096xf32>, vector<2x4096xf32> -> vector<2x4096xf32>
    %c0_62 = arith.constant 0 : index
    %c0_63 = arith.constant 0 : index
    %178 = vector.load %arg12[%c0_62, %c0_63] : memref<1x4096xf32, #tpu.memory_space<vmem>>, vector<1x4096xf32>
    %179 = vector.broadcast %178 : vector<1x4096xf32> to vector<2x4096xf32>
    %180 = arith.addf %177, %179 : vector<2x4096xf32>
    %c0_64 = arith.constant 0 : index
    %c0_65 = arith.constant 0 : index
    %181 = vector.load %arg13[%c0_64, %c0_65] : memref<2x4096xf32, #tpu.memory_space<vmem>>, vector<2x4096xf32>
    tpu.vector_store %arg13[%c0_64, %c0_65], %180 {strides = array<i32>} : memref<2x4096xf32, #tpu.memory_space<vmem>>, vector<2x4096xf32>,
    return
  }
}

</mosaic_0001>

<llo_original>
// kernel: tpu_custom_call.1
$region0: #{tpu_custom_call.1}
  #allocation0 [shape = 'u32[]', space=smem, size = 0x4, offset = 0x4, fixed_abs, tag = 'smem constant byte address 0x4 - core index']
  #allocation1 [shape = 'u32[144,128]{1,0:T(1,128)}', space=vmem, size = 0x12000, scoped, tag = 'internal scratch']
  #allocation2 [shape = 'bf16[1024,512]{1,0:T(16,128)(2,1)}', space=vmem, size = 0x100000, scoped, tag = 'scratch operand']
  #allocation3 [shape = 'bf16[512,256]{1,0:T(16,128)(2,1)}', space=vmem, size = 0x40000, scoped, tag = 'scratch operand']
  #allocation4 [shape = 'bf16[256,4096]{1,0:T(16,128)(2,1)}', space=vmem, size = 0x200000, scoped, tag = 'scratch operand']
  #allocation5 [shape = 's32[3]{0}', space=sflag, size = 0xc, scoped, tag = 'scratch operand']
  #allocation22 [shape = 's32[]', space=sflag, size = 0x4, offset = 0, fixed_abs, tag = 'sflag constant byte address 0x0 - dummy sync flag']
  #allocation24 [shape = 's32[]', space=sflag, size = 0x4, offset = 0, fixed_abs, tag = 'sflag constant byte address 0x0 - dummy sync flag']
  #allocation26 [shape = 's32[]', space=sflag, size = 0x4, offset = 0, fixed_abs, tag = 'sflag constant byte address 0x0 - dummy sync flag']
  %s0 = inlined_call_operand.vmem [shape: f32[256,64], index: 0, kind: input, shape index: {}]
  %s1 = inlined_call_operand.hbm [shape: bf16[64,64], index: 1, kind: input, shape index: {}]
  %s2 = inlined_call_operand.hbm [shape: f32[3,64], index: 2, kind: input, shape index: {}]
  %s3 = inlined_call_operand.hbm [shape: bf16[64,128], index: 3, kind: input, shape index: {}]
  %s4 = inlined_call_operand.hbm [shape: f32[3,128], index: 4, kind: input, shape index: {}]
  %s5 = inlined_call_operand.hbm [shape: bf16[128,1024], index: 5, kind: input, shape index: {}]
  %s6 = inlined_call_operand.hbm [shape: f32[3,1024], index: 6, kind: input, shape index: {}]
  %s7 = inlined_call_operand.hbm [shape: bf16[1024,512], index: 7, kind: input, shape index: {}]
  %s8 = inlined_call_operand.hbm [shape: f32[3,512], index: 8, kind: input, shape index: {}]
  %s9 = inlined_call_operand.hbm [shape: bf16[512,256], index: 9, kind: input, shape index: {}]
  %s10 = inlined_call_operand.hbm [shape: f32[3,256], index: 10, kind: input, shape index: {}]
  %s11 = inlined_call_operand.hbm [shape: bf16[256,4096], index: 11, kind: input, shape index: {}]
  %s12 = inlined_call_operand.hbm [shape: f32[1,4096], index: 12, kind: input, shape index: {}]
  %s13 = inlined_call_operand.hbm [shape: f32[2,4096], index: 13, kind: output, shape index: {}]
  %s14 = sld [smem:[#allocation0]]
  $region86: #{tpu_custom_call.1} parent=0
    _
  %s16 = ssub.s32 1, %s14
  %s17 = scalar_select 0, %s16, %s14
  $region1: #{tpu_custom_call.1} parent=0
    #allocation6 [shape = 'u8[16384]{0}', space=vmem, size = 0x4000, scoped, tag = 'input window, operand 1, single buffered']
    #allocation7 [shape = 's32[1]{0}', space=sflag, size = 0x4, scoped, tag = 'scoped memory for tpu_custom_call.1']
    #allocation8 [shape = 's32[1]{0}', space=sflag, size = 0x4, scoped, tag = 'scoped memory for tpu_custom_call.1']
    #allocation9 [shape = 'u8[2048]{0}', space=vmem, size = 0x800, scoped, tag = 'input window, operand 2, single buffered']
    #allocation10 [shape = 's32[1]{0}', space=sflag, size = 0x4, scoped, tag = 'scoped memory for tpu_custom_call.1']
    #allocation11 [shape = 'u8[16384]{0}', space=vmem, size = 0x4000, scoped, tag = 'input window, operand 3, single buffered']
    #allocation12 [shape = 'u8[2048]{0}', space=vmem, size = 0x800, scoped, tag = 'input window, operand 4, single buffered']
    #allocation13 [shape = 's32[1]{0}', space=sflag, size = 0x4, scoped, tag = 'scoped memory for tpu_custom_call.1']
    #allocation14 [shape = 'u8[262144]{0}', space=vmem, size = 0x40000, scoped, tag = 'input window, operand 5, single buffered']
    #allocation15 [shape = 'u8[16384]{0}', space=vmem, size = 0x4000, scoped, tag = 'input window, operand 6, single buffered']
    #allocation16 [shape = 's32[1]{0}', space=sflag, size = 0x4, scoped, tag = 'scoped memory for tpu_custom_call.1']
    #allocation17 [shape = 'u8[8192]{0}', space=vmem, size = 0x2000, scoped, tag = 'input window, operand 8, single buffered']
    #allocation18 [shape = 'u8[4096]{0}', space=vmem, size = 0x1000, scoped, tag = 'input window, operand 10, single buffered']
    #allocation19 [shape = 's32[1]{0}', space=sflag, size = 0x4, scoped, tag = 'scoped memory for tpu_custom_call.1']
    #allocation20 [shape = 'u8[16384]{0}', space=vmem, size = 0x4000, scoped, tag = 'input window, operand 12, single buffered']
    #allocation21 [shape = 'u8[32768]{0}', space=vmem, size = 0x8000, scoped, tag = 'output window, operand 0, single buffered']
    #allocation23 [shape = 'u32[9]{0}', space=smem, size = 0x24, scoped, tag = 'DMA stride descriptor']
    #allocation25 [shape = 'u32[9]{0}', space=smem, size = 0x24, scoped, tag = 'DMA stride descriptor']
    #allocation27 [shape = 'u32[9]{0}', space=smem, size = 0x24, scoped, tag = 'DMA stride descriptor']
    %18 = vsyncpa [#allocation7], 0
    %19 = vsyncpa [#allocation10], 0
    %20 = vsyncpa [#allocation13], 0
    %21 = vsyncpa [#allocation16], 0
    %22 = vsyncpa [#allocation19], 0
    %23 = vsyncpa [#allocation8], 0
    // Predicated region
    $region2: #{tpu_custom_call.1} parent=1 // pred_check
      _
    $region3: #{tpu_custom_call.1} parent=1 // pred_check_branch
      %25 = sbr.rel (0) target = $region5
    $region4: #{tpu_custom_call.1} parent=1 // pred_region
      _
    $region5: #{tpu_custom_call.1} parent=1 // pred_fallthru
      _
    // Predicated region
    $region6: #{tpu_custom_call.1} parent=1 // pred_check
      _
    $region7: #{tpu_custom_call.1} parent=1 // pred_check_branch
      %27 = sbr.rel (0) target = $region9
    $region8: #{tpu_custom_call.1} parent=1 // pred_region
      %s29 = ssub.s32 512, 512
      %30 = vsyncadd [#allocation7], %s29
      %s31 = sshll.u32 [#allocation6], 4
      %s32 = int_to_ptr.vmem [resolvable:$true] %s31
      %37 = dma.hbm_to_vmem [thread:$0]  %s1, 512, %s32, [#allocation7], 64, 64, 4
    $region9: #{tpu_custom_call.1} parent=1 // pred_fallthru
      _
    // Predicated region
    $region10: #{tpu_custom_call.1} parent=1 // pred_check
      _
    $region11: #{tpu_custom_call.1} parent=1 // pred_check_branch
      %39 = sbr.rel (0) target = $region13
    $region12: #{tpu_custom_call.1} parent=1 // pred_region
      %s41 = ssub.s32 64, 64
      %42 = vsyncadd [#allocation10], %s41
      %s44 = sshll.u32 [#allocation9], 4
      %s45 = int_to_ptr.vmem [resolvable:$true] %s44
      %47 = dma.hbm_to_vmem [thread:$0]  %s2, 64, %s45, [#allocation10]
    $region13: #{tpu_custom_call.1} parent=1 // pred_fallthru
      _
    // Predicated region
    $region14: #{tpu_custom_call.1} parent=1 // pred_check
      _
    $region15: #{tpu_custom_call.1} parent=1 // pred_check_branch
      %49 = sbr.rel (0) target = $region17
    $region16: #{tpu_custom_call.1} parent=1 // pred_region
      %s51 = ssub.s32 512, 512
      %52 = vsyncadd [#allocation10], %s51
      %s53 = sshll.u32 [#allocation11], 4
      %s54 = int_to_ptr.vmem [resolvable:$true] %s53
      %59 = dma.hbm_to_vmem [thread:$0]  %s3, 512, %s54, [#allocation10], 64, 64, 4
    $region17: #{tpu_custom_call.1} parent=1 // pred_fallthru
      _
    // Predicated region
    $region18: #{tpu_custom_call.1} parent=1 // pred_check
      _
    $region19: #{tpu_custom_call.1} parent=1 // pred_check_branch
      %61 = sbr.rel (0) target = $region21
    $region20: #{tpu_custom_call.1} parent=1 // pred_region
      %s63 = ssub.s32 64, 64
      %64 = vsyncadd [#allocation13], %s63
      %s66 = sshll.u32 [#allocation12], 4
      %s67 = int_to_ptr.vmem [resolvable:$true] %s66
      %69 = dma.hbm_to_vmem [thread:$0]  %s4, 64, %s67, [#allocation13]
    $region21: #{tpu_custom_call.1} parent=1 // pred_fallthru
      _
    // Predicated region
    $region22: #{tpu_custom_call.1} parent=1 // pred_check
      _
    $region23: #{tpu_custom_call.1} parent=1 // pred_check_branch
      %71 = sbr.rel (0) target = $region25
    $region24: #{tpu_custom_call.1} parent=1 // pred_region
      %s73 = ssub.s32 8192, 8192
      %74 = vsyncadd [#allocation13], %s73
      %s75 = sshll.u32 [#allocation14], 4
      %s76 = int_to_ptr.vmem [resolvable:$true] %s75
      %81 = dma.hbm_to_vmem [thread:$0]  %s5, 8192, %s76, [#allocation13], 512, 512, 32
    $region25: #{tpu_custom_call.1} parent=1 // pred_fallthru
      _
    // Predicated region
    $region26: #{tpu_custom_call.1} parent=1 // pred_check
      _
    $region27: #{tpu_custom_call.1} parent=1 // pred_check_branch
      %83 = sbr.rel (0) target = $region29
    $region28: #{tpu_custom_call.1} parent=1 // pred_region
      %s85 = ssub.s32 512, 512
      %86 = vsyncadd [#allocation16], %s85
      %s88 = sshll.u32 [#allocation15], 4
      %s89 = int_to_ptr.vmem [resolvable:$true] %s88
      %91 = dma.hbm_to_vmem [thread:$0]  %s6, 512, %s89, [#allocation16]
    $region29: #{tpu_custom_call.1} parent=1 // pred_fallthru
      _
    // Predicated region
    $region30: #{tpu_custom_call.1} parent=1 // pred_check
      _
    $region31: #{tpu_custom_call.1} parent=1 // pred_check_branch
      %93 = sbr.rel (0) target = $region33
    $region32: #{tpu_custom_call.1} parent=1 // pred_region
      %s95 = ssub.s32 256, 256
      %96 = vsyncadd [#allocation16], %s95
      %s98 = sshll.u32 [#allocation17], 4
      %s99 = int_to_ptr.vmem [resolvable:$true] %s98
      %101 = dma.hbm_to_vmem [thread:$0]  %s8, 256, %s99, [#allocation16]
    $region33: #{tpu_custom_call.1} parent=1 // pred_fallthru
      _
    // Predicated region
    $region34: #{tpu_custom_call.1} parent=1 // pred_check
      _
    $region35: #{tpu_custom_call.1} parent=1 // pred_check_branch
      %103 = sbr.rel (0) target = $region37
    $region36: #{tpu_custom_call.1} parent=1 // pred_region
      %s105 = ssub.s32 128, 128
      %106 = vsyncadd [#allocation19], %s105
      %s108 = sshll.u32 [#allocation18], 4
      %s109 = int_to_ptr.vmem [resolvable:$true] %s108
      %111 = dma.hbm_to_vmem [thread:$0]  %s10, 128, %s109, [#allocation19]
    $region37: #{tpu_custom_call.1} parent=1 // pred_fallthru
      _
    // Predicated region
    $region38: #{tpu_custom_call.1} parent=1 // pred_check
      _
    $region39: #{tpu_custom_call.1} parent=1 // pred_check_branch
      %113 = sbr.rel (0) target = $region41
    $region40: #{tpu_custom_call.1} parent=1 // pred_region
      %s115 = ssub.s32 512, 512
      %116 = vsyncadd [#allocation19], %s115
      %s118 = sshll.u32 [#allocation20], 4
      %s119 = int_to_ptr.vmem [resolvable:$true] %s118
      %121 = dma.hbm_to_vmem [thread:$0]  %s12, 512, %s119, [#allocation19]
    $region41: #{tpu_custom_call.1} parent=1 // pred_fallthru
      _
    // Predicated region
    $region42: #{tpu_custom_call.1} parent=1 // pred_check
      _
    $region43: #{tpu_custom_call.1} parent=1 // pred_check_branch
      %123 = sbr.rel (0) target = $region45
    $region44: #{tpu_custom_call.1} parent=1 // pred_region
      %124 = dma.done [#allocation7], 512
    $region45: #{tpu_custom_call.1} parent=1 // pred_fallthru
      _
    // Predicated region
    $region46: #{tpu_custom_call.1} parent=1 // pred_check
      _
    $region47: #{tpu_custom_call.1} parent=1 // pred_check_branch
      %126 = sbr.rel (0) target = $region49
    $region48: #{tpu_custom_call.1} parent=1 // pred_region
      %127 = dma.done [#allocation10], 64
    $region49: #{tpu_custom_call.1} parent=1 // pred_fallthru
      _
    // Predicated region
    $region50: #{tpu_custom_call.1} parent=1 // pred_check
      _
    $region51: #{tpu_custom_call.1} parent=1 // pred_check_branch
      %129 = sbr.rel (0) target = $region53
    $region52: #{tpu_custom_call.1} parent=1 // pred_region
      %130 = dma.done [#allocation10], 512
    $region53: #{tpu_custom_call.1} parent=1 // pred_fallthru
      _
    // Predicated region
    $region54: #{tpu_custom_call.1} parent=1 // pred_check
      _
    $region55: #{tpu_custom_call.1} parent=1 // pred_check_branch
      %132 = sbr.rel (0) target = $region57
    $region56: #{tpu_custom_call.1} parent=1 // pred_region
      %133 = dma.done [#allocation13], 64
    $region57: #{tpu_custom_call.1} parent=1 // pred_fallthru
      _
    // Predicated region
    $region58: #{tpu_custom_call.1} parent=1 // pred_check
      _
    $region59: #{tpu_custom_call.1} parent=1 // pred_check_branch
      %135 = sbr.rel (0) target = $region61
    $region60: #{tpu_custom_call.1} parent=1 // pred_region
      %136 = dma.done [#allocation13], 8192
    $region61: #{tpu_custom_call.1} parent=1 // pred_fallthru
      _
    // Predicated region
    $region62: #{tpu_custom_call.1} parent=1 // pred_check
      _
    $region63: #{tpu_custom_call.1} parent=1 // pred_check_branch
      %138 = sbr.rel (0) target = $region65
    $region64: #{tpu_custom_call.1} parent=1 // pred_region
      %139 = dma.done [#allocation16], 512
    $region65: #{tpu_custom_call.1} parent=1 // pred_fallthru
      _
    // Predicated region
    $region66: #{tpu_custom_call.1} parent=1 // pred_check
      _
    $region67: #{tpu_custom_call.1} parent=1 // pred_check_branch
      %141 = sbr.rel (0) target = $region69
    $region68: #{tpu_custom_call.1} parent=1 // pred_region
      %142 = dma.done [#allocation16], 256
    $region69: #{tpu_custom_call.1} parent=1 // pred_fallthru
      _
    // Predicated region
    $region70: #{tpu_custom_call.1} parent=1 // pred_check
      _
    $region71: #{tpu_custom_call.1} parent=1 // pred_check_branch
      %144 = sbr.rel (0) target = $region73
    $region72: #{tpu_custom_call.1} parent=1 // pred_region
      %145 = dma.done [#allocation19], 128
    $region73: #{tpu_custom_call.1} parent=1 // pred_fallthru
      _
    // Predicated region
    $region74: #{tpu_custom_call.1} parent=1 // pred_check
      _
    $region75: #{tpu_custom_call.1} parent=1 // pred_check_branch
      %147 = sbr.rel (0) target = $region77
    $region76: #{tpu_custom_call.1} parent=1 // pred_region
      %148 = dma.done [#allocation19], 512
    $region77: #{tpu_custom_call.1} parent=1 // pred_fallthru
      _
    %s150 = sshll.u32 1, 14
    %s151 = sxor.u32 4294967295, %s150
    %s153 = sld [smem:[#allocation0]]
    %s154 = sadd.s32 2, %s153
    %s156 = sshll.u32 7, 26
    %s157 = sxor.u32 4294967295, %s156
    %s158 = sand.u32 0, %s157
    %s159 = sshll.u32 %s154, 26
    %s160 = sor.u32 %s158, %s159
    %s161 = sshll.u32 [#allocation2], 4
    %s162 = int_to_ptr.vmem [resolvable:$true] %s161
    %165 = sst [smem:[#allocation23]] 512
    %s166 = scalar_lea.smem [#allocation23], 1
    %167 = sst [smem:[%s166]] 512
    %s168 = scalar_lea.smem [#allocation23], 2
    %169 = sst [smem:[%s168]] 4
    %s170 = scalar_lea.smem [#allocation23], 3
    %171 = sst [smem:[%s170]] 64
    %s172 = scalar_lea.smem [#allocation23], 4
    %173 = sst [smem:[%s172]] 128
    %s174 = scalar_lea.smem [#allocation23], 5
    %175 = sst [smem:[%s174]] 2
    %s176 = scalar_lea.smem [#allocation23], 6
    %177 = sst [smem:[%s176]] 256
    %s178 = scalar_lea.smem [#allocation23], 7
    %179 = sst [smem:[%s178]] 64
    %s180 = scalar_lea.smem [#allocation23], 8
    %181 = sst [smem:[%s180]] 4
    %183 = dma.general %s7, 32768, %s162, [#allocation5], [#allocation22], [#allocation23], %s160, 0
    %s184 = scalar_lea.sflag [#allocation5], 1
    %s186 = sshll.u32 1, 14
    %s187 = sxor.u32 4294967295, %s186
    %s189 = sadd.s32 2, %s153
    %s191 = sshll.u32 7, 26
    %s192 = sxor.u32 4294967295, %s191
    %s193 = sand.u32 0, %s192
    %s194 = sshll.u32 %s189, 26
    %s195 = sor.u32 %s193, %s194
    %s196 = sshll.u32 [#allocation3], 4
    %s197 = int_to_ptr.vmem [resolvable:$true] %s196
    %200 = sst [smem:[#allocation25]] 256
    %s201 = scalar_lea.smem [#allocation25], 1
    %202 = sst [smem:[%s201]] 256
    %s203 = scalar_lea.smem [#allocation25], 2
    %204 = sst [smem:[%s203]] 2
    %s205 = scalar_lea.smem [#allocation25], 3
    %206 = sst [smem:[%s205]] 64
    %s207 = scalar_lea.smem [#allocation25], 4
    %208 = sst [smem:[%s207]] 128
    %s209 = scalar_lea.smem [#allocation25], 5
    %210 = sst [smem:[%s209]] 2
    %s211 = scalar_lea.smem [#allocation25], 6
    %212 = sst [smem:[%s211]] 128
    %s213 = scalar_lea.smem [#allocation25], 7
    %214 = sst [smem:[%s213]] 64
    %s215 = scalar_lea.smem [#allocation25], 8
    %216 = sst [smem:[%s215]] 4
    %218 = dma.general %s9, 8192, %s197, %s184, [#allocation24], [#allocation25], %s195, 0
    %s219 = scalar_lea.sflag [#allocation5], 2
    %s221 = sshll.u32 1, 14
    %s222 = sxor.u32 4294967295, %s221
    %s224 = sadd.s32 2, %s153
    %s226 = sshll.u32 7, 26
    %s227 = sxor.u32 4294967295, %s226
    %s228 = sand.u32 0, %s227
    %s229 = sshll.u32 %s224, 26
    %s230 = sor.u32 %s228, %s229
    %s231 = sshll.u32 [#allocation4], 4
    %s232 = int_to_ptr.vmem [resolvable:$true] %s231
    %235 = sst [smem:[#allocation27]] 4096
    %s236 = scalar_lea.smem [#allocation27], 1
    %237 = sst [smem:[%s236]] 4096
    %s238 = scalar_lea.smem [#allocation27], 2
    %239 = sst [smem:[%s238]] 32
    %s240 = scalar_lea.smem [#allocation27], 3
    %241 = sst [smem:[%s240]] 64
    %s242 = scalar_lea.smem [#allocation27], 4
    %243 = sst [smem:[%s242]] 128
    %s244 = scalar_lea.smem [#allocation27], 5
    %245 = sst [smem:[%s244]] 2
    %s246 = scalar_lea.smem [#allocation27], 6
    %247 = sst [smem:[%s246]] 2048
    %s248 = scalar_lea.smem [#allocation27], 7
    %249 = sst [smem:[%s248]] 64
    %s250 = scalar_lea.smem [#allocation27], 8
    %251 = sst [smem:[%s250]] 4
    %253 = dma.general %s11, 65536, %s232, %s219, [#allocation26], [#allocation27], %s230, 0
    %v254 = vld [vmem:[%s0] sm:$0xff]
    %v255 = vld [vmem:[%s0 + $0x8] sm:$0xff]
    %v256 = vld [vmem:[%s0 + $0x10] sm:$0xff]
    %v257 = vld [vmem:[%s0 + $0x18] sm:$0xff]
    %v258 = vld [vmem:[%s0 + $0x20] sm:$0xff]
    %v259 = vld [vmem:[%s0 + $0x28] sm:$0xff]
    %v260 = vld [vmem:[%s0 + $0x30] sm:$0xff]
    %v261 = vld [vmem:[%s0 + $0x38] sm:$0xff]
    %v262 = vld [vmem:[%s0 + $0x40] sm:$0xff]
    %v263 = vld [vmem:[%s0 + $0x48] sm:$0xff]
    %v264 = vld [vmem:[%s0 + $0x50] sm:$0xff]
    %v265 = vld [vmem:[%s0 + $0x58] sm:$0xff]
    %v266 = vld [vmem:[%s0 + $0x60] sm:$0xff]
    %v267 = vld [vmem:[%s0 + $0x68] sm:$0xff]
    %v268 = vld [vmem:[%s0 + $0x70] sm:$0xff]
    %v269 = vld [vmem:[%s0 + $0x78] sm:$0xff]
    %v270 = vld [vmem:[%s0 + $0x80] sm:$0xff]
    %v271 = vld [vmem:[%s0 + $0x88] sm:$0xff]
    %v272 = vld [vmem:[%s0 + $0x90] sm:$0xff]
    %v273 = vld [vmem:[%s0 + $0x98] sm:$0xff]
    %v274 = vld [vmem:[%s0 + $0xa0] sm:$0xff]
    %v275 = vld [vmem:[%s0 + $0xa8] sm:$0xff]
    %v276 = vld [vmem:[%s0 + $0xb0] sm:$0xff]
    %v277 = vld [vmem:[%s0 + $0xb8] sm:$0xff]
    %v278 = vld [vmem:[%s0 + $0xc0] sm:$0xff]
    %v279 = vld [vmem:[%s0 + $0xc8] sm:$0xff]
    %v280 = vld [vmem:[%s0 + $0xd0] sm:$0xff]
    %v281 = vld [vmem:[%s0 + $0xd8] sm:$0xff]
    %v282 = vld [vmem:[%s0 + $0xe0] sm:$0xff]
    %v283 = vld [vmem:[%s0 + $0xe8] sm:$0xff]
    %v284 = vld [vmem:[%s0 + $0xf0] sm:$0xff]
    %v285 = vld [vmem:[%s0 + $0xf8] sm:$0xff]
    %v286 = vld [vmem:[#allocation6] sm:$0xf]
    %v287 = vld [vmem:[#allocation6 + $0x4] sm:$0xf]
    %v288 = vld [vmem:[#allocation6 + $0x8] sm:$0xf]
    %v289 = vld [vmem:[#allocation6 + $0xc] sm:$0xf]
    %v290 = vld [vmem:[#allocation6 + $0x10] sm:$0xf]
    %v291 = vld [vmem:[#allocation6 + $0x14] sm:$0xf]
    %v292 = vld [vmem:[#allocation6 + $0x18] sm:$0xf]
    %v293 = vld [vmem:[#allocation6 + $0x1c] sm:$0xf]
    %v294 = vunpack.c.l.bf16 %v286
    %v295 = vunpack.c.l.bf16 %v287
    %v296 = vunpack.c.l.bf16 %v288
    %v297 = vunpack.c.l.bf16 %v289
    %v298 = vunpack.c.l.bf16 %v290
    %v299 = vunpack.c.l.bf16 %v291
    %v300 = vunpack.c.l.bf16 %v292
    %v301 = vunpack.c.l.bf16 %v293
    %v302 = vld [vmem:[#allocation9] sm:$0x7]
    %v303 = vlaneseq
    %v304 = vshrl.u32 %v303, 7
    %v305 = vsub.s32 0, %v304
    %v306 = vrot.slane %v302, %v305
    %vm307 = vcmask 523264
    %v309 = vsel %vm307, %v254, 0
    %v312 = vsel %vm307, %v255, 0
    %v315 = vsel %vm307, %v256, 0
    %v318 = vsel %vm307, %v257, 0
    %v321 = vsel %vm307, %v258, 0
    %v324 = vsel %vm307, %v259, 0
    %v327 = vsel %vm307, %v260, 0
    %v330 = vsel %vm307, %v261, 0
    %v333 = vsel %vm307, %v262, 0
    %v336 = vsel %vm307, %v263, 0
    %v339 = vsel %vm307, %v264, 0
    %v342 = vsel %vm307, %v265, 0
    %v345 = vsel %vm307, %v266, 0
    %v348 = vsel %vm307, %v267, 0
    %v351 = vsel %vm307, %v268, 0
    %v354 = vsel %vm307, %v269, 0
    %v357 = vsel %vm307, %v270, 0
    %v360 = vsel %vm307, %v271, 0
    %v363 = vsel %vm307, %v272, 0
    %v366 = vsel %vm307, %v273, 0
    %v369 = vsel %vm307, %v274, 0
    %v372 = vsel %vm307, %v275, 0
    %v375 = vsel %vm307, %v276, 0
    %v378 = vsel %vm307, %v277, 0
    %v381 = vsel %vm307, %v278, 0
    %v384 = vsel %vm307, %v279, 0
    %v387 = vsel %vm307, %v280, 0
    %v390 = vsel %vm307, %v281, 0
    %v393 = vsel %vm307, %v282, 0
    %v396 = vsel %vm307, %v283, 0
    %v399 = vsel %vm307, %v284, 0
    %v402 = vsel %vm307, %v285, 0
    %404 = vmatprep.subr.mxu0 0.0
    %405 = vmatpush1.msra.mxu0 %v294
    %406 = vmatprep.subr.mxu0 0.0
    %407 = vmatpush1.msra.mxu0 %v295
    %408 = vmatprep.subr.mxu0 0.0
    %409 = vmatpush1.msra.mxu0 %v296
    %410 = vmatprep.subr.mxu0 0.0
    %411 = vmatpush1.msra.mxu0 %v297
    %412 = vmatprep.subr.mxu0 0.0
    %413 = vmatpush1.msra.mxu0 %v298
    %414 = vmatprep.subr.mxu0 0.0
    %415 = vmatpush1.msra.mxu0 %v299
    %416 = vmatprep.subr.mxu0 0.0
    %417 = vmatpush1.msra.mxu0 %v300
    %418 = vmatprep.subr.mxu0 0.0
    %419 = vmatpush1.msra.mxu0 %v301
    %420 = vmatprep.subr.mxu0 0.0
    %421 = vmatpush1.msra.mxu0 0.0
    %422 = vmatprep.subr.mxu0 0.0
    %423 = vmatpush1.msra.mxu0 0.0
    %424 = vmatprep.subr.mxu0 0.0
    %425 = vmatpush1.msra.mxu0 0.0
    %426 = vmatprep.subr.mxu0 0.0
    %427 = vmatpush1.msra.mxu0 0.0
    %428 = vmatprep.subr.mxu0 0.0
    %429 = vmatpush1.msra.mxu0 0.0
    %430 = vmatprep.subr.mxu0 0.0
    %431 = vmatpush1.msra.mxu0 0.0
    %432 = vmatprep.subr.mxu0 0.0
    %433 = vmatpush1.msra.mxu0 0.0
    %434 = vmatprep.subr.mxu0 0.0
    %435 = vmatpush1.msra.mxu0 0.0
    %436 = vmatprep.subr.mxu0 0.0
    %437 = vmatpush1.msra.mxu0 0.0
    %438 = vmatprep.subr.mxu0 0.0
    %439 = vmatpush1.msra.mxu0 0.0
    %440 = vmatprep.subr.mxu0 0.0
    %441 = vmatpush1.msra.mxu0 0.0
    %442 = vmatprep.subr.mxu0 0.0
    %443 = vmatpush1.msra.mxu0 0.0
    %444 = vmatprep.subr.mxu0 0.0
    %445 = vmatpush1.msra.mxu0 0.0
    %446 = vmatprep.subr.mxu0 0.0
    %447 = vmatpush1.msra.mxu0 0.0
    %448 = vmatprep.subr.mxu0 0.0
    %449 = vmatpush1.msra.mxu0 0.0
    %450 = vmatprep.subr.mxu0 0.0
    %451 = vmatpush1.msra.mxu0 0.0
    %452 = vmatprep.subr.mxu0 0.0
    %453 = vmatpush1.msra.mxu0 0.0
    %454 = vmatprep.subr.mxu0 0.0
    %455 = vmatpush1.msra.mxu0 0.0
    %456 = vmatprep.subr.mxu0 0.0
    %457 = vmatpush1.msra.mxu0 0.0
    %458 = vmatprep.subr.mxu0 0.0
    %459 = vmatpush1.msra.mxu0 0.0
    %460 = vmatprep.subr.mxu0 0.0
    %461 = vmatpush1.msra.mxu0 0.0
    %462 = vmatprep.subr.mxu0 0.0
    %463 = vmatpush1.msra.mxu0 0.0
    %464 = vmatprep.subr.mxu0 0.0
    %465 = vmatpush1.msra.mxu0 0.0
    %466 = vmatprep.subr.mxu0 0.0
    %467 = vmatpush1.msra.mxu0 0.0
    %468 = vmatprep.mubr.f32.mxu0 0.0
    %469 = vmatmul.mubr.f32.gmra.mrb[0].mxu0 %v309
    %v470 = vpop.f32.mrb[0].mxu0
    %v471 = vadd.f32 %v306, %v470
    %v472 = vpop.f32.mrb[0].mxu0
    %473 = vmatprep.mubr.f32.mxu0 0.0
    %474 = vmatmul.mubr.f32.gmra.mrb[0].mxu0 %v312
    %v475 = vpop.f32.mrb[0].mxu0
    %v476 = vadd.f32 %v306, %v475
    %v477 = vpop.f32.mrb[0].mxu0
    %478 = vmatprep.mubr.f32.mxu0 0.0
    %479 = vmatmul.mubr.f32.gmra.mrb[0].mxu0 %v315
    %v480 = vpop.f32.mrb[0].mxu0
    %v481 = vadd.f32 %v306, %v480
    %v482 = vpop.f32.mrb[0].mxu0
    %483 = vmatprep.mubr.f32.mxu0 0.0
    %484 = vmatmul.mubr.f32.gmra.mrb[0].mxu0 %v318
    %v485 = vpop.f32.mrb[0].mxu0
    %v486 = vadd.f32 %v306, %v485
    %v487 = vpop.f32.mrb[0].mxu0
    %488 = vmatprep.mubr.f32.mxu0 0.0
    %489 = vmatmul.mubr.f32.gmra.mrb[0].mxu0 %v321
    %v490 = vpop.f32.mrb[0].mxu0
    %v491 = vadd.f32 %v306, %v490
    %v492 = vpop.f32.mrb[0].mxu0
    %493 = vmatprep.mubr.f32.mxu0 0.0
    %494 = vmatmul.mubr.f32.gmra.mrb[0].mxu0 %v324
    %v495 = vpop.f32.mrb[0].mxu0
    %v496 = vadd.f32 %v306, %v495
    %v497 = vpop.f32.mrb[0].mxu0
    %498 = vmatprep.mubr.f32.mxu0 0.0
    %499 = vmatmul.mubr.f32.gmra.mrb[0].mxu0 %v327
    %v500 = vpop.f32.mrb[0].mxu0
    %v501 = vadd.f32 %v306, %v500
    %v502 = vpop.f32.mrb[0].mxu0
    %503 = vmatprep.mubr.f32.mxu0 0.0
    %504 = vmatmul.mubr.f32.gmra.mrb[0].mxu0 %v330
    %v505 = vpop.f32.mrb[0].mxu0
    %v506 = vadd.f32 %v306, %v505
    %v507 = vpop.f32.mrb[0].mxu0
    %508 = vmatprep.mubr.f32.mxu0 0.0
    %509 = vmatmul.mubr.f32.gmra.mrb[0].mxu0 %v333
    %v510 = vpop.f32.mrb[0].mxu0
    %v511 = vadd.f32 %v306, %v510
    %v512 = vpop.f32.mrb[0].mxu0
    %513 = vmatprep.mubr.f32.mxu0 0.0
    %514 = vmatmul.mubr.f32.gmra.mrb[0].mxu0 %v336
    %v515 = vpop.f32.mrb[0].mxu0
    %v516 = vadd.f32 %v306, %v515
    %v517 = vpop.f32.mrb[0].mxu0
    %518 = vmatprep.mubr.f32.mxu0 0.0
    %519 = vmatmul.mubr.f32.gmra.mrb[0].mxu0 %v339
    %v520 = vpop.f32.mrb[0].mxu0
    %v521 = vadd.f32 %v306, %v520
    %v522 = vpop.f32.mrb[0].mxu0
    %523 = vmatprep.mubr.f32.mxu0 0.0
    %524 = vmatmul.mubr.f32.gmra.mrb[0].mxu0 %v342
    %v525 = vpop.f32.mrb[0].mxu0
    %v526 = vadd.f32 %v306, %v525
    %v527 = vpop.f32.mrb[0].mxu0
    %528 = vmatprep.mubr.f32.mxu0 0.0
    %529 = vmatmul.mubr.f32.gmra.mrb[0].mxu0 %v345
    %v530 = vpop.f32.mrb[0].mxu0
    %v531 = vadd.f32 %v306, %v530
    %v532 = vpop.f32.mrb[0].mxu0
    %533 = vmatprep.mubr.f32.mxu0 0.0
    %534 = vmatmul.mubr.f32.gmra.mrb[0].mxu0 %v348
    %v535 = vpop.f32.mrb[0].mxu0
    %v536 = vadd.f32 %v306, %v535
    %v537 = vpop.f32.mrb[0].mxu0
    %538 = vmatprep.mubr.f32.mxu0 0.0
    %539 = vmatmul.mubr.f32.gmra.mrb[0].mxu0 %v351
    %v540 = vpop.f32.mrb[0].mxu0
    %v541 = vadd.f32 %v306, %v540
    %v542 = vpop.f32.mrb[0].mxu0
    %543 = vmatprep.mubr.f32.mxu0 0.0
    %544 = vmatmul.mubr.f32.gmra.mrb[0].mxu0 %v354
    %v545 = vpop.f32.mrb[0].mxu0
    %v546 = vadd.f32 %v306, %v545
    %v547 = vpop.f32.mrb[0].mxu0
    %548 = vmatprep.mubr.f32.mxu0 0.0
    %549 = vmatmul.mubr.f32.gmra.mrb[0].mxu0 %v357
    %v550 = vpop.f32.mrb[0].mxu0
    %v551 = vadd.f32 %v306, %v550
    %v552 = vpop.f32.mrb[0].mxu0
    %553 = vmatprep.mubr.f32.mxu0 0.0
    %554 = vmatmul.mubr.f32.gmra.mrb[0].mxu0 %v360
    %v555 = vpop.f32.mrb[0].mxu0
    %v556 = vadd.f32 %v306, %v555
    %v557 = vpop.f32.mrb[0].mxu0
    %558 = vmatprep.mubr.f32.mxu0 0.0
    %559 = vmatmul.mubr.f32.gmra.mrb[0].mxu0 %v363
    %v560 = vpop.f32.mrb[0].mxu0
    %v561 = vadd.f32 %v306, %v560
    %v562 = vpop.f32.mrb[0].mxu0
    %563 = vmatprep.mubr.f32.mxu0 0.0
    %564 = vmatmul.mubr.f32.gmra.mrb[0].mxu0 %v366
    %v565 = vpop.f32.mrb[0].mxu0
    %v566 = vadd.f32 %v306, %v565
    %v567 = vpop.f32.mrb[0].mxu0
    %568 = vmatprep.mubr.f32.mxu0 0.0
    %569 = vmatmul.mubr.f32.gmra.mrb[0].mxu0 %v369
    %v570 = vpop.f32.mrb[0].mxu0
    %v571 = vadd.f32 %v306, %v570
    %v572 = vpop.f32.mrb[0].mxu0
    %573 = vmatprep.mubr.f32.mxu0 0.0
    %574 = vmatmul.mubr.f32.gmra.mrb[0].mxu0 %v372
    %v575 = vpop.f32.mrb[0].mxu0
    %v576 = vadd.f32 %v306, %v575
    %v577 = vpop.f32.mrb[0].mxu0
    %578 = vmatprep.mubr.f32.mxu0 0.0
    %579 = vmatmul.mubr.f32.gmra.mrb[0].mxu0 %v375
    %v580 = vpop.f32.mrb[0].mxu0
    %v581 = vadd.f32 %v306, %v580
    %v582 = vpop.f32.mrb[0].mxu0
    %583 = vmatprep.mubr.f32.mxu0 0.0
    %584 = vmatmul.mubr.f32.gmra.mrb[0].mxu0 %v378
    %v585 = vpop.f32.mrb[0].mxu0
    %v586 = vadd.f32 %v306, %v585
    %v587 = vpop.f32.mrb[0].mxu0
    %588 = vmatprep.mubr.f32.mxu0 0.0
    %589 = vmatmul.mubr.f32.gmra.mrb[0].mxu0 %v381
    %v590 = vpop.f32.mrb[0].mxu0
    %v591 = vadd.f32 %v306, %v590
    %v592 = vpop.f32.mrb[0].mxu0
    %593 = vmatprep.mubr.f32.mxu0 0.0
    %594 = vmatmul.mubr.f32.gmra.mrb[0].mxu0 %v384
    %v595 = vpop.f32.mrb[0].mxu0
    %v596 = vadd.f32 %v306, %v595
    %v597 = vpop.f32.mrb[0].mxu0
    %598 = vmatprep.mubr.f32.mxu0 0.0
    %599 = vmatmul.mubr.f32.gmra.mrb[0].mxu0 %v387
    %v600 = vpop.f32.mrb[0].mxu0
    %v601 = vadd.f32 %v306, %v600
    %v602 = vpop.f32.mrb[0].mxu0
    %603 = vmatprep.mubr.f32.mxu0 0.0
    %604 = vmatmul.mubr.f32.gmra.mrb[0].mxu0 %v390
    %v605 = vpop.f32.mrb[0].mxu0
    %v606 = vadd.f32 %v306, %v605
    %v607 = vpop.f32.mrb[0].mxu0
    %608 = vmatprep.mubr.f32.mxu0 0.0
    %609 = vmatmul.mubr.f32.gmra.mrb[0].mxu0 %v393
    %v610 = vpop.f32.mrb[0].mxu0
    %v611 = vadd.f32 %v306, %v610
    %v612 = vpop.f32.mrb[0].mxu0
    %613 = vmatprep.mubr.f32.mxu0 0.0
    %614 = vmatmul.mubr.f32.gmra.mrb[0].mxu0 %v396
    %v615 = vpop.f32.mrb[0].mxu0
    %v616 = vadd.f32 %v306, %v615
    %v617 = vpop.f32.mrb[0].mxu0
    %618 = vmatprep.mubr.f32.mxu0 0.0
    %619 = vmatmul.mubr.f32.gmra.mrb[0].mxu0 %v399
    %v620 = vpop.f32.mrb[0].mxu0
    %v621 = vadd.f32 %v306, %v620
    %v622 = vpop.f32.mrb[0].mxu0
    %623 = vmatprep.mubr.f32.mxu0 0.0
    %624 = vmatmul.mubr.f32.gmra.mrb[0].mxu0 %v402
    %v625 = vpop.f32.mrb[0].mxu0
    %v626 = vadd.f32 %v306, %v625
    %v627 = vpop.f32.mrb[0].mxu0
    %628 = vdwg.mxu0
    %v629 = vmax.f32 %v471, 0.0
    %v630 = vmax.f32 %v476, 0.0
    %v631 = vmax.f32 %v481, 0.0
    %v632 = vmax.f32 %v486, 0.0
    %v633 = vmax.f32 %v491, 0.0
    %v634 = vmax.f32 %v496, 0.0
    %v635 = vmax.f32 %v501, 0.0
    %v636 = vmax.f32 %v506, 0.0
    %v637 = vmax.f32 %v511, 0.0
    %v638 = vmax.f32 %v516, 0.0
    %v639 = vmax.f32 %v521, 0.0
    %v640 = vmax.f32 %v526, 0.0
    %v641 = vmax.f32 %v531, 0.0
    %v642 = vmax.f32 %v536, 0.0
    %v643 = vmax.f32 %v541, 0.0
    %v644 = vmax.f32 %v546, 0.0
    %v645 = vmax.f32 %v551, 0.0
    %v646 = vmax.f32 %v556, 0.0
    %v647 = vmax.f32 %v561, 0.0
    %v648 = vmax.f32 %v566, 0.0
    %v649 = vmax.f32 %v571, 0.0
    %v650 = vmax.f32 %v576, 0.0
    %v651 = vmax.f32 %v581, 0.0
    %v652 = vmax.f32 %v586, 0.0
    %v653 = vmax.f32 %v591, 0.0
    %v654 = vmax.f32 %v596, 0.0
    %v655 = vmax.f32 %v601, 0.0
    %v656 = vmax.f32 %v606, 0.0
    %v657 = vmax.f32 %v611, 0.0
    %v658 = vmax.f32 %v616, 0.0
    %v659 = vmax.f32 %v621, 0.0
    %v660 = vmax.f32 %v626, 0.0
    %v661 = vsel %vm307, %v629, 0.0
    %v662 = vsel %vm307, %v630, 0.0
    %v663 = vadd.f32 %v661, %v662
    %v664 = vsel %vm307, %v631, 0.0
    %v665 = vadd.f32 %v663, %v664
    %v666 = vsel %vm307, %v632, 0.0
    %v667 = vadd.f32 %v665, %v666
    %v668 = vsel %vm307, %v633, 0.0
    %v669 = vadd.f32 %v667, %v668
    %v670 = vsel %vm307, %v634, 0.0
    %v671 = vadd.f32 %v669, %v670
    %v672 = vsel %vm307, %v635, 0.0
    %v673 = vadd.f32 %v671, %v672
    %v674 = vsel %vm307, %v636, 0.0
    %v675 = vadd.f32 %v673, %v674
    %v676 = vsel %vm307, %v637, 0.0
    %v677 = vadd.f32 %v675, %v676
    %v678 = vsel %vm307, %v638, 0.0
    %v679 = vadd.f32 %v677, %v678
    %v680 = vsel %vm307, %v639, 0.0
    %v681 = vadd.f32 %v679, %v680
    %v682 = vsel %vm307, %v640, 0.0
    %v683 = vadd.f32 %v681, %v682
    %v684 = vsel %vm307, %v641, 0.0
    %v685 = vadd.f32 %v683, %v684
    %v686 = vsel %vm307, %v642, 0.0
    %v687 = vadd.f32 %v685, %v686
    %v688 = vsel %vm307, %v643, 0.0
    %v689 = vadd.f32 %v687, %v688
    %v690 = vsel %vm307, %v644, 0.0
    %v691 = vadd.f32 %v689, %v690
    %v692 = vsel %vm307, %v645, 0.0
    %v693 = vadd.f32 %v691, %v692
    %v694 = vsel %vm307, %v646, 0.0
    %v695 = vadd.f32 %v693, %v694
    %v696 = vsel %vm307, %v647, 0.0
    %v697 = vadd.f32 %v695, %v696
    %v698 = vsel %vm307, %v648, 0.0
    %v699 = vadd.f32 %v697, %v698
    %v700 = vsel %vm307, %v649, 0.0
    %v701 = vadd.f32 %v699, %v700
    %v702 = vsel %vm307, %v650, 0.0
    %v703 = vadd.f32 %v701, %v702
    %v704 = vsel %vm307, %v651, 0.0
    %v705 = vadd.f32 %v703, %v704
    %v706 = vsel %vm307, %v652, 0.0
    %v707 = vadd.f32 %v705, %v706
    %v708 = vsel %vm307, %v653, 0.0
    %v709 = vadd.f32 %v707, %v708
    %v710 = vsel %vm307, %v654, 0.0
    %v711 = vadd.f32 %v709, %v710
    %v712 = vsel %vm307, %v655, 0.0
    %v713 = vadd.f32 %v711, %v712
    %v714 = vsel %vm307, %v656, 0.0
    %v715 = vadd.f32 %v713, %v714
    %v716 = vsel %vm307, %v657, 0.0
    %v717 = vadd.f32 %v715, %v716
    %v718 = vsel %vm307, %v658, 0.0
    %v719 = vadd.f32 %v717, %v718
    %v720 = vsel %vm307, %v659, 0.0
    %v721 = vadd.f32 %v719, %v720
    %v722 = vsel %vm307, %v660, 0.0
    %v723 = vadd.f32 %v721, %v722
    %v724 = vrot.slane %v723, 4
    %v725 = vadd.f32 %v723, %v724
    %v726 = vrot.slane %v725, 2
    %v727 = vadd.f32 %v725, %v726
    %v728 = vrot.slane %v727, 1
    %v729 = vadd.f32 %v727, %v728
    %v730 = vmul.f32 %v729, 0.00390625
    %v731 = vmul.f32 %v629, %v629
    %v732 = vmul.f32 %v630, %v630
    %v733 = vmul.f32 %v631, %v631
    %v734 = vmul.f32 %v632, %v632
    %v735 = vmul.f32 %v633, %v633
    %v736 = vmul.f32 %v634, %v634
    %v737 = vmul.f32 %v635, %v635
    %v738 = vmul.f32 %v636, %v636
    %v739 = vmul.f32 %v637, %v637
    %v740 = vmul.f32 %v638, %v638
    %v741 = vmul.f32 %v639, %v639
    %v742 = vmul.f32 %v640, %v640
    %v743 = vmul.f32 %v641, %v641
    %v744 = vmul.f32 %v642, %v642
    %v745 = vmul.f32 %v643, %v643
    %v746 = vmul.f32 %v644, %v644
    %v747 = vmul.f32 %v645, %v645
    %v748 = vmul.f32 %v646, %v646
    %v749 = vmul.f32 %v647, %v647
    %v750 = vmul.f32 %v648, %v648
    %v751 = vmul.f32 %v649, %v649
    %v752 = vmul.f32 %v650, %v650
    %v753 = vmul.f32 %v651, %v651
    %v754 = vmul.f32 %v652, %v652
    %v755 = vmul.f32 %v653, %v653
    %v756 = vmul.f32 %v654, %v654
    %v757 = vmul.f32 %v655, %v655
    %v758 = vmul.f32 %v656, %v656
    %v759 = vmul.f32 %v657, %v657
    %v760 = vmul.f32 %v658, %v658
    %v761 = vmul.f32 %v659, %v659
    %v762 = vmul.f32 %v660, %v660
    %v763 = vsel %vm307, %v731, 0.0
    %v764 = vsel %vm307, %v732, 0.0
    %v765 = vadd.f32 %v763, %v764
    %v766 = vsel %vm307, %v733, 0.0
    %v767 = vadd.f32 %v765, %v766
    %v768 = vsel %vm307, %v734, 0.0
    %v769 = vadd.f32 %v767, %v768
    %v770 = vsel %vm307, %v735, 0.0
    %v771 = vadd.f32 %v769, %v770
    %v772 = vsel %vm307, %v736, 0.0
    %v773 = vadd.f32 %v771, %v772
    %v774 = vsel %vm307, %v737, 0.0
    %v775 = vadd.f32 %v773, %v774
    %v776 = vsel %vm307, %v738, 0.0
    %v777 = vadd.f32 %v775, %v776
    %v778 = vsel %vm307, %v739, 0.0
    %v779 = vadd.f32 %v777, %v778
    %v780 = vsel %vm307, %v740, 0.0
    %v781 = vadd.f32 %v779, %v780
    %v782 = vsel %vm307, %v741, 0.0
    %v783 = vadd.f32 %v781, %v782
    %v784 = vsel %vm307, %v742, 0.0
    %v785 = vadd.f32 %v783, %v784
    %v786 = vsel %vm307, %v743, 0.0
    %v787 = vadd.f32 %v785, %v786
    %v788 = vsel %vm307, %v744, 0.0
    %v789 = vadd.f32 %v787, %v788
    %v790 = vsel %vm307, %v745, 0.0
    %v791 = vadd.f32 %v789, %v790
    %v792 = vsel %vm307, %v746, 0.0
    %v793 = vadd.f32 %v791, %v792
    %v794 = vsel %vm307, %v747, 0.0
    %v795 = vadd.f32 %v793, %v794
    %v796 = vsel %vm307, %v748, 0.0
    %v797 = vadd.f32 %v795, %v796
    %v798 = vsel %vm307, %v749, 0.0
    %v799 = vadd.f32 %v797, %v798
    %v800 = vsel %vm307, %v750, 0.0
    %v801 = vadd.f32 %v799, %v800
    %v802 = vsel %vm307, %v751, 0.0
    %v803 = vadd.f32 %v801, %v802
    %v804 = vsel %vm307, %v752, 0.0
    %v805 = vadd.f32 %v803, %v804
    %v806 = vsel %vm307, %v753, 0.0
    %v807 = vadd.f32 %v805, %v806
    %v808 = vsel %vm307, %v754, 0.0
    %v809 = vadd.f32 %v807, %v808
    %v810 = vsel %vm307, %v755, 0.0
    %v811 = vadd.f32 %v809, %v810
    %v812 = vsel %vm307, %v756, 0.0
    %v813 = vadd.f32 %v811, %v812
    %v814 = vsel %vm307, %v757, 0.0
    %v815 = vadd.f32 %v813, %v814
    %v816 = vsel %vm307, %v758, 0.0
    %v817 = vadd.f32 %v815, %v816
    %v818 = vsel %vm307, %v759, 0.0
    %v819 = vadd.f32 %v817, %v818
    %v820 = vsel %vm307, %v760, 0.0
    %v821 = vadd.f32 %v819, %v820
    %v822 = vsel %vm307, %v761, 0.0
    %v823 = vadd.f32 %v821, %v822
    %v824 = vsel %vm307, %v762, 0.0
    %v825 = vadd.f32 %v823, %v824
    %v826 = vrot.slane %v825, 4
    %v827 = vadd.f32 %v825, %v826
    %v828 = vrot.slane %v827, 2
    %v829 = vadd.f32 %v827, %v828
    %v830 = vrot.slane %v829, 1
    %v831 = vadd.f32 %v829, %v830
    %v832 = vmul.f32 %v831, 0.00390625
    %v833 = vmul.f32 %v730, %v730
    %v834 = vsub.f32 %v832, %v833
    %v835 = vadd.f32 %v834, 1e-05
    %v836 = vrsqrt.pop %v835
    %v837 = vmul.f32 %v302, %v836
    %v838 = vmul.f32 %v730, %v837
    %v840 = vrot.slane %v838, 7
    %v842 = vsub.f32 %v302, %v840
    %v843 = vlaneseq
    %v844 = vshrl.u32 %v843, 7
    %v845 = vsub.s32 1, %v844
    %v846 = vrot.slane %v837, %v845
    %v847 = vmul.f32 %v629, %v846
    %v848 = vmul.f32 %v630, %v846
    %v849 = vmul.f32 %v631, %v846
    %v850 = vmul.f32 %v632, %v846
    %v851 = vmul.f32 %v633, %v846
    %v852 = vmul.f32 %v634, %v846
    %v853 = vmul.f32 %v635, %v846
    %v854 = vmul.f32 %v636, %v846
    %v855 = vmul.f32 %v637, %v846
    %v856 = vmul.f32 %v638, %v846
    %v857 = vmul.f32 %v639, %v846
    %v858 = vmul.f32 %v640, %v846
    %v859 = vmul.f32 %v641, %v846
    %v860 = vmul.f32 %v642, %v846
    %v861 = vmul.f32 %v643, %v846
    %v862 = vmul.f32 %v644, %v846
    %v863 = vmul.f32 %v645, %v846
    %v864 = vmul.f32 %v646, %v846
    %v865 = vmul.f32 %v647, %v846
    %v866 = vmul.f32 %v648, %v846
    %v867 = vmul.f32 %v649, %v846
    %v868 = vmul.f32 %v650, %v846
    %v869 = vmul.f32 %v651, %v846
    %v870 = vmul.f32 %v652, %v846
    %v871 = vmul.f32 %v653, %v846
    %v872 = vmul.f32 %v654, %v846
    %v873 = vmul.f32 %v655, %v846
    %v874 = vmul.f32 %v656, %v846
    %v875 = vmul.f32 %v657, %v846
    %v876 = vmul.f32 %v658, %v846
    %v877 = vmul.f32 %v659, %v846
    %v878 = vmul.f32 %v660, %v846
    %v879 = vlaneseq
    %v880 = vshrl.u32 %v879, 7
    %v881 = vsub.s32 2, %v880
    %v882 = vrot.slane %v842, %v881
    %v883 = vadd.f32 %v847, %v882
    %v884 = vadd.f32 %v848, %v882
    %v885 = vadd.f32 %v849, %v882
    %v886 = vadd.f32 %v850, %v882
    %v887 = vadd.f32 %v851, %v882
    %v888 = vadd.f32 %v852, %v882
    %v889 = vadd.f32 %v853, %v882
    %v890 = vadd.f32 %v854, %v882
    %v891 = vadd.f32 %v855, %v882
    %v892 = vadd.f32 %v856, %v882
    %v893 = vadd.f32 %v857, %v882
    %v894 = vadd.f32 %v858, %v882
    %v895 = vadd.f32 %v859, %v882
    %v896 = vadd.f32 %v860, %v882
    %v897 = vadd.f32 %v861, %v882
    %v898 = vadd.f32 %v862, %v882
    %v899 = vadd.f32 %v863, %v882
    %v900 = vadd.f32 %v864, %v882
    %v901 = vadd.f32 %v865, %v882
    %v902 = vadd.f32 %v866, %v882
    %v903 = vadd.f32 %v867, %v882
    %v904 = vadd.f32 %v868, %v882
    %v905 = vadd.f32 %v869, %v882
    %v906 = vadd.f32 %v870, %v882
    %v907 = vadd.f32 %v871, %v882
    %v908 = vadd.f32 %v872, %v882
    %v909 = vadd.f32 %v873, %v882
    %v910 = vadd.f32 %v874, %v882
    %v911 = vadd.f32 %v875, %v882
    %v912 = vadd.f32 %v876, %v882
    %v913 = vadd.f32 %v877, %v882
    %v914 = vadd.f32 %v878, %v882
    %v915 = vld [vmem:[#allocation11] sm:$0xf]
    %v916 = vld [vmem:[#allocation11 + $0x4] sm:$0xf]
    %v917 = vld [vmem:[#allocation11 + $0x8] sm:$0xf]
    %v918 = vld [vmem:[#allocation11 + $0xc] sm:$0xf]
    %v919 = vld [vmem:[#allocation11 + $0x10] sm:$0xf]
    %v920 = vld [vmem:[#allocation11 + $0x14] sm:$0xf]
    %v921 = vld [vmem:[#allocation11 + $0x18] sm:$0xf]
    %v922 = vld [vmem:[#allocation11 + $0x1c] sm:$0xf]
    %v923 = vunpack.c.l.bf16 %v915
    %v924 = vunpack.c.l.bf16 %v916
    %v925 = vunpack.c.l.bf16 %v917
    %v926 = vunpack.c.l.bf16 %v918
    %v927 = vunpack.c.l.bf16 %v919
    %v928 = vunpack.c.l.bf16 %v920
    %v929 = vunpack.c.l.bf16 %v921
    %v930 = vunpack.c.l.bf16 %v922
    %v931 = vld [vmem:[#allocation12] sm:$0x7]
    %v932 = vlaneseq
    %v933 = vshrl.u32 %v932, 7
    %v934 = vsub.s32 0, %v933
    %v935 = vrot.slane %v931, %v934
    %v937 = vsel %vm307, %v883, 0
    %v940 = vsel %vm307, %v884, 0
    %v943 = vsel %vm307, %v885, 0
    %v946 = vsel %vm307, %v886, 0
    %v949 = vsel %vm307, %v887, 0
    %v952 = vsel %vm307, %v888, 0
    %v955 = vsel %vm307, %v889, 0
    %v958 = vsel %vm307, %v890, 0
    %v961 = vsel %vm307, %v891, 0
    %v964 = vsel %vm307, %v892, 0
    %v967 = vsel %vm307, %v893, 0
    %v970 = vsel %vm307, %v894, 0
    %v973 = vsel %vm307, %v895, 0
    %v976 = vsel %vm307, %v896, 0
    %v979 = vsel %vm307, %v897, 0
    %v982 = vsel %vm307, %v898, 0
    %v985 = vsel %vm307, %v899, 0
    %v988 = vsel %vm307, %v900, 0
    %v991 = vsel %vm307, %v901, 0
    %v994 = vsel %vm307, %v902, 0
    %v997 = vsel %vm307, %v903, 0
    %v1000 = vsel %vm307, %v904, 0
    %v1003 = vsel %vm307, %v905, 0
    %v1006 = vsel %vm307, %v906, 0
    %v1009 = vsel %vm307, %v907, 0
    %v1012 = vsel %vm307, %v908, 0
    %v1015 = vsel %vm307, %v909, 0
    %v1018 = vsel %vm307, %v910, 0
    %v1021 = vsel %vm307, %v911, 0
    %v1024 = vsel %vm307, %v912, 0
    %v1027 = vsel %vm307, %v913, 0
    %v1030 = vsel %vm307, %v914, 0
    %1032 = vmatprep.subr.mxu0 0.0
    %1033 = vmatpush1.msra.mxu0 %v923
    %1034 = vmatprep.subr.mxu0 0.0
    %1035 = vmatpush1.msra.mxu0 %v924
    %1036 = vmatprep.subr.mxu0 0.0
    %1037 = vmatpush1.msra.mxu0 %v925
    %1038 = vmatprep.subr.mxu0 0.0
    %1039 = vmatpush1.msra.mxu0 %v926
    %1040 = vmatprep.subr.mxu0 0.0
    %1041 = vmatpush1.msra.mxu0 %v927
    %1042 = vmatprep.subr.mxu0 0.0
    %1043 = vmatpush1.msra.mxu0 %v928
    %1044 = vmatprep.subr.mxu0 0.0
    %1045 = vmatpush1.msra.mxu0 %v929
    %1046 = vmatprep.subr.mxu0 0.0
    %1047 = vmatpush1.msra.mxu0 %v930
    %1048 = vmatprep.subr.mxu0 0.0
    %1049 = vmatpush1.msra.mxu0 0.0
    %1050 = vmatprep.subr.mxu0 0.0
    %1051 = vmatpush1.msra.mxu0 0.0
    %1052 = vmatprep.subr.mxu0 0.0
    %1053 = vmatpush1.msra.mxu0 0.0
    %1054 = vmatprep.subr.mxu0 0.0
    %1055 = vmatpush1.msra.mxu0 0.0
    %1056 = vmatprep.subr.mxu0 0.0
    %1057 = vmatpush1.msra.mxu0 0.0
    %1058 = vmatprep.subr.mxu0 0.0
    %1059 = vmatpush1.msra.mxu0 0.0
    %1060 = vmatprep.subr.mxu0 0.0
    %1061 = vmatpush1.msra.mxu0 0.0
    %1062 = vmatprep.subr.mxu0 0.0
    %1063 = vmatpush1.msra.mxu0 0.0
    %1064 = vmatprep.subr.mxu0 0.0
    %1065 = vmatpush1.msra.mxu0 0.0
    %1066 = vmatprep.subr.mxu0 0.0
    %1067 = vmatpush1.msra.mxu0 0.0
    %1068 = vmatprep.subr.mxu0 0.0
    %1069 = vmatpush1.msra.mxu0 0.0
    %1070 = vmatprep.subr.mxu0 0.0
    %1071 = vmatpush1.msra.mxu0 0.0
    %1072 = vmatprep.subr.mxu0 0.0
    %1073 = vmatpush1.msra.mxu0 0.0
    %1074 = vmatprep.subr.mxu0 0.0
    %1075 = vmatpush1.msra.mxu0 0.0
    %1076 = vmatprep.subr.mxu0 0.0
    %1077 = vmatpush1.msra.mxu0 0.0
    %1078 = vmatprep.subr.mxu0 0.0
    %1079 = vmatpush1.msra.mxu0 0.0
    %1080 = vmatprep.subr.mxu0 0.0
    %1081 = vmatpush1.msra.mxu0 0.0
    %1082 = vmatprep.subr.mxu0 0.0
    %1083 = vmatpush1.msra.mxu0 0.0
    %1084 = vmatprep.subr.mxu0 0.0
    %1085 = vmatpush1.msra.mxu0 0.0
    %1086 = vmatprep.subr.mxu0 0.0
    %1087 = vmatpush1.msra.mxu0 0.0
    %1088 = vmatprep.subr.mxu0 0.0
    %1089 = vmatpush1.msra.mxu0 0.0
    %1090 = vmatprep.subr.mxu0 0.0
    %1091 = vmatpush1.msra.mxu0 0.0
    %1092 = vmatprep.subr.mxu0 0.0
    %1093 = vmatpush1.msra.mxu0 0.0
    %1094 = vmatprep.subr.mxu0 0.0
    %1095 = vmatpush1.msra.mxu0 0.0
    %1096 = vmatprep.mubr.f32.mxu0 0.0
    %1097 = vmatmul.mubr.f32.gmra.mrb[0].mxu0 %v937
    %v1098 = vpop.f32.mrb[0].mxu0
    %v1099 = vadd.f32 %v935, %v1098
    %v1100 = vpop.f32.mrb[0].mxu0
    %1101 = vmatprep.mubr.f32.mxu0 0.0
    %1102 = vmatmul.mubr.f32.gmra.mrb[0].mxu0 %v940
    %v1103 = vpop.f32.mrb[0].mxu0
    %v1104 = vadd.f32 %v935, %v1103
    %v1105 = vpop.f32.mrb[0].mxu0
    %1106 = vmatprep.mubr.f32.mxu0 0.0
    %1107 = vmatmul.mubr.f32.gmra.mrb[0].mxu0 %v943
    %v1108 = vpop.f32.mrb[0].mxu0
    %v1109 = vadd.f32 %v935, %v1108
    %v1110 = vpop.f32.mrb[0].mxu0
    %1111 = vmatprep.mubr.f32.mxu0 0.0
    %1112 = vmatmul.mubr.f32.gmra.mrb[0].mxu0 %v946
    %v1113 = vpop.f32.mrb[0].mxu0
    %v1114 = vadd.f32 %v935, %v1113
    %v1115 = vpop.f32.mrb[0].mxu0
    %1116 = vmatprep.mubr.f32.mxu0 0.0
    %1117 = vmatmul.mubr.f32.gmra.mrb[0].mxu0 %v949
    %v1118 = vpop.f32.mrb[0].mxu0
    %v1119 = vadd.f32 %v935, %v1118
    %v1120 = vpop.f32.mrb[0].mxu0
    %1121 = vmatprep.mubr.f32.mxu0 0.0
    %1122 = vmatmul.mubr.f32.gmra.mrb[0].mxu0 %v952
    %v1123 = vpop.f32.mrb[0].mxu0
    %v1124 = vadd.f32 %v935, %v1123
    %v1125 = vpop.f32.mrb[0].mxu0
    %1126 = vmatprep.mubr.f32.mxu0 0.0
    %1127 = vmatmul.mubr.f32.gmra.mrb[0].mxu0 %v955
    %v1128 = vpop.f32.mrb[0].mxu0
    %v1129 = vadd.f32 %v935, %v1128
    %v1130 = vpop.f32.mrb[0].mxu0
    %1131 = vmatprep.mubr.f32.mxu0 0.0
    %1132 = vmatmul.mubr.f32.gmra.mrb[0].mxu0 %v958
    %v1133 = vpop.f32.mrb[0].mxu0
    %v1134 = vadd.f32 %v935, %v1133
    %v1135 = vpop.f32.mrb[0].mxu0
    %1136 = vmatprep.mubr.f32.mxu0 0.0
    %1137 = vmatmul.mubr.f32.gmra.mrb[0].mxu0 %v961
    %v1138 = vpop.f32.mrb[0].mxu0
    %v1139 = vadd.f32 %v935, %v1138
    %v1140 = vpop.f32.mrb[0].mxu0
    %1141 = vmatprep.mubr.f32.mxu0 0.0
    %1142 = vmatmul.mubr.f32.gmra.mrb[0].mxu0 %v964
    %v1143 = vpop.f32.mrb[0].mxu0
    %v1144 = vadd.f32 %v935, %v1143
    %v1145 = vpop.f32.mrb[0].mxu0
    %1146 = vmatprep.mubr.f32.mxu0 0.0
    %1147 = vmatmul.mubr.f32.gmra.mrb[0].mxu0 %v967
    %v1148 = vpop.f32.mrb[0].mxu0
    %v1149 = vadd.f32 %v935, %v1148
    %v1150 = vpop.f32.mrb[0].mxu0
    %1151 = vmatprep.mubr.f32.mxu0 0.0
    %1152 = vmatmul.mubr.f32.gmra.mrb[0].mxu0 %v970
    %v1153 = vpop.f32.mrb[0].mxu0
    %v1154 = vadd.f32 %v935, %v1153
    %v1155 = vpop.f32.mrb[0].mxu0
    %1156 = vmatprep.mubr.f32.mxu0 0.0
    %1157 = vmatmul.mubr.f32.gmra.mrb[0].mxu0 %v973
    %v1158 = vpop.f32.mrb[0].mxu0
    %v1159 = vadd.f32 %v935, %v1158
    %v1160 = vpop.f32.mrb[0].mxu0
    %1161 = vmatprep.mubr.f32.mxu0 0.0
    %1162 = vmatmul.mubr.f32.gmra.mrb[0].mxu0 %v976
    %v1163 = vpop.f32.mrb[0].mxu0
    %v1164 = vadd.f32 %v935, %v1163
    %v1165 = vpop.f32.mrb[0].mxu0
    %1166 = vmatprep.mubr.f32.mxu0 0.0
    %1167 = vmatmul.mubr.f32.gmra.mrb[0].mxu0 %v979
    %v1168 = vpop.f32.mrb[0].mxu0
    %v1169 = vadd.f32 %v935, %v1168
    %v1170 = vpop.f32.mrb[0].mxu0
    %1171 = vmatprep.mubr.f32.mxu0 0.0
    %1172 = vmatmul.mubr.f32.gmra.mrb[0].mxu0 %v982
    %v1173 = vpop.f32.mrb[0].mxu0
    %v1174 = vadd.f32 %v935, %v1173
    %v1175 = vpop.f32.mrb[0].mxu0
    %1176 = vmatprep.mubr.f32.mxu0 0.0
    %1177 = vmatmul.mubr.f32.gmra.mrb[0].mxu0 %v985
    %v1178 = vpop.f32.mrb[0].mxu0
    %v1179 = vadd.f32 %v935, %v1178
    %v1180 = vpop.f32.mrb[0].mxu0
    %1181 = vmatprep.mubr.f32.mxu0 0.0
    %1182 = vmatmul.mubr.f32.gmra.mrb[0].mxu0 %v988
    %v1183 = vpop.f32.mrb[0].mxu0
    %v1184 = vadd.f32 %v935, %v1183
    %v1185 = vpop.f32.mrb[0].mxu0
    %1186 = vmatprep.mubr.f32.mxu0 0.0
    %1187 = vmatmul.mubr.f32.gmra.mrb[0].mxu0 %v991
    %v1188 = vpop.f32.mrb[0].mxu0
    %v1189 = vadd.f32 %v935, %v1188
    %v1190 = vpop.f32.mrb[0].mxu0
    %1191 = vmatprep.mubr.f32.mxu0 0.0
    %1192 = vmatmul.mubr.f32.gmra.mrb[0].mxu0 %v994
    %v1193 = vpop.f32.mrb[0].mxu0
    %v1194 = vadd.f32 %v935, %v1193
    %v1195 = vpop.f32.mrb[0].mxu0
    %1196 = vmatprep.mubr.f32.mxu0 0.0
    %1197 = vmatmul.mubr.f32.gmra.mrb[0].mxu0 %v997
    %v1198 = vpop.f32.mrb[0].mxu0
    %v1199 = vadd.f32 %v935, %v1198
    %v1200 = vpop.f32.mrb[0].mxu0
    %1201 = vmatprep.mubr.f32.mxu0 0.0
    %1202 = vmatmul.mubr.f32.gmra.mrb[0].mxu0 %v1000
    %v1203 = vpop.f32.mrb[0].mxu0
    %v1204 = vadd.f32 %v935, %v1203
    %v1205 = vpop.f32.mrb[0].mxu0
    %1206 = vmatprep.mubr.f32.mxu0 0.0
    %1207 = vmatmul.mubr.f32.gmra.mrb[0].mxu0 %v1003
    %v1208 = vpop.f32.mrb[0].mxu0
    %v1209 = vadd.f32 %v935, %v1208
    %v1210 = vpop.f32.mrb[0].mxu0
    %1211 = vmatprep.mubr.f32.mxu0 0.0
    %1212 = vmatmul.mubr.f32.gmra.mrb[0].mxu0 %v1006
    %v1213 = vpop.f32.mrb[0].mxu0
    %v1214 = vadd.f32 %v935, %v1213
    %v1215 = vpop.f32.mrb[0].mxu0
    %1216 = vmatprep.mubr.f32.mxu0 0.0
    %1217 = vmatmul.mubr.f32.gmra.mrb[0].mxu0 %v1009
    %v1218 = vpop.f32.mrb[0].mxu0
    %v1219 = vadd.f32 %v935, %v1218
    %v1220 = vpop.f32.mrb[0].mxu0
    %1221 = vmatprep.mubr.f32.mxu0 0.0
    %1222 = vmatmul.mubr.f32.gmra.mrb[0].mxu0 %v1012
    %v1223 = vpop.f32.mrb[0].mxu0
    %v1224 = vadd.f32 %v935, %v1223
    %v1225 = vpop.f32.mrb[0].mxu0
    %1226 = vmatprep.mubr.f32.mxu0 0.0
    %1227 = vmatmul.mubr.f32.gmra.mrb[0].mxu0 %v1015
    %v1228 = vpop.f32.mrb[0].mxu0
    %v1229 = vadd.f32 %v935, %v1228
    %v1230 = vpop.f32.mrb[0].mxu0
    %1231 = vmatprep.mubr.f32.mxu0 0.0
    %1232 = vmatmul.mubr.f32.gmra.mrb[0].mxu0 %v1018
    %v1233 = vpop.f32.mrb[0].mxu0
    %v1234 = vadd.f32 %v935, %v1233
    %v1235 = vpop.f32.mrb[0].mxu0
    %1236 = vmatprep.mubr.f32.mxu0 0.0
    %1237 = vmatmul.mubr.f32.gmra.mrb[0].mxu0 %v1021
    %v1238 = vpop.f32.mrb[0].mxu0
    %v1239 = vadd.f32 %v935, %v1238
    %v1240 = vpop.f32.mrb[0].mxu0
    %1241 = vmatprep.mubr.f32.mxu0 0.0
    %1242 = vmatmul.mubr.f32.gmra.mrb[0].mxu0 %v1024
    %v1243 = vpop.f32.mrb[0].mxu0
    %v1244 = vadd.f32 %v935, %v1243
    %v1245 = vpop.f32.mrb[0].mxu0
    %1246 = vmatprep.mubr.f32.mxu0 0.0
    %1247 = vmatmul.mubr.f32.gmra.mrb[0].mxu0 %v1027
    %v1248 = vpop.f32.mrb[0].mxu0
    %v1249 = vadd.f32 %v935, %v1248
    %v1250 = vpop.f32.mrb[0].mxu0
    %1251 = vmatprep.mubr.f32.mxu0 0.0
    %1252 = vmatmul.mubr.f32.gmra.mrb[0].mxu0 %v1030
    %v1253 = vpop.f32.mrb[0].mxu0
    %v1254 = vadd.f32 %v935, %v1253
    %v1255 = vpop.f32.mrb[0].mxu0
    %1256 = vdwg.mxu0
    %v1257 = vmax.f32 %v1099, 0.0
    %v1258 = vmax.f32 %v1104, 0.0
    %v1259 = vmax.f32 %v1109, 0.0
    %v1260 = vmax.f32 %v1114, 0.0
    %v1261 = vmax.f32 %v1119, 0.0
    %v1262 = vmax.f32 %v1124, 0.0
    %v1263 = vmax.f32 %v1129, 0.0
    %v1264 = vmax.f32 %v1134, 0.0
    %v1265 = vmax.f32 %v1139, 0.0
    %v1266 = vmax.f32 %v1144, 0.0
    %v1267 = vmax.f32 %v1149, 0.0
    %v1268 = vmax.f32 %v1154, 0.0
    %v1269 = vmax.f32 %v1159, 0.0
    %v1270 = vmax.f32 %v1164, 0.0
    %v1271 = vmax.f32 %v1169, 0.0
    %v1272 = vmax.f32 %v1174, 0.0
    %v1273 = vmax.f32 %v1179, 0.0
    %v1274 = vmax.f32 %v1184, 0.0
    %v1275 = vmax.f32 %v1189, 0.0
    %v1276 = vmax.f32 %v1194, 0.0
    %v1277 = vmax.f32 %v1199, 0.0
    %v1278 = vmax.f32 %v1204, 0.0
    %v1279 = vmax.f32 %v1209, 0.0
    %v1280 = vmax.f32 %v1214, 0.0
    %v1281 = vmax.f32 %v1219, 0.0
    %v1282 = vmax.f32 %v1224, 0.0
    %v1283 = vmax.f32 %v1229, 0.0
    %v1284 = vmax.f32 %v1234, 0.0
    %v1285 = vmax.f32 %v1239, 0.0
    %v1286 = vmax.f32 %v1244, 0.0
    %v1287 = vmax.f32 %v1249, 0.0
    %v1288 = vmax.f32 %v1254, 0.0
    %v1289 = vadd.f32 %v1257, %v1258
    %v1290 = vadd.f32 %v1289, %v1259
    %v1291 = vadd.f32 %v1290, %v1260
    %v1292 = vadd.f32 %v1291, %v1261
    %v1293 = vadd.f32 %v1292, %v1262
    %v1294 = vadd.f32 %v1293, %v1263
    %v1295 = vadd.f32 %v1294, %v1264
    %v1296 = vadd.f32 %v1295, %v1265
    %v1297 = vadd.f32 %v1296, %v1266
    %v1298 = vadd.f32 %v1297, %v1267
    %v1299 = vadd.f32 %v1298, %v1268
    %v1300 = vadd.f32 %v1299, %v1269
    %v1301 = vadd.f32 %v1300, %v1270
    %v1302 = vadd.f32 %v1301, %v1271
    %v1303 = vadd.f32 %v1302, %v1272
    %v1304 = vadd.f32 %v1303, %v1273
    %v1305 = vadd.f32 %v1304, %v1274
    %v1306 = vadd.f32 %v1305, %v1275
    %v1307 = vadd.f32 %v1306, %v1276
    %v1308 = vadd.f32 %v1307, %v1277
    %v1309 = vadd.f32 %v1308, %v1278
    %v1310 = vadd.f32 %v1309, %v1279
    %v1311 = vadd.f32 %v1310, %v1280
    %v1312 = vadd.f32 %v1311, %v1281
    %v1313 = vadd.f32 %v1312, %v1282
    %v1314 = vadd.f32 %v1313, %v1283
    %v1315 = vadd.f32 %v1314, %v1284
    %v1316 = vadd.f32 %v1315, %v1285
    %v1317 = vadd.f32 %v1316, %v1286
    %v1318 = vadd.f32 %v1317, %v1287
    %v1319 = vadd.f32 %v1318, %v1288
    %v1320 = vrot.slane %v1319, 4
    %v1321 = vadd.f32 %v1319, %v1320
    %v1322 = vrot.slane %v1321, 2
    %v1323 = vadd.f32 %v1321, %v1322
    %v1324 = vrot.slane %v1323, 1
    %v1325 = vadd.f32 %v1323, %v1324
    %v1326 = vmul.f32 %v1325, 0.00390625
    %v1327 = vmul.f32 %v1257, %v1257
    %v1328 = vmul.f32 %v1258, %v1258
    %v1329 = vmul.f32 %v1259, %v1259
    %v1330 = vmul.f32 %v1260, %v1260
    %v1331 = vmul.f32 %v1261, %v1261
    %v1332 = vmul.f32 %v1262, %v1262
    %v1333 = vmul.f32 %v1263, %v1263
    %v1334 = vmul.f32 %v1264, %v1264
    %v1335 = vmul.f32 %v1265, %v1265
    %v1336 = vmul.f32 %v1266, %v1266
    %v1337 = vmul.f32 %v1267, %v1267
    %v1338 = vmul.f32 %v1268, %v1268
    %v1339 = vmul.f32 %v1269, %v1269
    %v1340 = vmul.f32 %v1270, %v1270
    %v1341 = vmul.f32 %v1271, %v1271
    %v1342 = vmul.f32 %v1272, %v1272
    %v1343 = vmul.f32 %v1273, %v1273
    %v1344 = vmul.f32 %v1274, %v1274
    %v1345 = vmul.f32 %v1275, %v1275
    %v1346 = vmul.f32 %v1276, %v1276
    %v1347 = vmul.f32 %v1277, %v1277
    %v1348 = vmul.f32 %v1278, %v1278
    %v1349 = vmul.f32 %v1279, %v1279
    %v1350 = vmul.f32 %v1280, %v1280
    %v1351 = vmul.f32 %v1281, %v1281
    %v1352 = vmul.f32 %v1282, %v1282
    %v1353 = vmul.f32 %v1283, %v1283
    %v1354 = vmul.f32 %v1284, %v1284
    %v1355 = vmul.f32 %v1285, %v1285
    %v1356 = vmul.f32 %v1286, %v1286
    %v1357 = vmul.f32 %v1287, %v1287
    %v1358 = vmul.f32 %v1288, %v1288
    %v1359 = vadd.f32 %v1327, %v1328
    %v1360 = vadd.f32 %v1359, %v1329
    %v1361 = vadd.f32 %v1360, %v1330
    %v1362 = vadd.f32 %v1361, %v1331
    %v1363 = vadd.f32 %v1362, %v1332
    %v1364 = vadd.f32 %v1363, %v1333
    %v1365 = vadd.f32 %v1364, %v1334
    %v1366 = vadd.f32 %v1365, %v1335
    %v1367 = vadd.f32 %v1366, %v1336
    %v1368 = vadd.f32 %v1367, %v1337
    %v1369 = vadd.f32 %v1368, %v1338
    %v1370 = vadd.f32 %v1369, %v1339
    %v1371 = vadd.f32 %v1370, %v1340
    %v1372 = vadd.f32 %v1371, %v1341
    %v1373 = vadd.f32 %v1372, %v1342
    %v1374 = vadd.f32 %v1373, %v1343
    %v1375 = vadd.f32 %v1374, %v1344
    %v1376 = vadd.f32 %v1375, %v1345
    %v1377 = vadd.f32 %v1376, %v1346
    %v1378 = vadd.f32 %v1377, %v1347
    %v1379 = vadd.f32 %v1378, %v1348
    %v1380 = vadd.f32 %v1379, %v1349
    %v1381 = vadd.f32 %v1380, %v1350
    %v1382 = vadd.f32 %v1381, %v1351
    %v1383 = vadd.f32 %v1382, %v1352
    %v1384 = vadd.f32 %v1383, %v1353
    %v1385 = vadd.f32 %v1384, %v1354
    %v1386 = vadd.f32 %v1385, %v1355
    %v1387 = vadd.f32 %v1386, %v1356
    %v1388 = vadd.f32 %v1387, %v1357
    %v1389 = vadd.f32 %v1388, %v1358
    %v1390 = vrot.slane %v1389, 4
    %v1391 = vadd.f32 %v1389, %v1390
    %v1392 = vrot.slane %v1391, 2
    %v1393 = vadd.f32 %v1391, %v1392
    %v1394 = vrot.slane %v1393, 1
    %v1395 = vadd.f32 %v1393, %v1394
    %v1396 = vmul.f32 %v1395, 0.00390625
    %v1397 = vmul.f32 %v1326, %v1326
    %v1398 = vsub.f32 %v1396, %v1397
    %v1399 = vadd.f32 %v1398, 1e-05
    %v1400 = vrsqrt.pop %v1399
    %v1401 = vmul.f32 %v931, %v1400
    %v1402 = vmul.f32 %v1326, %v1401
    %v1404 = vrot.slane %v1402, 7
    %v1406 = vsub.f32 %v931, %v1404
    %v1407 = vlaneseq
    %v1408 = vshrl.u32 %v1407, 7
    %v1409 = vsub.s32 1, %v1408
    %v1410 = vrot.slane %v1401, %v1409
    %v1411 = vmul.f32 %v1257, %v1410
    %v1412 = vmul.f32 %v1258, %v1410
    %v1413 = vmul.f32 %v1259, %v1410
    %v1414 = vmul.f32 %v1260, %v1410
    %v1415 = vmul.f32 %v1261, %v1410
    %v1416 = vmul.f32 %v1262, %v1410
    %v1417 = vmul.f32 %v1263, %v1410
    %v1418 = vmul.f32 %v1264, %v1410
    %v1419 = vmul.f32 %v1265, %v1410
    %v1420 = vmul.f32 %v1266, %v1410
    %v1421 = vmul.f32 %v1267, %v1410
    %v1422 = vmul.f32 %v1268, %v1410
    %v1423 = vmul.f32 %v1269, %v1410
    %v1424 = vmul.f32 %v1270, %v1410
    %v1425 = vmul.f32 %v1271, %v1410
    %v1426 = vmul.f32 %v1272, %v1410
    %v1427 = vmul.f32 %v1273, %v1410
    %v1428 = vmul.f32 %v1274, %v1410
    %v1429 = vmul.f32 %v1275, %v1410
    %v1430 = vmul.f32 %v1276, %v1410
    %v1431 = vmul.f32 %v1277, %v1410
    %v1432 = vmul.f32 %v1278, %v1410
    %v1433 = vmul.f32 %v1279, %v1410
    %v1434 = vmul.f32 %v1280, %v1410
    %v1435 = vmul.f32 %v1281, %v1410
    %v1436 = vmul.f32 %v1282, %v1410
    %v1437 = vmul.f32 %v1283, %v1410
    %v1438 = vmul.f32 %v1284, %v1410
    %v1439 = vmul.f32 %v1285, %v1410
    %v1440 = vmul.f32 %v1286, %v1410
    %v1441 = vmul.f32 %v1287, %v1410
    %v1442 = vmul.f32 %v1288, %v1410
    %v1443 = vlaneseq
    %v1444 = vshrl.u32 %v1443, 7
    %v1445 = vsub.s32 2, %v1444
    %v1446 = vrot.slane %v1406, %v1445
    %v1447 = vadd.f32 %v1411, %v1446
    %v1448 = vadd.f32 %v1412, %v1446
    %v1449 = vadd.f32 %v1413, %v1446
    %v1450 = vadd.f32 %v1414, %v1446
    %v1451 = vadd.f32 %v1415, %v1446
    %v1452 = vadd.f32 %v1416, %v1446
    %v1453 = vadd.f32 %v1417, %v1446
    %v1454 = vadd.f32 %v1418, %v1446
    %v1455 = vadd.f32 %v1419, %v1446
    %v1456 = vadd.f32 %v1420, %v1446
    %v1457 = vadd.f32 %v1421, %v1446
    %v1458 = vadd.f32 %v1422, %v1446
    %v1459 = vadd.f32 %v1423, %v1446
    %v1460 = vadd.f32 %v1424, %v1446
    %v1461 = vadd.f32 %v1425, %v1446
    %v1462 = vadd.f32 %v1426, %v1446
    %v1463 = vadd.f32 %v1427, %v1446
    %v1464 = vadd.f32 %v1428, %v1446
    %v1465 = vadd.f32 %v1429, %v1446
    %v1466 = vadd.f32 %v1430, %v1446
    %v1467 = vadd.f32 %v1431, %v1446
    %v1468 = vadd.f32 %v1432, %v1446
    %v1469 = vadd.f32 %v1433, %v1446
    %v1470 = vadd.f32 %v1434, %v1446
    %v1471 = vadd.f32 %v1435, %v1446
    %v1472 = vadd.f32 %v1436, %v1446
    %v1473 = vadd.f32 %v1437, %v1446
    %v1474 = vadd.f32 %v1438, %v1446
    %v1475 = vadd.f32 %v1439, %v1446
    %v1476 = vadd.f32 %v1440, %v1446
    %v1477 = vadd.f32 %v1441, %v1446
    %v1478 = vadd.f32 %v1442, %v1446
    %v1479 = vld [vmem:[#allocation14] sm:$0xff]
    %v1480 = vld [vmem:[#allocation14 + $0x8] sm:$0xff]
    %v1481 = vld [vmem:[#allocation14 + $0x10] sm:$0xff]
    %v1482 = vld [vmem:[#allocation14 + $0x18] sm:$0xff]
    %v1483 = vld [vmem:[#allocation14 + $0x20] sm:$0xff]
    %v1484 = vld [vmem:[#allocation14 + $0x28] sm:$0xff]
    %v1485 = vld [vmem:[#allocation14 + $0x30] sm:$0xff]
    %v1486 = vld [vmem:[#allocation14 + $0x38] sm:$0xff]
    %v1487 = vld [vmem:[#allocation14 + $0x40] sm:$0xff]
    %v1488 = vld [vmem:[#allocation14 + $0x48] sm:$0xff]
    %v1489 = vld [vmem:[#allocation14 + $0x50] sm:$0xff]
    %v1490 = vld [vmem:[#allocation14 + $0x58] sm:$0xff]
    %v1491 = vld [vmem:[#allocation14 + $0x60] sm:$0xff]
    %v1492 = vld [vmem:[#allocation14 + $0x68] sm:$0xff]
    %v1493 = vld [vmem:[#allocation14 + $0x70] sm:$0xff]
    %v1494 = vld [vmem:[#allocation14 + $0x78] sm:$0xff]
    %v1495 = vld [vmem:[#allocation14 + $0x80] sm:$0xff]
    %v1496 = vld [vmem:[#allocation14 + $0x88] sm:$0xff]
    %v1497 = vld [vmem:[#allocation14 + $0x90] sm:$0xff]
    %v1498 = vld [vmem:[#allocation14 + $0x98] sm:$0xff]
    %v1499 = vld [vmem:[#allocation14 + $0xa0] sm:$0xff]
    %v1500 = vld [vmem:[#allocation14 + $0xa8] sm:$0xff]
    %v1501 = vld [vmem:[#allocation14 + $0xb0] sm:$0xff]
    %v1502 = vld [vmem:[#allocation14 + $0xb8] sm:$0xff]
    %v1503 = vld [vmem:[#allocation14 + $0xc0] sm:$0xff]
    %v1504 = vld [vmem:[#allocation14 + $0xc8] sm:$0xff]
    %v1505 = vld [vmem:[#allocation14 + $0xd0] sm:$0xff]
    %v1506 = vld [vmem:[#allocation14 + $0xd8] sm:$0xff]
    %v1507 = vld [vmem:[#allocation14 + $0xe0] sm:$0xff]
    %v1508 = vld [vmem:[#allocation14 + $0xe8] sm:$0xff]
    %v1509 = vld [vmem:[#allocation14 + $0xf0] sm:$0xff]
    %v1510 = vld [vmem:[#allocation14 + $0xf8] sm:$0xff]
    %v1511 = vld [vmem:[#allocation14 + $0x100] sm:$0xff]
    %v1512 = vld [vmem:[#allocation14 + $0x108] sm:$0xff]
    %v1513 = vld [vmem:[#allocation14 + $0x110] sm:$0xff]
    %v1514 = vld [vmem:[#allocation14 + $0x118] sm:$0xff]
    %v1515 = vld [vmem:[#allocation14 + $0x120] sm:$0xff]
    %v1516 = vld [vmem:[#allocation14 + $0x128] sm:$0xff]
    %v1517 = vld [vmem:[#allocation14 + $0x130] sm:$0xff]
    %v1518 = vld [vmem:[#allocation14 + $0x138] sm:$0xff]
    %v1519 = vld [vmem:[#allocation14 + $0x140] sm:$0xff]
    %v1520 = vld [vmem:[#allocation14 + $0x148] sm:$0xff]
    %v1521 = vld [vmem:[#allocation14 + $0x150] sm:$0xff]
    %v1522 = vld [vmem:[#allocation14 + $0x158] sm:$0xff]
    %v1523 = vld [vmem:[#allocation14 + $0x160] sm:$0xff]
    %v1524 = vld [vmem:[#allocation14 + $0x168] sm:$0xff]
    %v1525 = vld [vmem:[#allocation14 + $0x170] sm:$0xff]
    %v1526 = vld [vmem:[#allocation14 + $0x178] sm:$0xff]
    %v1527 = vld [vmem:[#allocation14 + $0x180] sm:$0xff]
    %v1528 = vld [vmem:[#allocation14 + $0x188] sm:$0xff]
    %v1529 = vld [vmem:[#allocation14 + $0x190] sm:$0xff]
    %v1530 = vld [vmem:[#allocation14 + $0x198] sm:$0xff]
    %v1531 = vld [vmem:[#allocation14 + $0x1a0] sm:$0xff]
    %v1532 = vld [vmem:[#allocation14 + $0x1a8] sm:$0xff]
    %v1533 = vld [vmem:[#allocation14 + $0x1b0] sm:$0xff]
    %v1534 = vld [vmem:[#allocation14 + $0x1b8] sm:$0xff]
    %v1535 = vld [vmem:[#allocation14 + $0x1c0] sm:$0xff]
    %v1536 = vld [vmem:[#allocation14 + $0x1c8] sm:$0xff]
    %v1537 = vld [vmem:[#allocation14 + $0x1d0] sm:$0xff]
    %v1538 = vld [vmem:[#allocation14 + $0x1d8] sm:$0xff]
    %v1539 = vld [vmem:[#allocation14 + $0x1e0] sm:$0xff]
    %v1540 = vld [vmem:[#allocation14 + $0x1e8] sm:$0xff]
    %v1541 = vld [vmem:[#allocation14 + $0x1f0] sm:$0xff]
    %v1542 = vld [vmem:[#allocation14 + $0x1f8] sm:$0xff]
    %v1543 = vunpack.c.l.bf16 %v1479
    %v1544 = vunpack.c.h.bf16 %v1479
    %v1545 = vunpack.c.l.bf16 %v1480
    %v1546 = vunpack.c.h.bf16 %v1480
    %v1547 = vunpack.c.l.bf16 %v1481
    %v1548 = vunpack.c.h.bf16 %v1481
    %v1549 = vunpack.c.l.bf16 %v1482
    %v1550 = vunpack.c.h.bf16 %v1482
    %v1551 = vunpack.c.l.bf16 %v1483
    %v1552 = vunpack.c.h.bf16 %v1483
    %v1553 = vunpack.c.l.bf16 %v1484
    %v1554 = vunpack.c.h.bf16 %v1484
    %v1555 = vunpack.c.l.bf16 %v1485
    %v1556 = vunpack.c.h.bf16 %v1485
    %v1557 = vunpack.c.l.bf16 %v1486
    %v1558 = vunpack.c.h.bf16 %v1486
    %v1559 = vunpack.c.l.bf16 %v1487
    %v1560 = vunpack.c.h.bf16 %v1487
    %v1561 = vunpack.c.l.bf16 %v1488
    %v1562 = vunpack.c.h.bf16 %v1488
    %v1563 = vunpack.c.l.bf16 %v1489
    %v1564 = vunpack.c.h.bf16 %v1489
    %v1565 = vunpack.c.l.bf16 %v1490
    %v1566 = vunpack.c.h.bf16 %v1490
    %v1567 = vunpack.c.l.bf16 %v1491
    %v1568 = vunpack.c.h.bf16 %v1491
    %v1569 = vunpack.c.l.bf16 %v1492
    %v1570 = vunpack.c.h.bf16 %v1492
    %v1571 = vunpack.c.l.bf16 %v1493
    %v1572 = vunpack.c.h.bf16 %v1493
    %v1573 = vunpack.c.l.bf16 %v1494
    %v1574 = vunpack.c.h.bf16 %v1494
    %v1575 = vunpack.c.l.bf16 %v1495
    %v1576 = vunpack.c.h.bf16 %v1495
    %v1577 = vunpack.c.l.bf16 %v1496
    %v1578 = vunpack.c.h.bf16 %v1496
    %v1579 = vunpack.c.l.bf16 %v1497
    %v1580 = vunpack.c.h.bf16 %v1497
    %v1581 = vunpack.c.l.bf16 %v1498
    %v1582 = vunpack.c.h.bf16 %v1498
    %v1583 = vunpack.c.l.bf16 %v1499
    %v1584 = vunpack.c.h.bf16 %v1499
    %v1585 = vunpack.c.l.bf16 %v1500
    %v1586 = vunpack.c.h.bf16 %v1500
    %v1587 = vunpack.c.l.bf16 %v1501
    %v1588 = vunpack.c.h.bf16 %v1501
    %v1589 = vunpack.c.l.bf16 %v1502
    %v1590 = vunpack.c.h.bf16 %v1502
    %v1591 = vunpack.c.l.bf16 %v1503
    %v1592 = vunpack.c.h.bf16 %v1503
    %v1593 = vunpack.c.l.bf16 %v1504
    %v1594 = vunpack.c.h.bf16 %v1504
    %v1595 = vunpack.c.l.bf16 %v1505
    %v1596 = vunpack.c.h.bf16 %v1505
    %v1597 = vunpack.c.l.bf16 %v1506
    %v1598 = vunpack.c.h.bf16 %v1506
    %v1599 = vunpack.c.l.bf16 %v1507
    %v1600 = vunpack.c.h.bf16 %v1507
    %v1601 = vunpack.c.l.bf16 %v1508
    %v1602 = vunpack.c.h.bf16 %v1508
    %v1603 = vunpack.c.l.bf16 %v1509
    %v1604 = vunpack.c.h.bf16 %v1509
    %v1605 = vunpack.c.l.bf16 %v1510
    %v1606 = vunpack.c.h.bf16 %v1510
    %v1607 = vunpack.c.l.bf16 %v1511
    %v1608 = vunpack.c.h.bf16 %v1511
    %v1609 = vunpack.c.l.bf16 %v1512
    %v1610 = vunpack.c.h.bf16 %v1512
    %v1611 = vunpack.c.l.bf16 %v1513
    %v1612 = vunpack.c.h.bf16 %v1513
    %v1613 = vunpack.c.l.bf16 %v1514
    %v1614 = vunpack.c.h.bf16 %v1514
    %v1615 = vunpack.c.l.bf16 %v1515
    %v1616 = vunpack.c.h.bf16 %v1515
    %v1617 = vunpack.c.l.bf16 %v1516
    %v1618 = vunpack.c.h.bf16 %v1516
    %v1619 = vunpack.c.l.bf16 %v1517
    %v1620 = vunpack.c.h.bf16 %v1517
    %v1621 = vunpack.c.l.bf16 %v1518
    %v1622 = vunpack.c.h.bf16 %v1518
    %v1623 = vunpack.c.l.bf16 %v1519
    %v1624 = vunpack.c.h.bf16 %v1519
    %v1625 = vunpack.c.l.bf16 %v1520
    %v1626 = vunpack.c.h.bf16 %v1520
    %v1627 = vunpack.c.l.bf16 %v1521
    %v1628 = vunpack.c.h.bf16 %v1521
    %v1629 = vunpack.c.l.bf16 %v1522
    %v1630 = vunpack.c.h.bf16 %v1522
    %v1631 = vunpack.c.l.bf16 %v1523
    %v1632 = vunpack.c.h.bf16 %v1523
    %v1633 = vunpack.c.l.bf16 %v1524
    %v1634 = vunpack.c.h.bf16 %v1524
    %v1635 = vunpack.c.l.bf16 %v1525
    %v1636 = vunpack.c.h.bf16 %v1525
    %v1637 = vunpack.c.l.bf16 %v1526
    %v1638 = vunpack.c.h.bf16 %v1526
    %v1639 = vunpack.c.l.bf16 %v1527
    %v1640 = vunpack.c.h.bf16 %v1527
    %v1641 = vunpack.c.l.bf16 %v1528
    %v1642 = vunpack.c.h.bf16 %v1528
    %v1643 = vunpack.c.l.bf16 %v1529
    %v1644 = vunpack.c.h.bf16 %v1529
    %v1645 = vunpack.c.l.bf16 %v1530
    %v1646 = vunpack.c.h.bf16 %v1530
    %v1647 = vunpack.c.l.bf16 %v1531
    %v1648 = vunpack.c.h.bf16 %v1531
    %v1649 = vunpack.c.l.bf16 %v1532
    %v1650 = vunpack.c.h.bf16 %v1532
    %v1651 = vunpack.c.l.bf16 %v1533
    %v1652 = vunpack.c.h.bf16 %v1533
    %v1653 = vunpack.c.l.bf16 %v1534
    %v1654 = vunpack.c.h.bf16 %v1534
    %v1655 = vunpack.c.l.bf16 %v1535
    %v1656 = vunpack.c.h.bf16 %v1535
    %v1657 = vunpack.c.l.bf16 %v1536
    %v1658 = vunpack.c.h.bf16 %v1536
    %v1659 = vunpack.c.l.bf16 %v1537
    %v1660 = vunpack.c.h.bf16 %v1537
    %v1661 = vunpack.c.l.bf16 %v1538
    %v1662 = vunpack.c.h.bf16 %v1538
    %v1663 = vunpack.c.l.bf16 %v1539
    %v1664 = vunpack.c.h.bf16 %v1539
    %v1665 = vunpack.c.l.bf16 %v1540
    %v1666 = vunpack.c.h.bf16 %v1540
    %v1667 = vunpack.c.l.bf16 %v1541
    %v1668 = vunpack.c.h.bf16 %v1541
    %v1669 = vunpack.c.l.bf16 %v1542
    %v1670 = vunpack.c.h.bf16 %v1542
    %v1671 = vld [vmem:[#allocation15] sm:$0x77]
    %v1672 = vld [vmem:[#allocation15 + $0x8] sm:$0x77]
    %v1673 = vld [vmem:[#allocation15 + $0x10] sm:$0x77]
    %v1674 = vld [vmem:[#allocation15 + $0x18] sm:$0x77]
    %v1679 = vlaneseq
    %v1680 = vshrl.u32 %v1679, 7
    %v1681 = vsub.s32 0, %v1680
    %v1682 = vrot.slane %v1671, %v1681
    %v1683 = vlaneseq
    %v1684 = vshrl.u32 %v1683, 7
    %v1685 = vsub.s32 4, %v1684
    %v1686 = vrot.slane %v1671, %v1685
    %v1687 = vlaneseq
    %v1688 = vshrl.u32 %v1687, 7
    %v1689 = vsub.s32 0, %v1688
    %v1690 = vrot.slane %v1672, %v1689
    %v1691 = vlaneseq
    %v1692 = vshrl.u32 %v1691, 7
    %v1693 = vsub.s32 4, %v1692
    %v1694 = vrot.slane %v1672, %v1693
    %v1695 = vlaneseq
    %v1696 = vshrl.u32 %v1695, 7
    %v1697 = vsub.s32 0, %v1696
    %v1698 = vrot.slane %v1673, %v1697
    %v1699 = vlaneseq
    %v1700 = vshrl.u32 %v1699, 7
    %v1701 = vsub.s32 4, %v1700
    %v1702 = vrot.slane %v1673, %v1701
    %v1703 = vlaneseq
    %v1704 = vshrl.u32 %v1703, 7
    %v1705 = vsub.s32 0, %v1704
    %v1706 = vrot.slane %v1674, %v1705
    %v1707 = vlaneseq
    %v1708 = vshrl.u32 %v1707, 7
    %v1709 = vsub.s32 4, %v1708
    %v1710 = vrot.slane %v1674, %v1709
    %v1719 = vlaneseq
    %v1720 = vshrl.u32 %v1719, 7
    %v1721 = vsub.s32 0, %v1720
    %v1722 = vrot.slane %v1682, %v1721
    %v1723 = vlaneseq
    %v1724 = vshrl.u32 %v1723, 7
    %v1725 = vsub.s32 0, %v1724
    %v1726 = vrot.slane %v1686, %v1725
    %v1727 = vlaneseq
    %v1728 = vshrl.u32 %v1727, 7
    %v1729 = vsub.s32 0, %v1728
    %v1730 = vrot.slane %v1690, %v1729
    %v1731 = vlaneseq
    %v1732 = vshrl.u32 %v1731, 7
    %v1733 = vsub.s32 0, %v1732
    %v1734 = vrot.slane %v1694, %v1733
    %v1735 = vlaneseq
    %v1736 = vshrl.u32 %v1735, 7
    %v1737 = vsub.s32 0, %v1736
    %v1738 = vrot.slane %v1698, %v1737
    %v1739 = vlaneseq
    %v1740 = vshrl.u32 %v1739, 7
    %v1741 = vsub.s32 0, %v1740
    %v1742 = vrot.slane %v1702, %v1741
    %v1743 = vlaneseq
    %v1744 = vshrl.u32 %v1743, 7
    %v1745 = vsub.s32 0, %v1744
    %v1746 = vrot.slane %v1706, %v1745
    %v1747 = vlaneseq
    %v1748 = vshrl.u32 %v1747, 7
    %v1749 = vsub.s32 0, %v1748
    %v1750 = vrot.slane %v1710, %v1749
    %1751 = vmatprep.subr.mxu0 %v1544
    %1752 = vmatpush1.msra.mxu0 %v1543
    %1753 = vmatprep.subr.mxu0 %v1552
    %1754 = vmatpush1.msra.mxu0 %v1551
    %1755 = vmatprep.subr.mxu0 %v1560
    %1756 = vmatpush1.msra.mxu0 %v1559
    %1757 = vmatprep.subr.mxu0 %v1568
    %1758 = vmatpush1.msra.mxu0 %v1567
    %1759 = vmatprep.subr.mxu0 %v1576
    %1760 = vmatpush1.msra.mxu0 %v1575
    %1761 = vmatprep.subr.mxu0 %v1584
    %1762 = vmatpush1.msra.mxu0 %v1583
    %1763 = vmatprep.subr.mxu0 %v1592
    %1764 = vmatpush1.msra.mxu0 %v1591
    %1765 = vmatprep.subr.mxu0 %v1600
    %1766 = vmatpush1.msra.mxu0 %v1599
    %1767 = vmatprep.subr.mxu0 %v1608
    %1768 = vmatpush1.msra.mxu0 %v1607
    %1769 = vmatprep.subr.mxu0 %v1616
    %1770 = vmatpush1.msra.mxu0 %v1615
    %1771 = vmatprep.subr.mxu0 %v1624
    %1772 = vmatpush1.msra.mxu0 %v1623
    %1773 = vmatprep.subr.mxu0 %v1632
    %1774 = vmatpush1.msra.mxu0 %v1631
    %1775 = vmatprep.subr.mxu0 %v1640
    %1776 = vmatpush1.msra.mxu0 %v1639
    %1777 = vmatprep.subr.mxu0 %v1648
    %1778 = vmatpush1.msra.mxu0 %v1647
    %1779 = vmatprep.subr.mxu0 %v1656
    %1780 = vmatpush1.msra.mxu0 %v1655
    %1781 = vmatprep.subr.mxu0 %v1664
    %1782 = vmatpush1.msra.mxu0 %v1663
    %1783 = vmatprep.subr.mxu0 0.0
    %1784 = vmatpush1.msra.mxu0 0.0
    %1785 = vmatprep.subr.mxu0 0.0
    %1786 = vmatpush1.msra.mxu0 0.0
    %1787 = vmatprep.subr.mxu0 0.0
    %1788 = vmatpush1.msra.mxu0 0.0
    %1789 = vmatprep.subr.mxu0 0.0
    %1790 = vmatpush1.msra.mxu0 0.0
    %1791 = vmatprep.subr.mxu0 0.0
    %1792 = vmatpush1.msra.mxu0 0.0
    %1793 = vmatprep.subr.mxu0 0.0
    %1794 = vmatpush1.msra.mxu0 0.0
    %1795 = vmatprep.subr.mxu0 0.0
    %1796 = vmatpush1.msra.mxu0 0.0
    %1797 = vmatprep.subr.mxu0 0.0
    %1798 = vmatpush1.msra.mxu0 0.0
    %1799 = vmatprep.subr.mxu0 0.0
    %1800 = vmatpush1.msra.mxu0 0.0
    %1801 = vmatprep.subr.mxu0 0.0
    %1802 = vmatpush1.msra.mxu0 0.0
    %1803 = vmatprep.subr.mxu0 0.0
    %1804 = vmatpush1.msra.mxu0 0.0
    %1805 = vmatprep.subr.mxu0 0.0
    %1806 = vmatpush1.msra.mxu0 0.0
    %1807 = vmatprep.subr.mxu0 0.0
    %1808 = vmatpush1.msra.mxu0 0.0
    %1809 = vmatprep.subr.mxu0 0.0
    %1810 = vmatpush1.msra.mxu0 0.0
    %1811 = vmatprep.subr.mxu0 0.0
    %1812 = vmatpush1.msra.mxu0 0.0
    %1813 = vmatprep.subr.mxu0 0.0
    %1814 = vmatpush1.msra.mxu0 0.0
    %1815 = vmatprep.mubr.f32.mxu0 0.0
    %1816 = vmatmul.mubr.f32.gmra.mrb[0].mxu0 %v1447
    %v1817 = vpop.f32.mrb[0].mxu0
    %v1818 = vadd.f32 %v1722, %v1817
    %v1819 = vpop.f32.mrb[0].mxu0
    %v1820 = vadd.f32 %v1726, %v1819
    %1821 = vmatprep.mubr.f32.mxu0 0.0
    %1822 = vmatmul.mubr.f32.gmra.mrb[0].mxu0 %v1448
    %v1823 = vpop.f32.mrb[0].mxu0
    %v1824 = vadd.f32 %v1722, %v1823
    %v1825 = vpop.f32.mrb[0].mxu0
    %v1826 = vadd.f32 %v1726, %v1825
    %1827 = vmatprep.mubr.f32.mxu0 0.0
    %1828 = vmatmul.mubr.f32.gmra.mrb[0].mxu0 %v1449
    %v1829 = vpop.f32.mrb[0].mxu0
    %v1830 = vadd.f32 %v1722, %v1829
    %v1831 = vpop.f32.mrb[0].mxu0
    %v1832 = vadd.f32 %v1726, %v1831
    %1833 = vmatprep.mubr.f32.mxu0 0.0
    %1834 = vmatmul.mubr.f32.gmra.mrb[0].mxu0 %v1450
    %v1835 = vpop.f32.mrb[0].mxu0
    %v1836 = vadd.f32 %v1722, %v1835
    %v1837 = vpop.f32.mrb[0].mxu0
    %v1838 = vadd.f32 %v1726, %v1837
    %1839 = vmatprep.mubr.f32.mxu0 0.0
    %1840 = vmatmul.mubr.f32.gmra.mrb[0].mxu0 %v1451
    %v1841 = vpop.f32.mrb[0].mxu0
    %v1842 = vadd.f32 %v1722, %v1841
    %v1843 = vpop.f32.mrb[0].mxu0
    %v1844 = vadd.f32 %v1726, %v1843
    %1845 = vmatprep.mubr.f32.mxu0 0.0
    %1846 = vmatmul.mubr.f32.gmra.mrb[0].mxu0 %v1452
    %v1847 = vpop.f32.mrb[0].mxu0
    %v1848 = vadd.f32 %v1722, %v1847
    %v1849 = vpop.f32.mrb[0].mxu0
    %v1850 = vadd.f32 %v1726, %v1849
    %1851 = vmatprep.mubr.f32.mxu0 0.0
    %1852 = vmatmul.mubr.f32.gmra.mrb[0].mxu0 %v1453
    %v1853 = vpop.f32.mrb[0].mxu0
    %v1854 = vadd.f32 %v1722, %v1853
    %v1855 = vpop.f32.mrb[0].mxu0
    %v1856 = vadd.f32 %v1726, %v1855
    %1857 = vmatprep.mubr.f32.mxu0 0.0
    %1858 = vmatmul.mubr.f32.gmra.mrb[0].mxu0 %v1454
    %v1859 = vpop.f32.mrb[0].mxu0
    %v1860 = vadd.f32 %v1722, %v1859
    %v1861 = vpop.f32.mrb[0].mxu0
    %v1862 = vadd.f32 %v1726, %v1861
    %1863 = vmatprep.mubr.f32.mxu0 0.0
    %1864 = vmatmul.mubr.f32.gmra.mrb[0].mxu0 %v1455
    %v1865 = vpop.f32.mrb[0].mxu0
    %v1866 = vadd.f32 %v1722, %v1865
    %v1867 = vpop.f32.mrb[0].mxu0
    %v1868 = vadd.f32 %v1726, %v1867
    %1869 = vmatprep.mubr.f32.mxu0 0.0
    %1870 = vmatmul.mubr.f32.gmra.mrb[0].mxu0 %v1456
    %v1871 = vpop.f32.mrb[0].mxu0
    %v1872 = vadd.f32 %v1722, %v1871
    %v1873 = vpop.f32.mrb[0].mxu0
    %v1874 = vadd.f32 %v1726, %v1873
    %1875 = vmatprep.mubr.f32.mxu0 0.0
    %1876 = vmatmul.mubr.f32.gmra.mrb[0].mxu0 %v1457
    %v1877 = vpop.f32.mrb[0].mxu0
    %v1878 = vadd.f32 %v1722, %v1877
    %v1879 = vpop.f32.mrb[0].mxu0
    %v1880 = vadd.f32 %v1726, %v1879
    %1881 = vmatprep.mubr.f32.mxu0 0.0
    %1882 = vmatmul.mubr.f32.gmra.mrb[0].mxu0 %v1458
    %v1883 = vpop.f32.mrb[0].mxu0
    %v1884 = vadd.f32 %v1722, %v1883
    %v1885 = vpop.f32.mrb[0].mxu0
    %v1886 = vadd.f32 %v1726, %v1885
    %1887 = vmatprep.mubr.f32.mxu0 0.0
    %1888 = vmatmul.mubr.f32.gmra.mrb[0].mxu0 %v1459
    %v1889 = vpop.f32.mrb[0].mxu0
    %v1890 = vadd.f32 %v1722, %v1889
    %v1891 = vpop.f32.mrb[0].mxu0
    %v1892 = vadd.f32 %v1726, %v1891
    %1893 = vmatprep.mubr.f32.mxu0 0.0
    %1894 = vmatmul.mubr.f32.gmra.mrb[0].mxu0 %v1460
    %v1895 = vpop.f32.mrb[0].mxu0
    %v1896 = vadd.f32 %v1722, %v1895
    %v1897 = vpop.f32.mrb[0].mxu0
    %v1898 = vadd.f32 %v1726, %v1897
    %1899 = vmatprep.mubr.f32.mxu0 0.0
    %1900 = vmatmul.mubr.f32.gmra.mrb[0].mxu0 %v1461
    %v1901 = vpop.f32.mrb[0].mxu0
    %v1902 = vadd.f32 %v1722, %v1901
    %v1903 = vpop.f32.mrb[0].mxu0
    %v1904 = vadd.f32 %v1726, %v1903
    %1905 = vmatprep.mubr.f32.mxu0 0.0
    %1906 = vmatmul.mubr.f32.gmra.mrb[0].mxu0 %v1462
    %v1907 = vpop.f32.mrb[0].mxu0
    %v1908 = vadd.f32 %v1722, %v1907
    %v1909 = vpop.f32.mrb[0].mxu0
    %v1910 = vadd.f32 %v1726, %v1909
    %1911 = vmatprep.mubr.f32.mxu0 0.0
    %1912 = vmatmul.mubr.f32.gmra.mrb[0].mxu0 %v1463
    %v1913 = vpop.f32.mrb[0].mxu0
    %v1914 = vadd.f32 %v1722, %v1913
    %v1915 = vpop.f32.mrb[0].mxu0
    %v1916 = vadd.f32 %v1726, %v1915
    %1917 = vmatprep.mubr.f32.mxu0 0.0
    %1918 = vmatmul.mubr.f32.gmra.mrb[0].mxu0 %v1464
    %v1919 = vpop.f32.mrb[0].mxu0
    %v1920 = vadd.f32 %v1722, %v1919
    %v1921 = vpop.f32.mrb[0].mxu0
    %v1922 = vadd.f32 %v1726, %v1921
    %1923 = vmatprep.mubr.f32.mxu0 0.0
    %1924 = vmatmul.mubr.f32.gmra.mrb[0].mxu0 %v1465
    %v1925 = vpop.f32.mrb[0].mxu0
    %v1926 = vadd.f32 %v1722, %v1925
    %v1927 = vpop.f32.mrb[0].mxu0
    %v1928 = vadd.f32 %v1726, %v1927
    %1929 = vmatprep.mubr.f32.mxu0 0.0
    %1930 = vmatmul.mubr.f32.gmra.mrb[0].mxu0 %v1466
    %v1931 = vpop.f32.mrb[0].mxu0
    %v1932 = vadd.f32 %v1722, %v1931
    %v1933 = vpop.f32.mrb[0].mxu0
    %v1934 = vadd.f32 %v1726, %v1933
    %1935 = vmatprep.mubr.f32.mxu0 0.0
    %1936 = vmatmul.mubr.f32.gmra.mrb[0].mxu0 %v1467
    %v1937 = vpop.f32.mrb[0].mxu0
    %v1938 = vadd.f32 %v1722, %v1937
    %v1939 = vpop.f32.mrb[0].mxu0
    %v1940 = vadd.f32 %v1726, %v1939
    %1941 = vmatprep.mubr.f32.mxu0 0.0
    %1942 = vmatmul.mubr.f32.gmra.mrb[0].mxu0 %v1468
    %v1943 = vpop.f32.mrb[0].mxu0
    %v1944 = vadd.f32 %v1722, %v1943
    %v1945 = vpop.f32.mrb[0].mxu0
    %v1946 = vadd.f32 %v1726, %v1945
    %1947 = vmatprep.mubr.f32.mxu0 0.0
    %1948 = vmatmul.mubr.f32.gmra.mrb[0].mxu0 %v1469
    %v1949 = vpop.f32.mrb[0].mxu0
    %v1950 = vadd.f32 %v1722, %v1949
    %v1951 = vpop.f32.mrb[0].mxu0
    %v1952 = vadd.f32 %v1726, %v1951
    %1953 = vmatprep.mubr.f32.mxu0 0.0
    %1954 = vmatmul.mubr.f32.gmra.mrb[0].mxu0 %v1470
    %v1955 = vpop.f32.mrb[0].mxu0
    %v1956 = vadd.f32 %v1722, %v1955
    %v1957 = vpop.f32.mrb[0].mxu0
    %v1958 = vadd.f32 %v1726, %v1957
    %1959 = vmatprep.mubr.f32.mxu0 0.0
    %1960 = vmatmul.mubr.f32.gmra.mrb[0].mxu0 %v1471
    %v1961 = vpop.f32.mrb[0].mxu0
    %v1962 = vadd.f32 %v1722, %v1961
    %v1963 = vpop.f32.mrb[0].mxu0
    %v1964 = vadd.f32 %v1726, %v1963
    %1965 = vmatprep.mubr.f32.mxu0 0.0
    %1966 = vmatmul.mubr.f32.gmra.mrb[0].mxu0 %v1472
    %v1967 = vpop.f32.mrb[0].mxu0
    %v1968 = vadd.f32 %v1722, %v1967
    %v1969 = vpop.f32.mrb[0].mxu0
    %v1970 = vadd.f32 %v1726, %v1969
    %1971 = vmatprep.mubr.f32.mxu0 0.0
    %1972 = vmatmul.mubr.f32.gmra.mrb[0].mxu0 %v1473
    %v1973 = vpop.f32.mrb[0].mxu0
    %v1974 = vadd.f32 %v1722, %v1973
    %v1975 = vpop.f32.mrb[0].mxu0
    %v1976 = vadd.f32 %v1726, %v1975
    %1977 = vmatprep.mubr.f32.mxu0 0.0
    %1978 = vmatmul.mubr.f32.gmra.mrb[0].mxu0 %v1474
    %v1979 = vpop.f32.mrb[0].mxu0
    %v1980 = vadd.f32 %v1722, %v1979
    %v1981 = vpop.f32.mrb[0].mxu0
    %v1982 = vadd.f32 %v1726, %v1981
    %1983 = vmatprep.mubr.f32.mxu0 0.0
    %1984 = vmatmul.mubr.f32.gmra.mrb[0].mxu0 %v1475
    %v1985 = vpop.f32.mrb[0].mxu0
    %v1986 = vadd.f32 %v1722, %v1985
    %v1987 = vpop.f32.mrb[0].mxu0
    %v1988 = vadd.f32 %v1726, %v1987
    %1989 = vmatprep.mubr.f32.mxu0 0.0
    %1990 = vmatmul.mubr.f32.gmra.mrb[0].mxu0 %v1476
    %v1991 = vpop.f32.mrb[0].mxu0
    %v1992 = vadd.f32 %v1722, %v1991
    %v1993 = vpop.f32.mrb[0].mxu0
    %v1994 = vadd.f32 %v1726, %v1993
    %1995 = vmatprep.mubr.f32.mxu0 0.0
    %1996 = vmatmul.mubr.f32.gmra.mrb[0].mxu0 %v1477
    %v1997 = vpop.f32.mrb[0].mxu0
    %v1998 = vadd.f32 %v1722, %v1997
    %v1999 = vpop.f32.mrb[0].mxu0
    %v2000 = vadd.f32 %v1726, %v1999
    %2001 = vmatprep.mubr.f32.mxu0 0.0
    %2002 = vmatmul.mubr.f32.gmra.mrb[0].mxu0 %v1478
    %v2003 = vpop.f32.mrb[0].mxu0
    %v2004 = vadd.f32 %v1722, %v2003
    %v2005 = vpop.f32.mrb[0].mxu0
    %v2006 = vadd.f32 %v1726, %v2005
    %2007 = vdwg.mxu0
    %2008 = vmatprep.subr.mxu0 %v1546
    %2009 = vmatpush1.msra.mxu0 %v1545
    %2010 = vmatprep.subr.mxu0 %v1554
    %2011 = vmatpush1.msra.mxu0 %v1553
    %2012 = vmatprep.subr.mxu0 %v1562
    %2013 = vmatpush1.msra.mxu0 %v1561
    %2014 = vmatprep.subr.mxu0 %v1570
    %2015 = vmatpush1.msra.mxu0 %v1569
    %2016 = vmatprep.subr.mxu0 %v1578
    %2017 = vmatpush1.msra.mxu0 %v1577
    %2018 = vmatprep.subr.mxu0 %v1586
    %2019 = vmatpush1.msra.mxu0 %v1585
    %2020 = vmatprep.subr.mxu0 %v1594
    %2021 = vmatpush1.msra.mxu0 %v1593
    %2022 = vmatprep.subr.mxu0 %v1602
    %2023 = vmatpush1.msra.mxu0 %v1601
    %2024 = vmatprep.subr.mxu0 %v1610
    %2025 = vmatpush1.msra.mxu0 %v1609
    %2026 = vmatprep.subr.mxu0 %v1618
    %2027 = vmatpush1.msra.mxu0 %v1617
    %2028 = vmatprep.subr.mxu0 %v1626
    %2029 = vmatpush1.msra.mxu0 %v1625
    %2030 = vmatprep.subr.mxu0 %v1634
    %2031 = vmatpush1.msra.mxu0 %v1633
    %2032 = vmatprep.subr.mxu0 %v1642
    %2033 = vmatpush1.msra.mxu0 %v1641
    %2034 = vmatprep.subr.mxu0 %v1650
    %2035 = vmatpush1.msra.mxu0 %v1649
    %2036 = vmatprep.subr.mxu0 %v1658
    %2037 = vmatpush1.msra.mxu0 %v1657
    %2038 = vmatprep.subr.mxu0 %v1666
    %2039 = vmatpush1.msra.mxu0 %v1665
    %2040 = vmatprep.subr.mxu0 0.0
    %2041 = vmatpush1.msra.mxu0 0.0
    %2042 = vmatprep.subr.mxu0 0.0
    %2043 = vmatpush1.msra.mxu0 0.0
    %2044 = vmatprep.subr.mxu0 0.0
    %2045 = vmatpush1.msra.mxu0 0.0
    %2046 = vmatprep.subr.mxu0 0.0
    %2047 = vmatpush1.msra.mxu0 0.0
    %2048 = vmatprep.subr.mxu0 0.0
    %2049 = vmatpush1.msra.mxu0 0.0
    %2050 = vmatprep.subr.mxu0 0.0
    %2051 = vmatpush1.msra.mxu0 0.0
    %2052 = vmatprep.subr.mxu0 0.0
    %2053 = vmatpush1.msra.mxu0 0.0
    %2054 = vmatprep.subr.mxu0 0.0
    %2055 = vmatpush1.msra.mxu0 0.0
    %2056 = vmatprep.subr.mxu0 0.0
    %2057 = vmatpush1.msra.mxu0 0.0
    %2058 = vmatprep.subr.mxu0 0.0
    %2059 = vmatpush1.msra.mxu0 0.0
    %2060 = vmatprep.subr.mxu0 0.0
    %2061 = vmatpush1.msra.mxu0 0.0
    %2062 = vmatprep.subr.mxu0 0.0
    %2063 = vmatpush1.msra.mxu0 0.0
    %2064 = vmatprep.subr.mxu0 0.0
    %2065 = vmatpush1.msra.mxu0 0.0
    %2066 = vmatprep.subr.mxu0 0.0
    %2067 = vmatpush1.msra.mxu0 0.0
    %2068 = vmatprep.subr.mxu0 0.0
    %2069 = vmatpush1.msra.mxu0 0.0
    %2070 = vmatprep.subr.mxu0 0.0
    %2071 = vmatpush1.msra.mxu0 0.0
    %2072 = vmatprep.mubr.f32.mxu0 0.0
    %2073 = vmatmul.mubr.f32.gmra.mrb[0].mxu0 %v1447
    %v2074 = vpop.f32.mrb[0].mxu0
    %v2075 = vadd.f32 %v1730, %v2074
    %v2076 = vpop.f32.mrb[0].mxu0
    %v2077 = vadd.f32 %v1734, %v2076
    %2078 = vmatprep.mubr.f32.mxu0 0.0
    %2079 = vmatmul.mubr.f32.gmra.mrb[0].mxu0 %v1448
    %v2080 = vpop.f32.mrb[0].mxu0
    %v2081 = vadd.f32 %v1730, %v2080
    %v2082 = vpop.f32.mrb[0].mxu0
    %v2083 = vadd.f32 %v1734, %v2082
    %2084 = vmatprep.mubr.f32.mxu0 0.0
    %2085 = vmatmul.mubr.f32.gmra.mrb[0].mxu0 %v1449
    %v2086 = vpop.f32.mrb[0].mxu0
    %v2087 = vadd.f32 %v1730, %v2086
    %v2088 = vpop.f32.mrb[0].mxu0
    %v2089 = vadd.f32 %v1734, %v2088
    %2090 = vmatprep.mubr.f32.mxu0 0.0
    %2091 = vmatmul.mubr.f32.gmra.mrb[0].mxu0 %v1450
    %v2092 = vpop.f32.mrb[0].mxu0
    %v2093 = vadd.f32 %v1730, %v2092
    %v2094 = vpop.f32.mrb[0].mxu0
    %v2095 = vadd.f32 %v1734, %v2094
    %2096 = vmatprep.mubr.f32.mxu0 0.0
    %2097 = vmatmul.mubr.f32.gmra.mrb[0].mxu0 %v1451
    %v2098 = vpop.f32.mrb[0].mxu0
    %v2099 = vadd.f32 %v1730, %v2098
    %v2100 = vpop.f32.mrb[0].mxu0
    %v2101 = vadd.f32 %v1734, %v2100
    %2102 = vmatprep.mubr.f32.mxu0 0.0
    %2103 = vmatmul.mubr.f32.gmra.mrb[0].mxu0 %v1452
    %v2104 = vpop.f32.mrb[0].mxu0
    %v2105 = vadd.f32 %v1730, %v2104
    %v2106 = vpop.f32.mrb[0].mxu0
    %v2107 = vadd.f32 %v1734, %v2106
    %2108 = vmatprep.mubr.f32.mxu0 0.0
    %2109 = vmatmul.mubr.f32.gmra.mrb[0].mxu0 %v1453
    %v2110 = vpop.f32.mrb[0].mxu0
    %v2111 = vadd.f32 %v1730, %v2110
    %v2112 = vpop.f32.mrb[0].mxu0
    %v2113 = vadd.f32 %v1734, %v2112
    %2114 = vmatprep.mubr.f32.mxu0 0.0
    %2115 = vmatmul.mubr.f32.gmra.mrb[0].mxu0 %v1454
    %v2116 = vpop.f32.mrb[0].mxu0
    %v2117 = vadd.f32 %v1730, %v2116
    %v2118 = vpop.f32.mrb[0].mxu0
    %v2119 = vadd.f32 %v1734, %v2118
    %2120 = vmatprep.mubr.f32.mxu0 0.0
    %2121 = vmatmul.mubr.f32.gmra.mrb[0].mxu0 %v1455
    %v2122 = vpop.f32.mrb[0].mxu0
    %v2123 = vadd.f32 %v1730, %v2122
    %v2124 = vpop.f32.mrb[0].mxu0
    %v2125 = vadd.f32 %v1734, %v2124
    %2126 = vmatprep.mubr.f32.mxu0 0.0
    %2127 = vmatmul.mubr.f32.gmra.mrb[0].mxu0 %v1456
    %v2128 = vpop.f32.mrb[0].mxu0
    %v2129 = vadd.f32 %v1730, %v2128
    %v2130 = vpop.f32.mrb[0].mxu0
    %v2131 = vadd.f32 %v1734, %v2130
    %2132 = vmatprep.mubr.f32.mxu0 0.0
    %2133 = vmatmul.mubr.f32.gmra.mrb[0].mxu0 %v1457
    %v2134 = vpop.f32.mrb[0].mxu0
    %v2135 = vadd.f32 %v1730, %v2134
    %v2136 = vpop.f32.mrb[0].mxu0
    %v2137 = vadd.f32 %v1734, %v2136
    %2138 = vmatprep.mubr.f32.mxu0 0.0
    %2139 = vmatmul.mubr.f32.gmra.mrb[0].mxu0 %v1458
    %v2140 = vpop.f32.mrb[0].mxu0
    %v2141 = vadd.f32 %v1730, %v2140
    %v2142 = vpop.f32.mrb[0].mxu0
    %v2143 = vadd.f32 %v1734, %v2142
    %2144 = vmatprep.mubr.f32.mxu0 0.0
    %2145 = vmatmul.mubr.f32.gmra.mrb[0].mxu0 %v1459
    %v2146 = vpop.f32.mrb[0].mxu0
    %v2147 = vadd.f32 %v1730, %v2146
    %v2148 = vpop.f32.mrb[0].mxu0
    %v2149 = vadd.f32 %v1734, %v2148
    %2150 = vmatprep.mubr.f32.mxu0 0.0
    %2151 = vmatmul.mubr.f32.gmra.mrb[0].mxu0 %v1460
    %v2152 = vpop.f32.mrb[0].mxu0
    %v2153 = vadd.f32 %v1730, %v2152
    %v2154 = vpop.f32.mrb[0].mxu0
    %v2155 = vadd.f32 %v1734, %v2154
    %2156 = vmatprep.mubr.f32.mxu0 0.0
    %2157 = vmatmul.mubr.f32.gmra.mrb[0].mxu0 %v1461
    %v2158 = vpop.f32.mrb[0].mxu0
    %v2159 = vadd.f32 %v1730, %v2158
    %v2160 = vpop.f32.mrb[0].mxu0
    %v2161 = vadd.f32 %v1734, %v2160
    %2162 = vmatprep.mubr.f32.mxu0 0.0
    %2163 = vmatmul.mubr.f32.gmra.mrb[0].mxu0 %v1462
    %v2164 = vpop.f32.mrb[0].mxu0
    %v2165 = vadd.f32 %v1730, %v2164
    %v2166 = vpop.f32.mrb[0].mxu0
    %v2167 = vadd.f32 %v1734, %v2166
    %2168 = vmatprep.mubr.f32.mxu0 0.0
    %2169 = vmatmul.mubr.f32.gmra.mrb[0].mxu0 %v1463
    %v2170 = vpop.f32.mrb[0].mxu0
    %v2171 = vadd.f32 %v1730, %v2170
    %v2172 = vpop.f32.mrb[0].mxu0
    %v2173 = vadd.f32 %v1734, %v2172
    %2174 = vmatprep.mubr.f32.mxu0 0.0
    %2175 = vmatmul.mubr.f32.gmra.mrb[0].mxu0 %v1464
    %v2176 = vpop.f32.mrb[0].mxu0
    %v2177 = vadd.f32 %v1730, %v2176
    %v2178 = vpop.f32.mrb[0].mxu0
    %v2179 = vadd.f32 %v1734, %v2178
    %2180 = vmatprep.mubr.f32.mxu0 0.0
    %2181 = vmatmul.mubr.f32.gmra.mrb[0].mxu0 %v1465
    %v2182 = vpop.f32.mrb[0].mxu0
    %v2183 = vadd.f32 %v1730, %v2182
    %v2184 = vpop.f32.mrb[0].mxu0
    %v2185 = vadd.f32 %v1734, %v2184
    %2186 = vmatprep.mubr.f32.mxu0 0.0
    %2187 = vmatmul.mubr.f32.gmra.mrb[0].mxu0 %v1466
    %v2188 = vpop.f32.mrb[0].mxu0
    %v2189 = vadd.f32 %v1730, %v2188
    %v2190 = vpop.f32.mrb[0].mxu0
    %v2191 = vadd.f32 %v1734, %v2190
    %2192 = vmatprep.mubr.f32.mxu0 0.0
    %2193 = vmatmul.mubr.f32.gmra.mrb[0].mxu0 %v1467
    %v2194 = vpop.f32.mrb[0].mxu0
    %v2195 = vadd.f32 %v1730, %v2194
    %v2196 = vpop.f32.mrb[0].mxu0
    %v2197 = vadd.f32 %v1734, %v2196
    %2198 = vmatprep.mubr.f32.mxu0 0.0
    %2199 = vmatmul.mubr.f32.gmra.mrb[0].mxu0 %v1468
    %v2200 = vpop.f32.mrb[0].mxu0
    %v2201 = vadd.f32 %v1730, %v2200
    %v2202 = vpop.f32.mrb[0].mxu0
    %v2203 = vadd.f32 %v1734, %v2202
    %2204 = vmatprep.mubr.f32.mxu0 0.0
    %2205 = vmatmul.mubr.f32.gmra.mrb[0].mxu0 %v1469
    %v2206 = vpop.f32.mrb[0].mxu0
    %v2207 = vadd.f32 %v1730, %v2206
    %v2208 = vpop.f32.mrb[0].mxu0
    %v2209 = vadd.f32 %v1734, %v2208
    %2210 = vmatprep.mubr.f32.mxu0 0.0
    %2211 = vmatmul.mubr.f32.gmra.mrb[0].mxu0 %v1470
    %v2212 = vpop.f32.mrb[0].mxu0
    %v2213 = vadd.f32 %v1730, %v2212
    %v2214 = vpop.f32.mrb[0].mxu0
    %v2215 = vadd.f32 %v1734, %v2214
    %2216 = vmatprep.mubr.f32.mxu0 0.0
    %2217 = vmatmul.mubr.f32.gmra.mrb[0].mxu0 %v1471
    %v2218 = vpop.f32.mrb[0].mxu0
    %v2219 = vadd.f32 %v1730, %v2218
    %v2220 = vpop.f32.mrb[0].mxu0
    %v2221 = vadd.f32 %v1734, %v2220
    %2222 = vmatprep.mubr.f32.mxu0 0.0
    %2223 = vmatmul.mubr.f32.gmra.mrb[0].mxu0 %v1472
    %v2224 = vpop.f32.mrb[0].mxu0
    %v2225 = vadd.f32 %v1730, %v2224
    %v2226 = vpop.f32.mrb[0].mxu0
    %v2227 = vadd.f32 %v1734, %v2226
    %2228 = vmatprep.mubr.f32.mxu0 0.0
    %2229 = vmatmul.mubr.f32.gmra.mrb[0].mxu0 %v1473
    %v2230 = vpop.f32.mrb[0].mxu0
    %v2231 = vadd.f32 %v1730, %v2230
    %v2232 = vpop.f32.mrb[0].mxu0
    %v2233 = vadd.f32 %v1734, %v2232
    %2234 = vmatprep.mubr.f32.mxu0 0.0
    %2235 = vmatmul.mubr.f32.gmra.mrb[0].mxu0 %v1474
    %v2236 = vpop.f32.mrb[0].mxu0
    %v2237 = vadd.f32 %v1730, %v2236
    %v2238 = vpop.f32.mrb[0].mxu0
    %v2239 = vadd.f32 %v1734, %v2238
    %2240 = vmatprep.mubr.f32.mxu0 0.0
    %2241 = vmatmul.mubr.f32.gmra.mrb[0].mxu0 %v1475
    %v2242 = vpop.f32.mrb[0].mxu0
    %v2243 = vadd.f32 %v1730, %v2242
    %v2244 = vpop.f32.mrb[0].mxu0
    %v2245 = vadd.f32 %v1734, %v2244
    %2246 = vmatprep.mubr.f32.mxu0 0.0
    %2247 = vmatmul.mubr.f32.gmra.mrb[0].mxu0 %v1476
    %v2248 = vpop.f32.mrb[0].mxu0
    %v2249 = vadd.f32 %v1730, %v2248
    %v2250 = vpop.f32.mrb[0].mxu0
    %v2251 = vadd.f32 %v1734, %v2250
    %2252 = vmatprep.mubr.f32.mxu0 0.0
    %2253 = vmatmul.mubr.f32.gmra.mrb[0].mxu0 %v1477
    %v2254 = vpop.f32.mrb[0].mxu0
    %v2255 = vadd.f32 %v1730, %v2254
    %v2256 = vpop.f32.mrb[0].mxu0
    %v2257 = vadd.f32 %v1734, %v2256
    %2258 = vmatprep.mubr.f32.mxu0 0.0
    %2259 = vmatmul.mubr.f32.gmra.mrb[0].mxu0 %v1478
    %v2260 = vpop.f32.mrb[0].mxu0
    %v2261 = vadd.f32 %v1730, %v2260
    %v2262 = vpop.f32.mrb[0].mxu0
    %v2263 = vadd.f32 %v1734, %v2262
    %2264 = vdwg.mxu0
    %2265 = vmatprep.subr.mxu0 %v1548
    %2266 = vmatpush1.msra.mxu0 %v1547
    %2267 = vmatprep.subr.mxu0 %v1556
    %2268 = vmatpush1.msra.mxu0 %v1555
    %2269 = vmatprep.subr.mxu0 %v1564
    %2270 = vmatpush1.msra.mxu0 %v1563
    %2271 = vmatprep.subr.mxu0 %v1572
    %2272 = vmatpush1.msra.mxu0 %v1571
    %2273 = vmatprep.subr.mxu0 %v1580
    %2274 = vmatpush1.msra.mxu0 %v1579
    %2275 = vmatprep.subr.mxu0 %v1588
    %2276 = vmatpush1.msra.mxu0 %v1587
    %2277 = vmatprep.subr.mxu0 %v1596
    %2278 = vmatpush1.msra.mxu0 %v1595
    %2279 = vmatprep.subr.mxu0 %v1604
    %2280 = vmatpush1.msra.mxu0 %v1603
    %2281 = vmatprep.subr.mxu0 %v1612
    %2282 = vmatpush1.msra.mxu0 %v1611
    %2283 = vmatprep.subr.mxu0 %v1620
    %2284 = vmatpush1.msra.mxu0 %v1619
    %2285 = vmatprep.subr.mxu0 %v1628
    %2286 = vmatpush1.msra.mxu0 %v1627
    %2287 = vmatprep.subr.mxu0 %v1636
    %2288 = vmatpush1.msra.mxu0 %v1635
    %2289 = vmatprep.subr.mxu0 %v1644
    %2290 = vmatpush1.msra.mxu0 %v1643
    %2291 = vmatprep.subr.mxu0 %v1652
    %2292 = vmatpush1.msra.mxu0 %v1651
    %2293 = vmatprep.subr.mxu0 %v1660
    %2294 = vmatpush1.msra.mxu0 %v1659
    %2295 = vmatprep.subr.mxu0 %v1668
    %2296 = vmatpush1.msra.mxu0 %v1667
    %2297 = vmatprep.subr.mxu0 0.0
    %2298 = vmatpush1.msra.mxu0 0.0
    %2299 = vmatprep.subr.mxu0 0.0
    %2300 = vmatpush1.msra.mxu0 0.0
    %2301 = vmatprep.subr.mxu0 0.0
    %2302 = vmatpush1.msra.mxu0 0.0
    %2303 = vmatprep.subr.mxu0 0.0
    %2304 = vmatpush1.msra.mxu0 0.0
    %2305 = vmatprep.subr.mxu0 0.0
    %2306 = vmatpush1.msra.mxu0 0.0
    %2307 = vmatprep.subr.mxu0 0.0
    %2308 = vmatpush1.msra.mxu0 0.0
    %2309 = vmatprep.subr.mxu0 0.0
    %2310 = vmatpush1.msra.mxu0 0.0
    %2311 = vmatprep.subr.mxu0 0.0
    %2312 = vmatpush1.msra.mxu0 0.0
    %2313 = vmatprep.subr.mxu0 0.0
    %2314 = vmatpush1.msra.mxu0 0.0
    %2315 = vmatprep.subr.mxu0 0.0
    %2316 = vmatpush1.msra.mxu0 0.0
    %2317 = vmatprep.subr.mxu0 0.0
    %2318 = vmatpush1.msra.mxu0 0.0
    %2319 = vmatprep.subr.mxu0 0.0
    %2320 = vmatpush1.msra.mxu0 0.0
    %2321 = vmatprep.subr.mxu0 0.0
    %2322 = vmatpush1.msra.mxu0 0.0
    %2323 = vmatprep.subr.mxu0 0.0
    %2324 = vmatpush1.msra.mxu0 0.0
    %2325 = vmatprep.subr.mxu0 0.0
    %2326 = vmatpush1.msra.mxu0 0.0
    %2327 = vmatprep.subr.mxu0 0.0
    %2328 = vmatpush1.msra.mxu0 0.0
    %2329 = vmatprep.mubr.f32.mxu0 0.0
    %2330 = vmatmul.mubr.f32.gmra.mrb[0].mxu0 %v1447
    %v2331 = vpop.f32.mrb[0].mxu0
    %v2332 = vadd.f32 %v1738, %v2331
    %v2333 = vpop.f32.mrb[0].mxu0
    %v2334 = vadd.f32 %v1742, %v2333
    %2335 = vmatprep.mubr.f32.mxu0 0.0
    %2336 = vmatmul.mubr.f32.gmra.mrb[0].mxu0 %v1448
    %v2337 = vpop.f32.mrb[0].mxu0
    %v2338 = vadd.f32 %v1738, %v2337
    %v2339 = vpop.f32.mrb[0].mxu0
    %v2340 = vadd.f32 %v1742, %v2339
    %2341 = vmatprep.mubr.f32.mxu0 0.0
    %2342 = vmatmul.mubr.f32.gmra.mrb[0].mxu0 %v1449
    %v2343 = vpop.f32.mrb[0].mxu0
    %v2344 = vadd.f32 %v1738, %v2343
    %v2345 = vpop.f32.mrb[0].mxu0
    %v2346 = vadd.f32 %v1742, %v2345
    %2347 = vmatprep.mubr.f32.mxu0 0.0
    %2348 = vmatmul.mubr.f32.gmra.mrb[0].mxu0 %v1450
    %v2349 = vpop.f32.mrb[0].mxu0
    %v2350 = vadd.f32 %v1738, %v2349
    %v2351 = vpop.f32.mrb[0].mxu0
    %v2352 = vadd.f32 %v1742, %v2351
    %2353 = vmatprep.mubr.f32.mxu0 0.0
    %2354 = vmatmul.mubr.f32.gmra.mrb[0].mxu0 %v1451
    %v2355 = vpop.f32.mrb[0].mxu0
    %v2356 = vadd.f32 %v1738, %v2355
    %v2357 = vpop.f32.mrb[0].mxu0
    %v2358 = vadd.f32 %v1742, %v2357
    %2359 = vmatprep.mubr.f32.mxu0 0.0
    %2360 = vmatmul.mubr.f32.gmra.mrb[0].mxu0 %v1452
    %v2361 = vpop.f32.mrb[0].mxu0
    %v2362 = vadd.f32 %v1738, %v2361
    %v2363 = vpop.f32.mrb[0].mxu0
    %v2364 = vadd.f32 %v1742, %v2363
    %2365 = vmatprep.mubr.f32.mxu0 0.0
    %2366 = vmatmul.mubr.f32.gmra.mrb[0].mxu0 %v1453
    %v2367 = vpop.f32.mrb[0].mxu0
    %v2368 = vadd.f32 %v1738, %v2367
    %v2369 = vpop.f32.mrb[0].mxu0
    %v2370 = vadd.f32 %v1742, %v2369
    %2371 = vmatprep.mubr.f32.mxu0 0.0
    %2372 = vmatmul.mubr.f32.gmra.mrb[0].mxu0 %v1454
    %v2373 = vpop.f32.mrb[0].mxu0
    %v2374 = vadd.f32 %v1738, %v2373
    %v2375 = vpop.f32.mrb[0].mxu0
    %v2376 = vadd.f32 %v1742, %v2375
    %2377 = vmatprep.mubr.f32.mxu0 0.0
    %2378 = vmatmul.mubr.f32.gmra.mrb[0].mxu0 %v1455
    %v2379 = vpop.f32.mrb[0].mxu0
    %v2380 = vadd.f32 %v1738, %v2379
    %v2381 = vpop.f32.mrb[0].mxu0
    %v2382 = vadd.f32 %v1742, %v2381
    %2383 = vmatprep.mubr.f32.mxu0 0.0
    %2384 = vmatmul.mubr.f32.gmra.mrb[0].mxu0 %v1456
    %v2385 = vpop.f32.mrb[0].mxu0
    %v2386 = vadd.f32 %v1738, %v2385
    %v2387 = vpop.f32.mrb[0].mxu0
    %v2388 = vadd.f32 %v1742, %v2387
    %2389 = vmatprep.mubr.f32.mxu0 0.0
    %2390 = vmatmul.mubr.f32.gmra.mrb[0].mxu0 %v1457
    %v2391 = vpop.f32.mrb[0].mxu0
    %v2392 = vadd.f32 %v1738, %v2391
    %v2393 = vpop.f32.mrb[0].mxu0
    %v2394 = vadd.f32 %v1742, %v2393
    %2395 = vmatprep.mubr.f32.mxu0 0.0
    %2396 = vmatmul.mubr.f32.gmra.mrb[0].mxu0 %v1458
    %v2397 = vpop.f32.mrb[0].mxu0
    %v2398 = vadd.f32 %v1738, %v2397
    %v2399 = vpop.f32.mrb[0].mxu0
    %v2400 = vadd.f32 %v1742, %v2399
    %2401 = vmatprep.mubr.f32.mxu0 0.0
    %2402 = vmatmul.mubr.f32.gmra.mrb[0].mxu0 %v1459
    %v2403 = vpop.f32.mrb[0].mxu0
    %v2404 = vadd.f32 %v1738, %v2403
    %v2405 = vpop.f32.mrb[0].mxu0
    %v2406 = vadd.f32 %v1742, %v2405
    %2407 = vmatprep.mubr.f32.mxu0 0.0
    %2408 = vmatmul.mubr.f32.gmra.mrb[0].mxu0 %v1460
    %v2409 = vpop.f32.mrb[0].mxu0
    %v2410 = vadd.f32 %v1738, %v2409
    %v2411 = vpop.f32.mrb[0].mxu0
    %v2412 = vadd.f32 %v1742, %v2411
    %2413 = vmatprep.mubr.f32.mxu0 0.0
    %2414 = vmatmul.mubr.f32.gmra.mrb[0].mxu0 %v1461
    %v2415 = vpop.f32.mrb[0].mxu0
    %v2416 = vadd.f32 %v1738, %v2415
    %v2417 = vpop.f32.mrb[0].mxu0
    %v2418 = vadd.f32 %v1742, %v2417
    %2419 = vmatprep.mubr.f32.mxu0 0.0
    %2420 = vmatmul.mubr.f32.gmra.mrb[0].mxu0 %v1462
    %v2421 = vpop.f32.mrb[0].mxu0
    %v2422 = vadd.f32 %v1738, %v2421
    %v2423 = vpop.f32.mrb[0].mxu0
    %v2424 = vadd.f32 %v1742, %v2423
    %2425 = vmatprep.mubr.f32.mxu0 0.0
    %2426 = vmatmul.mubr.f32.gmra.mrb[0].mxu0 %v1463
    %v2427 = vpop.f32.mrb[0].mxu0
    %v2428 = vadd.f32 %v1738, %v2427
    %v2429 = vpop.f32.mrb[0].mxu0
    %v2430 = vadd.f32 %v1742, %v2429
    %2431 = vmatprep.mubr.f32.mxu0 0.0
    %2432 = vmatmul.mubr.f32.gmra.mrb[0].mxu0 %v1464
    %v2433 = vpop.f32.mrb[0].mxu0
    %v2434 = vadd.f32 %v1738, %v2433
    %v2435 = vpop.f32.mrb[0].mxu0
    %v2436 = vadd.f32 %v1742, %v2435
    %2437 = vmatprep.mubr.f32.mxu0 0.0
    %2438 = vmatmul.mubr.f32.gmra.mrb[0].mxu0 %v1465
    %v2439 = vpop.f32.mrb[0].mxu0
    %v2440 = vadd.f32 %v1738, %v2439
    %v2441 = vpop.f32.mrb[0].mxu0
    %v2442 = vadd.f32 %v1742, %v2441
    %2443 = vmatprep.mubr.f32.mxu0 0.0
    %2444 = vmatmul.mubr.f32.gmra.mrb[0].mxu0 %v1466
    %v2445 = vpop.f32.mrb[0].mxu0
    %v2446 = vadd.f32 %v1738, %v2445
    %v2447 = vpop.f32.mrb[0].mxu0
    %v2448 = vadd.f32 %v1742, %v2447
    %2449 = vmatprep.mubr.f32.mxu0 0.0
    %2450 = vmatmul.mubr.f32.gmra.mrb[0].mxu0 %v1467
    %v2451 = vpop.f32.mrb[0].mxu0
    %v2452 = vadd.f32 %v1738, %v2451
    %v2453 = vpop.f32.mrb[0].mxu0
    %v2454 = vadd.f32 %v1742, %v2453
    %2455 = vmatprep.mubr.f32.mxu0 0.0
    %2456 = vmatmul.mubr.f32.gmra.mrb[0].mxu0 %v1468
    %v2457 = vpop.f32.mrb[0].mxu0
    %v2458 = vadd.f32 %v1738, %v2457
    %v2459 = vpop.f32.mrb[0].mxu0
    %v2460 = vadd.f32 %v1742, %v2459
    %2461 = vmatprep.mubr.f32.mxu0 0.0
    %2462 = vmatmul.mubr.f32.gmra.mrb[0].mxu0 %v1469
    %v2463 = vpop.f32.mrb[0].mxu0
    %v2464 = vadd.f32 %v1738, %v2463
    %v2465 = vpop.f32.mrb[0].mxu0
    %v2466 = vadd.f32 %v1742, %v2465
    %2467 = vmatprep.mubr.f32.mxu0 0.0
    %2468 = vmatmul.mubr.f32.gmra.mrb[0].mxu0 %v1470
    %v2469 = vpop.f32.mrb[0].mxu0
    %v2470 = vadd.f32 %v1738, %v2469
    %v2471 = vpop.f32.mrb[0].mxu0
    %v2472 = vadd.f32 %v1742, %v2471
    %2473 = vmatprep.mubr.f32.mxu0 0.0
    %2474 = vmatmul.mubr.f32.gmra.mrb[0].mxu0 %v1471
    %v2475 = vpop.f32.mrb[0].mxu0
    %v2476 = vadd.f32 %v1738, %v2475
    %v2477 = vpop.f32.mrb[0].mxu0
    %v2478 = vadd.f32 %v1742, %v2477
    %2479 = vmatprep.mubr.f32.mxu0 0.0
    %2480 = vmatmul.mubr.f32.gmra.mrb[0].mxu0 %v1472
    %v2481 = vpop.f32.mrb[0].mxu0
    %v2482 = vadd.f32 %v1738, %v2481
    %v2483 = vpop.f32.mrb[0].mxu0
    %v2484 = vadd.f32 %v1742, %v2483
    %2485 = vmatprep.mubr.f32.mxu0 0.0
    %2486 = vmatmul.mubr.f32.gmra.mrb[0].mxu0 %v1473
    %v2487 = vpop.f32.mrb[0].mxu0
    %v2488 = vadd.f32 %v1738, %v2487
    %v2489 = vpop.f32.mrb[0].mxu0
    %v2490 = vadd.f32 %v1742, %v2489
    %2491 = vmatprep.mubr.f32.mxu0 0.0
    %2492 = vmatmul.mubr.f32.gmra.mrb[0].mxu0 %v1474
    %v2493 = vpop.f32.mrb[0].mxu0
    %v2494 = vadd.f32 %v1738, %v2493
    %v2495 = vpop.f32.mrb[0].mxu0
    %v2496 = vadd.f32 %v1742, %v2495
    %2497 = vmatprep.mubr.f32.mxu0 0.0
    %2498 = vmatmul.mubr.f32.gmra.mrb[0].mxu0 %v1475
    %v2499 = vpop.f32.mrb[0].mxu0
    %v2500 = vadd.f32 %v1738, %v2499
    %v2501 = vpop.f32.mrb[0].mxu0
    %v2502 = vadd.f32 %v1742, %v2501
    %2503 = vmatprep.mubr.f32.mxu0 0.0
    %2504 = vmatmul.mubr.f32.gmra.mrb[0].mxu0 %v1476
    %v2505 = vpop.f32.mrb[0].mxu0
    %v2506 = vadd.f32 %v1738, %v2505
    %v2507 = vpop.f32.mrb[0].mxu0
    %v2508 = vadd.f32 %v1742, %v2507
    %2509 = vmatprep.mubr.f32.mxu0 0.0
    %2510 = vmatmul.mubr.f32.gmra.mrb[0].mxu0 %v1477
    %v2511 = vpop.f32.mrb[0].mxu0
    %v2512 = vadd.f32 %v1738, %v2511
    %v2513 = vpop.f32.mrb[0].mxu0
    %v2514 = vadd.f32 %v1742, %v2513
    %2515 = vmatprep.mubr.f32.mxu0 0.0
    %2516 = vmatmul.mubr.f32.gmra.mrb[0].mxu0 %v1478
    %v2517 = vpop.f32.mrb[0].mxu0
    %v2518 = vadd.f32 %v1738, %v2517
    %v2519 = vpop.f32.mrb[0].mxu0
    %v2520 = vadd.f32 %v1742, %v2519
    %2521 = vdwg.mxu0
    %2522 = vmatprep.subr.mxu0 %v1550
    %2523 = vmatpush1.msra.mxu0 %v1549
    %2524 = vmatprep.subr.mxu0 %v1558
    %2525 = vmatpush1.msra.mxu0 %v1557
    %2526 = vmatprep.subr.mxu0 %v1566
    %2527 = vmatpush1.msra.mxu0 %v1565
    %2528 = vmatprep.subr.mxu0 %v1574
    %2529 = vmatpush1.msra.mxu0 %v1573
    %2530 = vmatprep.subr.mxu0 %v1582
    %2531 = vmatpush1.msra.mxu0 %v1581
    %2532 = vmatprep.subr.mxu0 %v1590
    %2533 = vmatpush1.msra.mxu0 %v1589
    %2534 = vmatprep.subr.mxu0 %v1598
    %2535 = vmatpush1.msra.mxu0 %v1597
    %2536 = vmatprep.subr.mxu0 %v1606
    %2537 = vmatpush1.msra.mxu0 %v1605
    %2538 = vmatprep.subr.mxu0 %v1614
    %2539 = vmatpush1.msra.mxu0 %v1613
    %2540 = vmatprep.subr.mxu0 %v1622
    %2541 = vmatpush1.msra.mxu0 %v1621
    %2542 = vmatprep.subr.mxu0 %v1630
    %2543 = vmatpush1.msra.mxu0 %v1629
    %2544 = vmatprep.subr.mxu0 %v1638
    %2545 = vmatpush1.msra.mxu0 %v1637
    %2546 = vmatprep.subr.mxu0 %v1646
    %2547 = vmatpush1.msra.mxu0 %v1645
    %2548 = vmatprep.subr.mxu0 %v1654
    %2549 = vmatpush1.msra.mxu0 %v1653
    %2550 = vmatprep.subr.mxu0 %v1662
    %2551 = vmatpush1.msra.mxu0 %v1661
    %2552 = vmatprep.subr.mxu0 %v1670
    %2553 = vmatpush1.msra.mxu0 %v1669
    %2554 = vmatprep.subr.mxu0 0.0
    %2555 = vmatpush1.msra.mxu0 0.0
    %2556 = vmatprep.subr.mxu0 0.0
    %2557 = vmatpush1.msra.mxu0 0.0
    %2558 = vmatprep.subr.mxu0 0.0
    %2559 = vmatpush1.msra.mxu0 0.0
    %2560 = vmatprep.subr.mxu0 0.0
    %2561 = vmatpush1.msra.mxu0 0.0
    %2562 = vmatprep.subr.mxu0 0.0
    %2563 = vmatpush1.msra.mxu0 0.0
    %2564 = vmatprep.subr.mxu0 0.0
    %2565 = vmatpush1.msra.mxu0 0.0
    %2566 = vmatprep.subr.mxu0 0.0
    %2567 = vmatpush1.msra.mxu0 0.0
    %2568 = vmatprep.subr.mxu0 0.0
    %2569 = vmatpush1.msra.mxu0 0.0
    %2570 = vmatprep.subr.mxu0 0.0
    %2571 = vmatpush1.msra.mxu0 0.0
    %2572 = vmatprep.subr.mxu0 0.0
    %2573 = vmatpush1.msra.mxu0 0.0
    %2574 = vmatprep.subr.mxu0 0.0
    %2575 = vmatpush1.msra.mxu0 0.0
    %2576 = vmatprep.subr.mxu0 0.0
    %2577 = vmatpush1.msra.mxu0 0.0
    %2578 = vmatprep.subr.mxu0 0.0
    %2579 = vmatpush1.msra.mxu0 0.0
    %2580 = vmatprep.subr.mxu0 0.0
    %2581 = vmatpush1.msra.mxu0 0.0
    %2582 = vmatprep.subr.mxu0 0.0
    %2583 = vmatpush1.msra.mxu0 0.0
    %2584 = vmatprep.subr.mxu0 0.0
    %2585 = vmatpush1.msra.mxu0 0.0
    %2586 = vmatprep.mubr.f32.mxu0 0.0
    %2587 = vmatmul.mubr.f32.gmra.mrb[0].mxu0 %v1447
    %v2588 = vpop.f32.mrb[0].mxu0
    %v2589 = vadd.f32 %v1746, %v2588
    %v2590 = vpop.f32.mrb[0].mxu0
    %v2591 = vadd.f32 %v1750, %v2590
    %2592 = vmatprep.mubr.f32.mxu0 0.0
    %2593 = vmatmul.mubr.f32.gmra.mrb[0].mxu0 %v1448
    %v2594 = vpop.f32.mrb[0].mxu0
    %v2595 = vadd.f32 %v1746, %v2594
    %v2596 = vpop.f32.mrb[0].mxu0
    %v2597 = vadd.f32 %v1750, %v2596
    %2598 = vmatprep.mubr.f32.mxu0 0.0
    %2599 = vmatmul.mubr.f32.gmra.mrb[0].mxu0 %v1449
    %v2600 = vpop.f32.mrb[0].mxu0
    %v2601 = vadd.f32 %v1746, %v2600
    %v2602 = vpop.f32.mrb[0].mxu0
    %v2603 = vadd.f32 %v1750, %v2602
    %2604 = vmatprep.mubr.f32.mxu0 0.0
    %2605 = vmatmul.mubr.f32.gmra.mrb[0].mxu0 %v1450
    %v2606 = vpop.f32.mrb[0].mxu0
    %v2607 = vadd.f32 %v1746, %v2606
    %v2608 = vpop.f32.mrb[0].mxu0
    %v2609 = vadd.f32 %v1750, %v2608
    %2610 = vmatprep.mubr.f32.mxu0 0.0
    %2611 = vmatmul.mubr.f32.gmra.mrb[0].mxu0 %v1451
    %v2612 = vpop.f32.mrb[0].mxu0
    %v2613 = vadd.f32 %v1746, %v2612
    %v2614 = vpop.f32.mrb[0].mxu0
    %v2615 = vadd.f32 %v1750, %v2614
    %2616 = vmatprep.mubr.f32.mxu0 0.0
    %2617 = vmatmul.mubr.f32.gmra.mrb[0].mxu0 %v1452
    %v2618 = vpop.f32.mrb[0].mxu0
    %v2619 = vadd.f32 %v1746, %v2618
    %v2620 = vpop.f32.mrb[0].mxu0
    %v2621 = vadd.f32 %v1750, %v2620
    %2622 = vmatprep.mubr.f32.mxu0 0.0
    %2623 = vmatmul.mubr.f32.gmra.mrb[0].mxu0 %v1453
    %v2624 = vpop.f32.mrb[0].mxu0
    %v2625 = vadd.f32 %v1746, %v2624
    %v2626 = vpop.f32.mrb[0].mxu0
    %v2627 = vadd.f32 %v1750, %v2626
    %2628 = vmatprep.mubr.f32.mxu0 0.0
    %2629 = vmatmul.mubr.f32.gmra.mrb[0].mxu0 %v1454
    %v2630 = vpop.f32.mrb[0].mxu0
    %v2631 = vadd.f32 %v1746, %v2630
    %v2632 = vpop.f32.mrb[0].mxu0
    %v2633 = vadd.f32 %v1750, %v2632
    %2634 = vmatprep.mubr.f32.mxu0 0.0
    %2635 = vmatmul.mubr.f32.gmra.mrb[0].mxu0 %v1455
    %v2636 = vpop.f32.mrb[0].mxu0
    %v2637 = vadd.f32 %v1746, %v2636
    %v2638 = vpop.f32.mrb[0].mxu0
    %v2639 = vadd.f32 %v1750, %v2638
    %2640 = vmatprep.mubr.f32.mxu0 0.0
    %2641 = vmatmul.mubr.f32.gmra.mrb[0].mxu0 %v1456
    %v2642 = vpop.f32.mrb[0].mxu0
    %v2643 = vadd.f32 %v1746, %v2642
    %v2644 = vpop.f32.mrb[0].mxu0
    %v2645 = vadd.f32 %v1750, %v2644
    %2646 = vmatprep.mubr.f32.mxu0 0.0
    %2647 = vmatmul.mubr.f32.gmra.mrb[0].mxu0 %v1457
    %v2648 = vpop.f32.mrb[0].mxu0
    %v2649 = vadd.f32 %v1746, %v2648
    %v2650 = vpop.f32.mrb[0].mxu0
    %v2651 = vadd.f32 %v1750, %v2650
    %2652 = vmatprep.mubr.f32.mxu0 0.0
    %2653 = vmatmul.mubr.f32.gmra.mrb[0].mxu0 %v1458
    %v2654 = vpop.f32.mrb[0].mxu0
    %v2655 = vadd.f32 %v1746, %v2654
    %v2656 = vpop.f32.mrb[0].mxu0
    %v2657 = vadd.f32 %v1750, %v2656
    %2658 = vmatprep.mubr.f32.mxu0 0.0
    %2659 = vmatmul.mubr.f32.gmra.mrb[0].mxu0 %v1459
    %v2660 = vpop.f32.mrb[0].mxu0
    %v2661 = vadd.f32 %v1746, %v2660
    %v2662 = vpop.f32.mrb[0].mxu0
    %v2663 = vadd.f32 %v1750, %v2662
    %2664 = vmatprep.mubr.f32.mxu0 0.0
    %2665 = vmatmul.mubr.f32.gmra.mrb[0].mxu0 %v1460
    %v2666 = vpop.f32.mrb[0].mxu0
    %v2667 = vadd.f32 %v1746, %v2666
    %v2668 = vpop.f32.mrb[0].mxu0
    %v2669 = vadd.f32 %v1750, %v2668
    %2670 = vmatprep.mubr.f32.mxu0 0.0
    %2671 = vmatmul.mubr.f32.gmra.mrb[0].mxu0 %v1461
    %v2672 = vpop.f32.mrb[0].mxu0
    %v2673 = vadd.f32 %v1746, %v2672
    %v2674 = vpop.f32.mrb[0].mxu0
    %v2675 = vadd.f32 %v1750, %v2674
    %2676 = vmatprep.mubr.f32.mxu0 0.0
    %2677 = vmatmul.mubr.f32.gmra.mrb[0].mxu0 %v1462
    %v2678 = vpop.f32.mrb[0].mxu0
    %v2679 = vadd.f32 %v1746, %v2678
    %v2680 = vpop.f32.mrb[0].mxu0
    %v2681 = vadd.f32 %v1750, %v2680
    %2682 = vmatprep.mubr.f32.mxu0 0.0
    %2683 = vmatmul.mubr.f32.gmra.mrb[0].mxu0 %v1463
    %v2684 = vpop.f32.mrb[0].mxu0
    %v2685 = vadd.f32 %v1746, %v2684
    %v2686 = vpop.f32.mrb[0].mxu0
    %v2687 = vadd.f32 %v1750, %v2686
    %2688 = vmatprep.mubr.f32.mxu0 0.0
    %2689 = vmatmul.mubr.f32.gmra.mrb[0].mxu0 %v1464
    %v2690 = vpop.f32.mrb[0].mxu0
    %v2691 = vadd.f32 %v1746, %v2690
    %v2692 = vpop.f32.mrb[0].mxu0
    %v2693 = vadd.f32 %v1750, %v2692
    %2694 = vmatprep.mubr.f32.mxu0 0.0
    %2695 = vmatmul.mubr.f32.gmra.mrb[0].mxu0 %v1465
    %v2696 = vpop.f32.mrb[0].mxu0
    %v2697 = vadd.f32 %v1746, %v2696
    %v2698 = vpop.f32.mrb[0].mxu0
    %v2699 = vadd.f32 %v1750, %v2698
    %2700 = vmatprep.mubr.f32.mxu0 0.0
    %2701 = vmatmul.mubr.f32.gmra.mrb[0].mxu0 %v1466
    %v2702 = vpop.f32.mrb[0].mxu0
    %v2703 = vadd.f32 %v1746, %v2702
    %v2704 = vpop.f32.mrb[0].mxu0
    %v2705 = vadd.f32 %v1750, %v2704
    %2706 = vmatprep.mubr.f32.mxu0 0.0
    %2707 = vmatmul.mubr.f32.gmra.mrb[0].mxu0 %v1467
    %v2708 = vpop.f32.mrb[0].mxu0
    %v2709 = vadd.f32 %v1746, %v2708
    %v2710 = vpop.f32.mrb[0].mxu0
    %v2711 = vadd.f32 %v1750, %v2710
    %2712 = vmatprep.mubr.f32.mxu0 0.0
    %2713 = vmatmul.mubr.f32.gmra.mrb[0].mxu0 %v1468
    %v2714 = vpop.f32.mrb[0].mxu0
    %v2715 = vadd.f32 %v1746, %v2714
    %v2716 = vpop.f32.mrb[0].mxu0
    %v2717 = vadd.f32 %v1750, %v2716
    %2718 = vmatprep.mubr.f32.mxu0 0.0
    %2719 = vmatmul.mubr.f32.gmra.mrb[0].mxu0 %v1469
    %v2720 = vpop.f32.mrb[0].mxu0
    %v2721 = vadd.f32 %v1746, %v2720
    %v2722 = vpop.f32.mrb[0].mxu0
    %v2723 = vadd.f32 %v1750, %v2722
    %2724 = vmatprep.mubr.f32.mxu0 0.0
    %2725 = vmatmul.mubr.f32.gmra.mrb[0].mxu0 %v1470
    %v2726 = vpop.f32.mrb[0].mxu0
    %v2727 = vadd.f32 %v1746, %v2726
    %v2728 = vpop.f32.mrb[0].mxu0
    %v2729 = vadd.f32 %v1750, %v2728
    %2730 = vmatprep.mubr.f32.mxu0 0.0
    %2731 = vmatmul.mubr.f32.gmra.mrb[0].mxu0 %v1471
    %v2732 = vpop.f32.mrb[0].mxu0
    %v2733 = vadd.f32 %v1746, %v2732
    %v2734 = vpop.f32.mrb[0].mxu0
    %v2735 = vadd.f32 %v1750, %v2734
    %2736 = vmatprep.mubr.f32.mxu0 0.0
    %2737 = vmatmul.mubr.f32.gmra.mrb[0].mxu0 %v1472
    %v2738 = vpop.f32.mrb[0].mxu0
    %v2739 = vadd.f32 %v1746, %v2738
    %v2740 = vpop.f32.mrb[0].mxu0
    %v2741 = vadd.f32 %v1750, %v2740
    %2742 = vmatprep.mubr.f32.mxu0 0.0
    %2743 = vmatmul.mubr.f32.gmra.mrb[0].mxu0 %v1473
    %v2744 = vpop.f32.mrb[0].mxu0
    %v2745 = vadd.f32 %v1746, %v2744
    %v2746 = vpop.f32.mrb[0].mxu0
    %v2747 = vadd.f32 %v1750, %v2746
    %2748 = vmatprep.mubr.f32.mxu0 0.0
    %2749 = vmatmul.mubr.f32.gmra.mrb[0].mxu0 %v1474
    %v2750 = vpop.f32.mrb[0].mxu0
    %v2751 = vadd.f32 %v1746, %v2750
    %v2752 = vpop.f32.mrb[0].mxu0
    %v2753 = vadd.f32 %v1750, %v2752
    %2754 = vmatprep.mubr.f32.mxu0 0.0
    %2755 = vmatmul.mubr.f32.gmra.mrb[0].mxu0 %v1475
    %v2756 = vpop.f32.mrb[0].mxu0
    %v2757 = vadd.f32 %v1746, %v2756
    %v2758 = vpop.f32.mrb[0].mxu0
    %v2759 = vadd.f32 %v1750, %v2758
    %2760 = vmatprep.mubr.f32.mxu0 0.0
    %2761 = vmatmul.mubr.f32.gmra.mrb[0].mxu0 %v1476
    %v2762 = vpop.f32.mrb[0].mxu0
    %v2763 = vadd.f32 %v1746, %v2762
    %v2764 = vpop.f32.mrb[0].mxu0
    %v2765 = vadd.f32 %v1750, %v2764
    %2766 = vmatprep.mubr.f32.mxu0 0.0
    %2767 = vmatmul.mubr.f32.gmra.mrb[0].mxu0 %v1477
    %v2768 = vpop.f32.mrb[0].mxu0
    %v2769 = vadd.f32 %v1746, %v2768
    %v2770 = vpop.f32.mrb[0].mxu0
    %v2771 = vadd.f32 %v1750, %v2770
    %2772 = vmatprep.mubr.f32.mxu0 0.0
    %2773 = vmatmul.mubr.f32.gmra.mrb[0].mxu0 %v1478
    %v2774 = vpop.f32.mrb[0].mxu0
    %v2775 = vadd.f32 %v1746, %v2774
    %v2776 = vpop.f32.mrb[0].mxu0
    %v2777 = vadd.f32 %v1750, %v2776
    %2778 = vdwg.mxu0
    %v2779 = vmax.f32 %v1818, 0.0
    %v2780 = vmax.f32 %v1820, 0.0
    %v2781 = vmax.f32 %v2075, 0.0
    %v2782 = vmax.f32 %v2077, 0.0
    %v2783 = vmax.f32 %v2332, 0.0
    %v2784 = vmax.f32 %v2334, 0.0
    %v2785 = vmax.f32 %v2589, 0.0
    %v2786 = vmax.f32 %v2591, 0.0
    %v2787 = vmax.f32 %v1824, 0.0
    %v2788 = vmax.f32 %v1826, 0.0
    %v2789 = vmax.f32 %v2081, 0.0
    %v2790 = vmax.f32 %v2083, 0.0
    %v2791 = vmax.f32 %v2338, 0.0
    %v2792 = vmax.f32 %v2340, 0.0
    %v2793 = vmax.f32 %v2595, 0.0
    %v2794 = vmax.f32 %v2597, 0.0
    %v2795 = vmax.f32 %v1830, 0.0
    %v2796 = vmax.f32 %v1832, 0.0
    %v2797 = vmax.f32 %v2087, 0.0
    %v2798 = vmax.f32 %v2089, 0.0
    %v2799 = vmax.f32 %v2344, 0.0
    %v2800 = vmax.f32 %v2346, 0.0
    %v2801 = vmax.f32 %v2601, 0.0
    %v2802 = vmax.f32 %v2603, 0.0
    %v2803 = vmax.f32 %v1836, 0.0
    %v2804 = vmax.f32 %v1838, 0.0
    %v2805 = vmax.f32 %v2093, 0.0
    %v2806 = vmax.f32 %v2095, 0.0
    %v2807 = vmax.f32 %v2350, 0.0
    %v2808 = vmax.f32 %v2352, 0.0
    %v2809 = vmax.f32 %v2607, 0.0
    %v2810 = vmax.f32 %v2609, 0.0
    %v2811 = vmax.f32 %v1842, 0.0
    %v2812 = vmax.f32 %v1844, 0.0
    %v2813 = vmax.f32 %v2099, 0.0
    %v2814 = vmax.f32 %v2101, 0.0
    %v2815 = vmax.f32 %v2356, 0.0
    %v2816 = vmax.f32 %v2358, 0.0
    %v2817 = vmax.f32 %v2613, 0.0
    %v2818 = vmax.f32 %v2615, 0.0
    %v2819 = vmax.f32 %v1848, 0.0
    %v2820 = vmax.f32 %v1850, 0.0
    %v2821 = vmax.f32 %v2105, 0.0
    %v2822 = vmax.f32 %v2107, 0.0
    %v2823 = vmax.f32 %v2362, 0.0
    %v2824 = vmax.f32 %v2364, 0.0
    %v2825 = vmax.f32 %v2619, 0.0
    %v2826 = vmax.f32 %v2621, 0.0
    %v2827 = vmax.f32 %v1854, 0.0
    %v2828 = vmax.f32 %v1856, 0.0
    %v2829 = vmax.f32 %v2111, 0.0
    %v2830 = vmax.f32 %v2113, 0.0
    %v2831 = vmax.f32 %v2368, 0.0
    %v2832 = vmax.f32 %v2370, 0.0
    %v2833 = vmax.f32 %v2625, 0.0
    %v2834 = vmax.f32 %v2627, 0.0
    %v2835 = vmax.f32 %v1860, 0.0
    %v2836 = vmax.f32 %v1862, 0.0
    %v2837 = vmax.f32 %v2117, 0.0
    %v2838 = vmax.f32 %v2119, 0.0
    %v2839 = vmax.f32 %v2374, 0.0
    %v2840 = vmax.f32 %v2376, 0.0
    %v2841 = vmax.f32 %v2631, 0.0
    %v2842 = vmax.f32 %v2633, 0.0
    %v2843 = vmax.f32 %v1866, 0.0
    %v2844 = vmax.f32 %v1868, 0.0
    %v2845 = vmax.f32 %v2123, 0.0
    %v2846 = vmax.f32 %v2125, 0.0
    %v2847 = vmax.f32 %v2380, 0.0
    %v2848 = vmax.f32 %v2382, 0.0
    %v2849 = vmax.f32 %v2637, 0.0
    %v2850 = vmax.f32 %v2639, 0.0
    %v2851 = vmax.f32 %v1872, 0.0
    %v2852 = vmax.f32 %v1874, 0.0
    %v2853 = vmax.f32 %v2129, 0.0
    %v2854 = vmax.f32 %v2131, 0.0
    %v2855 = vmax.f32 %v2386, 0.0
    %v2856 = vmax.f32 %v2388, 0.0
    %v2857 = vmax.f32 %v2643, 0.0
    %v2858 = vmax.f32 %v2645, 0.0
    %v2859 = vmax.f32 %v1878, 0.0
    %v2860 = vmax.f32 %v1880, 0.0
    %v2861 = vmax.f32 %v2135, 0.0
    %v2862 = vmax.f32 %v2137, 0.0
    %v2863 = vmax.f32 %v2392, 0.0
    %v2864 = vmax.f32 %v2394, 0.0
    %v2865 = vmax.f32 %v2649, 0.0
    %v2866 = vmax.f32 %v2651, 0.0
    %v2867 = vmax.f32 %v1884, 0.0
    %v2868 = vmax.f32 %v1886, 0.0
    %v2869 = vmax.f32 %v2141, 0.0
    %v2870 = vmax.f32 %v2143, 0.0
    %v2871 = vmax.f32 %v2398, 0.0
    %v2872 = vmax.f32 %v2400, 0.0
    %v2873 = vmax.f32 %v2655, 0.0
    %v2874 = vmax.f32 %v2657, 0.0
    %v2875 = vmax.f32 %v1890, 0.0
    %v2876 = vmax.f32 %v1892, 0.0
    %v2877 = vmax.f32 %v2147, 0.0
    %v2878 = vmax.f32 %v2149, 0.0
    %v2879 = vmax.f32 %v2404, 0.0
    %v2880 = vmax.f32 %v2406, 0.0
    %v2881 = vmax.f32 %v2661, 0.0
    %v2882 = vmax.f32 %v2663, 0.0
    %v2883 = vmax.f32 %v1896, 0.0
    %v2884 = vmax.f32 %v1898, 0.0
    %v2885 = vmax.f32 %v2153, 0.0
    %v2886 = vmax.f32 %v2155, 0.0
    %v2887 = vmax.f32 %v2410, 0.0
    %v2888 = vmax.f32 %v2412, 0.0
    %v2889 = vmax.f32 %v2667, 0.0
    %v2890 = vmax.f32 %v2669, 0.0
    %v2891 = vmax.f32 %v1902, 0.0
    %v2892 = vmax.f32 %v1904, 0.0
    %v2893 = vmax.f32 %v2159, 0.0
    %v2894 = vmax.f32 %v2161, 0.0
    %v2895 = vmax.f32 %v2416, 0.0
    %v2896 = vmax.f32 %v2418, 0.0
    %v2897 = vmax.f32 %v2673, 0.0
    %v2898 = vmax.f32 %v2675, 0.0
    %v2899 = vmax.f32 %v1908, 0.0
    %v2900 = vmax.f32 %v1910, 0.0
    %v2901 = vmax.f32 %v2165, 0.0
    %v2902 = vmax.f32 %v2167, 0.0
    %v2903 = vmax.f32 %v2422, 0.0
    %v2904 = vmax.f32 %v2424, 0.0
    %v2905 = vmax.f32 %v2679, 0.0
    %v2906 = vmax.f32 %v2681, 0.0
    %v2907 = vmax.f32 %v1914, 0.0
    %v2908 = vmax.f32 %v1916, 0.0
    %v2909 = vmax.f32 %v2171, 0.0
    %v2910 = vmax.f32 %v2173, 0.0
    %v2911 = vmax.f32 %v2428, 0.0
    %v2912 = vmax.f32 %v2430, 0.0
    %v2913 = vmax.f32 %v2685, 0.0
    %v2914 = vmax.f32 %v2687, 0.0
    %v2915 = vmax.f32 %v1920, 0.0
    %v2916 = vmax.f32 %v1922, 0.0
    %v2917 = vmax.f32 %v2177, 0.0
    %v2918 = vmax.f32 %v2179, 0.0
    %v2919 = vmax.f32 %v2434, 0.0
    %v2920 = vmax.f32 %v2436, 0.0
    %v2921 = vmax.f32 %v2691, 0.0
    %v2922 = vmax.f32 %v2693, 0.0
    %v2923 = vmax.f32 %v1926, 0.0
    %v2924 = vmax.f32 %v1928, 0.0
    %v2925 = vmax.f32 %v2183, 0.0
    %v2926 = vmax.f32 %v2185, 0.0
    %v2927 = vmax.f32 %v2440, 0.0
    %v2928 = vmax.f32 %v2442, 0.0
    %v2929 = vmax.f32 %v2697, 0.0
    %v2930 = vmax.f32 %v2699, 0.0
    %v2931 = vmax.f32 %v1932, 0.0
    %v2932 = vmax.f32 %v1934, 0.0
    %v2933 = vmax.f32 %v2189, 0.0
    %v2934 = vmax.f32 %v2191, 0.0
    %v2935 = vmax.f32 %v2446, 0.0
    %v2936 = vmax.f32 %v2448, 0.0
    %v2937 = vmax.f32 %v2703, 0.0
    %v2938 = vmax.f32 %v2705, 0.0
    %v2939 = vmax.f32 %v1938, 0.0
    %v2940 = vmax.f32 %v1940, 0.0
    %v2941 = vmax.f32 %v2195, 0.0
    %v2942 = vmax.f32 %v2197, 0.0
    %v2943 = vmax.f32 %v2452, 0.0
    %v2944 = vmax.f32 %v2454, 0.0
    %v2945 = vmax.f32 %v2709, 0.0
    %v2946 = vmax.f32 %v2711, 0.0
    %v2947 = vmax.f32 %v1944, 0.0
    %v2948 = vmax.f32 %v1946, 0.0
    %v2949 = vmax.f32 %v2201, 0.0
    %v2950 = vmax.f32 %v2203, 0.0
    %v2951 = vmax.f32 %v2458, 0.0
    %v2952 = vmax.f32 %v2460, 0.0
    %v2953 = vmax.f32 %v2715, 0.0
    %v2954 = vmax.f32 %v2717, 0.0
    %v2955 = vmax.f32 %v1950, 0.0
    %v2956 = vmax.f32 %v1952, 0.0
    %v2957 = vmax.f32 %v2207, 0.0
    %v2958 = vmax.f32 %v2209, 0.0
    %v2959 = vmax.f32 %v2464, 0.0
    %v2960 = vmax.f32 %v2466, 0.0
    %v2961 = vmax.f32 %v2721, 0.0
    %v2962 = vmax.f32 %v2723, 0.0
    %v2963 = vmax.f32 %v1956, 0.0
    %v2964 = vmax.f32 %v1958, 0.0
    %v2965 = vmax.f32 %v2213, 0.0
    %v2966 = vmax.f32 %v2215, 0.0
    %v2967 = vmax.f32 %v2470, 0.0
    %v2968 = vmax.f32 %v2472, 0.0
    %v2969 = vmax.f32 %v2727, 0.0
    %v2970 = vmax.f32 %v2729, 0.0
    %v2971 = vmax.f32 %v1962, 0.0
    %v2972 = vmax.f32 %v1964, 0.0
    %v2973 = vmax.f32 %v2219, 0.0
    %v2974 = vmax.f32 %v2221, 0.0
    %v2975 = vmax.f32 %v2476, 0.0
    %v2976 = vmax.f32 %v2478, 0.0
    %v2977 = vmax.f32 %v2733, 0.0
    %v2978 = vmax.f32 %v2735, 0.0
    %v2979 = vmax.f32 %v1968, 0.0
    %v2980 = vmax.f32 %v1970, 0.0
    %v2981 = vmax.f32 %v2225, 0.0
    %v2982 = vmax.f32 %v2227, 0.0
    %v2983 = vmax.f32 %v2482, 0.0
    %v2984 = vmax.f32 %v2484, 0.0
    %v2985 = vmax.f32 %v2739, 0.0
    %v2986 = vmax.f32 %v2741, 0.0
    %v2987 = vmax.f32 %v1974, 0.0
    %v2988 = vmax.f32 %v1976, 0.0
    %v2989 = vmax.f32 %v2231, 0.0
    %v2990 = vmax.f32 %v2233, 0.0
    %v2991 = vmax.f32 %v2488, 0.0
    %v2992 = vmax.f32 %v2490, 0.0
    %v2993 = vmax.f32 %v2745, 0.0
    %v2994 = vmax.f32 %v2747, 0.0
    %v2995 = vmax.f32 %v1980, 0.0
    %v2996 = vmax.f32 %v1982, 0.0
    %v2997 = vmax.f32 %v2237, 0.0
    %v2998 = vmax.f32 %v2239, 0.0
    %v2999 = vmax.f32 %v2494, 0.0
    %v3000 = vmax.f32 %v2496, 0.0
    %v3001 = vmax.f32 %v2751, 0.0
    %v3002 = vmax.f32 %v2753, 0.0
    %v3003 = vmax.f32 %v1986, 0.0
    %v3004 = vmax.f32 %v1988, 0.0
    %v3005 = vmax.f32 %v2243, 0.0
    %v3006 = vmax.f32 %v2245, 0.0
    %v3007 = vmax.f32 %v2500, 0.0
    %v3008 = vmax.f32 %v2502, 0.0
    %v3009 = vmax.f32 %v2757, 0.0
    %v3010 = vmax.f32 %v2759, 0.0
    %v3011 = vmax.f32 %v1992, 0.0
    %v3012 = vmax.f32 %v1994, 0.0
    %v3013 = vmax.f32 %v2249, 0.0
    %v3014 = vmax.f32 %v2251, 0.0
    %v3015 = vmax.f32 %v2506, 0.0
    %v3016 = vmax.f32 %v2508, 0.0
    %v3017 = vmax.f32 %v2763, 0.0
    %v3018 = vmax.f32 %v2765, 0.0
    %v3019 = vmax.f32 %v1998, 0.0
    %v3020 = vmax.f32 %v2000, 0.0
    %v3021 = vmax.f32 %v2255, 0.0
    %v3022 = vmax.f32 %v2257, 0.0
    %v3023 = vmax.f32 %v2512, 0.0
    %v3024 = vmax.f32 %v2514, 0.0
    %v3025 = vmax.f32 %v2769, 0.0
    %v3026 = vmax.f32 %v2771, 0.0
    %v3027 = vmax.f32 %v2004, 0.0
    %v3028 = vmax.f32 %v2006, 0.0
    %v3029 = vmax.f32 %v2261, 0.0
    %v3030 = vmax.f32 %v2263, 0.0
    %v3031 = vmax.f32 %v2518, 0.0
    %v3032 = vmax.f32 %v2520, 0.0
    %v3033 = vmax.f32 %v2775, 0.0
    %v3034 = vmax.f32 %v2777, 0.0
    %v3035 = vadd.f32 %v2779, %v2787
    %v3036 = vadd.f32 %v3035, %v2795
    %v3037 = vadd.f32 %v3036, %v2803
    %v3038 = vadd.f32 %v3037, %v2811
    %v3039 = vadd.f32 %v3038, %v2819
    %v3040 = vadd.f32 %v3039, %v2827
    %v3041 = vadd.f32 %v3040, %v2835
    %v3042 = vadd.f32 %v3041, %v2843
    %v3043 = vadd.f32 %v3042, %v2851
    %v3044 = vadd.f32 %v3043, %v2859
    %v3045 = vadd.f32 %v3044, %v2867
    %v3046 = vadd.f32 %v3045, %v2875
    %v3047 = vadd.f32 %v3046, %v2883
    %v3048 = vadd.f32 %v3047, %v2891
    %v3049 = vadd.f32 %v3048, %v2899
    %v3050 = vadd.f32 %v3049, %v2907
    %v3051 = vadd.f32 %v3050, %v2915
    %v3052 = vadd.f32 %v3051, %v2923
    %v3053 = vadd.f32 %v3052, %v2931
    %v3054 = vadd.f32 %v3053, %v2939
    %v3055 = vadd.f32 %v3054, %v2947
    %v3056 = vadd.f32 %v3055, %v2955
    %v3057 = vadd.f32 %v3056, %v2963
    %v3058 = vadd.f32 %v3057, %v2971
    %v3059 = vadd.f32 %v3058, %v2979
    %v3060 = vadd.f32 %v3059, %v2987
    %v3061 = vadd.f32 %v3060, %v2995
    %v3062 = vadd.f32 %v3061, %v3003
    %v3063 = vadd.f32 %v3062, %v3011
    %v3064 = vadd.f32 %v3063, %v3019
    %v3065 = vadd.f32 %v3064, %v3027
    %v3066 = vrot.slane %v3065, 4
    %v3067 = vadd.f32 %v3065, %v3066
    %v3068 = vrot.slane %v3067, 2
    %v3069 = vadd.f32 %v3067, %v3068
    %v3070 = vrot.slane %v3069, 1
    %v3071 = vadd.f32 %v3069, %v3070
    %v3072 = vadd.f32 %v2780, %v2788
    %v3073 = vadd.f32 %v3072, %v2796
    %v3074 = vadd.f32 %v3073, %v2804
    %v3075 = vadd.f32 %v3074, %v2812
    %v3076 = vadd.f32 %v3075, %v2820
    %v3077 = vadd.f32 %v3076, %v2828
    %v3078 = vadd.f32 %v3077, %v2836
    %v3079 = vadd.f32 %v3078, %v2844
    %v3080 = vadd.f32 %v3079, %v2852
    %v3081 = vadd.f32 %v3080, %v2860
    %v3082 = vadd.f32 %v3081, %v2868
    %v3083 = vadd.f32 %v3082, %v2876
    %v3084 = vadd.f32 %v3083, %v2884
    %v3085 = vadd.f32 %v3084, %v2892
    %v3086 = vadd.f32 %v3085, %v2900
    %v3087 = vadd.f32 %v3086, %v2908
    %v3088 = vadd.f32 %v3087, %v2916
    %v3089 = vadd.f32 %v3088, %v2924
    %v3090 = vadd.f32 %v3089, %v2932
    %v3091 = vadd.f32 %v3090, %v2940
    %v3092 = vadd.f32 %v3091, %v2948
    %v3093 = vadd.f32 %v3092, %v2956
    %v3094 = vadd.f32 %v3093, %v2964
    %v3095 = vadd.f32 %v3094, %v2972
    %v3096 = vadd.f32 %v3095, %v2980
    %v3097 = vadd.f32 %v3096, %v2988
    %v3098 = vadd.f32 %v3097, %v2996
    %v3099 = vadd.f32 %v3098, %v3004
    %v3100 = vadd.f32 %v3099, %v3012
    %v3101 = vadd.f32 %v3100, %v3020
    %v3102 = vadd.f32 %v3101, %v3028
    %v3103 = vrot.slane %v3102, 4
    %v3104 = vadd.f32 %v3102, %v3103
    %v3105 = vrot.slane %v3104, 2
    %v3106 = vadd.f32 %v3104, %v3105
    %v3107 = vrot.slane %v3106, 1
    %v3108 = vadd.f32 %v3106, %v3107
    %v3109 = vadd.f32 %v2781, %v2789
    %v3110 = vadd.f32 %v3109, %v2797
    %v3111 = vadd.f32 %v3110, %v2805
    %v3112 = vadd.f32 %v3111, %v2813
    %v3113 = vadd.f32 %v3112, %v2821
    %v3114 = vadd.f32 %v3113, %v2829
    %v3115 = vadd.f32 %v3114, %v2837
    %v3116 = vadd.f32 %v3115, %v2845
    %v3117 = vadd.f32 %v3116, %v2853
    %v3118 = vadd.f32 %v3117, %v2861
    %v3119 = vadd.f32 %v3118, %v2869
    %v3120 = vadd.f32 %v3119, %v2877
    %v3121 = vadd.f32 %v3120, %v2885
    %v3122 = vadd.f32 %v3121, %v2893
    %v3123 = vadd.f32 %v3122, %v2901
    %v3124 = vadd.f32 %v3123, %v2909
    %v3125 = vadd.f32 %v3124, %v2917
    %v3126 = vadd.f32 %v3125, %v2925
    %v3127 = vadd.f32 %v3126, %v2933
    %v3128 = vadd.f32 %v3127, %v2941
    %v3129 = vadd.f32 %v3128, %v2949
    %v3130 = vadd.f32 %v3129, %v2957
    %v3131 = vadd.f32 %v3130, %v2965
    %v3132 = vadd.f32 %v3131, %v2973
    %v3133 = vadd.f32 %v3132, %v2981
    %v3134 = vadd.f32 %v3133, %v2989
    %v3135 = vadd.f32 %v3134, %v2997
    %v3136 = vadd.f32 %v3135, %v3005
    %v3137 = vadd.f32 %v3136, %v3013
    %v3138 = vadd.f32 %v3137, %v3021
    %v3139 = vadd.f32 %v3138, %v3029
    %v3140 = vrot.slane %v3139, 4
    %v3141 = vadd.f32 %v3139, %v3140
    %v3142 = vrot.slane %v3141, 2
    %v3143 = vadd.f32 %v3141, %v3142
    %v3144 = vrot.slane %v3143, 1
    %v3145 = vadd.f32 %v3143, %v3144
    %v3146 = vadd.f32 %v2782, %v2790
    %v3147 = vadd.f32 %v3146, %v2798
    %v3148 = vadd.f32 %v3147, %v2806
    %v3149 = vadd.f32 %v3148, %v2814
    %v3150 = vadd.f32 %v3149, %v2822
    %v3151 = vadd.f32 %v3150, %v2830
    %v3152 = vadd.f32 %v3151, %v2838
    %v3153 = vadd.f32 %v3152, %v2846
    %v3154 = vadd.f32 %v3153, %v2854
    %v3155 = vadd.f32 %v3154, %v2862
    %v3156 = vadd.f32 %v3155, %v2870
    %v3157 = vadd.f32 %v3156, %v2878
    %v3158 = vadd.f32 %v3157, %v2886
    %v3159 = vadd.f32 %v3158, %v2894
    %v3160 = vadd.f32 %v3159, %v2902
    %v3161 = vadd.f32 %v3160, %v2910
    %v3162 = vadd.f32 %v3161, %v2918
    %v3163 = vadd.f32 %v3162, %v2926
    %v3164 = vadd.f32 %v3163, %v2934
    %v3165 = vadd.f32 %v3164, %v2942
    %v3166 = vadd.f32 %v3165, %v2950
    %v3167 = vadd.f32 %v3166, %v2958
    %v3168 = vadd.f32 %v3167, %v2966
    %v3169 = vadd.f32 %v3168, %v2974
    %v3170 = vadd.f32 %v3169, %v2982
    %v3171 = vadd.f32 %v3170, %v2990
    %v3172 = vadd.f32 %v3171, %v2998
    %v3173 = vadd.f32 %v3172, %v3006
    %v3174 = vadd.f32 %v3173, %v3014
    %v3175 = vadd.f32 %v3174, %v3022
    %v3176 = vadd.f32 %v3175, %v3030
    %v3177 = vrot.slane %v3176, 4
    %v3178 = vadd.f32 %v3176, %v3177
    %v3179 = vrot.slane %v3178, 2
    %v3180 = vadd.f32 %v3178, %v3179
    %v3181 = vrot.slane %v3180, 1
    %v3182 = vadd.f32 %v3180, %v3181
    %v3183 = vadd.f32 %v2783, %v2791
    %v3184 = vadd.f32 %v3183, %v2799
    %v3185 = vadd.f32 %v3184, %v2807
    %v3186 = vadd.f32 %v3185, %v2815
    %v3187 = vadd.f32 %v3186, %v2823
    %v3188 = vadd.f32 %v3187, %v2831
    %v3189 = vadd.f32 %v3188, %v2839
    %v3190 = vadd.f32 %v3189, %v2847
    %v3191 = vadd.f32 %v3190, %v2855
    %v3192 = vadd.f32 %v3191, %v2863
    %v3193 = vadd.f32 %v3192, %v2871
    %v3194 = vadd.f32 %v3193, %v2879
    %v3195 = vadd.f32 %v3194, %v2887
    %v3196 = vadd.f32 %v3195, %v2895
    %v3197 = vadd.f32 %v3196, %v2903
    %v3198 = vadd.f32 %v3197, %v2911
    %v3199 = vadd.f32 %v3198, %v2919
    %v3200 = vadd.f32 %v3199, %v2927
    %v3201 = vadd.f32 %v3200, %v2935
    %v3202 = vadd.f32 %v3201, %v2943
    %v3203 = vadd.f32 %v3202, %v2951
    %v3204 = vadd.f32 %v3203, %v2959
    %v3205 = vadd.f32 %v3204, %v2967
    %v3206 = vadd.f32 %v3205, %v2975
    %v3207 = vadd.f32 %v3206, %v2983
    %v3208 = vadd.f32 %v3207, %v2991
    %v3209 = vadd.f32 %v3208, %v2999
    %v3210 = vadd.f32 %v3209, %v3007
    %v3211 = vadd.f32 %v3210, %v3015
    %v3212 = vadd.f32 %v3211, %v3023
    %v3213 = vadd.f32 %v3212, %v3031
    %v3214 = vrot.slane %v3213, 4
    %v3215 = vadd.f32 %v3213, %v3214
    %v3216 = vrot.slane %v3215, 2
    %v3217 = vadd.f32 %v3215, %v3216
    %v3218 = vrot.slane %v3217, 1
    %v3219 = vadd.f32 %v3217, %v3218
    %v3220 = vadd.f32 %v2784, %v2792
    %v3221 = vadd.f32 %v3220, %v2800
    %v3222 = vadd.f32 %v3221, %v2808
    %v3223 = vadd.f32 %v3222, %v2816
    %v3224 = vadd.f32 %v3223, %v2824
    %v3225 = vadd.f32 %v3224, %v2832
    %v3226 = vadd.f32 %v3225, %v2840
    %v3227 = vadd.f32 %v3226, %v2848
    %v3228 = vadd.f32 %v3227, %v2856
    %v3229 = vadd.f32 %v3228, %v2864
    %v3230 = vadd.f32 %v3229, %v2872
    %v3231 = vadd.f32 %v3230, %v2880
    %v3232 = vadd.f32 %v3231, %v2888
    %v3233 = vadd.f32 %v3232, %v2896
    %v3234 = vadd.f32 %v3233, %v2904
    %v3235 = vadd.f32 %v3234, %v2912
    %v3236 = vadd.f32 %v3235, %v2920
    %v3237 = vadd.f32 %v3236, %v2928
    %v3238 = vadd.f32 %v3237, %v2936
    %v3239 = vadd.f32 %v3238, %v2944
    %v3240 = vadd.f32 %v3239, %v2952
    %v3241 = vadd.f32 %v3240, %v2960
    %v3242 = vadd.f32 %v3241, %v2968
    %v3243 = vadd.f32 %v3242, %v2976
    %v3244 = vadd.f32 %v3243, %v2984
    %v3245 = vadd.f32 %v3244, %v2992
    %v3246 = vadd.f32 %v3245, %v3000
    %v3247 = vadd.f32 %v3246, %v3008
    %v3248 = vadd.f32 %v3247, %v3016
    %v3249 = vadd.f32 %v3248, %v3024
    %v3250 = vadd.f32 %v3249, %v3032
    %v3251 = vrot.slane %v3250, 4
    %v3252 = vadd.f32 %v3250, %v3251
    %v3253 = vrot.slane %v3252, 2
    %v3254 = vadd.f32 %v3252, %v3253
    %v3255 = vrot.slane %v3254, 1
    %v3256 = vadd.f32 %v3254, %v3255
    %v3257 = vadd.f32 %v2785, %v2793
    %v3258 = vadd.f32 %v3257, %v2801
    %v3259 = vadd.f32 %v3258, %v2809
    %v3260 = vadd.f32 %v3259, %v2817
    %v3261 = vadd.f32 %v3260, %v2825
    %v3262 = vadd.f32 %v3261, %v2833
    %v3263 = vadd.f32 %v3262, %v2841
    %v3264 = vadd.f32 %v3263, %v2849
    %v3265 = vadd.f32 %v3264, %v2857
    %v3266 = vadd.f32 %v3265, %v2865
    %v3267 = vadd.f32 %v3266, %v2873
    %v3268 = vadd.f32 %v3267, %v2881
    %v3269 = vadd.f32 %v3268, %v2889
    %v3270 = vadd.f32 %v3269, %v2897
    %v3271 = vadd.f32 %v3270, %v2905
    %v3272 = vadd.f32 %v3271, %v2913
    %v3273 = vadd.f32 %v3272, %v2921
    %v3274 = vadd.f32 %v3273, %v2929
    %v3275 = vadd.f32 %v3274, %v2937
    %v3276 = vadd.f32 %v3275, %v2945
    %v3277 = vadd.f32 %v3276, %v2953
    %v3278 = vadd.f32 %v3277, %v2961
    %v3279 = vadd.f32 %v3278, %v2969
    %v3280 = vadd.f32 %v3279, %v2977
    %v3281 = vadd.f32 %v3280, %v2985
    %v3282 = vadd.f32 %v3281, %v2993
    %v3283 = vadd.f32 %v3282, %v3001
    %v3284 = vadd.f32 %v3283, %v3009
    %v3285 = vadd.f32 %v3284, %v3017
    %v3286 = vadd.f32 %v3285, %v3025
    %v3287 = vadd.f32 %v3286, %v3033
    %v3288 = vrot.slane %v3287, 4
    %v3289 = vadd.f32 %v3287, %v3288
    %v3290 = vrot.slane %v3289, 2
    %v3291 = vadd.f32 %v3289, %v3290
    %v3292 = vrot.slane %v3291, 1
    %v3293 = vadd.f32 %v3291, %v3292
    %v3294 = vadd.f32 %v2786, %v2794
    %v3295 = vadd.f32 %v3294, %v2802
    %v3296 = vadd.f32 %v3295, %v2810
    %v3297 = vadd.f32 %v3296, %v2818
    %v3298 = vadd.f32 %v3297, %v2826
    %v3299 = vadd.f32 %v3298, %v2834
    %v3300 = vadd.f32 %v3299, %v2842
    %v3301 = vadd.f32 %v3300, %v2850
    %v3302 = vadd.f32 %v3301, %v2858
    %v3303 = vadd.f32 %v3302, %v2866
    %v3304 = vadd.f32 %v3303, %v2874
    %v3305 = vadd.f32 %v3304, %v2882
    %v3306 = vadd.f32 %v3305, %v2890
    %v3307 = vadd.f32 %v3306, %v2898
    %v3308 = vadd.f32 %v3307, %v2906
    %v3309 = vadd.f32 %v3308, %v2914
    %v3310 = vadd.f32 %v3309, %v2922
    %v3311 = vadd.f32 %v3310, %v2930
    %v3312 = vadd.f32 %v3311, %v2938
    %v3313 = vadd.f32 %v3312, %v2946
    %v3314 = vadd.f32 %v3313, %v2954
    %v3315 = vadd.f32 %v3314, %v2962
    %v3316 = vadd.f32 %v3315, %v2970
    %v3317 = vadd.f32 %v3316, %v2978
    %v3318 = vadd.f32 %v3317, %v2986
    %v3319 = vadd.f32 %v3318, %v2994
    %v3320 = vadd.f32 %v3319, %v3002
    %v3321 = vadd.f32 %v3320, %v3010
    %v3322 = vadd.f32 %v3321, %v3018
    %v3323 = vadd.f32 %v3322, %v3026
    %v3324 = vadd.f32 %v3323, %v3034
    %v3325 = vrot.slane %v3324, 4
    %v3326 = vadd.f32 %v3324, %v3325
    %v3327 = vrot.slane %v3326, 2
    %v3328 = vadd.f32 %v3326, %v3327
    %v3329 = vrot.slane %v3328, 1
    %v3330 = vadd.f32 %v3328, %v3329
    %v3331 = vmul.f32 %v3071, 0.00390625
    %v3332 = vmul.f32 %v3108, 0.00390625
    %v3333 = vmul.f32 %v3145, 0.00390625
    %v3334 = vmul.f32 %v3182, 0.00390625
    %v3335 = vmul.f32 %v3219, 0.00390625
    %v3336 = vmul.f32 %v3256, 0.00390625
    %v3337 = vmul.f32 %v3293, 0.00390625
    %v3338 = vmul.f32 %v3330, 0.00390625
    %v3339 = vmul.f32 %v2779, %v2779
    %v3340 = vmul.f32 %v2780, %v2780
    %v3341 = vmul.f32 %v2781, %v2781
    %v3342 = vmul.f32 %v2782, %v2782
    %v3343 = vmul.f32 %v2783, %v2783
    %v3344 = vmul.f32 %v2784, %v2784
    %v3345 = vmul.f32 %v2785, %v2785
    %v3346 = vmul.f32 %v2786, %v2786
    %v3347 = vmul.f32 %v2787, %v2787
    %v3348 = vmul.f32 %v2788, %v2788
    %v3349 = vmul.f32 %v2789, %v2789
    %v3350 = vmul.f32 %v2790, %v2790
    %v3351 = vmul.f32 %v2791, %v2791
    %v3352 = vmul.f32 %v2792, %v2792
    %v3353 = vmul.f32 %v2793, %v2793
    %v3354 = vmul.f32 %v2794, %v2794
    %v3355 = vmul.f32 %v2795, %v2795
    %v3356 = vmul.f32 %v2796, %v2796
    %v3357 = vmul.f32 %v2797, %v2797
    %v3358 = vmul.f32 %v2798, %v2798
    %v3359 = vmul.f32 %v2799, %v2799
    %v3360 = vmul.f32 %v2800, %v2800
    %v3361 = vmul.f32 %v2801, %v2801
    %v3362 = vmul.f32 %v2802, %v2802
    %v3363 = vmul.f32 %v2803, %v2803
    %v3364 = vmul.f32 %v2804, %v2804
    %v3365 = vmul.f32 %v2805, %v2805
    %v3366 = vmul.f32 %v2806, %v2806
    %v3367 = vmul.f32 %v2807, %v2807
    %v3368 = vmul.f32 %v2808, %v2808
    %v3369 = vmul.f32 %v2809, %v2809
    %v3370 = vmul.f32 %v2810, %v2810
    %v3371 = vmul.f32 %v2811, %v2811
    %v3372 = vmul.f32 %v2812, %v2812
    %v3373 = vmul.f32 %v2813, %v2813
    %v3374 = vmul.f32 %v2814, %v2814
    %v3375 = vmul.f32 %v2815, %v2815
    %v3376 = vmul.f32 %v2816, %v2816
    %v3377 = vmul.f32 %v2817, %v2817
    %v3378 = vmul.f32 %v2818, %v2818
    %v3379 = vmul.f32 %v2819, %v2819
    %v3380 = vmul.f32 %v2820, %v2820
    %v3381 = vmul.f32 %v2821, %v2821
    %v3382 = vmul.f32 %v2822, %v2822
    %v3383 = vmul.f32 %v2823, %v2823
    %v3384 = vmul.f32 %v2824, %v2824
    %v3385 = vmul.f32 %v2825, %v2825
    %v3386 = vmul.f32 %v2826, %v2826
    %v3387 = vmul.f32 %v2827, %v2827
    %v3388 = vmul.f32 %v2828, %v2828
    %v3389 = vmul.f32 %v2829, %v2829
    %v3390 = vmul.f32 %v2830, %v2830
    %v3391 = vmul.f32 %v2831, %v2831
    %v3392 = vmul.f32 %v2832, %v2832
    %v3393 = vmul.f32 %v2833, %v2833
    %v3394 = vmul.f32 %v2834, %v2834
    %v3395 = vmul.f32 %v2835, %v2835
    %v3396 = vmul.f32 %v2836, %v2836
    %v3397 = vmul.f32 %v2837, %v2837
    %v3398 = vmul.f32 %v2838, %v2838
    %v3399 = vmul.f32 %v2839, %v2839
    %v3400 = vmul.f32 %v2840, %v2840
    %v3401 = vmul.f32 %v2841, %v2841
    %v3402 = vmul.f32 %v2842, %v2842
    %v3403 = vmul.f32 %v2843, %v2843
    %v3404 = vmul.f32 %v2844, %v2844
    %v3405 = vmul.f32 %v2845, %v2845
    %v3406 = vmul.f32 %v2846, %v2846
    %v3407 = vmul.f32 %v2847, %v2847
    %v3408 = vmul.f32 %v2848, %v2848
    %v3409 = vmul.f32 %v2849, %v2849
    %v3410 = vmul.f32 %v2850, %v2850
    %v3411 = vmul.f32 %v2851, %v2851
    %v3412 = vmul.f32 %v2852, %v2852
    %v3413 = vmul.f32 %v2853, %v2853
    %v3414 = vmul.f32 %v2854, %v2854
    %v3415 = vmul.f32 %v2855, %v2855
    %v3416 = vmul.f32 %v2856, %v2856
    %v3417 = vmul.f32 %v2857, %v2857
    %v3418 = vmul.f32 %v2858, %v2858
    %v3419 = vmul.f32 %v2859, %v2859
    %v3420 = vmul.f32 %v2860, %v2860
    %v3421 = vmul.f32 %v2861, %v2861
    %v3422 = vmul.f32 %v2862, %v2862
    %v3423 = vmul.f32 %v2863, %v2863
    %v3424 = vmul.f32 %v2864, %v2864
    %v3425 = vmul.f32 %v2865, %v2865
    %v3426 = vmul.f32 %v2866, %v2866
    %v3427 = vmul.f32 %v2867, %v2867
    %v3428 = vmul.f32 %v2868, %v2868
    %v3429 = vmul.f32 %v2869, %v2869
    %v3430 = vmul.f32 %v2870, %v2870
    %v3431 = vmul.f32 %v2871, %v2871
    %v3432 = vmul.f32 %v2872, %v2872
    %v3433 = vmul.f32 %v2873, %v2873
    %v3434 = vmul.f32 %v2874, %v2874
    %v3435 = vmul.f32 %v2875, %v2875
    %v3436 = vmul.f32 %v2876, %v2876
    %v3437 = vmul.f32 %v2877, %v2877
    %v3438 = vmul.f32 %v2878, %v2878
    %v3439 = vmul.f32 %v2879, %v2879
    %v3440 = vmul.f32 %v2880, %v2880
    %v3441 = vmul.f32 %v2881, %v2881
    %v3442 = vmul.f32 %v2882, %v2882
    %v3443 = vmul.f32 %v2883, %v2883
    %v3444 = vmul.f32 %v2884, %v2884
    %v3445 = vmul.f32 %v2885, %v2885
    %v3446 = vmul.f32 %v2886, %v2886
    %v3447 = vmul.f32 %v2887, %v2887
    %v3448 = vmul.f32 %v2888, %v2888
    %v3449 = vmul.f32 %v2889, %v2889
    %v3450 = vmul.f32 %v2890, %v2890
    %v3451 = vmul.f32 %v2891, %v2891
    %v3452 = vmul.f32 %v2892, %v2892
    %v3453 = vmul.f32 %v2893, %v2893
    %v3454 = vmul.f32 %v2894, %v2894
    %v3455 = vmul.f32 %v2895, %v2895
    %v3456 = vmul.f32 %v2896, %v2896
    %v3457 = vmul.f32 %v2897, %v2897
    %v3458 = vmul.f32 %v2898, %v2898
    %v3459 = vmul.f32 %v2899, %v2899
    %v3460 = vmul.f32 %v2900, %v2900
    %v3461 = vmul.f32 %v2901, %v2901
    %v3462 = vmul.f32 %v2902, %v2902
    %v3463 = vmul.f32 %v2903, %v2903
    %v3464 = vmul.f32 %v2904, %v2904
    %v3465 = vmul.f32 %v2905, %v2905
    %v3466 = vmul.f32 %v2906, %v2906
    %v3467 = vmul.f32 %v2907, %v2907
    %v3468 = vmul.f32 %v2908, %v2908
    %v3469 = vmul.f32 %v2909, %v2909
    %v3470 = vmul.f32 %v2910, %v2910
    %v3471 = vmul.f32 %v2911, %v2911
    %v3472 = vmul.f32 %v2912, %v2912
    %v3473 = vmul.f32 %v2913, %v2913
    %v3474 = vmul.f32 %v2914, %v2914
    %v3475 = vmul.f32 %v2915, %v2915
    %v3476 = vmul.f32 %v2916, %v2916
    %v3477 = vmul.f32 %v2917, %v2917
    %v3478 = vmul.f32 %v2918, %v2918
    %v3479 = vmul.f32 %v2919, %v2919
    %v3480 = vmul.f32 %v2920, %v2920
    %v3481 = vmul.f32 %v2921, %v2921
    %v3482 = vmul.f32 %v2922, %v2922
    %v3483 = vmul.f32 %v2923, %v2923
    %v3484 = vmul.f32 %v2924, %v2924
    %v3485 = vmul.f32 %v2925, %v2925
    %v3486 = vmul.f32 %v2926, %v2926
    %v3487 = vmul.f32 %v2927, %v2927
    %v3488 = vmul.f32 %v2928, %v2928
    %v3489 = vmul.f32 %v2929, %v2929
    %v3490 = vmul.f32 %v2930, %v2930
    %v3491 = vmul.f32 %v2931, %v2931
    %v3492 = vmul.f32 %v2932, %v2932
    %v3493 = vmul.f32 %v2933, %v2933
    %v3494 = vmul.f32 %v2934, %v2934
    %v3495 = vmul.f32 %v2935, %v2935
    %v3496 = vmul.f32 %v2936, %v2936
    %v3497 = vmul.f32 %v2937, %v2937
    %v3498 = vmul.f32 %v2938, %v2938
    %v3499 = vmul.f32 %v2939, %v2939
    %v3500 = vmul.f32 %v2940, %v2940
    %v3501 = vmul.f32 %v2941, %v2941
    %v3502 = vmul.f32 %v2942, %v2942
    %v3503 = vmul.f32 %v2943, %v2943
    %v3504 = vmul.f32 %v2944, %v2944
    %v3505 = vmul.f32 %v2945, %v2945
    %v3506 = vmul.f32 %v2946, %v2946
    %v3507 = vmul.f32 %v2947, %v2947
    %v3508 = vmul.f32 %v2948, %v2948
    %v3509 = vmul.f32 %v2949, %v2949
    %v3510 = vmul.f32 %v2950, %v2950
    %v3511 = vmul.f32 %v2951, %v2951
    %v3512 = vmul.f32 %v2952, %v2952
    %v3513 = vmul.f32 %v2953, %v2953
    %v3514 = vmul.f32 %v2954, %v2954
    %v3515 = vmul.f32 %v2955, %v2955
    %v3516 = vmul.f32 %v2956, %v2956
    %v3517 = vmul.f32 %v2957, %v2957
    %v3518 = vmul.f32 %v2958, %v2958
    %v3519 = vmul.f32 %v2959, %v2959
    %v3520 = vmul.f32 %v2960, %v2960
    %v3521 = vmul.f32 %v2961, %v2961
    %v3522 = vmul.f32 %v2962, %v2962
    %v3523 = vmul.f32 %v2963, %v2963
    %v3524 = vmul.f32 %v2964, %v2964
    %v3525 = vmul.f32 %v2965, %v2965
    %v3526 = vmul.f32 %v2966, %v2966
    %v3527 = vmul.f32 %v2967, %v2967
    %v3528 = vmul.f32 %v2968, %v2968
    %v3529 = vmul.f32 %v2969, %v2969
    %v3530 = vmul.f32 %v2970, %v2970
    %v3531 = vmul.f32 %v2971, %v2971
    %v3532 = vmul.f32 %v2972, %v2972
    %v3533 = vmul.f32 %v2973, %v2973
    %v3534 = vmul.f32 %v2974, %v2974
    %v3535 = vmul.f32 %v2975, %v2975
    %v3536 = vmul.f32 %v2976, %v2976
    %v3537 = vmul.f32 %v2977, %v2977
    %v3538 = vmul.f32 %v2978, %v2978
    %v3539 = vmul.f32 %v2979, %v2979
    %v3540 = vmul.f32 %v2980, %v2980
    %v3541 = vmul.f32 %v2981, %v2981
    %v3542 = vmul.f32 %v2982, %v2982
    %v3543 = vmul.f32 %v2983, %v2983
    %v3544 = vmul.f32 %v2984, %v2984
    %v3545 = vmul.f32 %v2985, %v2985
    %v3546 = vmul.f32 %v2986, %v2986
    %v3547 = vmul.f32 %v2987, %v2987
    %v3548 = vmul.f32 %v2988, %v2988
    %v3549 = vmul.f32 %v2989, %v2989
    %v3550 = vmul.f32 %v2990, %v2990
    %v3551 = vmul.f32 %v2991, %v2991
    %v3552 = vmul.f32 %v2992, %v2992
    %v3553 = vmul.f32 %v2993, %v2993
    %v3554 = vmul.f32 %v2994, %v2994
    %v3555 = vmul.f32 %v2995, %v2995
    %v3556 = vmul.f32 %v2996, %v2996
    %v3557 = vmul.f32 %v2997, %v2997
    %v3558 = vmul.f32 %v2998, %v2998
    %v3559 = vmul.f32 %v2999, %v2999
    %v3560 = vmul.f32 %v3000, %v3000
    %v3561 = vmul.f32 %v3001, %v3001
    %v3562 = vmul.f32 %v3002, %v3002
    %v3563 = vmul.f32 %v3003, %v3003
    %v3564 = vmul.f32 %v3004, %v3004
    %v3565 = vmul.f32 %v3005, %v3005
    %v3566 = vmul.f32 %v3006, %v3006
    %v3567 = vmul.f32 %v3007, %v3007
    %v3568 = vmul.f32 %v3008, %v3008
    %v3569 = vmul.f32 %v3009, %v3009
    %v3570 = vmul.f32 %v3010, %v3010
    %v3571 = vmul.f32 %v3011, %v3011
    %v3572 = vmul.f32 %v3012, %v3012
    %v3573 = vmul.f32 %v3013, %v3013
    %v3574 = vmul.f32 %v3014, %v3014
    %v3575 = vmul.f32 %v3015, %v3015
    %v3576 = vmul.f32 %v3016, %v3016
    %v3577 = vmul.f32 %v3017, %v3017
    %v3578 = vmul.f32 %v3018, %v3018
    %v3579 = vmul.f32 %v3019, %v3019
    %v3580 = vmul.f32 %v3020, %v3020
    %v3581 = vmul.f32 %v3021, %v3021
    %v3582 = vmul.f32 %v3022, %v3022
    %v3583 = vmul.f32 %v3023, %v3023
    %v3584 = vmul.f32 %v3024, %v3024
    %v3585 = vmul.f32 %v3025, %v3025
    %v3586 = vmul.f32 %v3026, %v3026
    %v3587 = vmul.f32 %v3027, %v3027
    %v3588 = vmul.f32 %v3028, %v3028
    %v3589 = vmul.f32 %v3029, %v3029
    %v3590 = vmul.f32 %v3030, %v3030
    %v3591 = vmul.f32 %v3031, %v3031
    %v3592 = vmul.f32 %v3032, %v3032
    %v3593 = vmul.f32 %v3033, %v3033
    %v3594 = vmul.f32 %v3034, %v3034
    %v3595 = vadd.f32 %v3339, %v3347
    %v3596 = vadd.f32 %v3595, %v3355
    %v3597 = vadd.f32 %v3596, %v3363
    %v3598 = vadd.f32 %v3597, %v3371
    %v3599 = vadd.f32 %v3598, %v3379
    %v3600 = vadd.f32 %v3599, %v3387
    %v3601 = vadd.f32 %v3600, %v3395
    %v3602 = vadd.f32 %v3601, %v3403
    %v3603 = vadd.f32 %v3602, %v3411
    %v3604 = vadd.f32 %v3603, %v3419
    %v3605 = vadd.f32 %v3604, %v3427
    %v3606 = vadd.f32 %v3605, %v3435
    %v3607 = vadd.f32 %v3606, %v3443
    %v3608 = vadd.f32 %v3607, %v3451
    %v3609 = vadd.f32 %v3608, %v3459
    %v3610 = vadd.f32 %v3609, %v3467
    %v3611 = vadd.f32 %v3610, %v3475
    %v3612 = vadd.f32 %v3611, %v3483
    %v3613 = vadd.f32 %v3612, %v3491
    %v3614 = vadd.f32 %v3613, %v3499
    %v3615 = vadd.f32 %v3614, %v3507
    %v3616 = vadd.f32 %v3615, %v3515
    %v3617 = vadd.f32 %v3616, %v3523
    %v3618 = vadd.f32 %v3617, %v3531
    %v3619 = vadd.f32 %v3618, %v3539
    %v3620 = vadd.f32 %v3619, %v3547
    %v3621 = vadd.f32 %v3620, %v3555
    %v3622 = vadd.f32 %v3621, %v3563
    %v3623 = vadd.f32 %v3622, %v3571
    %v3624 = vadd.f32 %v3623, %v3579
    %v3625 = vadd.f32 %v3624, %v3587
    %v3626 = vrot.slane %v3625, 4
    %v3627 = vadd.f32 %v3625, %v3626
    %v3628 = vrot.slane %v3627, 2
    %v3629 = vadd.f32 %v3627, %v3628
    %v3630 = vrot.slane %v3629, 1
    %v3631 = vadd.f32 %v3629, %v3630
    %v3632 = vadd.f32 %v3340, %v3348
    %v3633 = vadd.f32 %v3632, %v3356
    %v3634 = vadd.f32 %v3633, %v3364
    %v3635 = vadd.f32 %v3634, %v3372
    %v3636 = vadd.f32 %v3635, %v3380
    %v3637 = vadd.f32 %v3636, %v3388
    %v3638 = vadd.f32 %v3637, %v3396
    %v3639 = vadd.f32 %v3638, %v3404
    %v3640 = vadd.f32 %v3639, %v3412
    %v3641 = vadd.f32 %v3640, %v3420
    %v3642 = vadd.f32 %v3641, %v3428
    %v3643 = vadd.f32 %v3642, %v3436
    %v3644 = vadd.f32 %v3643, %v3444
    %v3645 = vadd.f32 %v3644, %v3452
    %v3646 = vadd.f32 %v3645, %v3460
    %v3647 = vadd.f32 %v3646, %v3468
    %v3648 = vadd.f32 %v3647, %v3476
    %v3649 = vadd.f32 %v3648, %v3484
    %v3650 = vadd.f32 %v3649, %v3492
    %v3651 = vadd.f32 %v3650, %v3500
    %v3652 = vadd.f32 %v3651, %v3508
    %v3653 = vadd.f32 %v3652, %v3516
    %v3654 = vadd.f32 %v3653, %v3524
    %v3655 = vadd.f32 %v3654, %v3532
    %v3656 = vadd.f32 %v3655, %v3540
    %v3657 = vadd.f32 %v3656, %v3548
    %v3658 = vadd.f32 %v3657, %v3556
    %v3659 = vadd.f32 %v3658, %v3564
    %v3660 = vadd.f32 %v3659, %v3572
    %v3661 = vadd.f32 %v3660, %v3580
    %v3662 = vadd.f32 %v3661, %v3588
    %v3663 = vrot.slane %v3662, 4
    %v3664 = vadd.f32 %v3662, %v3663
    %v3665 = vrot.slane %v3664, 2
    %v3666 = vadd.f32 %v3664, %v3665
    %v3667 = vrot.slane %v3666, 1
    %v3668 = vadd.f32 %v3666, %v3667
    %v3669 = vadd.f32 %v3341, %v3349
    %v3670 = vadd.f32 %v3669, %v3357
    %v3671 = vadd.f32 %v3670, %v3365
    %v3672 = vadd.f32 %v3671, %v3373
    %v3673 = vadd.f32 %v3672, %v3381
    %v3674 = vadd.f32 %v3673, %v3389
    %v3675 = vadd.f32 %v3674, %v3397
    %v3676 = vadd.f32 %v3675, %v3405
    %v3677 = vadd.f32 %v3676, %v3413
    %v3678 = vadd.f32 %v3677, %v3421
    %v3679 = vadd.f32 %v3678, %v3429
    %v3680 = vadd.f32 %v3679, %v3437
    %v3681 = vadd.f32 %v3680, %v3445
    %v3682 = vadd.f32 %v3681, %v3453
    %v3683 = vadd.f32 %v3682, %v3461
    %v3684 = vadd.f32 %v3683, %v3469
    %v3685 = vadd.f32 %v3684, %v3477
    %v3686 = vadd.f32 %v3685, %v3485
    %v3687 = vadd.f32 %v3686, %v3493
    %v3688 = vadd.f32 %v3687, %v3501
    %v3689 = vadd.f32 %v3688, %v3509
    %v3690 = vadd.f32 %v3689, %v3517
    %v3691 = vadd.f32 %v3690, %v3525
    %v3692 = vadd.f32 %v3691, %v3533
    %v3693 = vadd.f32 %v3692, %v3541
    %v3694 = vadd.f32 %v3693, %v3549
    %v3695 = vadd.f32 %v3694, %v3557
    %v3696 = vadd.f32 %v3695, %v3565
    %v3697 = vadd.f32 %v3696, %v3573
    %v3698 = vadd.f32 %v3697, %v3581
    %v3699 = vadd.f32 %v3698, %v3589
    %v3700 = vrot.slane %v3699, 4
    %v3701 = vadd.f32 %v3699, %v3700
    %v3702 = vrot.slane %v3701, 2
    %v3703 = vadd.f32 %v3701, %v3702
    %v3704 = vrot.slane %v3703, 1
    %v3705 = vadd.f32 %v3703, %v3704
    %v3706 = vadd.f32 %v3342, %v3350
    %v3707 = vadd.f32 %v3706, %v3358
    %v3708 = vadd.f32 %v3707, %v3366
    %v3709 = vadd.f32 %v3708, %v3374
    %v3710 = vadd.f32 %v3709, %v3382
    %v3711 = vadd.f32 %v3710, %v3390
    %v3712 = vadd.f32 %v3711, %v3398
    %v3713 = vadd.f32 %v3712, %v3406
    %v3714 = vadd.f32 %v3713, %v3414
    %v3715 = vadd.f32 %v3714, %v3422
    %v3716 = vadd.f32 %v3715, %v3430
    %v3717 = vadd.f32 %v3716, %v3438
    %v3718 = vadd.f32 %v3717, %v3446
    %v3719 = vadd.f32 %v3718, %v3454
    %v3720 = vadd.f32 %v3719, %v3462
    %v3721 = vadd.f32 %v3720, %v3470
    %v3722 = vadd.f32 %v3721, %v3478
    %v3723 = vadd.f32 %v3722, %v3486
    %v3724 = vadd.f32 %v3723, %v3494
    %v3725 = vadd.f32 %v3724, %v3502
    %v3726 = vadd.f32 %v3725, %v3510
    %v3727 = vadd.f32 %v3726, %v3518
    %v3728 = vadd.f32 %v3727, %v3526
    %v3729 = vadd.f32 %v3728, %v3534
    %v3730 = vadd.f32 %v3729, %v3542
    %v3731 = vadd.f32 %v3730, %v3550
    %v3732 = vadd.f32 %v3731, %v3558
    %v3733 = vadd.f32 %v3732, %v3566
    %v3734 = vadd.f32 %v3733, %v3574
    %v3735 = vadd.f32 %v3734, %v3582
    %v3736 = vadd.f32 %v3735, %v3590
    %v3737 = vrot.slane %v3736, 4
    %v3738 = vadd.f32 %v3736, %v3737
    %v3739 = vrot.slane %v3738, 2
    %v3740 = vadd.f32 %v3738, %v3739
    %v3741 = vrot.slane %v3740, 1
    %v3742 = vadd.f32 %v3740, %v3741
    %v3743 = vadd.f32 %v3343, %v3351
    %v3744 = vadd.f32 %v3743, %v3359
    %v3745 = vadd.f32 %v3744, %v3367
    %v3746 = vadd.f32 %v3745, %v3375
    %v3747 = vadd.f32 %v3746, %v3383
    %v3748 = vadd.f32 %v3747, %v3391
    %v3749 = vadd.f32 %v3748, %v3399
    %v3750 = vadd.f32 %v3749, %v3407
    %v3751 = vadd.f32 %v3750, %v3415
    %v3752 = vadd.f32 %v3751, %v3423
    %v3753 = vadd.f32 %v3752, %v3431
    %v3754 = vadd.f32 %v3753, %v3439
    %v3755 = vadd.f32 %v3754, %v3447
    %v3756 = vadd.f32 %v3755, %v3455
    %v3757 = vadd.f32 %v3756, %v3463
    %v3758 = vadd.f32 %v3757, %v3471
    %v3759 = vadd.f32 %v3758, %v3479
    %v3760 = vadd.f32 %v3759, %v3487
    %v3761 = vadd.f32 %v3760, %v3495
    %v3762 = vadd.f32 %v3761, %v3503
    %v3763 = vadd.f32 %v3762, %v3511
    %v3764 = vadd.f32 %v3763, %v3519
    %v3765 = vadd.f32 %v3764, %v3527
    %v3766 = vadd.f32 %v3765, %v3535
    %v3767 = vadd.f32 %v3766, %v3543
    %v3768 = vadd.f32 %v3767, %v3551
    %v3769 = vadd.f32 %v3768, %v3559
    %v3770 = vadd.f32 %v3769, %v3567
    %v3771 = vadd.f32 %v3770, %v3575
    %v3772 = vadd.f32 %v3771, %v3583
    %v3773 = vadd.f32 %v3772, %v3591
    %v3774 = vrot.slane %v3773, 4
    %v3775 = vadd.f32 %v3773, %v3774
    %v3776 = vrot.slane %v3775, 2
    %v3777 = vadd.f32 %v3775, %v3776
    %v3778 = vrot.slane %v3777, 1
    %v3779 = vadd.f32 %v3777, %v3778
    %v3780 = vadd.f32 %v3344, %v3352
    %v3781 = vadd.f32 %v3780, %v3360
    %v3782 = vadd.f32 %v3781, %v3368
    %v3783 = vadd.f32 %v3782, %v3376
    %v3784 = vadd.f32 %v3783, %v3384
    %v3785 = vadd.f32 %v3784, %v3392
    %v3786 = vadd.f32 %v3785, %v3400
    %v3787 = vadd.f32 %v3786, %v3408
    %v3788 = vadd.f32 %v3787, %v3416
    %v3789 = vadd.f32 %v3788, %v3424
    %v3790 = vadd.f32 %v3789, %v3432
    %v3791 = vadd.f32 %v3790, %v3440
    %v3792 = vadd.f32 %v3791, %v3448
    %v3793 = vadd.f32 %v3792, %v3456
    %v3794 = vadd.f32 %v3793, %v3464
    %v3795 = vadd.f32 %v3794, %v3472
    %v3796 = vadd.f32 %v3795, %v3480
    %v3797 = vadd.f32 %v3796, %v3488
    %v3798 = vadd.f32 %v3797, %v3496
    %v3799 = vadd.f32 %v3798, %v3504
    %v3800 = vadd.f32 %v3799, %v3512
    %v3801 = vadd.f32 %v3800, %v3520
    %v3802 = vadd.f32 %v3801, %v3528
    %v3803 = vadd.f32 %v3802, %v3536
    %v3804 = vadd.f32 %v3803, %v3544
    %v3805 = vadd.f32 %v3804, %v3552
    %v3806 = vadd.f32 %v3805, %v3560
    %v3807 = vadd.f32 %v3806, %v3568
    %v3808 = vadd.f32 %v3807, %v3576
    %v3809 = vadd.f32 %v3808, %v3584
    %v3810 = vadd.f32 %v3809, %v3592
    %v3811 = vrot.slane %v3810, 4
    %v3812 = vadd.f32 %v3810, %v3811
    %v3813 = vrot.slane %v3812, 2
    %v3814 = vadd.f32 %v3812, %v3813
    %v3815 = vrot.slane %v3814, 1
    %v3816 = vadd.f32 %v3814, %v3815
    %v3817 = vadd.f32 %v3345, %v3353
    %v3818 = vadd.f32 %v3817, %v3361
    %v3819 = vadd.f32 %v3818, %v3369
    %v3820 = vadd.f32 %v3819, %v3377
    %v3821 = vadd.f32 %v3820, %v3385
    %v3822 = vadd.f32 %v3821, %v3393
    %v3823 = vadd.f32 %v3822, %v3401
    %v3824 = vadd.f32 %v3823, %v3409
    %v3825 = vadd.f32 %v3824, %v3417
    %v3826 = vadd.f32 %v3825, %v3425
    %v3827 = vadd.f32 %v3826, %v3433
    %v3828 = vadd.f32 %v3827, %v3441
    %v3829 = vadd.f32 %v3828, %v3449
    %v3830 = vadd.f32 %v3829, %v3457
    %v3831 = vadd.f32 %v3830, %v3465
    %v3832 = vadd.f32 %v3831, %v3473
    %v3833 = vadd.f32 %v3832, %v3481
    %v3834 = vadd.f32 %v3833, %v3489
    %v3835 = vadd.f32 %v3834, %v3497
    %v3836 = vadd.f32 %v3835, %v3505
    %v3837 = vadd.f32 %v3836, %v3513
    %v3838 = vadd.f32 %v3837, %v3521
    %v3839 = vadd.f32 %v3838, %v3529
    %v3840 = vadd.f32 %v3839, %v3537
    %v3841 = vadd.f32 %v3840, %v3545
    %v3842 = vadd.f32 %v3841, %v3553
    %v3843 = vadd.f32 %v3842, %v3561
    %v3844 = vadd.f32 %v3843, %v3569
    %v3845 = vadd.f32 %v3844, %v3577
    %v3846 = vadd.f32 %v3845, %v3585
    %v3847 = vadd.f32 %v3846, %v3593
    %v3848 = vrot.slane %v3847, 4
    %v3849 = vadd.f32 %v3847, %v3848
    %v3850 = vrot.slane %v3849, 2
    %v3851 = vadd.f32 %v3849, %v3850
    %v3852 = vrot.slane %v3851, 1
    %v3853 = vadd.f32 %v3851, %v3852
    %v3854 = vadd.f32 %v3346, %v3354
    %v3855 = vadd.f32 %v3854, %v3362
    %v3856 = vadd.f32 %v3855, %v3370
    %v3857 = vadd.f32 %v3856, %v3378
    %v3858 = vadd.f32 %v3857, %v3386
    %v3859 = vadd.f32 %v3858, %v3394
    %v3860 = vadd.f32 %v3859, %v3402
    %v3861 = vadd.f32 %v3860, %v3410
    %v3862 = vadd.f32 %v3861, %v3418
    %v3863 = vadd.f32 %v3862, %v3426
    %v3864 = vadd.f32 %v3863, %v3434
    %v3865 = vadd.f32 %v3864, %v3442
    %v3866 = vadd.f32 %v3865, %v3450
    %v3867 = vadd.f32 %v3866, %v3458
    %v3868 = vadd.f32 %v3867, %v3466
    %v3869 = vadd.f32 %v3868, %v3474
    %v3870 = vadd.f32 %v3869, %v3482
    %v3871 = vadd.f32 %v3870, %v3490
    %v3872 = vadd.f32 %v3871, %v3498
    %v3873 = vadd.f32 %v3872, %v3506
    %v3874 = vadd.f32 %v3873, %v3514
    %v3875 = vadd.f32 %v3874, %v3522
    %v3876 = vadd.f32 %v3875, %v3530
    %v3877 = vadd.f32 %v3876, %v3538
    %v3878 = vadd.f32 %v3877, %v3546
    %v3879 = vadd.f32 %v3878, %v3554
    %v3880 = vadd.f32 %v3879, %v3562
    %v3881 = vadd.f32 %v3880, %v3570
    %v3882 = vadd.f32 %v3881, %v3578
    %v3883 = vadd.f32 %v3882, %v3586
    %v3884 = vadd.f32 %v3883, %v3594
    %v3885 = vrot.slane %v3884, 4
    %v3886 = vadd.f32 %v3884, %v3885
    %v3887 = vrot.slane %v3886, 2
    %v3888 = vadd.f32 %v3886, %v3887
    %v3889 = vrot.slane %v3888, 1
    %v3890 = vadd.f32 %v3888, %v3889
    %v3891 = vmul.f32 %v3631, 0.00390625
    %v3892 = vmul.f32 %v3668, 0.00390625
    %v3893 = vmul.f32 %v3705, 0.00390625
    %v3894 = vmul.f32 %v3742, 0.00390625
    %v3895 = vmul.f32 %v3779, 0.00390625
    %v3896 = vmul.f32 %v3816, 0.00390625
    %v3897 = vmul.f32 %v3853, 0.00390625
    %v3898 = vmul.f32 %v3890, 0.00390625
    %v3899 = vmul.f32 %v3331, %v3331
    %v3900 = vmul.f32 %v3332, %v3332
    %v3901 = vmul.f32 %v3333, %v3333
    %v3902 = vmul.f32 %v3334, %v3334
    %v3903 = vmul.f32 %v3335, %v3335
    %v3904 = vmul.f32 %v3336, %v3336
    %v3905 = vmul.f32 %v3337, %v3337
    %v3906 = vmul.f32 %v3338, %v3338
    %v3907 = vsub.f32 %v3891, %v3899
    %v3908 = vsub.f32 %v3892, %v3900
    %v3909 = vsub.f32 %v3893, %v3901
    %v3910 = vsub.f32 %v3894, %v3902
    %v3911 = vsub.f32 %v3895, %v3903
    %v3912 = vsub.f32 %v3896, %v3904
    %v3913 = vsub.f32 %v3897, %v3905
    %v3914 = vsub.f32 %v3898, %v3906
    %v3915 = vadd.f32 %v3907, 1e-05
    %v3916 = vadd.f32 %v3908, 1e-05
    %v3917 = vadd.f32 %v3909, 1e-05
    %v3918 = vadd.f32 %v3910, 1e-05
    %v3919 = vadd.f32 %v3911, 1e-05
    %v3920 = vadd.f32 %v3912, 1e-05
    %v3921 = vadd.f32 %v3913, 1e-05
    %v3922 = vadd.f32 %v3914, 1e-05
    %v3923 = vrsqrt.pop %v3915
    %v3924 = vrsqrt.pop %v3916
    %v3925 = vrsqrt.pop %v3917
    %v3926 = vrsqrt.pop %v3918
    %v3927 = vrsqrt.pop %v3919
    %v3928 = vrsqrt.pop %v3920
    %v3929 = vrsqrt.pop %v3921
    %v3930 = vrsqrt.pop %v3922
    %v3939 = vcombine.low %v3923, %v3924
    %v3940 = vcombine.low %v3925, %v3926
    %v3941 = vcombine.low %v3927, %v3928
    %v3942 = vcombine.low %v3929, %v3930
    %v3943 = vrot.slane %v3939, 7
    %v3944 = vrot.slane %v3940, 7
    %v3945 = vrot.slane %v3941, 7
    %v3946 = vrot.slane %v3942, 7
    %v3951 = vmul.f32 %v1671, %v3943
    %v3952 = vmul.f32 %v1672, %v3944
    %v3953 = vmul.f32 %v1673, %v3945
    %v3954 = vmul.f32 %v1674, %v3946
    %v3959 = vlaneseq
    %v3960 = vshrl.u32 %v3959, 7
    %v3961 = vsub.s32 1, %v3960
    %v3962 = vrot.slane %v3951, %v3961
    %v3963 = vlaneseq
    %v3964 = vshrl.u32 %v3963, 7
    %v3965 = vsub.s32 5, %v3964
    %v3966 = vrot.slane %v3951, %v3965
    %v3967 = vlaneseq
    %v3968 = vshrl.u32 %v3967, 7
    %v3969 = vsub.s32 1, %v3968
    %v3970 = vrot.slane %v3952, %v3969
    %v3971 = vlaneseq
    %v3972 = vshrl.u32 %v3971, 7
    %v3973 = vsub.s32 5, %v3972
    %v3974 = vrot.slane %v3952, %v3973
    %v3975 = vlaneseq
    %v3976 = vshrl.u32 %v3975, 7
    %v3977 = vsub.s32 1, %v3976
    %v3978 = vrot.slane %v3953, %v3977
    %v3979 = vlaneseq
    %v3980 = vshrl.u32 %v3979, 7
    %v3981 = vsub.s32 5, %v3980
    %v3982 = vrot.slane %v3953, %v3981
    %v3983 = vlaneseq
    %v3984 = vshrl.u32 %v3983, 7
    %v3985 = vsub.s32 1, %v3984
    %v3986 = vrot.slane %v3954, %v3985
    %v3987 = vlaneseq
    %v3988 = vshrl.u32 %v3987, 7
    %v3989 = vsub.s32 5, %v3988
    %v3990 = vrot.slane %v3954, %v3989
    %v3999 = vmul.f32 %v3331, %v3962
    %v4000 = vmul.f32 %v3332, %v3966
    %v4001 = vmul.f32 %v3333, %v3970
    %v4002 = vmul.f32 %v3334, %v3974
    %v4003 = vmul.f32 %v3335, %v3978
    %v4004 = vmul.f32 %v3336, %v3982
    %v4005 = vmul.f32 %v3337, %v3986
    %v4006 = vmul.f32 %v3338, %v3990
    %v4015 = vcombine.low %v3999, %v4000
    %v4016 = vcombine.low %v4001, %v4002
    %v4017 = vcombine.low %v4003, %v4004
    %v4018 = vcombine.low %v4005, %v4006
    %v4019 = vrot.slane %v4015, 6
    %v4020 = vrot.slane %v4016, 6
    %v4021 = vrot.slane %v4017, 6
    %v4022 = vrot.slane %v4018, 6
    %v4027 = vsub.f32 %v1671, %v4019
    %v4028 = vsub.f32 %v1672, %v4020
    %v4029 = vsub.f32 %v1673, %v4021
    %v4030 = vsub.f32 %v1674, %v4022
    %v4031 = vlaneseq
    %v4032 = vshrl.u32 %v4031, 7
    %v4033 = vsub.s32 1, %v4032
    %v4034 = vrot.slane %v3962, %v4033
    %v4035 = vlaneseq
    %v4036 = vshrl.u32 %v4035, 7
    %v4037 = vsub.s32 1, %v4036
    %v4038 = vrot.slane %v3966, %v4037
    %v4039 = vlaneseq
    %v4040 = vshrl.u32 %v4039, 7
    %v4041 = vsub.s32 1, %v4040
    %v4042 = vrot.slane %v3970, %v4041
    %v4043 = vlaneseq
    %v4044 = vshrl.u32 %v4043, 7
    %v4045 = vsub.s32 1, %v4044
    %v4046 = vrot.slane %v3974, %v4045
    %v4047 = vlaneseq
    %v4048 = vshrl.u32 %v4047, 7
    %v4049 = vsub.s32 1, %v4048
    %v4050 = vrot.slane %v3978, %v4049
    %v4051 = vlaneseq
    %v4052 = vshrl.u32 %v4051, 7
    %v4053 = vsub.s32 1, %v4052
    %v4054 = vrot.slane %v3982, %v4053
    %v4055 = vlaneseq
    %v4056 = vshrl.u32 %v4055, 7
    %v4057 = vsub.s32 1, %v4056
    %v4058 = vrot.slane %v3986, %v4057
    %v4059 = vlaneseq
    %v4060 = vshrl.u32 %v4059, 7
    %v4061 = vsub.s32 1, %v4060
    %v4062 = vrot.slane %v3990, %v4061
    %v4063 = vmul.f32 %v2779, %v4034
    %v4064 = vmul.f32 %v2780, %v4038
    %v4065 = vmul.f32 %v2781, %v4042
    %v4066 = vmul.f32 %v2782, %v4046
    %v4067 = vmul.f32 %v2783, %v4050
    %v4068 = vmul.f32 %v2784, %v4054
    %v4069 = vmul.f32 %v2785, %v4058
    %v4070 = vmul.f32 %v2786, %v4062
    %v4071 = vmul.f32 %v2787, %v4034
    %v4072 = vmul.f32 %v2788, %v4038
    %v4073 = vmul.f32 %v2789, %v4042
    %v4074 = vmul.f32 %v2790, %v4046
    %v4075 = vmul.f32 %v2791, %v4050
    %v4076 = vmul.f32 %v2792, %v4054
    %v4077 = vmul.f32 %v2793, %v4058
    %v4078 = vmul.f32 %v2794, %v4062
    %v4079 = vmul.f32 %v2795, %v4034
    %v4080 = vmul.f32 %v2796, %v4038
    %v4081 = vmul.f32 %v2797, %v4042
    %v4082 = vmul.f32 %v2798, %v4046
    %v4083 = vmul.f32 %v2799, %v4050
    %v4084 = vmul.f32 %v2800, %v4054
    %v4085 = vmul.f32 %v2801, %v4058
    %v4086 = vmul.f32 %v2802, %v4062
    %v4087 = vmul.f32 %v2803, %v4034
    %v4088 = vmul.f32 %v2804, %v4038
    %v4089 = vmul.f32 %v2805, %v4042
    %v4090 = vmul.f32 %v2806, %v4046
    %v4091 = vmul.f32 %v2807, %v4050
    %v4092 = vmul.f32 %v2808, %v4054
    %v4093 = vmul.f32 %v2809, %v4058
    %v4094 = vmul.f32 %v2810, %v4062
    %v4095 = vmul.f32 %v2811, %v4034
    %v4096 = vmul.f32 %v2812, %v4038
    %v4097 = vmul.f32 %v2813, %v4042
    %v4098 = vmul.f32 %v2814, %v4046
    %v4099 = vmul.f32 %v2815, %v4050
    %v4100 = vmul.f32 %v2816, %v4054
    %v4101 = vmul.f32 %v2817, %v4058
    %v4102 = vmul.f32 %v2818, %v4062
    %v4103 = vmul.f32 %v2819, %v4034
    %v4104 = vmul.f32 %v2820, %v4038
    %v4105 = vmul.f32 %v2821, %v4042
    %v4106 = vmul.f32 %v2822, %v4046
    %v4107 = vmul.f32 %v2823, %v4050
    %v4108 = vmul.f32 %v2824, %v4054
    %v4109 = vmul.f32 %v2825, %v4058
    %v4110 = vmul.f32 %v2826, %v4062
    %v4111 = vmul.f32 %v2827, %v4034
    %v4112 = vmul.f32 %v2828, %v4038
    %v4113 = vmul.f32 %v2829, %v4042
    %v4114 = vmul.f32 %v2830, %v4046
    %v4115 = vmul.f32 %v2831, %v4050
    %v4116 = vmul.f32 %v2832, %v4054
    %v4117 = vmul.f32 %v2833, %v4058
    %v4118 = vmul.f32 %v2834, %v4062
    %v4119 = vmul.f32 %v2835, %v4034
    %v4120 = vmul.f32 %v2836, %v4038
    %v4121 = vmul.f32 %v2837, %v4042
    %v4122 = vmul.f32 %v2838, %v4046
    %v4123 = vmul.f32 %v2839, %v4050
    %v4124 = vmul.f32 %v2840, %v4054
    %v4125 = vmul.f32 %v2841, %v4058
    %v4126 = vmul.f32 %v2842, %v4062
    %v4127 = vmul.f32 %v2843, %v4034
    %v4128 = vmul.f32 %v2844, %v4038
    %v4129 = vmul.f32 %v2845, %v4042
    %v4130 = vmul.f32 %v2846, %v4046
    %v4131 = vmul.f32 %v2847, %v4050
    %v4132 = vmul.f32 %v2848, %v4054
    %v4133 = vmul.f32 %v2849, %v4058
    %v4134 = vmul.f32 %v2850, %v4062
    %v4135 = vmul.f32 %v2851, %v4034
    %v4136 = vmul.f32 %v2852, %v4038
    %v4137 = vmul.f32 %v2853, %v4042
    %v4138 = vmul.f32 %v2854, %v4046
    %v4139 = vmul.f32 %v2855, %v4050
    %v4140 = vmul.f32 %v2856, %v4054
    %v4141 = vmul.f32 %v2857, %v4058
    %v4142 = vmul.f32 %v2858, %v4062
    %v4143 = vmul.f32 %v2859, %v4034
    %v4144 = vmul.f32 %v2860, %v4038
    %v4145 = vmul.f32 %v2861, %v4042
    %v4146 = vmul.f32 %v2862, %v4046
    %v4147 = vmul.f32 %v2863, %v4050
    %v4148 = vmul.f32 %v2864, %v4054
    %v4149 = vmul.f32 %v2865, %v4058
    %v4150 = vmul.f32 %v2866, %v4062
    %v4151 = vmul.f32 %v2867, %v4034
    %v4152 = vmul.f32 %v2868, %v4038
    %v4153 = vmul.f32 %v2869, %v4042
    %v4154 = vmul.f32 %v2870, %v4046
    %v4155 = vmul.f32 %v2871, %v4050
    %v4156 = vmul.f32 %v2872, %v4054
    %v4157 = vmul.f32 %v2873, %v4058
    %v4158 = vmul.f32 %v2874, %v4062
    %v4159 = vmul.f32 %v2875, %v4034
    %v4160 = vmul.f32 %v2876, %v4038
    %v4161 = vmul.f32 %v2877, %v4042
    %v4162 = vmul.f32 %v2878, %v4046
    %v4163 = vmul.f32 %v2879, %v4050
    %v4164 = vmul.f32 %v2880, %v4054
    %v4165 = vmul.f32 %v2881, %v4058
    %v4166 = vmul.f32 %v2882, %v4062
    %v4167 = vmul.f32 %v2883, %v4034
    %v4168 = vmul.f32 %v2884, %v4038
    %v4169 = vmul.f32 %v2885, %v4042
    %v4170 = vmul.f32 %v2886, %v4046
    %v4171 = vmul.f32 %v2887, %v4050
    %v4172 = vmul.f32 %v2888, %v4054
    %v4173 = vmul.f32 %v2889, %v4058
    %v4174 = vmul.f32 %v2890, %v4062
    %v4175 = vmul.f32 %v2891, %v4034
    %v4176 = vmul.f32 %v2892, %v4038
    %v4177 = vmul.f32 %v2893, %v4042
    %v4178 = vmul.f32 %v2894, %v4046
    %v4179 = vmul.f32 %v2895, %v4050
    %v4180 = vmul.f32 %v2896, %v4054
    %v4181 = vmul.f32 %v2897, %v4058
    %v4182 = vmul.f32 %v2898, %v4062
    %v4183 = vmul.f32 %v2899, %v4034
    %v4184 = vmul.f32 %v2900, %v4038
    %v4185 = vmul.f32 %v2901, %v4042
    %v4186 = vmul.f32 %v2902, %v4046
    %v4187 = vmul.f32 %v2903, %v4050
    %v4188 = vmul.f32 %v2904, %v4054
    %v4189 = vmul.f32 %v2905, %v4058
    %v4190 = vmul.f32 %v2906, %v4062
    %v4191 = vmul.f32 %v2907, %v4034
    %v4192 = vmul.f32 %v2908, %v4038
    %v4193 = vmul.f32 %v2909, %v4042
    %v4194 = vmul.f32 %v2910, %v4046
    %v4195 = vmul.f32 %v2911, %v4050
    %v4196 = vmul.f32 %v2912, %v4054
    %v4197 = vmul.f32 %v2913, %v4058
    %v4198 = vmul.f32 %v2914, %v4062
    %v4199 = vmul.f32 %v2915, %v4034
    %v4200 = vmul.f32 %v2916, %v4038
    %v4201 = vmul.f32 %v2917, %v4042
    %v4202 = vmul.f32 %v2918, %v4046
    %v4203 = vmul.f32 %v2919, %v4050
    %v4204 = vmul.f32 %v2920, %v4054
    %v4205 = vmul.f32 %v2921, %v4058
    %v4206 = vmul.f32 %v2922, %v4062
    %v4207 = vmul.f32 %v2923, %v4034
    %v4208 = vmul.f32 %v2924, %v4038
    %v4209 = vmul.f32 %v2925, %v4042
    %v4210 = vmul.f32 %v2926, %v4046
    %v4211 = vmul.f32 %v2927, %v4050
    %v4212 = vmul.f32 %v2928, %v4054
    %v4213 = vmul.f32 %v2929, %v4058
    %v4214 = vmul.f32 %v2930, %v4062
    %v4215 = vmul.f32 %v2931, %v4034
    %v4216 = vmul.f32 %v2932, %v4038
    %v4217 = vmul.f32 %v2933, %v4042
    %v4218 = vmul.f32 %v2934, %v4046
    %v4219 = vmul.f32 %v2935, %v4050
    %v4220 = vmul.f32 %v2936, %v4054
    %v4221 = vmul.f32 %v2937, %v4058
    %v4222 = vmul.f32 %v2938, %v4062
    %v4223 = vmul.f32 %v2939, %v4034
    %v4224 = vmul.f32 %v2940, %v4038
    %v4225 = vmul.f32 %v2941, %v4042
    %v4226 = vmul.f32 %v2942, %v4046
    %v4227 = vmul.f32 %v2943, %v4050
    %v4228 = vmul.f32 %v2944, %v4054
    %v4229 = vmul.f32 %v2945, %v4058
    %v4230 = vmul.f32 %v2946, %v4062
    %v4231 = vmul.f32 %v2947, %v4034
    %v4232 = vmul.f32 %v2948, %v4038
    %v4233 = vmul.f32 %v2949, %v4042
    %v4234 = vmul.f32 %v2950, %v4046
    %v4235 = vmul.f32 %v2951, %v4050
    %v4236 = vmul.f32 %v2952, %v4054
    %v4237 = vmul.f32 %v2953, %v4058
    %v4238 = vmul.f32 %v2954, %v4062
    %v4239 = vmul.f32 %v2955, %v4034
    %v4240 = vmul.f32 %v2956, %v4038
    %v4241 = vmul.f32 %v2957, %v4042
    %v4242 = vmul.f32 %v2958, %v4046
    %v4243 = vmul.f32 %v2959, %v4050
    %v4244 = vmul.f32 %v2960, %v4054
    %v4245 = vmul.f32 %v2961, %v4058
    %v4246 = vmul.f32 %v2962, %v4062
    %v4247 = vmul.f32 %v2963, %v4034
    %v4248 = vmul.f32 %v2964, %v4038
    %v4249 = vmul.f32 %v2965, %v4042
    %v4250 = vmul.f32 %v2966, %v4046
    %v4251 = vmul.f32 %v2967, %v4050
    %v4252 = vmul.f32 %v2968, %v4054
    %v4253 = vmul.f32 %v2969, %v4058
    %v4254 = vmul.f32 %v2970, %v4062
    %v4255 = vmul.f32 %v2971, %v4034
    %v4256 = vmul.f32 %v2972, %v4038
    %v4257 = vmul.f32 %v2973, %v4042
    %v4258 = vmul.f32 %v2974, %v4046
    %v4259 = vmul.f32 %v2975, %v4050
    %v4260 = vmul.f32 %v2976, %v4054
    %v4261 = vmul.f32 %v2977, %v4058
    %v4262 = vmul.f32 %v2978, %v4062
    %v4263 = vmul.f32 %v2979, %v4034
    %v4264 = vmul.f32 %v2980, %v4038
    %v4265 = vmul.f32 %v2981, %v4042
    %v4266 = vmul.f32 %v2982, %v4046
    %v4267 = vmul.f32 %v2983, %v4050
    %v4268 = vmul.f32 %v2984, %v4054
    %v4269 = vmul.f32 %v2985, %v4058
    %v4270 = vmul.f32 %v2986, %v4062
    %v4271 = vmul.f32 %v2987, %v4034
    %v4272 = vmul.f32 %v2988, %v4038
    %v4273 = vmul.f32 %v2989, %v4042
    %v4274 = vmul.f32 %v2990, %v4046
    %v4275 = vmul.f32 %v2991, %v4050
    %v4276 = vmul.f32 %v2992, %v4054
    %v4277 = vmul.f32 %v2993, %v4058
    %v4278 = vmul.f32 %v2994, %v4062
    %v4279 = vmul.f32 %v2995, %v4034
    %v4280 = vmul.f32 %v2996, %v4038
    %v4281 = vmul.f32 %v2997, %v4042
    %v4282 = vmul.f32 %v2998, %v4046
    %v4283 = vmul.f32 %v2999, %v4050
    %v4284 = vmul.f32 %v3000, %v4054
    %v4285 = vmul.f32 %v3001, %v4058
    %v4286 = vmul.f32 %v3002, %v4062
    %v4287 = vmul.f32 %v3003, %v4034
    %v4288 = vmul.f32 %v3004, %v4038
    %v4289 = vmul.f32 %v3005, %v4042
    %v4290 = vmul.f32 %v3006, %v4046
    %v4291 = vmul.f32 %v3007, %v4050
    %v4292 = vmul.f32 %v3008, %v4054
    %v4293 = vmul.f32 %v3009, %v4058
    %v4294 = vmul.f32 %v3010, %v4062
    %v4295 = vmul.f32 %v3011, %v4034
    %v4296 = vmul.f32 %v3012, %v4038
    %v4297 = vmul.f32 %v3013, %v4042
    %v4298 = vmul.f32 %v3014, %v4046
    %v4299 = vmul.f32 %v3015, %v4050
    %v4300 = vmul.f32 %v3016, %v4054
    %v4301 = vmul.f32 %v3017, %v4058
    %v4302 = vmul.f32 %v3018, %v4062
    %v4303 = vmul.f32 %v3019, %v4034
    %v4304 = vmul.f32 %v3020, %v4038
    %v4305 = vmul.f32 %v3021, %v4042
    %v4306 = vmul.f32 %v3022, %v4046
    %v4307 = vmul.f32 %v3023, %v4050
    %v4308 = vmul.f32 %v3024, %v4054
    %v4309 = vmul.f32 %v3025, %v4058
    %v4310 = vmul.f32 %v3026, %v4062
    %v4311 = vmul.f32 %v3027, %v4034
    %v4312 = vmul.f32 %v3028, %v4038
    %v4313 = vmul.f32 %v3029, %v4042
    %v4314 = vmul.f32 %v3030, %v4046
    %v4315 = vmul.f32 %v3031, %v4050
    %v4316 = vmul.f32 %v3032, %v4054
    %v4317 = vmul.f32 %v3033, %v4058
    %v4318 = vmul.f32 %v3034, %v4062
    %v4323 = vlaneseq
    %v4324 = vshrl.u32 %v4323, 7
    %v4325 = vsub.s32 2, %v4324
    %v4326 = vrot.slane %v4027, %v4325
    %v4327 = vlaneseq
    %v4328 = vshrl.u32 %v4327, 7
    %v4329 = vsub.s32 6, %v4328
    %v4330 = vrot.slane %v4027, %v4329
    %v4331 = vlaneseq
    %v4332 = vshrl.u32 %v4331, 7
    %v4333 = vsub.s32 2, %v4332
    %v4334 = vrot.slane %v4028, %v4333
    %v4335 = vlaneseq
    %v4336 = vshrl.u32 %v4335, 7
    %v4337 = vsub.s32 6, %v4336
    %v4338 = vrot.slane %v4028, %v4337
    %v4339 = vlaneseq
    %v4340 = vshrl.u32 %v4339, 7
    %v4341 = vsub.s32 2, %v4340
    %v4342 = vrot.slane %v4029, %v4341
    %v4343 = vlaneseq
    %v4344 = vshrl.u32 %v4343, 7
    %v4345 = vsub.s32 6, %v4344
    %v4346 = vrot.slane %v4029, %v4345
    %v4347 = vlaneseq
    %v4348 = vshrl.u32 %v4347, 7
    %v4349 = vsub.s32 2, %v4348
    %v4350 = vrot.slane %v4030, %v4349
    %v4351 = vlaneseq
    %v4352 = vshrl.u32 %v4351, 7
    %v4353 = vsub.s32 6, %v4352
    %v4354 = vrot.slane %v4030, %v4353
    %v4363 = vlaneseq
    %v4364 = vshrl.u32 %v4363, 7
    %v4365 = vsub.s32 2, %v4364
    %v4366 = vrot.slane %v4326, %v4365
    %v4367 = vlaneseq
    %v4368 = vshrl.u32 %v4367, 7
    %v4369 = vsub.s32 2, %v4368
    %v4370 = vrot.slane %v4330, %v4369
    %v4371 = vlaneseq
    %v4372 = vshrl.u32 %v4371, 7
    %v4373 = vsub.s32 2, %v4372
    %v4374 = vrot.slane %v4334, %v4373
    %v4375 = vlaneseq
    %v4376 = vshrl.u32 %v4375, 7
    %v4377 = vsub.s32 2, %v4376
    %v4378 = vrot.slane %v4338, %v4377
    %v4379 = vlaneseq
    %v4380 = vshrl.u32 %v4379, 7
    %v4381 = vsub.s32 2, %v4380
    %v4382 = vrot.slane %v4342, %v4381
    %v4383 = vlaneseq
    %v4384 = vshrl.u32 %v4383, 7
    %v4385 = vsub.s32 2, %v4384
    %v4386 = vrot.slane %v4346, %v4385
    %v4387 = vlaneseq
    %v4388 = vshrl.u32 %v4387, 7
    %v4389 = vsub.s32 2, %v4388
    %v4390 = vrot.slane %v4350, %v4389
    %v4391 = vlaneseq
    %v4392 = vshrl.u32 %v4391, 7
    %v4393 = vsub.s32 2, %v4392
    %v4394 = vrot.slane %v4354, %v4393
    %v4395 = vadd.f32 %v4063, %v4366
    %v4396 = vadd.f32 %v4064, %v4370
    %v4397 = vadd.f32 %v4065, %v4374
    %v4398 = vadd.f32 %v4066, %v4378
    %v4399 = vadd.f32 %v4067, %v4382
    %v4400 = vadd.f32 %v4068, %v4386
    %v4401 = vadd.f32 %v4069, %v4390
    %v4402 = vadd.f32 %v4070, %v4394
    %v4403 = vadd.f32 %v4071, %v4366
    %v4404 = vadd.f32 %v4072, %v4370
    %v4405 = vadd.f32 %v4073, %v4374
    %v4406 = vadd.f32 %v4074, %v4378
    %v4407 = vadd.f32 %v4075, %v4382
    %v4408 = vadd.f32 %v4076, %v4386
    %v4409 = vadd.f32 %v4077, %v4390
    %v4410 = vadd.f32 %v4078, %v4394
    %v4411 = vadd.f32 %v4079, %v4366
    %v4412 = vadd.f32 %v4080, %v4370
    %v4413 = vadd.f32 %v4081, %v4374
    %v4414 = vadd.f32 %v4082, %v4378
    %v4415 = vadd.f32 %v4083, %v4382
    %v4416 = vadd.f32 %v4084, %v4386
    %v4417 = vadd.f32 %v4085, %v4390
    %v4418 = vadd.f32 %v4086, %v4394
    %v4419 = vadd.f32 %v4087, %v4366
    %v4420 = vadd.f32 %v4088, %v4370
    %v4421 = vadd.f32 %v4089, %v4374
    %v4422 = vadd.f32 %v4090, %v4378
    %v4423 = vadd.f32 %v4091, %v4382
    %v4424 = vadd.f32 %v4092, %v4386
    %v4425 = vadd.f32 %v4093, %v4390
    %v4426 = vadd.f32 %v4094, %v4394
    %v4427 = vadd.f32 %v4095, %v4366
    %v4428 = vadd.f32 %v4096, %v4370
    %v4429 = vadd.f32 %v4097, %v4374
    %v4430 = vadd.f32 %v4098, %v4378
    %v4431 = vadd.f32 %v4099, %v4382
    %v4432 = vadd.f32 %v4100, %v4386
    %v4433 = vadd.f32 %v4101, %v4390
    %v4434 = vadd.f32 %v4102, %v4394
    %v4435 = vadd.f32 %v4103, %v4366
    %v4436 = vadd.f32 %v4104, %v4370
    %v4437 = vadd.f32 %v4105, %v4374
    %v4438 = vadd.f32 %v4106, %v4378
    %v4439 = vadd.f32 %v4107, %v4382
    %v4440 = vadd.f32 %v4108, %v4386
    %v4441 = vadd.f32 %v4109, %v4390
    %v4442 = vadd.f32 %v4110, %v4394
    %v4443 = vadd.f32 %v4111, %v4366
    %v4444 = vadd.f32 %v4112, %v4370
    %v4445 = vadd.f32 %v4113, %v4374
    %v4446 = vadd.f32 %v4114, %v4378
    %v4447 = vadd.f32 %v4115, %v4382
    %v4448 = vadd.f32 %v4116, %v4386
    %v4449 = vadd.f32 %v4117, %v4390
    %v4450 = vadd.f32 %v4118, %v4394
    %v4451 = vadd.f32 %v4119, %v4366
    %v4452 = vadd.f32 %v4120, %v4370
    %v4453 = vadd.f32 %v4121, %v4374
    %v4454 = vadd.f32 %v4122, %v4378
    %v4455 = vadd.f32 %v4123, %v4382
    %v4456 = vadd.f32 %v4124, %v4386
    %v4457 = vadd.f32 %v4125, %v4390
    %v4458 = vadd.f32 %v4126, %v4394
    %v4459 = vadd.f32 %v4127, %v4366
    %v4460 = vadd.f32 %v4128, %v4370
    %v4461 = vadd.f32 %v4129, %v4374
    %v4462 = vadd.f32 %v4130, %v4378
    %v4463 = vadd.f32 %v4131, %v4382
    %v4464 = vadd.f32 %v4132, %v4386
    %v4465 = vadd.f32 %v4133, %v4390
    %v4466 = vadd.f32 %v4134, %v4394
    %v4467 = vadd.f32 %v4135, %v4366
    %v4468 = vadd.f32 %v4136, %v4370
    %v4469 = vadd.f32 %v4137, %v4374
    %v4470 = vadd.f32 %v4138, %v4378
    %v4471 = vadd.f32 %v4139, %v4382
    %v4472 = vadd.f32 %v4140, %v4386
    %v4473 = vadd.f32 %v4141, %v4390
    %v4474 = vadd.f32 %v4142, %v4394
    %v4475 = vadd.f32 %v4143, %v4366
    %v4476 = vadd.f32 %v4144, %v4370
    %v4477 = vadd.f32 %v4145, %v4374
    %v4478 = vadd.f32 %v4146, %v4378
    %v4479 = vadd.f32 %v4147, %v4382
    %v4480 = vadd.f32 %v4148, %v4386
    %v4481 = vadd.f32 %v4149, %v4390
    %v4482 = vadd.f32 %v4150, %v4394
    %v4483 = vadd.f32 %v4151, %v4366
    %v4484 = vadd.f32 %v4152, %v4370
    %v4485 = vadd.f32 %v4153, %v4374
    %v4486 = vadd.f32 %v4154, %v4378
    %v4487 = vadd.f32 %v4155, %v4382
    %v4488 = vadd.f32 %v4156, %v4386
    %v4489 = vadd.f32 %v4157, %v4390
    %v4490 = vadd.f32 %v4158, %v4394
    %v4491 = vadd.f32 %v4159, %v4366
    %v4492 = vadd.f32 %v4160, %v4370
    %v4493 = vadd.f32 %v4161, %v4374
    %v4494 = vadd.f32 %v4162, %v4378
    %v4495 = vadd.f32 %v4163, %v4382
    %v4496 = vadd.f32 %v4164, %v4386
    %v4497 = vadd.f32 %v4165, %v4390
    %v4498 = vadd.f32 %v4166, %v4394
    %v4499 = vadd.f32 %v4167, %v4366
    %v4500 = vadd.f32 %v4168, %v4370
    %v4501 = vadd.f32 %v4169, %v4374
    %v4502 = vadd.f32 %v4170, %v4378
    %v4503 = vadd.f32 %v4171, %v4382
    %v4504 = vadd.f32 %v4172, %v4386
    %v4505 = vadd.f32 %v4173, %v4390
    %v4506 = vadd.f32 %v4174, %v4394
    %v4507 = vadd.f32 %v4175, %v4366
    %v4508 = vadd.f32 %v4176, %v4370
    %v4509 = vadd.f32 %v4177, %v4374
    %v4510 = vadd.f32 %v4178, %v4378
    %v4511 = vadd.f32 %v4179, %v4382
    %v4512 = vadd.f32 %v4180, %v4386
    %v4513 = vadd.f32 %v4181, %v4390
    %v4514 = vadd.f32 %v4182, %v4394
    %v4515 = vadd.f32 %v4183, %v4366
    %v4516 = vadd.f32 %v4184, %v4370
    %v4517 = vadd.f32 %v4185, %v4374
    %v4518 = vadd.f32 %v4186, %v4378
    %v4519 = vadd.f32 %v4187, %v4382
    %v4520 = vadd.f32 %v4188, %v4386
    %v4521 = vadd.f32 %v4189, %v4390
    %v4522 = vadd.f32 %v4190, %v4394
    %v4523 = vadd.f32 %v4191, %v4366
    %v4524 = vadd.f32 %v4192, %v4370
    %v4525 = vadd.f32 %v4193, %v4374
    %v4526 = vadd.f32 %v4194, %v4378
    %v4527 = vadd.f32 %v4195, %v4382
    %v4528 = vadd.f32 %v4196, %v4386
    %v4529 = vadd.f32 %v4197, %v4390
    %v4530 = vadd.f32 %v4198, %v4394
    %v4531 = vadd.f32 %v4199, %v4366
    %v4532 = vadd.f32 %v4200, %v4370
    %v4533 = vadd.f32 %v4201, %v4374
    %v4534 = vadd.f32 %v4202, %v4378
    %v4535 = vadd.f32 %v4203, %v4382
    %v4536 = vadd.f32 %v4204, %v4386
    %v4537 = vadd.f32 %v4205, %v4390
    %v4538 = vadd.f32 %v4206, %v4394
    %v4539 = vadd.f32 %v4207, %v4366
    %v4540 = vadd.f32 %v4208, %v4370
    %v4541 = vadd.f32 %v4209, %v4374
    %v4542 = vadd.f32 %v4210, %v4378
    %v4543 = vadd.f32 %v4211, %v4382
    %v4544 = vadd.f32 %v4212, %v4386
    %v4545 = vadd.f32 %v4213, %v4390
    %v4546 = vadd.f32 %v4214, %v4394
    %v4547 = vadd.f32 %v4215, %v4366
    %v4548 = vadd.f32 %v4216, %v4370
    %v4549 = vadd.f32 %v4217, %v4374
    %v4550 = vadd.f32 %v4218, %v4378
    %v4551 = vadd.f32 %v4219, %v4382
    %v4552 = vadd.f32 %v4220, %v4386
    %v4553 = vadd.f32 %v4221, %v4390
    %v4554 = vadd.f32 %v4222, %v4394
    %v4555 = vadd.f32 %v4223, %v4366
    %v4556 = vadd.f32 %v4224, %v4370
    %v4557 = vadd.f32 %v4225, %v4374
    %v4558 = vadd.f32 %v4226, %v4378
    %v4559 = vadd.f32 %v4227, %v4382
    %v4560 = vadd.f32 %v4228, %v4386
    %v4561 = vadd.f32 %v4229, %v4390
    %v4562 = vadd.f32 %v4230, %v4394
    %v4563 = vadd.f32 %v4231, %v4366
    %v4564 = vadd.f32 %v4232, %v4370
    %v4565 = vadd.f32 %v4233, %v4374
    %v4566 = vadd.f32 %v4234, %v4378
    %v4567 = vadd.f32 %v4235, %v4382
    %v4568 = vadd.f32 %v4236, %v4386
    %v4569 = vadd.f32 %v4237, %v4390
    %v4570 = vadd.f32 %v4238, %v4394
    %v4571 = vadd.f32 %v4239, %v4366
    %v4572 = vadd.f32 %v4240, %v4370
    %v4573 = vadd.f32 %v4241, %v4374
    %v4574 = vadd.f32 %v4242, %v4378
    %v4575 = vadd.f32 %v4243, %v4382
    %v4576 = vadd.f32 %v4244, %v4386
    %v4577 = vadd.f32 %v4245, %v4390
    %v4578 = vadd.f32 %v4246, %v4394
    %v4579 = vadd.f32 %v4247, %v4366
    %v4580 = vadd.f32 %v4248, %v4370
    %v4581 = vadd.f32 %v4249, %v4374
    %v4582 = vadd.f32 %v4250, %v4378
    %v4583 = vadd.f32 %v4251, %v4382
    %v4584 = vadd.f32 %v4252, %v4386
    %v4585 = vadd.f32 %v4253, %v4390
    %v4586 = vadd.f32 %v4254, %v4394
    %v4587 = vadd.f32 %v4255, %v4366
    %v4588 = vadd.f32 %v4256, %v4370
    %v4589 = vadd.f32 %v4257, %v4374
    %v4590 = vadd.f32 %v4258, %v4378
    %v4591 = vadd.f32 %v4259, %v4382
    %v4592 = vadd.f32 %v4260, %v4386
    %v4593 = vadd.f32 %v4261, %v4390
    %v4594 = vadd.f32 %v4262, %v4394
    %v4595 = vadd.f32 %v4263, %v4366
    %v4596 = vadd.f32 %v4264, %v4370
    %v4597 = vadd.f32 %v4265, %v4374
    %v4598 = vadd.f32 %v4266, %v4378
    %v4599 = vadd.f32 %v4267, %v4382
    %v4600 = vadd.f32 %v4268, %v4386
    %v4601 = vadd.f32 %v4269, %v4390
    %v4602 = vadd.f32 %v4270, %v4394
    %v4603 = vadd.f32 %v4271, %v4366
    %v4604 = vadd.f32 %v4272, %v4370
    %v4605 = vadd.f32 %v4273, %v4374
    %v4606 = vadd.f32 %v4274, %v4378
    %v4607 = vadd.f32 %v4275, %v4382
    %v4608 = vadd.f32 %v4276, %v4386
    %v4609 = vadd.f32 %v4277, %v4390
    %v4610 = vadd.f32 %v4278, %v4394
    %v4611 = vadd.f32 %v4279, %v4366
    %v4612 = vadd.f32 %v4280, %v4370
    %v4613 = vadd.f32 %v4281, %v4374
    %v4614 = vadd.f32 %v4282, %v4378
    %v4615 = vadd.f32 %v4283, %v4382
    %v4616 = vadd.f32 %v4284, %v4386
    %v4617 = vadd.f32 %v4285, %v4390
    %v4618 = vadd.f32 %v4286, %v4394
    %v4619 = vadd.f32 %v4287, %v4366
    %v4620 = vadd.f32 %v4288, %v4370
    %v4621 = vadd.f32 %v4289, %v4374
    %v4622 = vadd.f32 %v4290, %v4378
    %v4623 = vadd.f32 %v4291, %v4382
    %v4624 = vadd.f32 %v4292, %v4386
    %v4625 = vadd.f32 %v4293, %v4390
    %v4626 = vadd.f32 %v4294, %v4394
    %v4627 = vadd.f32 %v4295, %v4366
    %v4628 = vadd.f32 %v4296, %v4370
    %v4629 = vadd.f32 %v4297, %v4374
    %v4630 = vadd.f32 %v4298, %v4378
    %v4631 = vadd.f32 %v4299, %v4382
    %v4632 = vadd.f32 %v4300, %v4386
    %v4633 = vadd.f32 %v4301, %v4390
    %v4634 = vadd.f32 %v4302, %v4394
    %v4635 = vadd.f32 %v4303, %v4366
    %v4636 = vadd.f32 %v4304, %v4370
    %v4637 = vadd.f32 %v4305, %v4374
    %v4638 = vadd.f32 %v4306, %v4378
    %v4639 = vadd.f32 %v4307, %v4382
    %v4640 = vadd.f32 %v4308, %v4386
    %v4641 = vadd.f32 %v4309, %v4390
    %v4642 = vadd.f32 %v4310, %v4394
    %v4643 = vadd.f32 %v4311, %v4366
    %v4644 = vadd.f32 %v4312, %v4370
    %v4645 = vadd.f32 %v4313, %v4374
    %v4646 = vadd.f32 %v4314, %v4378
    %v4647 = vadd.f32 %v4315, %v4382
    %v4648 = vadd.f32 %v4316, %v4386
    %v4649 = vadd.f32 %v4317, %v4390
    %v4650 = vadd.f32 %v4318, %v4394
    %v4651 = vmax.f32 %v4395, %v4403
    %v4652 = vmax.f32 %v4651, %v4411
    %v4653 = vmax.f32 %v4652, %v4419
    %v4654 = vmax.f32 %v4653, %v4427
    %v4655 = vmax.f32 %v4654, %v4435
    %v4656 = vmax.f32 %v4655, %v4443
    %v4657 = vmax.f32 %v4656, %v4451
    %v4658 = vmax.f32 %v4657, %v4459
    %v4659 = vmax.f32 %v4658, %v4467
    %v4660 = vmax.f32 %v4659, %v4475
    %v4661 = vmax.f32 %v4660, %v4483
    %v4662 = vmax.f32 %v4661, %v4491
    %v4663 = vmax.f32 %v4662, %v4499
    %v4664 = vmax.f32 %v4663, %v4507
    %v4665 = vmax.f32 %v4664, %v4515
    %v4666 = vrot.slane %v4665, 4
    %v4667 = vmax.f32 %v4665, %v4666
    %v4668 = vrot.slane %v4667, 2
    %v4669 = vmax.f32 %v4667, %v4668
    %v4670 = vrot.slane %v4669, 1
    %v4671 = vmax.f32 %v4669, %v4670
    %v4672 = vmax.f32 %v4396, %v4404
    %v4673 = vmax.f32 %v4672, %v4412
    %v4674 = vmax.f32 %v4673, %v4420
    %v4675 = vmax.f32 %v4674, %v4428
    %v4676 = vmax.f32 %v4675, %v4436
    %v4677 = vmax.f32 %v4676, %v4444
    %v4678 = vmax.f32 %v4677, %v4452
    %v4679 = vmax.f32 %v4678, %v4460
    %v4680 = vmax.f32 %v4679, %v4468
    %v4681 = vmax.f32 %v4680, %v4476
    %v4682 = vmax.f32 %v4681, %v4484
    %v4683 = vmax.f32 %v4682, %v4492
    %v4684 = vmax.f32 %v4683, %v4500
    %v4685 = vmax.f32 %v4684, %v4508
    %v4686 = vmax.f32 %v4685, %v4516
    %v4687 = vrot.slane %v4686, 4
    %v4688 = vmax.f32 %v4686, %v4687
    %v4689 = vrot.slane %v4688, 2
    %v4690 = vmax.f32 %v4688, %v4689
    %v4691 = vrot.slane %v4690, 1
    %v4692 = vmax.f32 %v4690, %v4691
    %v4693 = vmax.f32 %v4397, %v4405
    %v4694 = vmax.f32 %v4693, %v4413
    %v4695 = vmax.f32 %v4694, %v4421
    %v4696 = vmax.f32 %v4695, %v4429
    %v4697 = vmax.f32 %v4696, %v4437
    %v4698 = vmax.f32 %v4697, %v4445
    %v4699 = vmax.f32 %v4698, %v4453
    %v4700 = vmax.f32 %v4699, %v4461
    %v4701 = vmax.f32 %v4700, %v4469
    %v4702 = vmax.f32 %v4701, %v4477
    %v4703 = vmax.f32 %v4702, %v4485
    %v4704 = vmax.f32 %v4703, %v4493
    %v4705 = vmax.f32 %v4704, %v4501
    %v4706 = vmax.f32 %v4705, %v4509
    %v4707 = vmax.f32 %v4706, %v4517
    %v4708 = vrot.slane %v4707, 4
    %v4709 = vmax.f32 %v4707, %v4708
    %v4710 = vrot.slane %v4709, 2
    %v4711 = vmax.f32 %v4709, %v4710
    %v4712 = vrot.slane %v4711, 1
    %v4713 = vmax.f32 %v4711, %v4712
    %v4714 = vmax.f32 %v4398, %v4406
    %v4715 = vmax.f32 %v4714, %v4414
    %v4716 = vmax.f32 %v4715, %v4422
    %v4717 = vmax.f32 %v4716, %v4430
    %v4718 = vmax.f32 %v4717, %v4438
    %v4719 = vmax.f32 %v4718, %v4446
    %v4720 = vmax.f32 %v4719, %v4454
    %v4721 = vmax.f32 %v4720, %v4462
    %v4722 = vmax.f32 %v4721, %v4470
    %v4723 = vmax.f32 %v4722, %v4478
    %v4724 = vmax.f32 %v4723, %v4486
    %v4725 = vmax.f32 %v4724, %v4494
    %v4726 = vmax.f32 %v4725, %v4502
    %v4727 = vmax.f32 %v4726, %v4510
    %v4728 = vmax.f32 %v4727, %v4518
    %v4729 = vrot.slane %v4728, 4
    %v4730 = vmax.f32 %v4728, %v4729
    %v4731 = vrot.slane %v4730, 2
    %v4732 = vmax.f32 %v4730, %v4731
    %v4733 = vrot.slane %v4732, 1
    %v4734 = vmax.f32 %v4732, %v4733
    %v4735 = vmax.f32 %v4399, %v4407
    %v4736 = vmax.f32 %v4735, %v4415
    %v4737 = vmax.f32 %v4736, %v4423
    %v4738 = vmax.f32 %v4737, %v4431
    %v4739 = vmax.f32 %v4738, %v4439
    %v4740 = vmax.f32 %v4739, %v4447
    %v4741 = vmax.f32 %v4740, %v4455
    %v4742 = vmax.f32 %v4741, %v4463
    %v4743 = vmax.f32 %v4742, %v4471
    %v4744 = vmax.f32 %v4743, %v4479
    %v4745 = vmax.f32 %v4744, %v4487
    %v4746 = vmax.f32 %v4745, %v4495
    %v4747 = vmax.f32 %v4746, %v4503
    %v4748 = vmax.f32 %v4747, %v4511
    %v4749 = vmax.f32 %v4748, %v4519
    %v4750 = vrot.slane %v4749, 4
    %v4751 = vmax.f32 %v4749, %v4750
    %v4752 = vrot.slane %v4751, 2
    %v4753 = vmax.f32 %v4751, %v4752
    %v4754 = vrot.slane %v4753, 1
    %v4755 = vmax.f32 %v4753, %v4754
    %v4756 = vmax.f32 %v4400, %v4408
    %v4757 = vmax.f32 %v4756, %v4416
    %v4758 = vmax.f32 %v4757, %v4424
    %v4759 = vmax.f32 %v4758, %v4432
    %v4760 = vmax.f32 %v4759, %v4440
    %v4761 = vmax.f32 %v4760, %v4448
    %v4762 = vmax.f32 %v4761, %v4456
    %v4763 = vmax.f32 %v4762, %v4464
    %v4764 = vmax.f32 %v4763, %v4472
    %v4765 = vmax.f32 %v4764, %v4480
    %v4766 = vmax.f32 %v4765, %v4488
    %v4767 = vmax.f32 %v4766, %v4496
    %v4768 = vmax.f32 %v4767, %v4504
    %v4769 = vmax.f32 %v4768, %v4512
    %v4770 = vmax.f32 %v4769, %v4520
    %v4771 = vrot.slane %v4770, 4
    %v4772 = vmax.f32 %v4770, %v4771
    %v4773 = vrot.slane %v4772, 2
    %v4774 = vmax.f32 %v4772, %v4773
    %v4775 = vrot.slane %v4774, 1
    %v4776 = vmax.f32 %v4774, %v4775
    %v4777 = vmax.f32 %v4401, %v4409
    %v4778 = vmax.f32 %v4777, %v4417
    %v4779 = vmax.f32 %v4778, %v4425
    %v4780 = vmax.f32 %v4779, %v4433
    %v4781 = vmax.f32 %v4780, %v4441
    %v4782 = vmax.f32 %v4781, %v4449
    %v4783 = vmax.f32 %v4782, %v4457
    %v4784 = vmax.f32 %v4783, %v4465
    %v4785 = vmax.f32 %v4784, %v4473
    %v4786 = vmax.f32 %v4785, %v4481
    %v4787 = vmax.f32 %v4786, %v4489
    %v4788 = vmax.f32 %v4787, %v4497
    %v4789 = vmax.f32 %v4788, %v4505
    %v4790 = vmax.f32 %v4789, %v4513
    %v4791 = vmax.f32 %v4790, %v4521
    %v4792 = vrot.slane %v4791, 4
    %v4793 = vmax.f32 %v4791, %v4792
    %v4794 = vrot.slane %v4793, 2
    %v4795 = vmax.f32 %v4793, %v4794
    %v4796 = vrot.slane %v4795, 1
    %v4797 = vmax.f32 %v4795, %v4796
    %v4798 = vmax.f32 %v4402, %v4410
    %v4799 = vmax.f32 %v4798, %v4418
    %v4800 = vmax.f32 %v4799, %v4426
    %v4801 = vmax.f32 %v4800, %v4434
    %v4802 = vmax.f32 %v4801, %v4442
    %v4803 = vmax.f32 %v4802, %v4450
    %v4804 = vmax.f32 %v4803, %v4458
    %v4805 = vmax.f32 %v4804, %v4466
    %v4806 = vmax.f32 %v4805, %v4474
    %v4807 = vmax.f32 %v4806, %v4482
    %v4808 = vmax.f32 %v4807, %v4490
    %v4809 = vmax.f32 %v4808, %v4498
    %v4810 = vmax.f32 %v4809, %v4506
    %v4811 = vmax.f32 %v4810, %v4514
    %v4812 = vmax.f32 %v4811, %v4522
    %v4813 = vrot.slane %v4812, 4
    %v4814 = vmax.f32 %v4812, %v4813
    %v4815 = vrot.slane %v4814, 2
    %v4816 = vmax.f32 %v4814, %v4815
    %v4817 = vrot.slane %v4816, 1
    %v4818 = vmax.f32 %v4816, %v4817
    %v4819 = vmax.f32 %v4523, %v4531
    %v4820 = vmax.f32 %v4819, %v4539
    %v4821 = vmax.f32 %v4820, %v4547
    %v4822 = vmax.f32 %v4821, %v4555
    %v4823 = vmax.f32 %v4822, %v4563
    %v4824 = vmax.f32 %v4823, %v4571
    %v4825 = vmax.f32 %v4824, %v4579
    %v4826 = vmax.f32 %v4825, %v4587
    %v4827 = vmax.f32 %v4826, %v4595
    %v4828 = vmax.f32 %v4827, %v4603
    %v4829 = vmax.f32 %v4828, %v4611
    %v4830 = vmax.f32 %v4829, %v4619
    %v4831 = vmax.f32 %v4830, %v4627
    %v4832 = vmax.f32 %v4831, %v4635
    %v4833 = vmax.f32 %v4832, %v4643
    %v4834 = vrot.slane %v4833, 4
    %v4835 = vmax.f32 %v4833, %v4834
    %v4836 = vrot.slane %v4835, 2
    %v4837 = vmax.f32 %v4835, %v4836
    %v4838 = vrot.slane %v4837, 1
    %v4839 = vmax.f32 %v4837, %v4838
    %v4840 = vmax.f32 %v4524, %v4532
    %v4841 = vmax.f32 %v4840, %v4540
    %v4842 = vmax.f32 %v4841, %v4548
    %v4843 = vmax.f32 %v4842, %v4556
    %v4844 = vmax.f32 %v4843, %v4564
    %v4845 = vmax.f32 %v4844, %v4572
    %v4846 = vmax.f32 %v4845, %v4580
    %v4847 = vmax.f32 %v4846, %v4588
    %v4848 = vmax.f32 %v4847, %v4596
    %v4849 = vmax.f32 %v4848, %v4604
    %v4850 = vmax.f32 %v4849, %v4612
    %v4851 = vmax.f32 %v4850, %v4620
    %v4852 = vmax.f32 %v4851, %v4628
    %v4853 = vmax.f32 %v4852, %v4636
    %v4854 = vmax.f32 %v4853, %v4644
    %v4855 = vrot.slane %v4854, 4
    %v4856 = vmax.f32 %v4854, %v4855
    %v4857 = vrot.slane %v4856, 2
    %v4858 = vmax.f32 %v4856, %v4857
    %v4859 = vrot.slane %v4858, 1
    %v4860 = vmax.f32 %v4858, %v4859
    %v4861 = vmax.f32 %v4525, %v4533
    %v4862 = vmax.f32 %v4861, %v4541
    %v4863 = vmax.f32 %v4862, %v4549
    %v4864 = vmax.f32 %v4863, %v4557
    %v4865 = vmax.f32 %v4864, %v4565
    %v4866 = vmax.f32 %v4865, %v4573
    %v4867 = vmax.f32 %v4866, %v4581
    %v4868 = vmax.f32 %v4867, %v4589
    %v4869 = vmax.f32 %v4868, %v4597
    %v4870 = vmax.f32 %v4869, %v4605
    %v4871 = vmax.f32 %v4870, %v4613
    %v4872 = vmax.f32 %v4871, %v4621
    %v4873 = vmax.f32 %v4872, %v4629
    %v4874 = vmax.f32 %v4873, %v4637
    %v4875 = vmax.f32 %v4874, %v4645
    %v4876 = vrot.slane %v4875, 4
    %v4877 = vmax.f32 %v4875, %v4876
    %v4878 = vrot.slane %v4877, 2
    %v4879 = vmax.f32 %v4877, %v4878
    %v4880 = vrot.slane %v4879, 1
    %v4881 = vmax.f32 %v4879, %v4880
    %v4882 = vmax.f32 %v4526, %v4534
    %v4883 = vmax.f32 %v4882, %v4542
    %v4884 = vmax.f32 %v4883, %v4550
    %v4885 = vmax.f32 %v4884, %v4558
    %v4886 = vmax.f32 %v4885, %v4566
    %v4887 = vmax.f32 %v4886, %v4574
    %v4888 = vmax.f32 %v4887, %v4582
    %v4889 = vmax.f32 %v4888, %v4590
    %v4890 = vmax.f32 %v4889, %v4598
    %v4891 = vmax.f32 %v4890, %v4606
    %v4892 = vmax.f32 %v4891, %v4614
    %v4893 = vmax.f32 %v4892, %v4622
    %v4894 = vmax.f32 %v4893, %v4630
    %v4895 = vmax.f32 %v4894, %v4638
    %v4896 = vmax.f32 %v4895, %v4646
    %v4897 = vrot.slane %v4896, 4
    %v4898 = vmax.f32 %v4896, %v4897
    %v4899 = vrot.slane %v4898, 2
    %v4900 = vmax.f32 %v4898, %v4899
    %v4901 = vrot.slane %v4900, 1
    %v4902 = vmax.f32 %v4900, %v4901
    %v4903 = vmax.f32 %v4527, %v4535
    %v4904 = vmax.f32 %v4903, %v4543
    %v4905 = vmax.f32 %v4904, %v4551
    %v4906 = vmax.f32 %v4905, %v4559
    %v4907 = vmax.f32 %v4906, %v4567
    %v4908 = vmax.f32 %v4907, %v4575
    %v4909 = vmax.f32 %v4908, %v4583
    %v4910 = vmax.f32 %v4909, %v4591
    %v4911 = vmax.f32 %v4910, %v4599
    %v4912 = vmax.f32 %v4911, %v4607
    %v4913 = vmax.f32 %v4912, %v4615
    %v4914 = vmax.f32 %v4913, %v4623
    %v4915 = vmax.f32 %v4914, %v4631
    %v4916 = vmax.f32 %v4915, %v4639
    %v4917 = vmax.f32 %v4916, %v4647
    %v4918 = vrot.slane %v4917, 4
    %v4919 = vmax.f32 %v4917, %v4918
    %v4920 = vrot.slane %v4919, 2
    %v4921 = vmax.f32 %v4919, %v4920
    %v4922 = vrot.slane %v4921, 1
    %v4923 = vmax.f32 %v4921, %v4922
    %v4924 = vmax.f32 %v4528, %v4536
    %v4925 = vmax.f32 %v4924, %v4544
    %v4926 = vmax.f32 %v4925, %v4552
    %v4927 = vmax.f32 %v4926, %v4560
    %v4928 = vmax.f32 %v4927, %v4568
    %v4929 = vmax.f32 %v4928, %v4576
    %v4930 = vmax.f32 %v4929, %v4584
    %v4931 = vmax.f32 %v4930, %v4592
    %v4932 = vmax.f32 %v4931, %v4600
    %v4933 = vmax.f32 %v4932, %v4608
    %v4934 = vmax.f32 %v4933, %v4616
    %v4935 = vmax.f32 %v4934, %v4624
    %v4936 = vmax.f32 %v4935, %v4632
    %v4937 = vmax.f32 %v4936, %v4640
    %v4938 = vmax.f32 %v4937, %v4648
    %v4939 = vrot.slane %v4938, 4
    %v4940 = vmax.f32 %v4938, %v4939
    %v4941 = vrot.slane %v4940, 2
    %v4942 = vmax.f32 %v4940, %v4941
    %v4943 = vrot.slane %v4942, 1
    %v4944 = vmax.f32 %v4942, %v4943
    %v4945 = vmax.f32 %v4529, %v4537
    %v4946 = vmax.f32 %v4945, %v4545
    %v4947 = vmax.f32 %v4946, %v4553
    %v4948 = vmax.f32 %v4947, %v4561
    %v4949 = vmax.f32 %v4948, %v4569
    %v4950 = vmax.f32 %v4949, %v4577
    %v4951 = vmax.f32 %v4950, %v4585
    %v4952 = vmax.f32 %v4951, %v4593
    %v4953 = vmax.f32 %v4952, %v4601
    %v4954 = vmax.f32 %v4953, %v4609
    %v4955 = vmax.f32 %v4954, %v4617
    %v4956 = vmax.f32 %v4955, %v4625
    %v4957 = vmax.f32 %v4956, %v4633
    %v4958 = vmax.f32 %v4957, %v4641
    %v4959 = vmax.f32 %v4958, %v4649
    %v4960 = vrot.slane %v4959, 4
    %v4961 = vmax.f32 %v4959, %v4960
    %v4962 = vrot.slane %v4961, 2
    %v4963 = vmax.f32 %v4961, %v4962
    %v4964 = vrot.slane %v4963, 1
    %v4965 = vmax.f32 %v4963, %v4964
    %v4966 = vmax.f32 %v4530, %v4538
    %v4967 = vmax.f32 %v4966, %v4546
    %v4968 = vmax.f32 %v4967, %v4554
    %v4969 = vmax.f32 %v4968, %v4562
    %v4970 = vmax.f32 %v4969, %v4570
    %v4971 = vmax.f32 %v4970, %v4578
    %v4972 = vmax.f32 %v4971, %v4586
    %v4973 = vmax.f32 %v4972, %v4594
    %v4974 = vmax.f32 %v4973, %v4602
    %v4975 = vmax.f32 %v4974, %v4610
    %v4976 = vmax.f32 %v4975, %v4618
    %v4977 = vmax.f32 %v4976, %v4626
    %v4978 = vmax.f32 %v4977, %v4634
    %v4979 = vmax.f32 %v4978, %v4642
    %v4980 = vmax.f32 %v4979, %v4650
    %v4981 = vrot.slane %v4980, 4
    %v4982 = vmax.f32 %v4980, %v4981
    %v4983 = vrot.slane %v4982, 2
    %v4984 = vmax.f32 %v4982, %v4983
    %v4985 = vrot.slane %v4984, 1
    %v4986 = vmax.f32 %v4984, %v4985
    %s4987 = smul.u32 4, 128
    %s4988 = smul.u32 %s4987, 4
    %s4989 = sshll.u32 %s4988, 4
    %4990 = dma.done [#allocation5], %s4989
    %v4991 = vld [vmem:[#allocation2] sm:$0xff]
    %v4992 = vld [vmem:[#allocation2 + $0x8] sm:$0xff]
    %v4993 = vld [vmem:[#allocation2 + $0x10] sm:$0xff]
    %v4994 = vld [vmem:[#allocation2 + $0x18] sm:$0xff]
    %v4995 = vld [vmem:[#allocation2 + $0x20] sm:$0xff]
    %v4996 = vld [vmem:[#allocation2 + $0x28] sm:$0xff]
    %v4997 = vld [vmem:[#allocation2 + $0x30] sm:$0xff]
    %v4998 = vld [vmem:[#allocation2 + $0x38] sm:$0xff]
    %v4999 = vld [vmem:[#allocation2 + $0x40] sm:$0xff]
    %v5000 = vld [vmem:[#allocation2 + $0x48] sm:$0xff]
    %v5001 = vld [vmem:[#allocation2 + $0x50] sm:$0xff]
    %v5002 = vld [vmem:[#allocation2 + $0x58] sm:$0xff]
    %v5003 = vld [vmem:[#allocation2 + $0x60] sm:$0xff]
    %v5004 = vld [vmem:[#allocation2 + $0x68] sm:$0xff]
    %v5005 = vld [vmem:[#allocation2 + $0x70] sm:$0xff]
    %v5006 = vld [vmem:[#allocation2 + $0x78] sm:$0xff]
    %v5007 = vld [vmem:[#allocation2 + $0x80] sm:$0xff]
    %v5008 = vld [vmem:[#allocation2 + $0x88] sm:$0xff]
    %v5009 = vld [vmem:[#allocation2 + $0x90] sm:$0xff]
    %v5010 = vld [vmem:[#allocation2 + $0x98] sm:$0xff]
    %v5011 = vld [vmem:[#allocation2 + $0xa0] sm:$0xff]
    %v5012 = vld [vmem:[#allocation2 + $0xa8] sm:$0xff]
    %v5013 = vld [vmem:[#allocation2 + $0xb0] sm:$0xff]
    %v5014 = vld [vmem:[#allocation2 + $0xb8] sm:$0xff]
    %v5015 = vld [vmem:[#allocation2 + $0xc0] sm:$0xff]
    %v5016 = vld [vmem:[#allocation2 + $0xc8] sm:$0xff]
    %v5017 = vld [vmem:[#allocation2 + $0xd0] sm:$0xff]
    %v5018 = vld [vmem:[#allocation2 + $0xd8] sm:$0xff]
    %v5019 = vld [vmem:[#allocation2 + $0xe0] sm:$0xff]
    %v5020 = vld [vmem:[#allocation2 + $0xe8] sm:$0xff]
    %v5021 = vld [vmem:[#allocation2 + $0xf0] sm:$0xff]
    %v5022 = vld [vmem:[#allocation2 + $0xf8] sm:$0xff]
    %v5023 = vld [vmem:[#allocation2 + $0x100] sm:$0xff]
    %v5024 = vld [vmem:[#allocation2 + $0x108] sm:$0xff]
    %v5025 = vld [vmem:[#allocation2 + $0x110] sm:$0xff]
    %v5026 = vld [vmem:[#allocation2 + $0x118] sm:$0xff]
    %v5027 = vld [vmem:[#allocation2 + $0x120] sm:$0xff]
    %v5028 = vld [vmem:[#allocation2 + $0x128] sm:$0xff]
    %v5029 = vld [vmem:[#allocation2 + $0x130] sm:$0xff]
    %v5030 = vld [vmem:[#allocation2 + $0x138] sm:$0xff]
    %v5031 = vld [vmem:[#allocation2 + $0x140] sm:$0xff]
    %v5032 = vld [vmem:[#allocation2 + $0x148] sm:$0xff]
    %v5033 = vld [vmem:[#allocation2 + $0x150] sm:$0xff]
    %v5034 = vld [vmem:[#allocation2 + $0x158] sm:$0xff]
    %v5035 = vld [vmem:[#allocation2 + $0x160] sm:$0xff]
    %v5036 = vld [vmem:[#allocation2 + $0x168] sm:$0xff]
    %v5037 = vld [vmem:[#allocation2 + $0x170] sm:$0xff]
    %v5038 = vld [vmem:[#allocation2 + $0x178] sm:$0xff]
    %v5039 = vld [vmem:[#allocation2 + $0x180] sm:$0xff]
    %v5040 = vld [vmem:[#allocation2 + $0x188] sm:$0xff]
    %v5041 = vld [vmem:[#allocation2 + $0x190] sm:$0xff]
    %v5042 = vld [vmem:[#allocation2 + $0x198] sm:$0xff]
    %v5043 = vld [vmem:[#allocation2 + $0x1a0] sm:$0xff]
    %v5044 = vld [vmem:[#allocation2 + $0x1a8] sm:$0xff]
    %v5045 = vld [vmem:[#allocation2 + $0x1b0] sm:$0xff]
    %v5046 = vld [vmem:[#allocation2 + $0x1b8] sm:$0xff]
    %v5047 = vld [vmem:[#allocation2 + $0x1c0] sm:$0xff]
    %v5048 = vld [vmem:[#allocation2 + $0x1c8] sm:$0xff]
    %v5049 = vld [vmem:[#allocation2 + $0x1d0] sm:$0xff]
    %v5050 = vld [vmem:[#allocation2 + $0x1d8] sm:$0xff]
    %v5051 = vld [vmem:[#allocation2 + $0x1e0] sm:$0xff]
    %v5052 = vld [vmem:[#allocation2 + $0x1e8] sm:$0xff]
    %v5053 = vld [vmem:[#allocation2 + $0x1f0] sm:$0xff]
    %v5054 = vld [vmem:[#allocation2 + $0x1f8] sm:$0xff]
    %v5055 = vld [vmem:[#allocation2 + $0x200] sm:$0xff]
    %v5056 = vld [vmem:[#allocation2 + $0x208] sm:$0xff]
    %v5057 = vld [vmem:[#allocation2 + $0x210] sm:$0xff]
    %v5058 = vld [vmem:[#allocation2 + $0x218] sm:$0xff]
    %v5059 = vld [vmem:[#allocation2 + $0x220] sm:$0xff]
    %v5060 = vld [vmem:[#allocation2 + $0x228] sm:$0xff]
    %v5061 = vld [vmem:[#allocation2 + $0x230] sm:$0xff]
    %v5062 = vld [vmem:[#allocation2 + $0x238] sm:$0xff]
    %v5063 = vld [vmem:[#allocation2 + $0x240] sm:$0xff]
    %v5064 = vld [vmem:[#allocation2 + $0x248] sm:$0xff]
    %v5065 = vld [vmem:[#allocation2 + $0x250] sm:$0xff]
    %v5066 = vld [vmem:[#allocation2 + $0x258] sm:$0xff]
    %v5067 = vld [vmem:[#allocation2 + $0x260] sm:$0xff]
    %v5068 = vld [vmem:[#allocation2 + $0x268] sm:$0xff]
    %v5069 = vld [vmem:[#allocation2 + $0x270] sm:$0xff]
    %v5070 = vld [vmem:[#allocation2 + $0x278] sm:$0xff]
    %v5071 = vld [vmem:[#allocation2 + $0x280] sm:$0xff]
    %v5072 = vld [vmem:[#allocation2 + $0x288] sm:$0xff]
    %v5073 = vld [vmem:[#allocation2 + $0x290] sm:$0xff]
    %v5074 = vld [vmem:[#allocation2 + $0x298] sm:$0xff]
    %v5075 = vld [vmem:[#allocation2 + $0x2a0] sm:$0xff]
    %v5076 = vld [vmem:[#allocation2 + $0x2a8] sm:$0xff]
    %v5077 = vld [vmem:[#allocation2 + $0x2b0] sm:$0xff]
    %v5078 = vld [vmem:[#allocation2 + $0x2b8] sm:$0xff]
    %v5079 = vld [vmem:[#allocation2 + $0x2c0] sm:$0xff]
    %v5080 = vld [vmem:[#allocation2 + $0x2c8] sm:$0xff]
    %v5081 = vld [vmem:[#allocation2 + $0x2d0] sm:$0xff]
    %v5082 = vld [vmem:[#allocation2 + $0x2d8] sm:$0xff]
    %v5083 = vld [vmem:[#allocation2 + $0x2e0] sm:$0xff]
    %v5084 = vld [vmem:[#allocation2 + $0x2e8] sm:$0xff]
    %v5085 = vld [vmem:[#allocation2 + $0x2f0] sm:$0xff]
    %v5086 = vld [vmem:[#allocation2 + $0x2f8] sm:$0xff]
    %v5087 = vld [vmem:[#allocation2 + $0x300] sm:$0xff]
    %v5088 = vld [vmem:[#allocation2 + $0x308] sm:$0xff]
    %v5089 = vld [vmem:[#allocation2 + $0x310] sm:$0xff]
    %v5090 = vld [vmem:[#allocation2 + $0x318] sm:$0xff]
    %v5091 = vld [vmem:[#allocation2 + $0x320] sm:$0xff]
    %v5092 = vld [vmem:[#allocation2 + $0x328] sm:$0xff]
    %v5093 = vld [vmem:[#allocation2 + $0x330] sm:$0xff]
    %v5094 = vld [vmem:[#allocation2 + $0x338] sm:$0xff]
    %v5095 = vld [vmem:[#allocation2 + $0x340] sm:$0xff]
    %v5096 = vld [vmem:[#allocation2 + $0x348] sm:$0xff]
    %v5097 = vld [vmem:[#allocation2 + $0x350] sm:$0xff]
    %v5098 = vld [vmem:[#allocation2 + $0x358] sm:$0xff]
    %v5099 = vld [vmem:[#allocation2 + $0x360] sm:$0xff]
    %v5100 = vld [vmem:[#allocation2 + $0x368] sm:$0xff]
    %v5101 = vld [vmem:[#allocation2 + $0x370] sm:$0xff]
    %v5102 = vld [vmem:[#allocation2 + $0x378] sm:$0xff]
    %v5103 = vld [vmem:[#allocation2 + $0x380] sm:$0xff]
    %v5104 = vld [vmem:[#allocation2 + $0x388] sm:$0xff]
    %v5105 = vld [vmem:[#allocation2 + $0x390] sm:$0xff]
    %v5106 = vld [vmem:[#allocation2 + $0x398] sm:$0xff]
    %v5107 = vld [vmem:[#allocation2 + $0x3a0] sm:$0xff]
    %v5108 = vld [vmem:[#allocation2 + $0x3a8] sm:$0xff]
    %v5109 = vld [vmem:[#allocation2 + $0x3b0] sm:$0xff]
    %v5110 = vld [vmem:[#allocation2 + $0x3b8] sm:$0xff]
    %v5111 = vld [vmem:[#allocation2 + $0x3c0] sm:$0xff]
    %v5112 = vld [vmem:[#allocation2 + $0x3c8] sm:$0xff]
    %v5113 = vld [vmem:[#allocation2 + $0x3d0] sm:$0xff]
    %v5114 = vld [vmem:[#allocation2 + $0x3d8] sm:$0xff]
    %v5115 = vld [vmem:[#allocation2 + $0x3e0] sm:$0xff]
    %v5116 = vld [vmem:[#allocation2 + $0x3e8] sm:$0xff]
    %v5117 = vld [vmem:[#allocation2 + $0x3f0] sm:$0xff]
    %v5118 = vld [vmem:[#allocation2 + $0x3f8] sm:$0xff]
    %v5119 = vld [vmem:[#allocation2 + $0x400] sm:$0xff]
    %v5120 = vld [vmem:[#allocation2 + $0x408] sm:$0xff]
    %v5121 = vld [vmem:[#allocation2 + $0x410] sm:$0xff]
    %v5122 = vld [vmem:[#allocation2 + $0x418] sm:$0xff]
    %v5123 = vld [vmem:[#allocation2 + $0x420] sm:$0xff]
    %v5124 = vld [vmem:[#allocation2 + $0x428] sm:$0xff]
    %v5125 = vld [vmem:[#allocation2 + $0x430] sm:$0xff]
    %v5126 = vld [vmem:[#allocation2 + $0x438] sm:$0xff]
    %v5127 = vld [vmem:[#allocation2 + $0x440] sm:$0xff]
    %v5128 = vld [vmem:[#allocation2 + $0x448] sm:$0xff]
    %v5129 = vld [vmem:[#allocation2 + $0x450] sm:$0xff]
    %v5130 = vld [vmem:[#allocation2 + $0x458] sm:$0xff]
    %v5131 = vld [vmem:[#allocation2 + $0x460] sm:$0xff]
    %v5132 = vld [vmem:[#allocation2 + $0x468] sm:$0xff]
    %v5133 = vld [vmem:[#allocation2 + $0x470] sm:$0xff]
    %v5134 = vld [vmem:[#allocation2 + $0x478] sm:$0xff]
    %v5135 = vld [vmem:[#allocation2 + $0x480] sm:$0xff]
    %v5136 = vld [vmem:[#allocation2 + $0x488] sm:$0xff]
    %v5137 = vld [vmem:[#allocation2 + $0x490] sm:$0xff]
    %v5138 = vld [vmem:[#allocation2 + $0x498] sm:$0xff]
    %v5139 = vld [vmem:[#allocation2 + $0x4a0] sm:$0xff]
    %v5140 = vld [vmem:[#allocation2 + $0x4a8] sm:$0xff]
    %v5141 = vld [vmem:[#allocation2 + $0x4b0] sm:$0xff]
    %v5142 = vld [vmem:[#allocation2 + $0x4b8] sm:$0xff]
    %v5143 = vld [vmem:[#allocation2 + $0x4c0] sm:$0xff]
    %v5144 = vld [vmem:[#allocation2 + $0x4c8] sm:$0xff]
    %v5145 = vld [vmem:[#allocation2 + $0x4d0] sm:$0xff]
    %v5146 = vld [vmem:[#allocation2 + $0x4d8] sm:$0xff]
    %v5147 = vld [vmem:[#allocation2 + $0x4e0] sm:$0xff]
    %v5148 = vld [vmem:[#allocation2 + $0x4e8] sm:$0xff]
    %v5149 = vld [vmem:[#allocation2 + $0x4f0] sm:$0xff]
    %v5150 = vld [vmem:[#allocation2 + $0x4f8] sm:$0xff]
    %v5151 = vld [vmem:[#allocation2 + $0x500] sm:$0xff]
    %v5152 = vld [vmem:[#allocation2 + $0x508] sm:$0xff]
    %v5153 = vld [vmem:[#allocation2 + $0x510] sm:$0xff]
    %v5154 = vld [vmem:[#allocation2 + $0x518] sm:$0xff]
    %v5155 = vld [vmem:[#allocation2 + $0x520] sm:$0xff]
    %v5156 = vld [vmem:[#allocation2 + $0x528] sm:$0xff]
    %v5157 = vld [vmem:[#allocation2 + $0x530] sm:$0xff]
    %v5158 = vld [vmem:[#allocation2 + $0x538] sm:$0xff]
    %v5159 = vld [vmem:[#allocation2 + $0x540] sm:$0xff]
    %v5160 = vld [vmem:[#allocation2 + $0x548] sm:$0xff]
    %v5161 = vld [vmem:[#allocation2 + $0x550] sm:$0xff]
    %v5162 = vld [vmem:[#allocation2 + $0x558] sm:$0xff]
    %v5163 = vld [vmem:[#allocation2 + $0x560] sm:$0xff]
    %v5164 = vld [vmem:[#allocation2 + $0x568] sm:$0xff]
    %v5165 = vld [vmem:[#allocation2 + $0x570] sm:$0xff]
    %v5166 = vld [vmem:[#allocation2 + $0x578] sm:$0xff]
    %v5167 = vld [vmem:[#allocation2 + $0x580] sm:$0xff]
    %v5168 = vld [vmem:[#allocation2 + $0x588] sm:$0xff]
    %v5169 = vld [vmem:[#allocation2 + $0x590] sm:$0xff]
    %v5170 = vld [vmem:[#allocation2 + $0x598] sm:$0xff]
    %v5171 = vld [vmem:[#allocation2 + $0x5a0] sm:$0xff]
    %v5172 = vld [vmem:[#allocation2 + $0x5a8] sm:$0xff]
    %v5173 = vld [vmem:[#allocation2 + $0x5b0] sm:$0xff]
    %v5174 = vld [vmem:[#allocation2 + $0x5b8] sm:$0xff]
    %v5175 = vld [vmem:[#allocation2 + $0x5c0] sm:$0xff]
    %v5176 = vld [vmem:[#allocation2 + $0x5c8] sm:$0xff]
    %v5177 = vld [vmem:[#allocation2 + $0x5d0] sm:$0xff]
    %v5178 = vld [vmem:[#allocation2 + $0x5d8] sm:$0xff]
    %v5179 = vld [vmem:[#allocation2 + $0x5e0] sm:$0xff]
    %v5180 = vld [vmem:[#allocation2 + $0x5e8] sm:$0xff]
    %v5181 = vld [vmem:[#allocation2 + $0x5f0] sm:$0xff]
    %v5182 = vld [vmem:[#allocation2 + $0x5f8] sm:$0xff]
    %v5183 = vld [vmem:[#allocation2 + $0x600] sm:$0xff]
    %v5184 = vld [vmem:[#allocation2 + $0x608] sm:$0xff]
    %v5185 = vld [vmem:[#allocation2 + $0x610] sm:$0xff]
    %v5186 = vld [vmem:[#allocation2 + $0x618] sm:$0xff]
    %v5187 = vld [vmem:[#allocation2 + $0x620] sm:$0xff]
    %v5188 = vld [vmem:[#allocation2 + $0x628] sm:$0xff]
    %v5189 = vld [vmem:[#allocation2 + $0x630] sm:$0xff]
    %v5190 = vld [vmem:[#allocation2 + $0x638] sm:$0xff]
    %v5191 = vld [vmem:[#allocation2 + $0x640] sm:$0xff]
    %v5192 = vld [vmem:[#allocation2 + $0x648] sm:$0xff]
    %v5193 = vld [vmem:[#allocation2 + $0x650] sm:$0xff]
    %v5194 = vld [vmem:[#allocation2 + $0x658] sm:$0xff]
    %v5195 = vld [vmem:[#allocation2 + $0x660] sm:$0xff]
    %v5196 = vld [vmem:[#allocation2 + $0x668] sm:$0xff]
    %v5197 = vld [vmem:[#allocation2 + $0x670] sm:$0xff]
    %v5198 = vld [vmem:[#allocation2 + $0x678] sm:$0xff]
    %v5199 = vld [vmem:[#allocation2 + $0x680] sm:$0xff]
    %v5200 = vld [vmem:[#allocation2 + $0x688] sm:$0xff]
    %v5201 = vld [vmem:[#allocation2 + $0x690] sm:$0xff]
    %v5202 = vld [vmem:[#allocation2 + $0x698] sm:$0xff]
    %v5203 = vld [vmem:[#allocation2 + $0x6a0] sm:$0xff]
    %v5204 = vld [vmem:[#allocation2 + $0x6a8] sm:$0xff]
    %v5205 = vld [vmem:[#allocation2 + $0x6b0] sm:$0xff]
    %v5206 = vld [vmem:[#allocation2 + $0x6b8] sm:$0xff]
    %v5207 = vld [vmem:[#allocation2 + $0x6c0] sm:$0xff]
    %v5208 = vld [vmem:[#allocation2 + $0x6c8] sm:$0xff]
    %v5209 = vld [vmem:[#allocation2 + $0x6d0] sm:$0xff]
    %v5210 = vld [vmem:[#allocation2 + $0x6d8] sm:$0xff]
    %v5211 = vld [vmem:[#allocation2 + $0x6e0] sm:$0xff]
    %v5212 = vld [vmem:[#allocation2 + $0x6e8] sm:$0xff]
    %v5213 = vld [vmem:[#allocation2 + $0x6f0] sm:$0xff]
    %v5214 = vld [vmem:[#allocation2 + $0x6f8] sm:$0xff]
    %v5215 = vld [vmem:[#allocation2 + $0x700] sm:$0xff]
    %v5216 = vld [vmem:[#allocation2 + $0x708] sm:$0xff]
    %v5217 = vld [vmem:[#allocation2 + $0x710] sm:$0xff]
    %v5218 = vld [vmem:[#allocation2 + $0x718] sm:$0xff]
    %v5219 = vld [vmem:[#allocation2 + $0x720] sm:$0xff]
    %v5220 = vld [vmem:[#allocation2 + $0x728] sm:$0xff]
    %v5221 = vld [vmem:[#allocation2 + $0x730] sm:$0xff]
    %v5222 = vld [vmem:[#allocation2 + $0x738] sm:$0xff]
    %v5223 = vld [vmem:[#allocation2 + $0x740] sm:$0xff]
    %v5224 = vld [vmem:[#allocation2 + $0x748] sm:$0xff]
    %v5225 = vld [vmem:[#allocation2 + $0x750] sm:$0xff]
    %v5226 = vld [vmem:[#allocation2 + $0x758] sm:$0xff]
    %v5227 = vld [vmem:[#allocation2 + $0x760] sm:$0xff]
    %v5228 = vld [vmem:[#allocation2 + $0x768] sm:$0xff]
    %v5229 = vld [vmem:[#allocation2 + $0x770] sm:$0xff]
    %v5230 = vld [vmem:[#allocation2 + $0x778] sm:$0xff]
    %v5231 = vld [vmem:[#allocation2 + $0x780] sm:$0xff]
    %v5232 = vld [vmem:[#allocation2 + $0x788] sm:$0xff]
    %v5233 = vld [vmem:[#allocation2 + $0x790] sm:$0xff]
    %v5234 = vld [vmem:[#allocation2 + $0x798] sm:$0xff]
    %v5235 = vld [vmem:[#allocation2 + $0x7a0] sm:$0xff]
    %v5236 = vld [vmem:[#allocation2 + $0x7a8] sm:$0xff]
    %v5237 = vld [vmem:[#allocation2 + $0x7b0] sm:$0xff]
    %v5238 = vld [vmem:[#allocation2 + $0x7b8] sm:$0xff]
    %v5239 = vld [vmem:[#allocation2 + $0x7c0] sm:$0xff]
    %v5240 = vld [vmem:[#allocation2 + $0x7c8] sm:$0xff]
    %v5241 = vld [vmem:[#allocation2 + $0x7d0] sm:$0xff]
    %v5242 = vld [vmem:[#allocation2 + $0x7d8] sm:$0xff]
    %v5243 = vld [vmem:[#allocation2 + $0x7e0] sm:$0xff]
    %v5244 = vld [vmem:[#allocation2 + $0x7e8] sm:$0xff]
    %v5245 = vld [vmem:[#allocation2 + $0x7f0] sm:$0xff]
    %v5246 = vld [vmem:[#allocation2 + $0x7f8] sm:$0xff]
    %v5247 = vunpack.c.l.bf16 %v4991
    %v5248 = vunpack.c.l.bf16 %v4992
    %v5249 = vunpack.c.l.bf16 %v4993
    %v5250 = vunpack.c.l.bf16 %v4994
    %v5251 = vunpack.c.h.bf16 %v4991
    %v5252 = vunpack.c.h.bf16 %v4992
    %v5253 = vunpack.c.h.bf16 %v4993
    %v5254 = vunpack.c.h.bf16 %v4994
    %v5255 = vunpack.c.l.bf16 %v4995
    %v5256 = vunpack.c.l.bf16 %v4996
    %v5257 = vunpack.c.l.bf16 %v4997
    %v5258 = vunpack.c.l.bf16 %v4998
    %v5259 = vunpack.c.h.bf16 %v4995
    %v5260 = vunpack.c.h.bf16 %v4996
    %v5261 = vunpack.c.h.bf16 %v4997
    %v5262 = vunpack.c.h.bf16 %v4998
    %v5263 = vunpack.c.l.bf16 %v4999
    %v5264 = vunpack.c.l.bf16 %v5000
    %v5265 = vunpack.c.l.bf16 %v5001
    %v5266 = vunpack.c.l.bf16 %v5002
    %v5267 = vunpack.c.h.bf16 %v4999
    %v5268 = vunpack.c.h.bf16 %v5000
    %v5269 = vunpack.c.h.bf16 %v5001
    %v5270 = vunpack.c.h.bf16 %v5002
    %v5271 = vunpack.c.l.bf16 %v5003
    %v5272 = vunpack.c.l.bf16 %v5004
    %v5273 = vunpack.c.l.bf16 %v5005
    %v5274 = vunpack.c.l.bf16 %v5006
    %v5275 = vunpack.c.h.bf16 %v5003
    %v5276 = vunpack.c.h.bf16 %v5004
    %v5277 = vunpack.c.h.bf16 %v5005
    %v5278 = vunpack.c.h.bf16 %v5006
    %v5279 = vunpack.c.l.bf16 %v5007
    %v5280 = vunpack.c.l.bf16 %v5008
    %v5281 = vunpack.c.l.bf16 %v5009
    %v5282 = vunpack.c.l.bf16 %v5010
    %v5283 = vunpack.c.h.bf16 %v5007
    %v5284 = vunpack.c.h.bf16 %v5008
    %v5285 = vunpack.c.h.bf16 %v5009
    %v5286 = vunpack.c.h.bf16 %v5010
    %v5287 = vunpack.c.l.bf16 %v5011
    %v5288 = vunpack.c.l.bf16 %v5012
    %v5289 = vunpack.c.l.bf16 %v5013
    %v5290 = vunpack.c.l.bf16 %v5014
    %v5291 = vunpack.c.h.bf16 %v5011
    %v5292 = vunpack.c.h.bf16 %v5012
    %v5293 = vunpack.c.h.bf16 %v5013
    %v5294 = vunpack.c.h.bf16 %v5014
    %v5295 = vunpack.c.l.bf16 %v5015
    %v5296 = vunpack.c.l.bf16 %v5016
    %v5297 = vunpack.c.l.bf16 %v5017
    %v5298 = vunpack.c.l.bf16 %v5018
    %v5299 = vunpack.c.h.bf16 %v5015
    %v5300 = vunpack.c.h.bf16 %v5016
    %v5301 = vunpack.c.h.bf16 %v5017
    %v5302 = vunpack.c.h.bf16 %v5018
    %v5303 = vunpack.c.l.bf16 %v5019
    %v5304 = vunpack.c.l.bf16 %v5020
    %v5305 = vunpack.c.l.bf16 %v5021
    %v5306 = vunpack.c.l.bf16 %v5022
    %v5307 = vunpack.c.h.bf16 %v5019
    %v5308 = vunpack.c.h.bf16 %v5020
    %v5309 = vunpack.c.h.bf16 %v5021
    %v5310 = vunpack.c.h.bf16 %v5022
    %v5311 = vunpack.c.l.bf16 %v5023
    %v5312 = vunpack.c.l.bf16 %v5024
    %v5313 = vunpack.c.l.bf16 %v5025
    %v5314 = vunpack.c.l.bf16 %v5026
    %v5315 = vunpack.c.h.bf16 %v5023
    %v5316 = vunpack.c.h.bf16 %v5024
    %v5317 = vunpack.c.h.bf16 %v5025
    %v5318 = vunpack.c.h.bf16 %v5026
    %v5319 = vunpack.c.l.bf16 %v5027
    %v5320 = vunpack.c.l.bf16 %v5028
    %v5321 = vunpack.c.l.bf16 %v5029
    %v5322 = vunpack.c.l.bf16 %v5030
    %v5323 = vunpack.c.h.bf16 %v5027
    %v5324 = vunpack.c.h.bf16 %v5028
    %v5325 = vunpack.c.h.bf16 %v5029
    %v5326 = vunpack.c.h.bf16 %v5030
    %v5327 = vunpack.c.l.bf16 %v5031
    %v5328 = vunpack.c.l.bf16 %v5032
    %v5329 = vunpack.c.l.bf16 %v5033
    %v5330 = vunpack.c.l.bf16 %v5034
    %v5331 = vunpack.c.h.bf16 %v5031
    %v5332 = vunpack.c.h.bf16 %v5032
    %v5333 = vunpack.c.h.bf16 %v5033
    %v5334 = vunpack.c.h.bf16 %v5034
    %v5335 = vunpack.c.l.bf16 %v5035
    %v5336 = vunpack.c.l.bf16 %v5036
    %v5337 = vunpack.c.l.bf16 %v5037
    %v5338 = vunpack.c.l.bf16 %v5038
    %v5339 = vunpack.c.h.bf16 %v5035
    %v5340 = vunpack.c.h.bf16 %v5036
    %v5341 = vunpack.c.h.bf16 %v5037
    %v5342 = vunpack.c.h.bf16 %v5038
    %v5343 = vunpack.c.l.bf16 %v5039
    %v5344 = vunpack.c.l.bf16 %v5040
    %v5345 = vunpack.c.l.bf16 %v5041
    %v5346 = vunpack.c.l.bf16 %v5042
    %v5347 = vunpack.c.h.bf16 %v5039
    %v5348 = vunpack.c.h.bf16 %v5040
    %v5349 = vunpack.c.h.bf16 %v5041
    %v5350 = vunpack.c.h.bf16 %v5042
    %v5351 = vunpack.c.l.bf16 %v5043
    %v5352 = vunpack.c.l.bf16 %v5044
    %v5353 = vunpack.c.l.bf16 %v5045
    %v5354 = vunpack.c.l.bf16 %v5046
    %v5355 = vunpack.c.h.bf16 %v5043
    %v5356 = vunpack.c.h.bf16 %v5044
    %v5357 = vunpack.c.h.bf16 %v5045
    %v5358 = vunpack.c.h.bf16 %v5046
    %v5359 = vunpack.c.l.bf16 %v5047
    %v5360 = vunpack.c.l.bf16 %v5048
    %v5361 = vunpack.c.l.bf16 %v5049
    %v5362 = vunpack.c.l.bf16 %v5050
    %v5363 = vunpack.c.h.bf16 %v5047
    %v5364 = vunpack.c.h.bf16 %v5048
    %v5365 = vunpack.c.h.bf16 %v5049
    %v5366 = vunpack.c.h.bf16 %v5050
    %v5367 = vunpack.c.l.bf16 %v5051
    %v5368 = vunpack.c.l.bf16 %v5052
    %v5369 = vunpack.c.l.bf16 %v5053
    %v5370 = vunpack.c.l.bf16 %v5054
    %v5371 = vunpack.c.h.bf16 %v5051
    %v5372 = vunpack.c.h.bf16 %v5052
    %v5373 = vunpack.c.h.bf16 %v5053
    %v5374 = vunpack.c.h.bf16 %v5054
    %v5375 = vunpack.c.l.bf16 %v5055
    %v5376 = vunpack.c.l.bf16 %v5056
    %v5377 = vunpack.c.l.bf16 %v5057
    %v5378 = vunpack.c.l.bf16 %v5058
    %v5379 = vunpack.c.h.bf16 %v5055
    %v5380 = vunpack.c.h.bf16 %v5056
    %v5381 = vunpack.c.h.bf16 %v5057
    %v5382 = vunpack.c.h.bf16 %v5058
    %v5383 = vunpack.c.l.bf16 %v5059
    %v5384 = vunpack.c.l.bf16 %v5060
    %v5385 = vunpack.c.l.bf16 %v5061
    %v5386 = vunpack.c.l.bf16 %v5062
    %v5387 = vunpack.c.h.bf16 %v5059
    %v5388 = vunpack.c.h.bf16 %v5060
    %v5389 = vunpack.c.h.bf16 %v5061
    %v5390 = vunpack.c.h.bf16 %v5062
    %v5391 = vunpack.c.l.bf16 %v5063
    %v5392 = vunpack.c.l.bf16 %v5064
    %v5393 = vunpack.c.l.bf16 %v5065
    %v5394 = vunpack.c.l.bf16 %v5066
    %v5395 = vunpack.c.h.bf16 %v5063
    %v5396 = vunpack.c.h.bf16 %v5064
    %v5397 = vunpack.c.h.bf16 %v5065
    %v5398 = vunpack.c.h.bf16 %v5066
    %v5399 = vunpack.c.l.bf16 %v5067
    %v5400 = vunpack.c.l.bf16 %v5068
    %v5401 = vunpack.c.l.bf16 %v5069
    %v5402 = vunpack.c.l.bf16 %v5070
    %v5403 = vunpack.c.h.bf16 %v5067
    %v5404 = vunpack.c.h.bf16 %v5068
    %v5405 = vunpack.c.h.bf16 %v5069
    %v5406 = vunpack.c.h.bf16 %v5070
    %v5407 = vunpack.c.l.bf16 %v5071
    %v5408 = vunpack.c.l.bf16 %v5072
    %v5409 = vunpack.c.l.bf16 %v5073
    %v5410 = vunpack.c.l.bf16 %v5074
    %v5411 = vunpack.c.h.bf16 %v5071
    %v5412 = vunpack.c.h.bf16 %v5072
    %v5413 = vunpack.c.h.bf16 %v5073
    %v5414 = vunpack.c.h.bf16 %v5074
    %v5415 = vunpack.c.l.bf16 %v5075
    %v5416 = vunpack.c.l.bf16 %v5076
    %v5417 = vunpack.c.l.bf16 %v5077
    %v5418 = vunpack.c.l.bf16 %v5078
    %v5419 = vunpack.c.h.bf16 %v5075
    %v5420 = vunpack.c.h.bf16 %v5076
    %v5421 = vunpack.c.h.bf16 %v5077
    %v5422 = vunpack.c.h.bf16 %v5078
    %v5423 = vunpack.c.l.bf16 %v5079
    %v5424 = vunpack.c.l.bf16 %v5080
    %v5425 = vunpack.c.l.bf16 %v5081
    %v5426 = vunpack.c.l.bf16 %v5082
    %v5427 = vunpack.c.h.bf16 %v5079
    %v5428 = vunpack.c.h.bf16 %v5080
    %v5429 = vunpack.c.h.bf16 %v5081
    %v5430 = vunpack.c.h.bf16 %v5082
    %v5431 = vunpack.c.l.bf16 %v5083
    %v5432 = vunpack.c.l.bf16 %v5084
    %v5433 = vunpack.c.l.bf16 %v5085
    %v5434 = vunpack.c.l.bf16 %v5086
    %v5435 = vunpack.c.h.bf16 %v5083
    %v5436 = vunpack.c.h.bf16 %v5084
    %v5437 = vunpack.c.h.bf16 %v5085
    %v5438 = vunpack.c.h.bf16 %v5086
    %v5439 = vunpack.c.l.bf16 %v5087
    %v5440 = vunpack.c.l.bf16 %v5088
    %v5441 = vunpack.c.l.bf16 %v5089
    %v5442 = vunpack.c.l.bf16 %v5090
    %v5443 = vunpack.c.h.bf16 %v5087
    %v5444 = vunpack.c.h.bf16 %v5088
    %v5445 = vunpack.c.h.bf16 %v5089
    %v5446 = vunpack.c.h.bf16 %v5090
    %v5447 = vunpack.c.l.bf16 %v5091
    %v5448 = vunpack.c.l.bf16 %v5092
    %v5449 = vunpack.c.l.bf16 %v5093
    %v5450 = vunpack.c.l.bf16 %v5094
    %v5451 = vunpack.c.h.bf16 %v5091
    %v5452 = vunpack.c.h.bf16 %v5092
    %v5453 = vunpack.c.h.bf16 %v5093
    %v5454 = vunpack.c.h.bf16 %v5094
    %v5455 = vunpack.c.l.bf16 %v5095
    %v5456 = vunpack.c.l.bf16 %v5096
    %v5457 = vunpack.c.l.bf16 %v5097
    %v5458 = vunpack.c.l.bf16 %v5098
    %v5459 = vunpack.c.h.bf16 %v5095
    %v5460 = vunpack.c.h.bf16 %v5096
    %v5461 = vunpack.c.h.bf16 %v5097
    %v5462 = vunpack.c.h.bf16 %v5098
    %v5463 = vunpack.c.l.bf16 %v5099
    %v5464 = vunpack.c.l.bf16 %v5100
    %v5465 = vunpack.c.l.bf16 %v5101
    %v5466 = vunpack.c.l.bf16 %v5102
    %v5467 = vunpack.c.h.bf16 %v5099
    %v5468 = vunpack.c.h.bf16 %v5100
    %v5469 = vunpack.c.h.bf16 %v5101
    %v5470 = vunpack.c.h.bf16 %v5102
    %v5471 = vunpack.c.l.bf16 %v5103
    %v5472 = vunpack.c.l.bf16 %v5104
    %v5473 = vunpack.c.l.bf16 %v5105
    %v5474 = vunpack.c.l.bf16 %v5106
    %v5475 = vunpack.c.h.bf16 %v5103
    %v5476 = vunpack.c.h.bf16 %v5104
    %v5477 = vunpack.c.h.bf16 %v5105
    %v5478 = vunpack.c.h.bf16 %v5106
    %v5479 = vunpack.c.l.bf16 %v5107
    %v5480 = vunpack.c.l.bf16 %v5108
    %v5481 = vunpack.c.l.bf16 %v5109
    %v5482 = vunpack.c.l.bf16 %v5110
    %v5483 = vunpack.c.h.bf16 %v5107
    %v5484 = vunpack.c.h.bf16 %v5108
    %v5485 = vunpack.c.h.bf16 %v5109
    %v5486 = vunpack.c.h.bf16 %v5110
    %v5487 = vunpack.c.l.bf16 %v5111
    %v5488 = vunpack.c.l.bf16 %v5112
    %v5489 = vunpack.c.l.bf16 %v5113
    %v5490 = vunpack.c.l.bf16 %v5114
    %v5491 = vunpack.c.h.bf16 %v5111
    %v5492 = vunpack.c.h.bf16 %v5112
    %v5493 = vunpack.c.h.bf16 %v5113
    %v5494 = vunpack.c.h.bf16 %v5114
    %v5495 = vunpack.c.l.bf16 %v5115
    %v5496 = vunpack.c.l.bf16 %v5116
    %v5497 = vunpack.c.l.bf16 %v5117
    %v5498 = vunpack.c.l.bf16 %v5118
    %v5499 = vunpack.c.h.bf16 %v5115
    %v5500 = vunpack.c.h.bf16 %v5116
    %v5501 = vunpack.c.h.bf16 %v5117
    %v5502 = vunpack.c.h.bf16 %v5118
    %v5503 = vunpack.c.l.bf16 %v5119
    %v5504 = vunpack.c.l.bf16 %v5120
    %v5505 = vunpack.c.l.bf16 %v5121
    %v5506 = vunpack.c.l.bf16 %v5122
    %v5507 = vunpack.c.h.bf16 %v5119
    %v5508 = vunpack.c.h.bf16 %v5120
    %v5509 = vunpack.c.h.bf16 %v5121
    %v5510 = vunpack.c.h.bf16 %v5122
    %v5511 = vunpack.c.l.bf16 %v5123
    %v5512 = vunpack.c.l.bf16 %v5124
    %v5513 = vunpack.c.l.bf16 %v5125
    %v5514 = vunpack.c.l.bf16 %v5126
    %v5515 = vunpack.c.h.bf16 %v5123
    %v5516 = vunpack.c.h.bf16 %v5124
    %v5517 = vunpack.c.h.bf16 %v5125
    %v5518 = vunpack.c.h.bf16 %v5126
    %v5519 = vunpack.c.l.bf16 %v5127
    %v5520 = vunpack.c.l.bf16 %v5128
    %v5521 = vunpack.c.l.bf16 %v5129
    %v5522 = vunpack.c.l.bf16 %v5130
    %v5523 = vunpack.c.h.bf16 %v5127
    %v5524 = vunpack.c.h.bf16 %v5128
    %v5525 = vunpack.c.h.bf16 %v5129
    %v5526 = vunpack.c.h.bf16 %v5130
    %v5527 = vunpack.c.l.bf16 %v5131
    %v5528 = vunpack.c.l.bf16 %v5132
    %v5529 = vunpack.c.l.bf16 %v5133
    %v5530 = vunpack.c.l.bf16 %v5134
    %v5531 = vunpack.c.h.bf16 %v5131
    %v5532 = vunpack.c.h.bf16 %v5132
    %v5533 = vunpack.c.h.bf16 %v5133
    %v5534 = vunpack.c.h.bf16 %v5134
    %v5535 = vunpack.c.l.bf16 %v5135
    %v5536 = vunpack.c.l.bf16 %v5136
    %v5537 = vunpack.c.l.bf16 %v5137
    %v5538 = vunpack.c.l.bf16 %v5138
    %v5539 = vunpack.c.h.bf16 %v5135
    %v5540 = vunpack.c.h.bf16 %v5136
    %v5541 = vunpack.c.h.bf16 %v5137
    %v5542 = vunpack.c.h.bf16 %v5138
    %v5543 = vunpack.c.l.bf16 %v5139
    %v5544 = vunpack.c.l.bf16 %v5140
    %v5545 = vunpack.c.l.bf16 %v5141
    %v5546 = vunpack.c.l.bf16 %v5142
    %v5547 = vunpack.c.h.bf16 %v5139
    %v5548 = vunpack.c.h.bf16 %v5140
    %v5549 = vunpack.c.h.bf16 %v5141
    %v5550 = vunpack.c.h.bf16 %v5142
    %v5551 = vunpack.c.l.bf16 %v5143
    %v5552 = vunpack.c.l.bf16 %v5144
    %v5553 = vunpack.c.l.bf16 %v5145
    %v5554 = vunpack.c.l.bf16 %v5146
    %v5555 = vunpack.c.h.bf16 %v5143
    %v5556 = vunpack.c.h.bf16 %v5144
    %v5557 = vunpack.c.h.bf16 %v5145
    %v5558 = vunpack.c.h.bf16 %v5146
    %v5559 = vunpack.c.l.bf16 %v5147
    %v5560 = vunpack.c.l.bf16 %v5148
    %v5561 = vunpack.c.l.bf16 %v5149
    %v5562 = vunpack.c.l.bf16 %v5150
    %v5563 = vunpack.c.h.bf16 %v5147
    %v5564 = vunpack.c.h.bf16 %v5148
    %v5565 = vunpack.c.h.bf16 %v5149
    %v5566 = vunpack.c.h.bf16 %v5150
    %v5567 = vunpack.c.l.bf16 %v5151
    %v5568 = vunpack.c.l.bf16 %v5152
    %v5569 = vunpack.c.l.bf16 %v5153
    %v5570 = vunpack.c.l.bf16 %v5154
    %v5571 = vunpack.c.h.bf16 %v5151
    %v5572 = vunpack.c.h.bf16 %v5152
    %v5573 = vunpack.c.h.bf16 %v5153
    %v5574 = vunpack.c.h.bf16 %v5154
    %v5575 = vunpack.c.l.bf16 %v5155
    %v5576 = vunpack.c.l.bf16 %v5156
    %v5577 = vunpack.c.l.bf16 %v5157
    %v5578 = vunpack.c.l.bf16 %v5158
    %v5579 = vunpack.c.h.bf16 %v5155
    %v5580 = vunpack.c.h.bf16 %v5156
    %v5581 = vunpack.c.h.bf16 %v5157
    %v5582 = vunpack.c.h.bf16 %v5158
    %v5583 = vunpack.c.l.bf16 %v5159
    %v5584 = vunpack.c.l.bf16 %v5160
    %v5585 = vunpack.c.l.bf16 %v5161
    %v5586 = vunpack.c.l.bf16 %v5162
    %v5587 = vunpack.c.h.bf16 %v5159
    %v5588 = vunpack.c.h.bf16 %v5160
    %v5589 = vunpack.c.h.bf16 %v5161
    %v5590 = vunpack.c.h.bf16 %v5162
    %v5591 = vunpack.c.l.bf16 %v5163
    %v5592 = vunpack.c.l.bf16 %v5164
    %v5593 = vunpack.c.l.bf16 %v5165
    %v5594 = vunpack.c.l.bf16 %v5166
    %v5595 = vunpack.c.h.bf16 %v5163
    %v5596 = vunpack.c.h.bf16 %v5164
    %v5597 = vunpack.c.h.bf16 %v5165
    %v5598 = vunpack.c.h.bf16 %v5166
    %v5599 = vunpack.c.l.bf16 %v5167
    %v5600 = vunpack.c.l.bf16 %v5168
    %v5601 = vunpack.c.l.bf16 %v5169
    %v5602 = vunpack.c.l.bf16 %v5170
    %v5603 = vunpack.c.h.bf16 %v5167
    %v5604 = vunpack.c.h.bf16 %v5168
    %v5605 = vunpack.c.h.bf16 %v5169
    %v5606 = vunpack.c.h.bf16 %v5170
    %v5607 = vunpack.c.l.bf16 %v5171
    %v5608 = vunpack.c.l.bf16 %v5172
    %v5609 = vunpack.c.l.bf16 %v5173
    %v5610 = vunpack.c.l.bf16 %v5174
    %v5611 = vunpack.c.h.bf16 %v5171
    %v5612 = vunpack.c.h.bf16 %v5172
    %v5613 = vunpack.c.h.bf16 %v5173
    %v5614 = vunpack.c.h.bf16 %v5174
    %v5615 = vunpack.c.l.bf16 %v5175
    %v5616 = vunpack.c.l.bf16 %v5176
    %v5617 = vunpack.c.l.bf16 %v5177
    %v5618 = vunpack.c.l.bf16 %v5178
    %v5619 = vunpack.c.h.bf16 %v5175
    %v5620 = vunpack.c.h.bf16 %v5176
    %v5621 = vunpack.c.h.bf16 %v5177
    %v5622 = vunpack.c.h.bf16 %v5178
    %v5623 = vunpack.c.l.bf16 %v5179
    %v5624 = vunpack.c.l.bf16 %v5180
    %v5625 = vunpack.c.l.bf16 %v5181
    %v5626 = vunpack.c.l.bf16 %v5182
    %v5627 = vunpack.c.h.bf16 %v5179
    %v5628 = vunpack.c.h.bf16 %v5180
    %v5629 = vunpack.c.h.bf16 %v5181
    %v5630 = vunpack.c.h.bf16 %v5182
    %v5631 = vunpack.c.l.bf16 %v5183
    %v5632 = vunpack.c.l.bf16 %v5184
    %v5633 = vunpack.c.l.bf16 %v5185
    %v5634 = vunpack.c.l.bf16 %v5186
    %v5635 = vunpack.c.h.bf16 %v5183
    %v5636 = vunpack.c.h.bf16 %v5184
    %v5637 = vunpack.c.h.bf16 %v5185
    %v5638 = vunpack.c.h.bf16 %v5186
    %v5639 = vunpack.c.l.bf16 %v5187
    %v5640 = vunpack.c.l.bf16 %v5188
    %v5641 = vunpack.c.l.bf16 %v5189
    %v5642 = vunpack.c.l.bf16 %v5190
    %v5643 = vunpack.c.h.bf16 %v5187
    %v5644 = vunpack.c.h.bf16 %v5188
    %v5645 = vunpack.c.h.bf16 %v5189
    %v5646 = vunpack.c.h.bf16 %v5190
    %v5647 = vunpack.c.l.bf16 %v5191
    %v5648 = vunpack.c.l.bf16 %v5192
    %v5649 = vunpack.c.l.bf16 %v5193
    %v5650 = vunpack.c.l.bf16 %v5194
    %v5651 = vunpack.c.h.bf16 %v5191
    %v5652 = vunpack.c.h.bf16 %v5192
    %v5653 = vunpack.c.h.bf16 %v5193
    %v5654 = vunpack.c.h.bf16 %v5194
    %v5655 = vunpack.c.l.bf16 %v5195
    %v5656 = vunpack.c.l.bf16 %v5196
    %v5657 = vunpack.c.l.bf16 %v5197
    %v5658 = vunpack.c.l.bf16 %v5198
    %v5659 = vunpack.c.h.bf16 %v5195
    %v5660 = vunpack.c.h.bf16 %v5196
    %v5661 = vunpack.c.h.bf16 %v5197
    %v5662 = vunpack.c.h.bf16 %v5198
    %v5663 = vunpack.c.l.bf16 %v5199
    %v5664 = vunpack.c.l.bf16 %v5200
    %v5665 = vunpack.c.l.bf16 %v5201
    %v5666 = vunpack.c.l.bf16 %v5202
    %v5667 = vunpack.c.h.bf16 %v5199
    %v5668 = vunpack.c.h.bf16 %v5200
    %v5669 = vunpack.c.h.bf16 %v5201
    %v5670 = vunpack.c.h.bf16 %v5202
    %v5671 = vunpack.c.l.bf16 %v5203
    %v5672 = vunpack.c.l.bf16 %v5204
    %v5673 = vunpack.c.l.bf16 %v5205
    %v5674 = vunpack.c.l.bf16 %v5206
    %v5675 = vunpack.c.h.bf16 %v5203
    %v5676 = vunpack.c.h.bf16 %v5204
    %v5677 = vunpack.c.h.bf16 %v5205
    %v5678 = vunpack.c.h.bf16 %v5206
    %v5679 = vunpack.c.l.bf16 %v5207
    %v5680 = vunpack.c.l.bf16 %v5208
    %v5681 = vunpack.c.l.bf16 %v5209
    %v5682 = vunpack.c.l.bf16 %v5210
    %v5683 = vunpack.c.h.bf16 %v5207
    %v5684 = vunpack.c.h.bf16 %v5208
    %v5685 = vunpack.c.h.bf16 %v5209
    %v5686 = vunpack.c.h.bf16 %v5210
    %v5687 = vunpack.c.l.bf16 %v5211
    %v5688 = vunpack.c.l.bf16 %v5212
    %v5689 = vunpack.c.l.bf16 %v5213
    %v5690 = vunpack.c.l.bf16 %v5214
    %v5691 = vunpack.c.h.bf16 %v5211
    %v5692 = vunpack.c.h.bf16 %v5212
    %v5693 = vunpack.c.h.bf16 %v5213
    %v5694 = vunpack.c.h.bf16 %v5214
    %v5695 = vunpack.c.l.bf16 %v5215
    %v5696 = vunpack.c.l.bf16 %v5216
    %v5697 = vunpack.c.l.bf16 %v5217
    %v5698 = vunpack.c.l.bf16 %v5218
    %v5699 = vunpack.c.h.bf16 %v5215
    %v5700 = vunpack.c.h.bf16 %v5216
    %v5701 = vunpack.c.h.bf16 %v5217
    %v5702 = vunpack.c.h.bf16 %v5218
    %v5703 = vunpack.c.l.bf16 %v5219
    %v5704 = vunpack.c.l.bf16 %v5220
    %v5705 = vunpack.c.l.bf16 %v5221
    %v5706 = vunpack.c.l.bf16 %v5222
    %v5707 = vunpack.c.h.bf16 %v5219
    %v5708 = vunpack.c.h.bf16 %v5220
    %v5709 = vunpack.c.h.bf16 %v5221
    %v5710 = vunpack.c.h.bf16 %v5222
    %v5711 = vunpack.c.l.bf16 %v5223
    %v5712 = vunpack.c.l.bf16 %v5224
    %v5713 = vunpack.c.l.bf16 %v5225
    %v5714 = vunpack.c.l.bf16 %v5226
    %v5715 = vunpack.c.h.bf16 %v5223
    %v5716 = vunpack.c.h.bf16 %v5224
    %v5717 = vunpack.c.h.bf16 %v5225
    %v5718 = vunpack.c.h.bf16 %v5226
    %v5719 = vunpack.c.l.bf16 %v5227
    %v5720 = vunpack.c.l.bf16 %v5228
    %v5721 = vunpack.c.l.bf16 %v5229
    %v5722 = vunpack.c.l.bf16 %v5230
    %v5723 = vunpack.c.h.bf16 %v5227
    %v5724 = vunpack.c.h.bf16 %v5228
    %v5725 = vunpack.c.h.bf16 %v5229
    %v5726 = vunpack.c.h.bf16 %v5230
    %v5727 = vunpack.c.l.bf16 %v5231
    %v5728 = vunpack.c.l.bf16 %v5232
    %v5729 = vunpack.c.l.bf16 %v5233
    %v5730 = vunpack.c.l.bf16 %v5234
    %v5731 = vunpack.c.h.bf16 %v5231
    %v5732 = vunpack.c.h.bf16 %v5232
    %v5733 = vunpack.c.h.bf16 %v5233
    %v5734 = vunpack.c.h.bf16 %v5234
    %v5735 = vunpack.c.l.bf16 %v5235
    %v5736 = vunpack.c.l.bf16 %v5236
    %v5737 = vunpack.c.l.bf16 %v5237
    %v5738 = vunpack.c.l.bf16 %v5238
    %v5739 = vunpack.c.h.bf16 %v5235
    %v5740 = vunpack.c.h.bf16 %v5236
    %v5741 = vunpack.c.h.bf16 %v5237
    %v5742 = vunpack.c.h.bf16 %v5238
    %v5743 = vunpack.c.l.bf16 %v5239
    %v5744 = vunpack.c.l.bf16 %v5240
    %v5745 = vunpack.c.l.bf16 %v5241
    %v5746 = vunpack.c.l.bf16 %v5242
    %v5747 = vunpack.c.h.bf16 %v5239
    %v5748 = vunpack.c.h.bf16 %v5240
    %v5749 = vunpack.c.h.bf16 %v5241
    %v5750 = vunpack.c.h.bf16 %v5242
    %v5751 = vunpack.c.l.bf16 %v5243
    %v5752 = vunpack.c.l.bf16 %v5244
    %v5753 = vunpack.c.l.bf16 %v5245
    %v5754 = vunpack.c.l.bf16 %v5246
    %v5755 = vunpack.c.h.bf16 %v5243
    %v5756 = vunpack.c.h.bf16 %v5244
    %v5757 = vunpack.c.h.bf16 %v5245
    %v5758 = vunpack.c.h.bf16 %v5246
    %v5759 = vld [vmem:[#allocation17] sm:$0x77]
    %v5760 = vld [vmem:[#allocation17 + $0x8] sm:$0x77]
    %v5763 = vlaneseq
    %v5764 = vshrl.u32 %v5763, 7
    %v5765 = vsub.s32 0, %v5764
    %v5766 = vrot.slane %v5759, %v5765
    %v5767 = vlaneseq
    %v5768 = vshrl.u32 %v5767, 7
    %v5769 = vsub.s32 4, %v5768
    %v5770 = vrot.slane %v5759, %v5769
    %v5771 = vlaneseq
    %v5772 = vshrl.u32 %v5771, 7
    %v5773 = vsub.s32 0, %v5772
    %v5774 = vrot.slane %v5760, %v5773
    %v5775 = vlaneseq
    %v5776 = vshrl.u32 %v5775, 7
    %v5777 = vsub.s32 4, %v5776
    %v5778 = vrot.slane %v5760, %v5777
    %v5783 = vlaneseq
    %v5784 = vshrl.u32 %v5783, 7
    %v5785 = vsub.s32 0, %v5784
    %v5786 = vrot.slane %v5766, %v5785
    %v5787 = vlaneseq
    %v5788 = vshrl.u32 %v5787, 7
    %v5789 = vsub.s32 0, %v5788
    %v5790 = vrot.slane %v5770, %v5789
    %v5791 = vlaneseq
    %v5792 = vshrl.u32 %v5791, 7
    %v5793 = vsub.s32 0, %v5792
    %v5794 = vrot.slane %v5774, %v5793
    %v5795 = vlaneseq
    %v5796 = vshrl.u32 %v5795, 7
    %v5797 = vsub.s32 0, %v5796
    %v5798 = vrot.slane %v5778, %v5797
    %vm5815 = vcmask 1041409
    %v5816 = vsel %vm5815, %v4839, %v4671
    %v5817 = vsel %vm5815, %v4860, %v4692
    %v5818 = vsel %vm5815, %v4881, %v4713
    %v5819 = vsel %vm5815, %v4902, %v4734
    %v5820 = vsel %vm5815, %v4923, %v4755
    %v5821 = vsel %vm5815, %v4944, %v4776
    %v5822 = vsel %vm5815, %v4965, %v4797
    %v5823 = vsel %vm5815, %v4986, %v4818
    %5832 = vmatprep.subr.mxu0 %v5248
    %5833 = vmatpush1.msra.mxu0 %v5247
    %5834 = vmatprep.subr.mxu0 %v5252
    %5835 = vmatpush1.msra.mxu0 %v5251
    %5836 = vmatprep.subr.mxu0 %v5256
    %5837 = vmatpush1.msra.mxu0 %v5255
    %5838 = vmatprep.subr.mxu0 %v5260
    %5839 = vmatpush1.msra.mxu0 %v5259
    %5840 = vmatprep.subr.mxu0 %v5264
    %5841 = vmatpush1.msra.mxu0 %v5263
    %5842 = vmatprep.subr.mxu0 %v5268
    %5843 = vmatpush1.msra.mxu0 %v5267
    %5844 = vmatprep.subr.mxu0 %v5272
    %5845 = vmatpush1.msra.mxu0 %v5271
    %5846 = vmatprep.subr.mxu0 %v5276
    %5847 = vmatpush1.msra.mxu0 %v5275
    %5848 = vmatprep.subr.mxu0 %v5280
    %5849 = vmatpush1.msra.mxu0 %v5279
    %5850 = vmatprep.subr.mxu0 %v5284
    %5851 = vmatpush1.msra.mxu0 %v5283
    %5852 = vmatprep.subr.mxu0 %v5288
    %5853 = vmatpush1.msra.mxu0 %v5287
    %5854 = vmatprep.subr.mxu0 %v5292
    %5855 = vmatpush1.msra.mxu0 %v5291
    %5856 = vmatprep.subr.mxu0 %v5296
    %5857 = vmatpush1.msra.mxu0 %v5295
    %5858 = vmatprep.subr.mxu0 %v5300
    %5859 = vmatpush1.msra.mxu0 %v5299
    %5860 = vmatprep.subr.mxu0 %v5304
    %5861 = vmatpush1.msra.mxu0 %v5303
    %5862 = vmatprep.subr.mxu0 %v5308
    %5863 = vmatpush1.msra.mxu0 %v5307
    %5864 = vmatprep.subr.mxu0 %v5312
    %5865 = vmatpush1.msra.mxu0 %v5311
    %5866 = vmatprep.subr.mxu0 %v5316
    %5867 = vmatpush1.msra.mxu0 %v5315
    %5868 = vmatprep.subr.mxu0 %v5320
    %5869 = vmatpush1.msra.mxu0 %v5319
    %5870 = vmatprep.subr.mxu0 %v5324
    %5871 = vmatpush1.msra.mxu0 %v5323
    %5872 = vmatprep.subr.mxu0 %v5328
    %5873 = vmatpush1.msra.mxu0 %v5327
    %5874 = vmatprep.subr.mxu0 %v5332
    %5875 = vmatpush1.msra.mxu0 %v5331
    %5876 = vmatprep.subr.mxu0 %v5336
    %5877 = vmatpush1.msra.mxu0 %v5335
    %5878 = vmatprep.subr.mxu0 %v5340
    %5879 = vmatpush1.msra.mxu0 %v5339
    %5880 = vmatprep.subr.mxu0 %v5344
    %5881 = vmatpush1.msra.mxu0 %v5343
    %5882 = vmatprep.subr.mxu0 %v5348
    %5883 = vmatpush1.msra.mxu0 %v5347
    %5884 = vmatprep.subr.mxu0 %v5352
    %5885 = vmatpush1.msra.mxu0 %v5351
    %5886 = vmatprep.subr.mxu0 %v5356
    %5887 = vmatpush1.msra.mxu0 %v5355
    %5888 = vmatprep.subr.mxu0 %v5360
    %5889 = vmatpush1.msra.mxu0 %v5359
    %5890 = vmatprep.subr.mxu0 %v5364
    %5891 = vmatpush1.msra.mxu0 %v5363
    %5892 = vmatprep.subr.mxu0 %v5368
    %5893 = vmatpush1.msra.mxu0 %v5367
    %5894 = vmatprep.subr.mxu0 %v5372
    %5895 = vmatpush1.msra.mxu0 %v5371
    %5896 = vmatprep.mubr.f32.mxu0 %v5817
    %5897 = vmatmul.mubr.f32.gmra.mrb[0].mxu0 %v5816
    %v5898 = vpop.f32.mrb[0].mxu0
    %v5899 = vadd.f32 %v5786, %v5898
    %v5900 = vpop.f32.mrb[0].mxu0
    %v5901 = vadd.f32 %v5790, %v5900
    %5902 = vdwg.mxu0
    %5903 = vmatprep.subr.mxu0 %v5376
    %5904 = vmatpush1.msra.mxu0 %v5375
    %5905 = vmatprep.subr.mxu0 %v5380
    %5906 = vmatpush1.msra.mxu0 %v5379
    %5907 = vmatprep.subr.mxu0 %v5384
    %5908 = vmatpush1.msra.mxu0 %v5383
    %5909 = vmatprep.subr.mxu0 %v5388
    %5910 = vmatpush1.msra.mxu0 %v5387
    %5911 = vmatprep.subr.mxu0 %v5392
    %5912 = vmatpush1.msra.mxu0 %v5391
    %5913 = vmatprep.subr.mxu0 %v5396
    %5914 = vmatpush1.msra.mxu0 %v5395
    %5915 = vmatprep.subr.mxu0 %v5400
    %5916 = vmatpush1.msra.mxu0 %v5399
    %5917 = vmatprep.subr.mxu0 %v5404
    %5918 = vmatpush1.msra.mxu0 %v5403
    %5919 = vmatprep.subr.mxu0 %v5408
    %5920 = vmatpush1.msra.mxu0 %v5407
    %5921 = vmatprep.subr.mxu0 %v5412
    %5922 = vmatpush1.msra.mxu0 %v5411
    %5923 = vmatprep.subr.mxu0 %v5416
    %5924 = vmatpush1.msra.mxu0 %v5415
    %5925 = vmatprep.subr.mxu0 %v5420
    %5926 = vmatpush1.msra.mxu0 %v5419
    %5927 = vmatprep.subr.mxu0 %v5424
    %5928 = vmatpush1.msra.mxu0 %v5423
    %5929 = vmatprep.subr.mxu0 %v5428
    %5930 = vmatpush1.msra.mxu0 %v5427
    %5931 = vmatprep.subr.mxu0 %v5432
    %5932 = vmatpush1.msra.mxu0 %v5431
    %5933 = vmatprep.subr.mxu0 %v5436
    %5934 = vmatpush1.msra.mxu0 %v5435
    %5935 = vmatprep.subr.mxu0 %v5440
    %5936 = vmatpush1.msra.mxu0 %v5439
    %5937 = vmatprep.subr.mxu0 %v5444
    %5938 = vmatpush1.msra.mxu0 %v5443
    %5939 = vmatprep.subr.mxu0 %v5448
    %5940 = vmatpush1.msra.mxu0 %v5447
    %5941 = vmatprep.subr.mxu0 %v5452
    %5942 = vmatpush1.msra.mxu0 %v5451
    %5943 = vmatprep.subr.mxu0 %v5456
    %5944 = vmatpush1.msra.mxu0 %v5455
    %5945 = vmatprep.subr.mxu0 %v5460
    %5946 = vmatpush1.msra.mxu0 %v5459
    %5947 = vmatprep.subr.mxu0 %v5464
    %5948 = vmatpush1.msra.mxu0 %v5463
    %5949 = vmatprep.subr.mxu0 %v5468
    %5950 = vmatpush1.msra.mxu0 %v5467
    %5951 = vmatprep.subr.mxu0 %v5472
    %5952 = vmatpush1.msra.mxu0 %v5471
    %5953 = vmatprep.subr.mxu0 %v5476
    %5954 = vmatpush1.msra.mxu0 %v5475
    %5955 = vmatprep.subr.mxu0 %v5480
    %5956 = vmatpush1.msra.mxu0 %v5479
    %5957 = vmatprep.subr.mxu0 %v5484
    %5958 = vmatpush1.msra.mxu0 %v5483
    %5959 = vmatprep.subr.mxu0 %v5488
    %5960 = vmatpush1.msra.mxu0 %v5487
    %5961 = vmatprep.subr.mxu0 %v5492
    %5962 = vmatpush1.msra.mxu0 %v5491
    %5963 = vmatprep.subr.mxu0 %v5496
    %5964 = vmatpush1.msra.mxu0 %v5495
    %5965 = vmatprep.subr.mxu0 %v5500
    %5966 = vmatpush1.msra.mxu0 %v5499
    %5967 = vmatprep.mubr.f32.mxu0 %v5819
    %5968 = vmatmul.mubr.f32.gmra.mrb[0].mxu0 %v5818
    %v5969 = vpop.f32.mrb[0].mxu0
    %v5970 = vadd.f32 %v5899, %v5969
    %v5971 = vpop.f32.mrb[0].mxu0
    %v5972 = vadd.f32 %v5901, %v5971
    %5973 = vdwg.mxu0
    %5974 = vmatprep.subr.mxu0 %v5504
    %5975 = vmatpush1.msra.mxu0 %v5503
    %5976 = vmatprep.subr.mxu0 %v5508
    %5977 = vmatpush1.msra.mxu0 %v5507
    %5978 = vmatprep.subr.mxu0 %v5512
    %5979 = vmatpush1.msra.mxu0 %v5511
    %5980 = vmatprep.subr.mxu0 %v5516
    %5981 = vmatpush1.msra.mxu0 %v5515
    %5982 = vmatprep.subr.mxu0 %v5520
    %5983 = vmatpush1.msra.mxu0 %v5519
    %5984 = vmatprep.subr.mxu0 %v5524
    %5985 = vmatpush1.msra.mxu0 %v5523
    %5986 = vmatprep.subr.mxu0 %v5528
    %5987 = vmatpush1.msra.mxu0 %v5527
    %5988 = vmatprep.subr.mxu0 %v5532
    %5989 = vmatpush1.msra.mxu0 %v5531
    %5990 = vmatprep.subr.mxu0 %v5536
    %5991 = vmatpush1.msra.mxu0 %v5535
    %5992 = vmatprep.subr.mxu0 %v5540
    %5993 = vmatpush1.msra.mxu0 %v5539
    %5994 = vmatprep.subr.mxu0 %v5544
    %5995 = vmatpush1.msra.mxu0 %v5543
    %5996 = vmatprep.subr.mxu0 %v5548
    %5997 = vmatpush1.msra.mxu0 %v5547
    %5998 = vmatprep.subr.mxu0 %v5552
    %5999 = vmatpush1.msra.mxu0 %v5551
    %6000 = vmatprep.subr.mxu0 %v5556
    %6001 = vmatpush1.msra.mxu0 %v5555
    %6002 = vmatprep.subr.mxu0 %v5560
    %6003 = vmatpush1.msra.mxu0 %v5559
    %6004 = vmatprep.subr.mxu0 %v5564
    %6005 = vmatpush1.msra.mxu0 %v5563
    %6006 = vmatprep.subr.mxu0 %v5568
    %6007 = vmatpush1.msra.mxu0 %v5567
    %6008 = vmatprep.subr.mxu0 %v5572
    %6009 = vmatpush1.msra.mxu0 %v5571
    %6010 = vmatprep.subr.mxu0 %v5576
    %6011 = vmatpush1.msra.mxu0 %v5575
    %6012 = vmatprep.subr.mxu0 %v5580
    %6013 = vmatpush1.msra.mxu0 %v5579
    %6014 = vmatprep.subr.mxu0 %v5584
    %6015 = vmatpush1.msra.mxu0 %v5583
    %6016 = vmatprep.subr.mxu0 %v5588
    %6017 = vmatpush1.msra.mxu0 %v5587
    %6018 = vmatprep.subr.mxu0 %v5592
    %6019 = vmatpush1.msra.mxu0 %v5591
    %6020 = vmatprep.subr.mxu0 %v5596
    %6021 = vmatpush1.msra.mxu0 %v5595
    %6022 = vmatprep.subr.mxu0 %v5600
    %6023 = vmatpush1.msra.mxu0 %v5599
    %6024 = vmatprep.subr.mxu0 %v5604
    %6025 = vmatpush1.msra.mxu0 %v5603
    %6026 = vmatprep.subr.mxu0 %v5608
    %6027 = vmatpush1.msra.mxu0 %v5607
    %6028 = vmatprep.subr.mxu0 %v5612
    %6029 = vmatpush1.msra.mxu0 %v5611
    %6030 = vmatprep.subr.mxu0 %v5616
    %6031 = vmatpush1.msra.mxu0 %v5615
    %6032 = vmatprep.subr.mxu0 %v5620
    %6033 = vmatpush1.msra.mxu0 %v5619
    %6034 = vmatprep.subr.mxu0 %v5624
    %6035 = vmatpush1.msra.mxu0 %v5623
    %6036 = vmatprep.subr.mxu0 %v5628
    %6037 = vmatpush1.msra.mxu0 %v5627
    %6038 = vmatprep.mubr.f32.mxu0 %v5821
    %6039 = vmatmul.mubr.f32.gmra.mrb[0].mxu0 %v5820
    %v6040 = vpop.f32.mrb[0].mxu0
    %v6041 = vadd.f32 %v5970, %v6040
    %v6042 = vpop.f32.mrb[0].mxu0
    %v6043 = vadd.f32 %v5972, %v6042
    %6044 = vdwg.mxu0
    %6045 = vmatprep.subr.mxu0 %v5632
    %6046 = vmatpush1.msra.mxu0 %v5631
    %6047 = vmatprep.subr.mxu0 %v5636
    %6048 = vmatpush1.msra.mxu0 %v5635
    %6049 = vmatprep.subr.mxu0 %v5640
    %6050 = vmatpush1.msra.mxu0 %v5639
    %6051 = vmatprep.subr.mxu0 %v5644
    %6052 = vmatpush1.msra.mxu0 %v5643
    %6053 = vmatprep.subr.mxu0 %v5648
    %6054 = vmatpush1.msra.mxu0 %v5647
    %6055 = vmatprep.subr.mxu0 %v5652
    %6056 = vmatpush1.msra.mxu0 %v5651
    %6057 = vmatprep.subr.mxu0 %v5656
    %6058 = vmatpush1.msra.mxu0 %v5655
    %6059 = vmatprep.subr.mxu0 %v5660
    %6060 = vmatpush1.msra.mxu0 %v5659
    %6061 = vmatprep.subr.mxu0 %v5664
    %6062 = vmatpush1.msra.mxu0 %v5663
    %6063 = vmatprep.subr.mxu0 %v5668
    %6064 = vmatpush1.msra.mxu0 %v5667
    %6065 = vmatprep.subr.mxu0 %v5672
    %6066 = vmatpush1.msra.mxu0 %v5671
    %6067 = vmatprep.subr.mxu0 %v5676
    %6068 = vmatpush1.msra.mxu0 %v5675
    %6069 = vmatprep.subr.mxu0 %v5680
    %6070 = vmatpush1.msra.mxu0 %v5679
    %6071 = vmatprep.subr.mxu0 %v5684
    %6072 = vmatpush1.msra.mxu0 %v5683
    %6073 = vmatprep.subr.mxu0 %v5688
    %6074 = vmatpush1.msra.mxu0 %v5687
    %6075 = vmatprep.subr.mxu0 %v5692
    %6076 = vmatpush1.msra.mxu0 %v5691
    %6077 = vmatprep.subr.mxu0 %v5696
    %6078 = vmatpush1.msra.mxu0 %v5695
    %6079 = vmatprep.subr.mxu0 %v5700
    %6080 = vmatpush1.msra.mxu0 %v5699
    %6081 = vmatprep.subr.mxu0 %v5704
    %6082 = vmatpush1.msra.mxu0 %v5703
    %6083 = vmatprep.subr.mxu0 %v5708
    %6084 = vmatpush1.msra.mxu0 %v5707
    %6085 = vmatprep.subr.mxu0 %v5712
    %6086 = vmatpush1.msra.mxu0 %v5711
    %6087 = vmatprep.subr.mxu0 %v5716
    %6088 = vmatpush1.msra.mxu0 %v5715
    %6089 = vmatprep.subr.mxu0 %v5720
    %6090 = vmatpush1.msra.mxu0 %v5719
    %6091 = vmatprep.subr.mxu0 %v5724
    %6092 = vmatpush1.msra.mxu0 %v5723
    %6093 = vmatprep.subr.mxu0 %v5728
    %6094 = vmatpush1.msra.mxu0 %v5727
    %6095 = vmatprep.subr.mxu0 %v5732
    %6096 = vmatpush1.msra.mxu0 %v5731
    %6097 = vmatprep.subr.mxu0 %v5736
    %6098 = vmatpush1.msra.mxu0 %v5735
    %6099 = vmatprep.subr.mxu0 %v5740
    %6100 = vmatpush1.msra.mxu0 %v5739
    %6101 = vmatprep.subr.mxu0 %v5744
    %6102 = vmatpush1.msra.mxu0 %v5743
    %6103 = vmatprep.subr.mxu0 %v5748
    %6104 = vmatpush1.msra.mxu0 %v5747
    %6105 = vmatprep.subr.mxu0 %v5752
    %6106 = vmatpush1.msra.mxu0 %v5751
    %6107 = vmatprep.subr.mxu0 %v5756
    %6108 = vmatpush1.msra.mxu0 %v5755
    %6109 = vmatprep.mubr.f32.mxu0 %v5823
    %6110 = vmatmul.mubr.f32.gmra.mrb[0].mxu0 %v5822
    %v6111 = vpop.f32.mrb[0].mxu0
    %v6112 = vadd.f32 %v6041, %v6111
    %v6113 = vpop.f32.mrb[0].mxu0
    %v6114 = vadd.f32 %v6043, %v6113
    %6115 = vdwg.mxu0
    %6116 = vmatprep.subr.mxu0 %v5250
    %6117 = vmatpush1.msra.mxu0 %v5249
    %6118 = vmatprep.subr.mxu0 %v5254
    %6119 = vmatpush1.msra.mxu0 %v5253
    %6120 = vmatprep.subr.mxu0 %v5258
    %6121 = vmatpush1.msra.mxu0 %v5257
    %6122 = vmatprep.subr.mxu0 %v5262
    %6123 = vmatpush1.msra.mxu0 %v5261
    %6124 = vmatprep.subr.mxu0 %v5266
    %6125 = vmatpush1.msra.mxu0 %v5265
    %6126 = vmatprep.subr.mxu0 %v5270
    %6127 = vmatpush1.msra.mxu0 %v5269
    %6128 = vmatprep.subr.mxu0 %v5274
    %6129 = vmatpush1.msra.mxu0 %v5273
    %6130 = vmatprep.subr.mxu0 %v5278
    %6131 = vmatpush1.msra.mxu0 %v5277
    %6132 = vmatprep.subr.mxu0 %v5282
    %6133 = vmatpush1.msra.mxu0 %v5281
    %6134 = vmatprep.subr.mxu0 %v5286
    %6135 = vmatpush1.msra.mxu0 %v5285
    %6136 = vmatprep.subr.mxu0 %v5290
    %6137 = vmatpush1.msra.mxu0 %v5289
    %6138 = vmatprep.subr.mxu0 %v5294
    %6139 = vmatpush1.msra.mxu0 %v5293
    %6140 = vmatprep.subr.mxu0 %v5298
    %6141 = vmatpush1.msra.mxu0 %v5297
    %6142 = vmatprep.subr.mxu0 %v5302
    %6143 = vmatpush1.msra.mxu0 %v5301
    %6144 = vmatprep.subr.mxu0 %v5306
    %6145 = vmatpush1.msra.mxu0 %v5305
    %6146 = vmatprep.subr.mxu0 %v5310
    %6147 = vmatpush1.msra.mxu0 %v5309
    %6148 = vmatprep.subr.mxu0 %v5314
    %6149 = vmatpush1.msra.mxu0 %v5313
    %6150 = vmatprep.subr.mxu0 %v5318
    %6151 = vmatpush1.msra.mxu0 %v5317
    %6152 = vmatprep.subr.mxu0 %v5322
    %6153 = vmatpush1.msra.mxu0 %v5321
    %6154 = vmatprep.subr.mxu0 %v5326
    %6155 = vmatpush1.msra.mxu0 %v5325
    %6156 = vmatprep.subr.mxu0 %v5330
    %6157 = vmatpush1.msra.mxu0 %v5329
    %6158 = vmatprep.subr.mxu0 %v5334
    %6159 = vmatpush1.msra.mxu0 %v5333
    %6160 = vmatprep.subr.mxu0 %v5338
    %6161 = vmatpush1.msra.mxu0 %v5337
    %6162 = vmatprep.subr.mxu0 %v5342
    %6163 = vmatpush1.msra.mxu0 %v5341
    %6164 = vmatprep.subr.mxu0 %v5346
    %6165 = vmatpush1.msra.mxu0 %v5345
    %6166 = vmatprep.subr.mxu0 %v5350
    %6167 = vmatpush1.msra.mxu0 %v5349
    %6168 = vmatprep.subr.mxu0 %v5354
    %6169 = vmatpush1.msra.mxu0 %v5353
    %6170 = vmatprep.subr.mxu0 %v5358
    %6171 = vmatpush1.msra.mxu0 %v5357
    %6172 = vmatprep.subr.mxu0 %v5362
    %6173 = vmatpush1.msra.mxu0 %v5361
    %6174 = vmatprep.subr.mxu0 %v5366
    %6175 = vmatpush1.msra.mxu0 %v5365
    %6176 = vmatprep.subr.mxu0 %v5370
    %6177 = vmatpush1.msra.mxu0 %v5369
    %6178 = vmatprep.subr.mxu0 %v5374
    %6179 = vmatpush1.msra.mxu0 %v5373
    %6180 = vmatprep.mubr.f32.mxu0 %v5817
    %6181 = vmatmul.mubr.f32.gmra.mrb[0].mxu0 %v5816
    %v6182 = vpop.f32.mrb[0].mxu0
    %v6183 = vadd.f32 %v5794, %v6182
    %v6184 = vpop.f32.mrb[0].mxu0
    %v6185 = vadd.f32 %v5798, %v6184
    %6186 = vdwg.mxu0
    %6187 = vmatprep.subr.mxu0 %v5378
    %6188 = vmatpush1.msra.mxu0 %v5377
    %6189 = vmatprep.subr.mxu0 %v5382
    %6190 = vmatpush1.msra.mxu0 %v5381
    %6191 = vmatprep.subr.mxu0 %v5386
    %6192 = vmatpush1.msra.mxu0 %v5385
    %6193 = vmatprep.subr.mxu0 %v5390
    %6194 = vmatpush1.msra.mxu0 %v5389
    %6195 = vmatprep.subr.mxu0 %v5394
    %6196 = vmatpush1.msra.mxu0 %v5393
    %6197 = vmatprep.subr.mxu0 %v5398
    %6198 = vmatpush1.msra.mxu0 %v5397
    %6199 = vmatprep.subr.mxu0 %v5402
    %6200 = vmatpush1.msra.mxu0 %v5401
    %6201 = vmatprep.subr.mxu0 %v5406
    %6202 = vmatpush1.msra.mxu0 %v5405
    %6203 = vmatprep.subr.mxu0 %v5410
    %6204 = vmatpush1.msra.mxu0 %v5409
    %6205 = vmatprep.subr.mxu0 %v5414
    %6206 = vmatpush1.msra.mxu0 %v5413
    %6207 = vmatprep.subr.mxu0 %v5418
    %6208 = vmatpush1.msra.mxu0 %v5417
    %6209 = vmatprep.subr.mxu0 %v5422
    %6210 = vmatpush1.msra.mxu0 %v5421
    %6211 = vmatprep.subr.mxu0 %v5426
    %6212 = vmatpush1.msra.mxu0 %v5425
    %6213 = vmatprep.subr.mxu0 %v5430
    %6214 = vmatpush1.msra.mxu0 %v5429
    %6215 = vmatprep.subr.mxu0 %v5434
    %6216 = vmatpush1.msra.mxu0 %v5433
    %6217 = vmatprep.subr.mxu0 %v5438
    %6218 = vmatpush1.msra.mxu0 %v5437
    %6219 = vmatprep.subr.mxu0 %v5442
    %6220 = vmatpush1.msra.mxu0 %v5441
    %6221 = vmatprep.subr.mxu0 %v5446
    %6222 = vmatpush1.msra.mxu0 %v5445
    %6223 = vmatprep.subr.mxu0 %v5450
    %6224 = vmatpush1.msra.mxu0 %v5449
    %6225 = vmatprep.subr.mxu0 %v5454
    %6226 = vmatpush1.msra.mxu0 %v5453
    %6227 = vmatprep.subr.mxu0 %v5458
    %6228 = vmatpush1.msra.mxu0 %v5457
    %6229 = vmatprep.subr.mxu0 %v5462
    %6230 = vmatpush1.msra.mxu0 %v5461
    %6231 = vmatprep.subr.mxu0 %v5466
    %6232 = vmatpush1.msra.mxu0 %v5465
    %6233 = vmatprep.subr.mxu0 %v5470
    %6234 = vmatpush1.msra.mxu0 %v5469
    %6235 = vmatprep.subr.mxu0 %v5474
    %6236 = vmatpush1.msra.mxu0 %v5473
    %6237 = vmatprep.subr.mxu0 %v5478
    %6238 = vmatpush1.msra.mxu0 %v5477
    %6239 = vmatprep.subr.mxu0 %v5482
    %6240 = vmatpush1.msra.mxu0 %v5481
    %6241 = vmatprep.subr.mxu0 %v5486
    %6242 = vmatpush1.msra.mxu0 %v5485
    %6243 = vmatprep.subr.mxu0 %v5490
    %6244 = vmatpush1.msra.mxu0 %v5489
    %6245 = vmatprep.subr.mxu0 %v5494
    %6246 = vmatpush1.msra.mxu0 %v5493
    %6247 = vmatprep.subr.mxu0 %v5498
    %6248 = vmatpush1.msra.mxu0 %v5497
    %6249 = vmatprep.subr.mxu0 %v5502
    %6250 = vmatpush1.msra.mxu0 %v5501
    %6251 = vmatprep.mubr.f32.mxu0 %v5819
    %6252 = vmatmul.mubr.f32.gmra.mrb[0].mxu0 %v5818
    %v6253 = vpop.f32.mrb[0].mxu0
    %v6254 = vadd.f32 %v6183, %v6253
    %v6255 = vpop.f32.mrb[0].mxu0
    %v6256 = vadd.f32 %v6185, %v6255
    %6257 = vdwg.mxu0
    %6258 = vmatprep.subr.mxu0 %v5506
    %6259 = vmatpush1.msra.mxu0 %v5505
    %6260 = vmatprep.subr.mxu0 %v5510
    %6261 = vmatpush1.msra.mxu0 %v5509
    %6262 = vmatprep.subr.mxu0 %v5514
    %6263 = vmatpush1.msra.mxu0 %v5513
    %6264 = vmatprep.subr.mxu0 %v5518
    %6265 = vmatpush1.msra.mxu0 %v5517
    %6266 = vmatprep.subr.mxu0 %v5522
    %6267 = vmatpush1.msra.mxu0 %v5521
    %6268 = vmatprep.subr.mxu0 %v5526
    %6269 = vmatpush1.msra.mxu0 %v5525
    %6270 = vmatprep.subr.mxu0 %v5530
    %6271 = vmatpush1.msra.mxu0 %v5529
    %6272 = vmatprep.subr.mxu0 %v5534
    %6273 = vmatpush1.msra.mxu0 %v5533
    %6274 = vmatprep.subr.mxu0 %v5538
    %6275 = vmatpush1.msra.mxu0 %v5537
    %6276 = vmatprep.subr.mxu0 %v5542
    %6277 = vmatpush1.msra.mxu0 %v5541
    %6278 = vmatprep.subr.mxu0 %v5546
    %6279 = vmatpush1.msra.mxu0 %v5545
    %6280 = vmatprep.subr.mxu0 %v5550
    %6281 = vmatpush1.msra.mxu0 %v5549
    %6282 = vmatprep.subr.mxu0 %v5554
    %6283 = vmatpush1.msra.mxu0 %v5553
    %6284 = vmatprep.subr.mxu0 %v5558
    %6285 = vmatpush1.msra.mxu0 %v5557
    %6286 = vmatprep.subr.mxu0 %v5562
    %6287 = vmatpush1.msra.mxu0 %v5561
    %6288 = vmatprep.subr.mxu0 %v5566
    %6289 = vmatpush1.msra.mxu0 %v5565
    %6290 = vmatprep.subr.mxu0 %v5570
    %6291 = vmatpush1.msra.mxu0 %v5569
    %6292 = vmatprep.subr.mxu0 %v5574
    %6293 = vmatpush1.msra.mxu0 %v5573
    %6294 = vmatprep.subr.mxu0 %v5578
    %6295 = vmatpush1.msra.mxu0 %v5577
    %6296 = vmatprep.subr.mxu0 %v5582
    %6297 = vmatpush1.msra.mxu0 %v5581
    %6298 = vmatprep.subr.mxu0 %v5586
    %6299 = vmatpush1.msra.mxu0 %v5585
    %6300 = vmatprep.subr.mxu0 %v5590
    %6301 = vmatpush1.msra.mxu0 %v5589
    %6302 = vmatprep.subr.mxu0 %v5594
    %6303 = vmatpush1.msra.mxu0 %v5593
    %6304 = vmatprep.subr.mxu0 %v5598
    %6305 = vmatpush1.msra.mxu0 %v5597
    %6306 = vmatprep.subr.mxu0 %v5602
    %6307 = vmatpush1.msra.mxu0 %v5601
    %6308 = vmatprep.subr.mxu0 %v5606
    %6309 = vmatpush1.msra.mxu0 %v5605
    %6310 = vmatprep.subr.mxu0 %v5610
    %6311 = vmatpush1.msra.mxu0 %v5609
    %6312 = vmatprep.subr.mxu0 %v5614
    %6313 = vmatpush1.msra.mxu0 %v5613
    %6314 = vmatprep.subr.mxu0 %v5618
    %6315 = vmatpush1.msra.mxu0 %v5617
    %6316 = vmatprep.subr.mxu0 %v5622
    %6317 = vmatpush1.msra.mxu0 %v5621
    %6318 = vmatprep.subr.mxu0 %v5626
    %6319 = vmatpush1.msra.mxu0 %v5625
    %6320 = vmatprep.subr.mxu0 %v5630
    %6321 = vmatpush1.msra.mxu0 %v5629
    %6322 = vmatprep.mubr.f32.mxu0 %v5821
    %6323 = vmatmul.mubr.f32.gmra.mrb[0].mxu0 %v5820
    %v6324 = vpop.f32.mrb[0].mxu0
    %v6325 = vadd.f32 %v6254, %v6324
    %v6326 = vpop.f32.mrb[0].mxu0
    %v6327 = vadd.f32 %v6256, %v6326
    %6328 = vdwg.mxu0
    %6329 = vmatprep.subr.mxu0 %v5634
    %6330 = vmatpush1.msra.mxu0 %v5633
    %6331 = vmatprep.subr.mxu0 %v5638
    %6332 = vmatpush1.msra.mxu0 %v5637
    %6333 = vmatprep.subr.mxu0 %v5642
    %6334 = vmatpush1.msra.mxu0 %v5641
    %6335 = vmatprep.subr.mxu0 %v5646
    %6336 = vmatpush1.msra.mxu0 %v5645
    %6337 = vmatprep.subr.mxu0 %v5650
    %6338 = vmatpush1.msra.mxu0 %v5649
    %6339 = vmatprep.subr.mxu0 %v5654
    %6340 = vmatpush1.msra.mxu0 %v5653
    %6341 = vmatprep.subr.mxu0 %v5658
    %6342 = vmatpush1.msra.mxu0 %v5657
    %6343 = vmatprep.subr.mxu0 %v5662
    %6344 = vmatpush1.msra.mxu0 %v5661
    %6345 = vmatprep.subr.mxu0 %v5666
    %6346 = vmatpush1.msra.mxu0 %v5665
    %6347 = vmatprep.subr.mxu0 %v5670
    %6348 = vmatpush1.msra.mxu0 %v5669
    %6349 = vmatprep.subr.mxu0 %v5674
    %6350 = vmatpush1.msra.mxu0 %v5673
    %6351 = vmatprep.subr.mxu0 %v5678
    %6352 = vmatpush1.msra.mxu0 %v5677
    %6353 = vmatprep.subr.mxu0 %v5682
    %6354 = vmatpush1.msra.mxu0 %v5681
    %6355 = vmatprep.subr.mxu0 %v5686
    %6356 = vmatpush1.msra.mxu0 %v5685
    %6357 = vmatprep.subr.mxu0 %v5690
    %6358 = vmatpush1.msra.mxu0 %v5689
    %6359 = vmatprep.subr.mxu0 %v5694
    %6360 = vmatpush1.msra.mxu0 %v5693
    %6361 = vmatprep.subr.mxu0 %v5698
    %6362 = vmatpush1.msra.mxu0 %v5697
    %6363 = vmatprep.subr.mxu0 %v5702
    %6364 = vmatpush1.msra.mxu0 %v5701
    %6365 = vmatprep.subr.mxu0 %v5706
    %6366 = vmatpush1.msra.mxu0 %v5705
    %6367 = vmatprep.subr.mxu0 %v5710
    %6368 = vmatpush1.msra.mxu0 %v5709
    %6369 = vmatprep.subr.mxu0 %v5714
    %6370 = vmatpush1.msra.mxu0 %v5713
    %6371 = vmatprep.subr.mxu0 %v5718
    %6372 = vmatpush1.msra.mxu0 %v5717
    %6373 = vmatprep.subr.mxu0 %v5722
    %6374 = vmatpush1.msra.mxu0 %v5721
    %6375 = vmatprep.subr.mxu0 %v5726
    %6376 = vmatpush1.msra.mxu0 %v5725
    %6377 = vmatprep.subr.mxu0 %v5730
    %6378 = vmatpush1.msra.mxu0 %v5729
    %6379 = vmatprep.subr.mxu0 %v5734
    %6380 = vmatpush1.msra.mxu0 %v5733
    %6381 = vmatprep.subr.mxu0 %v5738
    %6382 = vmatpush1.msra.mxu0 %v5737
    %6383 = vmatprep.subr.mxu0 %v5742
    %6384 = vmatpush1.msra.mxu0 %v5741
    %6385 = vmatprep.subr.mxu0 %v5746
    %6386 = vmatpush1.msra.mxu0 %v5745
    %6387 = vmatprep.subr.mxu0 %v5750
    %6388 = vmatpush1.msra.mxu0 %v5749
    %6389 = vmatprep.subr.mxu0 %v5754
    %6390 = vmatpush1.msra.mxu0 %v5753
    %6391 = vmatprep.subr.mxu0 %v5758
    %6392 = vmatpush1.msra.mxu0 %v5757
    %6393 = vmatprep.mubr.f32.mxu0 %v5823
    %6394 = vmatmul.mubr.f32.gmra.mrb[0].mxu0 %v5822
    %v6395 = vpop.f32.mrb[0].mxu0
    %v6396 = vadd.f32 %v6325, %v6395
    %v6397 = vpop.f32.mrb[0].mxu0
    %v6398 = vadd.f32 %v6327, %v6397
    %6399 = vdwg.mxu0
    %v6400 = vmax.f32 %v6112, 0.0
    %v6401 = vmax.f32 %v6114, 0.0
    %v6402 = vmax.f32 %v6396, 0.0
    %v6403 = vmax.f32 %v6398, 0.0
    %vm6404 = vcmask 1041408
    %v6405 = vsel %vm6404, %v6400, 0.0
    %v6406 = vrot.slane %v6405, 4
    %v6407 = vadd.f32 %v6405, %v6406
    %v6408 = vrot.slane %v6407, 2
    %v6409 = vadd.f32 %v6407, %v6408
    %v6410 = vrot.slane %v6409, 1
    %v6411 = vadd.f32 %v6409, %v6410
    %v6412 = vsel %vm6404, %v6401, 0.0
    %v6413 = vrot.slane %v6412, 4
    %v6414 = vadd.f32 %v6412, %v6413
    %v6415 = vrot.slane %v6414, 2
    %v6416 = vadd.f32 %v6414, %v6415
    %v6417 = vrot.slane %v6416, 1
    %v6418 = vadd.f32 %v6416, %v6417
    %v6419 = vsel %vm6404, %v6402, 0.0
    %v6420 = vrot.slane %v6419, 4
    %v6421 = vadd.f32 %v6419, %v6420
    %v6422 = vrot.slane %v6421, 2
    %v6423 = vadd.f32 %v6421, %v6422
    %v6424 = vrot.slane %v6423, 1
    %v6425 = vadd.f32 %v6423, %v6424
    %v6426 = vsel %vm6404, %v6403, 0.0
    %v6427 = vrot.slane %v6426, 4
    %v6428 = vadd.f32 %v6426, %v6427
    %v6429 = vrot.slane %v6428, 2
    %v6430 = vadd.f32 %v6428, %v6429
    %v6431 = vrot.slane %v6430, 1
    %v6432 = vadd.f32 %v6430, %v6431
    %v6433 = vmul.f32 %v6411, 0.5
    %v6434 = vmul.f32 %v6418, 0.5
    %v6435 = vmul.f32 %v6425, 0.5
    %v6436 = vmul.f32 %v6432, 0.5
    %v6437 = vmul.f32 %v6400, %v6400
    %v6438 = vmul.f32 %v6401, %v6401
    %v6439 = vmul.f32 %v6402, %v6402
    %v6440 = vmul.f32 %v6403, %v6403
    %v6441 = vsel %vm6404, %v6437, 0.0
    %v6442 = vrot.slane %v6441, 4
    %v6443 = vadd.f32 %v6441, %v6442
    %v6444 = vrot.slane %v6443, 2
    %v6445 = vadd.f32 %v6443, %v6444
    %v6446 = vrot.slane %v6445, 1
    %v6447 = vadd.f32 %v6445, %v6446
    %v6448 = vsel %vm6404, %v6438, 0.0
    %v6449 = vrot.slane %v6448, 4
    %v6450 = vadd.f32 %v6448, %v6449
    %v6451 = vrot.slane %v6450, 2
    %v6452 = vadd.f32 %v6450, %v6451
    %v6453 = vrot.slane %v6452, 1
    %v6454 = vadd.f32 %v6452, %v6453
    %v6455 = vsel %vm6404, %v6439, 0.0
    %v6456 = vrot.slane %v6455, 4
    %v6457 = vadd.f32 %v6455, %v6456
    %v6458 = vrot.slane %v6457, 2
    %v6459 = vadd.f32 %v6457, %v6458
    %v6460 = vrot.slane %v6459, 1
    %v6461 = vadd.f32 %v6459, %v6460
    %v6462 = vsel %vm6404, %v6440, 0.0
    %v6463 = vrot.slane %v6462, 4
    %v6464 = vadd.f32 %v6462, %v6463
    %v6465 = vrot.slane %v6464, 2
    %v6466 = vadd.f32 %v6464, %v6465
    %v6467 = vrot.slane %v6466, 1
    %v6468 = vadd.f32 %v6466, %v6467
    %v6469 = vmul.f32 %v6447, 0.5
    %v6470 = vmul.f32 %v6454, 0.5
    %v6471 = vmul.f32 %v6461, 0.5
    %v6472 = vmul.f32 %v6468, 0.5
    %v6473 = vmul.f32 %v6433, %v6433
    %v6474 = vmul.f32 %v6434, %v6434
    %v6475 = vmul.f32 %v6435, %v6435
    %v6476 = vmul.f32 %v6436, %v6436
    %v6477 = vsub.f32 %v6469, %v6473
    %v6478 = vsub.f32 %v6470, %v6474
    %v6479 = vsub.f32 %v6471, %v6475
    %v6480 = vsub.f32 %v6472, %v6476
    %v6481 = vadd.f32 %v6477, 1e-05
    %v6482 = vadd.f32 %v6478, 1e-05
    %v6483 = vadd.f32 %v6479, 1e-05
    %v6484 = vadd.f32 %v6480, 1e-05
    %v6485 = vrsqrt.pop %v6481
    %v6486 = vrsqrt.pop %v6482
    %v6487 = vrsqrt.pop %v6483
    %v6488 = vrsqrt.pop %v6484
    %v6493 = vcombine.low %v6485, %v6486
    %v6494 = vcombine.low %v6487, %v6488
    %v6495 = vrot.slane %v6493, 7
    %v6496 = vrot.slane %v6494, 7
    %v6499 = vmul.f32 %v5759, %v6495
    %v6500 = vmul.f32 %v5760, %v6496
    %v6503 = vlaneseq
    %v6504 = vshrl.u32 %v6503, 7
    %v6505 = vsub.s32 1, %v6504
    %v6506 = vrot.slane %v6499, %v6505
    %v6507 = vlaneseq
    %v6508 = vshrl.u32 %v6507, 7
    %v6509 = vsub.s32 5, %v6508
    %v6510 = vrot.slane %v6499, %v6509
    %v6511 = vlaneseq
    %v6512 = vshrl.u32 %v6511, 7
    %v6513 = vsub.s32 1, %v6512
    %v6514 = vrot.slane %v6500, %v6513
    %v6515 = vlaneseq
    %v6516 = vshrl.u32 %v6515, 7
    %v6517 = vsub.s32 5, %v6516
    %v6518 = vrot.slane %v6500, %v6517
    %v6523 = vmul.f32 %v6433, %v6506
    %v6524 = vmul.f32 %v6434, %v6510
    %v6525 = vmul.f32 %v6435, %v6514
    %v6526 = vmul.f32 %v6436, %v6518
    %v6531 = vcombine.low %v6523, %v6524
    %v6532 = vcombine.low %v6525, %v6526
    %v6533 = vrot.slane %v6531, 6
    %v6534 = vrot.slane %v6532, 6
    %v6537 = vsub.f32 %v5759, %v6533
    %v6538 = vsub.f32 %v5760, %v6534
    %v6539 = vlaneseq
    %v6540 = vshrl.u32 %v6539, 7
    %v6541 = vsub.s32 1, %v6540
    %v6542 = vrot.slane %v6506, %v6541
    %v6543 = vlaneseq
    %v6544 = vshrl.u32 %v6543, 7
    %v6545 = vsub.s32 1, %v6544
    %v6546 = vrot.slane %v6510, %v6545
    %v6547 = vlaneseq
    %v6548 = vshrl.u32 %v6547, 7
    %v6549 = vsub.s32 1, %v6548
    %v6550 = vrot.slane %v6514, %v6549
    %v6551 = vlaneseq
    %v6552 = vshrl.u32 %v6551, 7
    %v6553 = vsub.s32 1, %v6552
    %v6554 = vrot.slane %v6518, %v6553
    %v6555 = vmul.f32 %v6400, %v6542
    %v6556 = vmul.f32 %v6401, %v6546
    %v6557 = vmul.f32 %v6402, %v6550
    %v6558 = vmul.f32 %v6403, %v6554
    %v6561 = vlaneseq
    %v6562 = vshrl.u32 %v6561, 7
    %v6563 = vsub.s32 2, %v6562
    %v6564 = vrot.slane %v6537, %v6563
    %v6565 = vlaneseq
    %v6566 = vshrl.u32 %v6565, 7
    %v6567 = vsub.s32 6, %v6566
    %v6568 = vrot.slane %v6537, %v6567
    %v6569 = vlaneseq
    %v6570 = vshrl.u32 %v6569, 7
    %v6571 = vsub.s32 2, %v6570
    %v6572 = vrot.slane %v6538, %v6571
    %v6573 = vlaneseq
    %v6574 = vshrl.u32 %v6573, 7
    %v6575 = vsub.s32 6, %v6574
    %v6576 = vrot.slane %v6538, %v6575
    %v6581 = vlaneseq
    %v6582 = vshrl.u32 %v6581, 7
    %v6583 = vsub.s32 2, %v6582
    %v6584 = vrot.slane %v6564, %v6583
    %v6585 = vlaneseq
    %v6586 = vshrl.u32 %v6585, 7
    %v6587 = vsub.s32 2, %v6586
    %v6588 = vrot.slane %v6568, %v6587
    %v6589 = vlaneseq
    %v6590 = vshrl.u32 %v6589, 7
    %v6591 = vsub.s32 2, %v6590
    %v6592 = vrot.slane %v6572, %v6591
    %v6593 = vlaneseq
    %v6594 = vshrl.u32 %v6593, 7
    %v6595 = vsub.s32 2, %v6594
    %v6596 = vrot.slane %v6576, %v6595
    %v6597 = vadd.f32 %v6555, %v6584
    %v6598 = vadd.f32 %v6556, %v6588
    %v6599 = vadd.f32 %v6557, %v6592
    %v6600 = vadd.f32 %v6558, %v6596
    %s6601 = smul.u32 4, 64
    %s6602 = smul.u32 %s6601, 2
    %s6603 = sshll.u32 %s6602, 4
    %6604 = dma.done %s184, %s6603
    %v6605 = vld [vmem:[#allocation3] sm:$0xff]
    %v6606 = vld [vmem:[#allocation3 + $0x8] sm:$0xff]
    %v6607 = vld [vmem:[#allocation3 + $0x10] sm:$0xff]
    %v6608 = vld [vmem:[#allocation3 + $0x18] sm:$0xff]
    %v6609 = vld [vmem:[#allocation3 + $0x20] sm:$0xff]
    %v6610 = vld [vmem:[#allocation3 + $0x28] sm:$0xff]
    %v6611 = vld [vmem:[#allocation3 + $0x30] sm:$0xff]
    %v6612 = vld [vmem:[#allocation3 + $0x38] sm:$0xff]
    %v6613 = vld [vmem:[#allocation3 + $0x40] sm:$0xff]
    %v6614 = vld [vmem:[#allocation3 + $0x48] sm:$0xff]
    %v6615 = vld [vmem:[#allocation3 + $0x50] sm:$0xff]
    %v6616 = vld [vmem:[#allocation3 + $0x58] sm:$0xff]
    %v6617 = vld [vmem:[#allocation3 + $0x60] sm:$0xff]
    %v6618 = vld [vmem:[#allocation3 + $0x68] sm:$0xff]
    %v6619 = vld [vmem:[#allocation3 + $0x70] sm:$0xff]
    %v6620 = vld [vmem:[#allocation3 + $0x78] sm:$0xff]
    %v6621 = vld [vmem:[#allocation3 + $0x80] sm:$0xff]
    %v6622 = vld [vmem:[#allocation3 + $0x88] sm:$0xff]
    %v6623 = vld [vmem:[#allocation3 + $0x90] sm:$0xff]
    %v6624 = vld [vmem:[#allocation3 + $0x98] sm:$0xff]
    %v6625 = vld [vmem:[#allocation3 + $0xa0] sm:$0xff]
    %v6626 = vld [vmem:[#allocation3 + $0xa8] sm:$0xff]
    %v6627 = vld [vmem:[#allocation3 + $0xb0] sm:$0xff]
    %v6628 = vld [vmem:[#allocation3 + $0xb8] sm:$0xff]
    %v6629 = vld [vmem:[#allocation3 + $0xc0] sm:$0xff]
    %v6630 = vld [vmem:[#allocation3 + $0xc8] sm:$0xff]
    %v6631 = vld [vmem:[#allocation3 + $0xd0] sm:$0xff]
    %v6632 = vld [vmem:[#allocation3 + $0xd8] sm:$0xff]
    %v6633 = vld [vmem:[#allocation3 + $0xe0] sm:$0xff]
    %v6634 = vld [vmem:[#allocation3 + $0xe8] sm:$0xff]
    %v6635 = vld [vmem:[#allocation3 + $0xf0] sm:$0xff]
    %v6636 = vld [vmem:[#allocation3 + $0xf8] sm:$0xff]
    %v6637 = vld [vmem:[#allocation3 + $0x100] sm:$0xff]
    %v6638 = vld [vmem:[#allocation3 + $0x108] sm:$0xff]
    %v6639 = vld [vmem:[#allocation3 + $0x110] sm:$0xff]
    %v6640 = vld [vmem:[#allocation3 + $0x118] sm:$0xff]
    %v6641 = vld [vmem:[#allocation3 + $0x120] sm:$0xff]
    %v6642 = vld [vmem:[#allocation3 + $0x128] sm:$0xff]
    %v6643 = vld [vmem:[#allocation3 + $0x130] sm:$0xff]
    %v6644 = vld [vmem:[#allocation3 + $0x138] sm:$0xff]
    %v6645 = vld [vmem:[#allocation3 + $0x140] sm:$0xff]
    %v6646 = vld [vmem:[#allocation3 + $0x148] sm:$0xff]
    %v6647 = vld [vmem:[#allocation3 + $0x150] sm:$0xff]
    %v6648 = vld [vmem:[#allocation3 + $0x158] sm:$0xff]
    %v6649 = vld [vmem:[#allocation3 + $0x160] sm:$0xff]
    %v6650 = vld [vmem:[#allocation3 + $0x168] sm:$0xff]
    %v6651 = vld [vmem:[#allocation3 + $0x170] sm:$0xff]
    %v6652 = vld [vmem:[#allocation3 + $0x178] sm:$0xff]
    %v6653 = vld [vmem:[#allocation3 + $0x180] sm:$0xff]
    %v6654 = vld [vmem:[#allocation3 + $0x188] sm:$0xff]
    %v6655 = vld [vmem:[#allocation3 + $0x190] sm:$0xff]
    %v6656 = vld [vmem:[#allocation3 + $0x198] sm:$0xff]
    %v6657 = vld [vmem:[#allocation3 + $0x1a0] sm:$0xff]
    %v6658 = vld [vmem:[#allocation3 + $0x1a8] sm:$0xff]
    %v6659 = vld [vmem:[#allocation3 + $0x1b0] sm:$0xff]
    %v6660 = vld [vmem:[#allocation3 + $0x1b8] sm:$0xff]
    %v6661 = vld [vmem:[#allocation3 + $0x1c0] sm:$0xff]
    %v6662 = vld [vmem:[#allocation3 + $0x1c8] sm:$0xff]
    %v6663 = vld [vmem:[#allocation3 + $0x1d0] sm:$0xff]
    %v6664 = vld [vmem:[#allocation3 + $0x1d8] sm:$0xff]
    %v6665 = vld [vmem:[#allocation3 + $0x1e0] sm:$0xff]
    %v6666 = vld [vmem:[#allocation3 + $0x1e8] sm:$0xff]
    %v6667 = vld [vmem:[#allocation3 + $0x1f0] sm:$0xff]
    %v6668 = vld [vmem:[#allocation3 + $0x1f8] sm:$0xff]
    %v6669 = vunpack.c.l.bf16 %v6605
    %v6670 = vunpack.c.l.bf16 %v6606
    %v6671 = vunpack.c.h.bf16 %v6605
    %v6672 = vunpack.c.h.bf16 %v6606
    %v6673 = vunpack.c.l.bf16 %v6607
    %v6674 = vunpack.c.l.bf16 %v6608
    %v6675 = vunpack.c.h.bf16 %v6607
    %v6676 = vunpack.c.h.bf16 %v6608
    %v6677 = vunpack.c.l.bf16 %v6609
    %v6678 = vunpack.c.l.bf16 %v6610
    %v6679 = vunpack.c.h.bf16 %v6609
    %v6680 = vunpack.c.h.bf16 %v6610
    %v6681 = vunpack.c.l.bf16 %v6611
    %v6682 = vunpack.c.l.bf16 %v6612
    %v6683 = vunpack.c.h.bf16 %v6611
    %v6684 = vunpack.c.h.bf16 %v6612
    %v6685 = vunpack.c.l.bf16 %v6613
    %v6686 = vunpack.c.l.bf16 %v6614
    %v6687 = vunpack.c.h.bf16 %v6613
    %v6688 = vunpack.c.h.bf16 %v6614
    %v6689 = vunpack.c.l.bf16 %v6615
    %v6690 = vunpack.c.l.bf16 %v6616
    %v6691 = vunpack.c.h.bf16 %v6615
    %v6692 = vunpack.c.h.bf16 %v6616
    %v6693 = vunpack.c.l.bf16 %v6617
    %v6694 = vunpack.c.l.bf16 %v6618
    %v6695 = vunpack.c.h.bf16 %v6617
    %v6696 = vunpack.c.h.bf16 %v6618
    %v6697 = vunpack.c.l.bf16 %v6619
    %v6698 = vunpack.c.l.bf16 %v6620
    %v6699 = vunpack.c.h.bf16 %v6619
    %v6700 = vunpack.c.h.bf16 %v6620
    %v6701 = vunpack.c.l.bf16 %v6621
    %v6702 = vunpack.c.l.bf16 %v6622
    %v6703 = vunpack.c.h.bf16 %v6621
    %v6704 = vunpack.c.h.bf16 %v6622
    %v6705 = vunpack.c.l.bf16 %v6623
    %v6706 = vunpack.c.l.bf16 %v6624
    %v6707 = vunpack.c.h.bf16 %v6623
    %v6708 = vunpack.c.h.bf16 %v6624
    %v6709 = vunpack.c.l.bf16 %v6625
    %v6710 = vunpack.c.l.bf16 %v6626
    %v6711 = vunpack.c.h.bf16 %v6625
    %v6712 = vunpack.c.h.bf16 %v6626
    %v6713 = vunpack.c.l.bf16 %v6627
    %v6714 = vunpack.c.l.bf16 %v6628
    %v6715 = vunpack.c.h.bf16 %v6627
    %v6716 = vunpack.c.h.bf16 %v6628
    %v6717 = vunpack.c.l.bf16 %v6629
    %v6718 = vunpack.c.l.bf16 %v6630
    %v6719 = vunpack.c.h.bf16 %v6629
    %v6720 = vunpack.c.h.bf16 %v6630
    %v6721 = vunpack.c.l.bf16 %v6631
    %v6722 = vunpack.c.l.bf16 %v6632
    %v6723 = vunpack.c.h.bf16 %v6631
    %v6724 = vunpack.c.h.bf16 %v6632
    %v6725 = vunpack.c.l.bf16 %v6633
    %v6726 = vunpack.c.l.bf16 %v6634
    %v6727 = vunpack.c.h.bf16 %v6633
    %v6728 = vunpack.c.h.bf16 %v6634
    %v6729 = vunpack.c.l.bf16 %v6635
    %v6730 = vunpack.c.l.bf16 %v6636
    %v6731 = vunpack.c.h.bf16 %v6635
    %v6732 = vunpack.c.h.bf16 %v6636
    %v6733 = vunpack.c.l.bf16 %v6637
    %v6734 = vunpack.c.l.bf16 %v6638
    %v6735 = vunpack.c.h.bf16 %v6637
    %v6736 = vunpack.c.h.bf16 %v6638
    %v6737 = vunpack.c.l.bf16 %v6639
    %v6738 = vunpack.c.l.bf16 %v6640
    %v6739 = vunpack.c.h.bf16 %v6639
    %v6740 = vunpack.c.h.bf16 %v6640
    %v6741 = vunpack.c.l.bf16 %v6641
    %v6742 = vunpack.c.l.bf16 %v6642
    %v6743 = vunpack.c.h.bf16 %v6641
    %v6744 = vunpack.c.h.bf16 %v6642
    %v6745 = vunpack.c.l.bf16 %v6643
    %v6746 = vunpack.c.l.bf16 %v6644
    %v6747 = vunpack.c.h.bf16 %v6643
    %v6748 = vunpack.c.h.bf16 %v6644
    %v6749 = vunpack.c.l.bf16 %v6645
    %v6750 = vunpack.c.l.bf16 %v6646
    %v6751 = vunpack.c.h.bf16 %v6645
    %v6752 = vunpack.c.h.bf16 %v6646
    %v6753 = vunpack.c.l.bf16 %v6647
    %v6754 = vunpack.c.l.bf16 %v6648
    %v6755 = vunpack.c.h.bf16 %v6647
    %v6756 = vunpack.c.h.bf16 %v6648
    %v6757 = vunpack.c.l.bf16 %v6649
    %v6758 = vunpack.c.l.bf16 %v6650
    %v6759 = vunpack.c.h.bf16 %v6649
    %v6760 = vunpack.c.h.bf16 %v6650
    %v6761 = vunpack.c.l.bf16 %v6651
    %v6762 = vunpack.c.l.bf16 %v6652
    %v6763 = vunpack.c.h.bf16 %v6651
    %v6764 = vunpack.c.h.bf16 %v6652
    %v6765 = vunpack.c.l.bf16 %v6653
    %v6766 = vunpack.c.l.bf16 %v6654
    %v6767 = vunpack.c.h.bf16 %v6653
    %v6768 = vunpack.c.h.bf16 %v6654
    %v6769 = vunpack.c.l.bf16 %v6655
    %v6770 = vunpack.c.l.bf16 %v6656
    %v6771 = vunpack.c.h.bf16 %v6655
    %v6772 = vunpack.c.h.bf16 %v6656
    %v6773 = vunpack.c.l.bf16 %v6657
    %v6774 = vunpack.c.l.bf16 %v6658
    %v6775 = vunpack.c.h.bf16 %v6657
    %v6776 = vunpack.c.h.bf16 %v6658
    %v6777 = vunpack.c.l.bf16 %v6659
    %v6778 = vunpack.c.l.bf16 %v6660
    %v6779 = vunpack.c.h.bf16 %v6659
    %v6780 = vunpack.c.h.bf16 %v6660
    %v6781 = vunpack.c.l.bf16 %v6661
    %v6782 = vunpack.c.l.bf16 %v6662
    %v6783 = vunpack.c.h.bf16 %v6661
    %v6784 = vunpack.c.h.bf16 %v6662
    %v6785 = vunpack.c.l.bf16 %v6663
    %v6786 = vunpack.c.l.bf16 %v6664
    %v6787 = vunpack.c.h.bf16 %v6663
    %v6788 = vunpack.c.h.bf16 %v6664
    %v6789 = vunpack.c.l.bf16 %v6665
    %v6790 = vunpack.c.l.bf16 %v6666
    %v6791 = vunpack.c.h.bf16 %v6665
    %v6792 = vunpack.c.h.bf16 %v6666
    %v6793 = vunpack.c.l.bf16 %v6667
    %v6794 = vunpack.c.l.bf16 %v6668
    %v6795 = vunpack.c.h.bf16 %v6667
    %v6796 = vunpack.c.h.bf16 %v6668
    %v6797 = vld [vmem:[#allocation18] sm:$0x77]
    %v6799 = vlaneseq
    %v6800 = vshrl.u32 %v6799, 7
    %v6801 = vsub.s32 0, %v6800
    %v6802 = vrot.slane %v6797, %v6801
    %v6803 = vlaneseq
    %v6804 = vshrl.u32 %v6803, 7
    %v6805 = vsub.s32 4, %v6804
    %v6806 = vrot.slane %v6797, %v6805
    %v6809 = vlaneseq
    %v6810 = vshrl.u32 %v6809, 7
    %v6811 = vsub.s32 0, %v6810
    %v6812 = vrot.slane %v6802, %v6811
    %v6813 = vlaneseq
    %v6814 = vshrl.u32 %v6813, 7
    %v6815 = vsub.s32 0, %v6814
    %v6816 = vrot.slane %v6806, %v6815
    %6817 = vmatprep.subr.mxu0 %v6670
    %6818 = vmatpush1.msra.mxu0 %v6669
    %6819 = vmatprep.subr.mxu0 %v6672
    %6820 = vmatpush1.msra.mxu0 %v6671
    %6821 = vmatprep.subr.mxu0 %v6674
    %6822 = vmatpush1.msra.mxu0 %v6673
    %6823 = vmatprep.subr.mxu0 %v6676
    %6824 = vmatpush1.msra.mxu0 %v6675
    %6825 = vmatprep.subr.mxu0 %v6678
    %6826 = vmatpush1.msra.mxu0 %v6677
    %6827 = vmatprep.subr.mxu0 %v6680
    %6828 = vmatpush1.msra.mxu0 %v6679
    %6829 = vmatprep.subr.mxu0 %v6682
    %6830 = vmatpush1.msra.mxu0 %v6681
    %6831 = vmatprep.subr.mxu0 %v6684
    %6832 = vmatpush1.msra.mxu0 %v6683
    %6833 = vmatprep.subr.mxu0 %v6686
    %6834 = vmatpush1.msra.mxu0 %v6685
    %6835 = vmatprep.subr.mxu0 %v6688
    %6836 = vmatpush1.msra.mxu0 %v6687
    %6837 = vmatprep.subr.mxu0 %v6690
    %6838 = vmatpush1.msra.mxu0 %v6689
    %6839 = vmatprep.subr.mxu0 %v6692
    %6840 = vmatpush1.msra.mxu0 %v6691
    %6841 = vmatprep.subr.mxu0 %v6694
    %6842 = vmatpush1.msra.mxu0 %v6693
    %6843 = vmatprep.subr.mxu0 %v6696
    %6844 = vmatpush1.msra.mxu0 %v6695
    %6845 = vmatprep.subr.mxu0 %v6698
    %6846 = vmatpush1.msra.mxu0 %v6697
    %6847 = vmatprep.subr.mxu0 %v6700
    %6848 = vmatpush1.msra.mxu0 %v6699
    %6849 = vmatprep.subr.mxu0 %v6702
    %6850 = vmatpush1.msra.mxu0 %v6701
    %6851 = vmatprep.subr.mxu0 %v6704
    %6852 = vmatpush1.msra.mxu0 %v6703
    %6853 = vmatprep.subr.mxu0 %v6706
    %6854 = vmatpush1.msra.mxu0 %v6705
    %6855 = vmatprep.subr.mxu0 %v6708
    %6856 = vmatpush1.msra.mxu0 %v6707
    %6857 = vmatprep.subr.mxu0 %v6710
    %6858 = vmatpush1.msra.mxu0 %v6709
    %6859 = vmatprep.subr.mxu0 %v6712
    %6860 = vmatpush1.msra.mxu0 %v6711
    %6861 = vmatprep.subr.mxu0 %v6714
    %6862 = vmatpush1.msra.mxu0 %v6713
    %6863 = vmatprep.subr.mxu0 %v6716
    %6864 = vmatpush1.msra.mxu0 %v6715
    %6865 = vmatprep.subr.mxu0 %v6718
    %6866 = vmatpush1.msra.mxu0 %v6717
    %6867 = vmatprep.subr.mxu0 %v6720
    %6868 = vmatpush1.msra.mxu0 %v6719
    %6869 = vmatprep.subr.mxu0 %v6722
    %6870 = vmatpush1.msra.mxu0 %v6721
    %6871 = vmatprep.subr.mxu0 %v6724
    %6872 = vmatpush1.msra.mxu0 %v6723
    %6873 = vmatprep.subr.mxu0 %v6726
    %6874 = vmatpush1.msra.mxu0 %v6725
    %6875 = vmatprep.subr.mxu0 %v6728
    %6876 = vmatpush1.msra.mxu0 %v6727
    %6877 = vmatprep.subr.mxu0 %v6730
    %6878 = vmatpush1.msra.mxu0 %v6729
    %6879 = vmatprep.subr.mxu0 %v6732
    %6880 = vmatpush1.msra.mxu0 %v6731
    %6881 = vmatprep.mubr.f32.mxu0 %v6598
    %6882 = vmatmul.mubr.f32.gmra.mrb[0].mxu0 %v6597
    %v6883 = vpop.f32.mrb[0].mxu0
    %v6884 = vadd.f32 %v6812, %v6883
    %v6885 = vpop.f32.mrb[0].mxu0
    %v6886 = vadd.f32 %v6816, %v6885
    %6887 = vdwg.mxu0
    %6888 = vmatprep.subr.mxu0 %v6734
    %6889 = vmatpush1.msra.mxu0 %v6733
    %6890 = vmatprep.subr.mxu0 %v6736
    %6891 = vmatpush1.msra.mxu0 %v6735
    %6892 = vmatprep.subr.mxu0 %v6738
    %6893 = vmatpush1.msra.mxu0 %v6737
    %6894 = vmatprep.subr.mxu0 %v6740
    %6895 = vmatpush1.msra.mxu0 %v6739
    %6896 = vmatprep.subr.mxu0 %v6742
    %6897 = vmatpush1.msra.mxu0 %v6741
    %6898 = vmatprep.subr.mxu0 %v6744
    %6899 = vmatpush1.msra.mxu0 %v6743
    %6900 = vmatprep.subr.mxu0 %v6746
    %6901 = vmatpush1.msra.mxu0 %v6745
    %6902 = vmatprep.subr.mxu0 %v6748
    %6903 = vmatpush1.msra.mxu0 %v6747
    %6904 = vmatprep.subr.mxu0 %v6750
    %6905 = vmatpush1.msra.mxu0 %v6749
    %6906 = vmatprep.subr.mxu0 %v6752
    %6907 = vmatpush1.msra.mxu0 %v6751
    %6908 = vmatprep.subr.mxu0 %v6754
    %6909 = vmatpush1.msra.mxu0 %v6753
    %6910 = vmatprep.subr.mxu0 %v6756
    %6911 = vmatpush1.msra.mxu0 %v6755
    %6912 = vmatprep.subr.mxu0 %v6758
    %6913 = vmatpush1.msra.mxu0 %v6757
    %6914 = vmatprep.subr.mxu0 %v6760
    %6915 = vmatpush1.msra.mxu0 %v6759
    %6916 = vmatprep.subr.mxu0 %v6762
    %6917 = vmatpush1.msra.mxu0 %v6761
    %6918 = vmatprep.subr.mxu0 %v6764
    %6919 = vmatpush1.msra.mxu0 %v6763
    %6920 = vmatprep.subr.mxu0 %v6766
    %6921 = vmatpush1.msra.mxu0 %v6765
    %6922 = vmatprep.subr.mxu0 %v6768
    %6923 = vmatpush1.msra.mxu0 %v6767
    %6924 = vmatprep.subr.mxu0 %v6770
    %6925 = vmatpush1.msra.mxu0 %v6769
    %6926 = vmatprep.subr.mxu0 %v6772
    %6927 = vmatpush1.msra.mxu0 %v6771
    %6928 = vmatprep.subr.mxu0 %v6774
    %6929 = vmatpush1.msra.mxu0 %v6773
    %6930 = vmatprep.subr.mxu0 %v6776
    %6931 = vmatpush1.msra.mxu0 %v6775
    %6932 = vmatprep.subr.mxu0 %v6778
    %6933 = vmatpush1.msra.mxu0 %v6777
    %6934 = vmatprep.subr.mxu0 %v6780
    %6935 = vmatpush1.msra.mxu0 %v6779
    %6936 = vmatprep.subr.mxu0 %v6782
    %6937 = vmatpush1.msra.mxu0 %v6781
    %6938 = vmatprep.subr.mxu0 %v6784
    %6939 = vmatpush1.msra.mxu0 %v6783
    %6940 = vmatprep.subr.mxu0 %v6786
    %6941 = vmatpush1.msra.mxu0 %v6785
    %6942 = vmatprep.subr.mxu0 %v6788
    %6943 = vmatpush1.msra.mxu0 %v6787
    %6944 = vmatprep.subr.mxu0 %v6790
    %6945 = vmatpush1.msra.mxu0 %v6789
    %6946 = vmatprep.subr.mxu0 %v6792
    %6947 = vmatpush1.msra.mxu0 %v6791
    %6948 = vmatprep.subr.mxu0 %v6794
    %6949 = vmatpush1.msra.mxu0 %v6793
    %6950 = vmatprep.subr.mxu0 %v6796
    %6951 = vmatpush1.msra.mxu0 %v6795
    %6952 = vmatprep.mubr.f32.mxu0 %v6600
    %6953 = vmatmul.mubr.f32.gmra.mrb[0].mxu0 %v6599
    %v6954 = vpop.f32.mrb[0].mxu0
    %v6955 = vadd.f32 %v6884, %v6954
    %v6956 = vpop.f32.mrb[0].mxu0
    %v6957 = vadd.f32 %v6886, %v6956
    %6958 = vdwg.mxu0
    %v6959 = vmax.f32 %v6955, 0.0
    %v6960 = vmax.f32 %v6957, 0.0
    %v6961 = vsel %vm6404, %v6959, 0.0
    %v6962 = vrot.slane %v6961, 4
    %v6963 = vadd.f32 %v6961, %v6962
    %v6964 = vrot.slane %v6963, 2
    %v6965 = vadd.f32 %v6963, %v6964
    %v6966 = vrot.slane %v6965, 1
    %v6967 = vadd.f32 %v6965, %v6966
    %v6968 = vsel %vm6404, %v6960, 0.0
    %v6969 = vrot.slane %v6968, 4
    %v6970 = vadd.f32 %v6968, %v6969
    %v6971 = vrot.slane %v6970, 2
    %v6972 = vadd.f32 %v6970, %v6971
    %v6973 = vrot.slane %v6972, 1
    %v6974 = vadd.f32 %v6972, %v6973
    %v6975 = vmul.f32 %v6967, 0.5
    %v6976 = vmul.f32 %v6974, 0.5
    %v6977 = vmul.f32 %v6959, %v6959
    %v6978 = vmul.f32 %v6960, %v6960
    %v6979 = vsel %vm6404, %v6977, 0.0
    %v6980 = vrot.slane %v6979, 4
    %v6981 = vadd.f32 %v6979, %v6980
    %v6982 = vrot.slane %v6981, 2
    %v6983 = vadd.f32 %v6981, %v6982
    %v6984 = vrot.slane %v6983, 1
    %v6985 = vadd.f32 %v6983, %v6984
    %v6986 = vsel %vm6404, %v6978, 0.0
    %v6987 = vrot.slane %v6986, 4
    %v6988 = vadd.f32 %v6986, %v6987
    %v6989 = vrot.slane %v6988, 2
    %v6990 = vadd.f32 %v6988, %v6989
    %v6991 = vrot.slane %v6990, 1
    %v6992 = vadd.f32 %v6990, %v6991
    %v6993 = vmul.f32 %v6985, 0.5
    %v6994 = vmul.f32 %v6992, 0.5
    %v6995 = vmul.f32 %v6975, %v6975
    %v6996 = vmul.f32 %v6976, %v6976
    %v6997 = vsub.f32 %v6993, %v6995
    %v6998 = vsub.f32 %v6994, %v6996
    %v6999 = vadd.f32 %v6997, 1e-05
    %v7000 = vadd.f32 %v6998, 1e-05
    %v7001 = vrsqrt.pop %v6999
    %v7002 = vrsqrt.pop %v7000
    %v7005 = vcombine.low %v7001, %v7002
    %v7006 = vrot.slane %v7005, 7
    %v7008 = vmul.f32 %v6797, %v7006
    %v7010 = vlaneseq
    %v7011 = vshrl.u32 %v7010, 7
    %v7012 = vsub.s32 1, %v7011
    %v7013 = vrot.slane %v7008, %v7012
    %v7014 = vlaneseq
    %v7015 = vshrl.u32 %v7014, 7
    %v7016 = vsub.s32 5, %v7015
    %v7017 = vrot.slane %v7008, %v7016
    %v7020 = vmul.f32 %v6975, %v7013
    %v7021 = vmul.f32 %v6976, %v7017
    %v7024 = vcombine.low %v7020, %v7021
    %v7025 = vrot.slane %v7024, 6
    %v7027 = vsub.f32 %v6797, %v7025
    %v7028 = vlaneseq
    %v7029 = vshrl.u32 %v7028, 7
    %v7030 = vsub.s32 1, %v7029
    %v7031 = vrot.slane %v7013, %v7030
    %v7032 = vlaneseq
    %v7033 = vshrl.u32 %v7032, 7
    %v7034 = vsub.s32 1, %v7033
    %v7035 = vrot.slane %v7017, %v7034
    %v7036 = vmul.f32 %v6959, %v7031
    %v7037 = vmul.f32 %v6960, %v7035
    %v7039 = vlaneseq
    %v7040 = vshrl.u32 %v7039, 7
    %v7041 = vsub.s32 2, %v7040
    %v7042 = vrot.slane %v7027, %v7041
    %v7043 = vlaneseq
    %v7044 = vshrl.u32 %v7043, 7
    %v7045 = vsub.s32 6, %v7044
    %v7046 = vrot.slane %v7027, %v7045
    %v7049 = vlaneseq
    %v7050 = vshrl.u32 %v7049, 7
    %v7051 = vsub.s32 2, %v7050
    %v7052 = vrot.slane %v7042, %v7051
    %v7053 = vlaneseq
    %v7054 = vshrl.u32 %v7053, 7
    %v7055 = vsub.s32 2, %v7054
    %v7056 = vrot.slane %v7046, %v7055
    %v7057 = vadd.f32 %v7036, %v7052
    %v7058 = vadd.f32 %v7037, %v7056
    %s7059 = smul.u32 4, 32
    %s7060 = smul.u32 %s7059, 32
    %s7061 = sshll.u32 %s7060, 4
    %7062 = dma.done %s219, %s7061
    %v7063 = vld [vmem:[#allocation4] sm:$0xff]
    %v7064 = vld [vmem:[#allocation4 + $0x8] sm:$0xff]
    %v7065 = vld [vmem:[#allocation4 + $0x10] sm:$0xff]
    %v7066 = vld [vmem:[#allocation4 + $0x18] sm:$0xff]
    %v7067 = vld [vmem:[#allocation4 + $0x20] sm:$0xff]
    %v7068 = vld [vmem:[#allocation4 + $0x28] sm:$0xff]
    %v7069 = vld [vmem:[#allocation4 + $0x30] sm:$0xff]
    %v7070 = vld [vmem:[#allocation4 + $0x38] sm:$0xff]
    %v7071 = vld [vmem:[#allocation4 + $0x40] sm:$0xff]
    %v7072 = vld [vmem:[#allocation4 + $0x48] sm:$0xff]
    %v7073 = vld [vmem:[#allocation4 + $0x50] sm:$0xff]
    %v7074 = vld [vmem:[#allocation4 + $0x58] sm:$0xff]
    %v7075 = vld [vmem:[#allocation4 + $0x60] sm:$0xff]
    %v7076 = vld [vmem:[#allocation4 + $0x68] sm:$0xff]
    %v7077 = vld [vmem:[#allocation4 + $0x70] sm:$0xff]
    %v7078 = vld [vmem:[#allocation4 + $0x78] sm:$0xff]
    %v7079 = vld [vmem:[#allocation4 + $0x80] sm:$0xff]
    %v7080 = vld [vmem:[#allocation4 + $0x88] sm:$0xff]
    %v7081 = vld [vmem:[#allocation4 + $0x90] sm:$0xff]
    %v7082 = vld [vmem:[#allocation4 + $0x98] sm:$0xff]
    %v7083 = vld [vmem:[#allocation4 + $0xa0] sm:$0xff]
    %v7084 = vld [vmem:[#allocation4 + $0xa8] sm:$0xff]
    %v7085 = vld [vmem:[#allocation4 + $0xb0] sm:$0xff]
    %v7086 = vld [vmem:[#allocation4 + $0xb8] sm:$0xff]
    %v7087 = vld [vmem:[#allocation4 + $0xc0] sm:$0xff]
    %v7088 = vld [vmem:[#allocation4 + $0xc8] sm:$0xff]
    %v7089 = vld [vmem:[#allocation4 + $0xd0] sm:$0xff]
    %v7090 = vld [vmem:[#allocation4 + $0xd8] sm:$0xff]
    %v7091 = vld [vmem:[#allocation4 + $0xe0] sm:$0xff]
    %v7092 = vld [vmem:[#allocation4 + $0xe8] sm:$0xff]
    %v7093 = vld [vmem:[#allocation4 + $0xf0] sm:$0xff]
    %v7094 = vld [vmem:[#allocation4 + $0xf8] sm:$0xff]
    %v7095 = vld [vmem:[#allocation4 + $0x100] sm:$0xff]
    %v7096 = vld [vmem:[#allocation4 + $0x108] sm:$0xff]
    %v7097 = vld [vmem:[#allocation4 + $0x110] sm:$0xff]
    %v7098 = vld [vmem:[#allocation4 + $0x118] sm:$0xff]
    %v7099 = vld [vmem:[#allocation4 + $0x120] sm:$0xff]
    %v7100 = vld [vmem:[#allocation4 + $0x128] sm:$0xff]
    %v7101 = vld [vmem:[#allocation4 + $0x130] sm:$0xff]
    %v7102 = vld [vmem:[#allocation4 + $0x138] sm:$0xff]
    %v7103 = vld [vmem:[#allocation4 + $0x140] sm:$0xff]
    %v7104 = vld [vmem:[#allocation4 + $0x148] sm:$0xff]
    %v7105 = vld [vmem:[#allocation4 + $0x150] sm:$0xff]
    %v7106 = vld [vmem:[#allocation4 + $0x158] sm:$0xff]
    %v7107 = vld [vmem:[#allocation4 + $0x160] sm:$0xff]
    %v7108 = vld [vmem:[#allocation4 + $0x168] sm:$0xff]
    %v7109 = vld [vmem:[#allocation4 + $0x170] sm:$0xff]
    %v7110 = vld [vmem:[#allocation4 + $0x178] sm:$0xff]
    %v7111 = vld [vmem:[#allocation4 + $0x180] sm:$0xff]
    %v7112 = vld [vmem:[#allocation4 + $0x188] sm:$0xff]
    %v7113 = vld [vmem:[#allocation4 + $0x190] sm:$0xff]
    %v7114 = vld [vmem:[#allocation4 + $0x198] sm:$0xff]
    %v7115 = vld [vmem:[#allocation4 + $0x1a0] sm:$0xff]
    %v7116 = vld [vmem:[#allocation4 + $0x1a8] sm:$0xff]
    %v7117 = vld [vmem:[#allocation4 + $0x1b0] sm:$0xff]
    %v7118 = vld [vmem:[#allocation4 + $0x1b8] sm:$0xff]
    %v7119 = vld [vmem:[#allocation4 + $0x1c0] sm:$0xff]
    %v7120 = vld [vmem:[#allocation4 + $0x1c8] sm:$0xff]
    %v7121 = vld [vmem:[#allocation4 + $0x1d0] sm:$0xff]
    %v7122 = vld [vmem:[#allocation4 + $0x1d8] sm:$0xff]
    %v7123 = vld [vmem:[#allocation4 + $0x1e0] sm:$0xff]
    %v7124 = vld [vmem:[#allocation4 + $0x1e8] sm:$0xff]
    %v7125 = vld [vmem:[#allocation4 + $0x1f0] sm:$0xff]
    %v7126 = vld [vmem:[#allocation4 + $0x1f8] sm:$0xff]
    %v7127 = vld [vmem:[#allocation4 + $0x200] sm:$0xff]
    %v7128 = vld [vmem:[#allocation4 + $0x208] sm:$0xff]
    %v7129 = vld [vmem:[#allocation4 + $0x210] sm:$0xff]
    %v7130 = vld [vmem:[#allocation4 + $0x218] sm:$0xff]
    %v7131 = vld [vmem:[#allocation4 + $0x220] sm:$0xff]
    %v7132 = vld [vmem:[#allocation4 + $0x228] sm:$0xff]
    %v7133 = vld [vmem:[#allocation4 + $0x230] sm:$0xff]
    %v7134 = vld [vmem:[#allocation4 + $0x238] sm:$0xff]
    %v7135 = vld [vmem:[#allocation4 + $0x240] sm:$0xff]
    %v7136 = vld [vmem:[#allocation4 + $0x248] sm:$0xff]
    %v7137 = vld [vmem:[#allocation4 + $0x250] sm:$0xff]
    %v7138 = vld [vmem:[#allocation4 + $0x258] sm:$0xff]
    %v7139 = vld [vmem:[#allocation4 + $0x260] sm:$0xff]
    %v7140 = vld [vmem:[#allocation4 + $0x268] sm:$0xff]
    %v7141 = vld [vmem:[#allocation4 + $0x270] sm:$0xff]
    %v7142 = vld [vmem:[#allocation4 + $0x278] sm:$0xff]
    %v7143 = vld [vmem:[#allocation4 + $0x280] sm:$0xff]
    %v7144 = vld [vmem:[#allocation4 + $0x288] sm:$0xff]
    %v7145 = vld [vmem:[#allocation4 + $0x290] sm:$0xff]
    %v7146 = vld [vmem:[#allocation4 + $0x298] sm:$0xff]
    %v7147 = vld [vmem:[#allocation4 + $0x2a0] sm:$0xff]
    %v7148 = vld [vmem:[#allocation4 + $0x2a8] sm:$0xff]
    %v7149 = vld [vmem:[#allocation4 + $0x2b0] sm:$0xff]
    %v7150 = vld [vmem:[#allocation4 + $0x2b8] sm:$0xff]
    %v7151 = vld [vmem:[#allocation4 + $0x2c0] sm:$0xff]
    %v7152 = vld [vmem:[#allocation4 + $0x2c8] sm:$0xff]
    %v7153 = vld [vmem:[#allocation4 + $0x2d0] sm:$0xff]
    %v7154 = vld [vmem:[#allocation4 + $0x2d8] sm:$0xff]
    %v7155 = vld [vmem:[#allocation4 + $0x2e0] sm:$0xff]
    %v7156 = vld [vmem:[#allocation4 + $0x2e8] sm:$0xff]
    %v7157 = vld [vmem:[#allocation4 + $0x2f0] sm:$0xff]
    %v7158 = vld [vmem:[#allocation4 + $0x2f8] sm:$0xff]
    %v7159 = vld [vmem:[#allocation4 + $0x300] sm:$0xff]
    %v7160 = vld [vmem:[#allocation4 + $0x308] sm:$0xff]
    %v7161 = vld [vmem:[#allocation4 + $0x310] sm:$0xff]
    %v7162 = vld [vmem:[#allocation4 + $0x318] sm:$0xff]
    %v7163 = vld [vmem:[#allocation4 + $0x320] sm:$0xff]
    %v7164 = vld [vmem:[#allocation4 + $0x328] sm:$0xff]
    %v7165 = vld [vmem:[#allocation4 + $0x330] sm:$0xff]
    %v7166 = vld [vmem:[#allocation4 + $0x338] sm:$0xff]
    %v7167 = vld [vmem:[#allocation4 + $0x340] sm:$0xff]
    %v7168 = vld [vmem:[#allocation4 + $0x348] sm:$0xff]
    %v7169 = vld [vmem:[#allocation4 + $0x350] sm:$0xff]
    %v7170 = vld [vmem:[#allocation4 + $0x358] sm:$0xff]
    %v7171 = vld [vmem:[#allocation4 + $0x360] sm:$0xff]
    %v7172 = vld [vmem:[#allocation4 + $0x368] sm:$0xff]
    %v7173 = vld [vmem:[#allocation4 + $0x370] sm:$0xff]
    %v7174 = vld [vmem:[#allocation4 + $0x378] sm:$0xff]
    %v7175 = vld [vmem:[#allocation4 + $0x380] sm:$0xff]
    %v7176 = vld [vmem:[#allocation4 + $0x388] sm:$0xff]
    %v7177 = vld [vmem:[#allocation4 + $0x390] sm:$0xff]
    %v7178 = vld [vmem:[#allocation4 + $0x398] sm:$0xff]
    %v7179 = vld [vmem:[#allocation4 + $0x3a0] sm:$0xff]
    %v7180 = vld [vmem:[#allocation4 + $0x3a8] sm:$0xff]
    %v7181 = vld [vmem:[#allocation4 + $0x3b0] sm:$0xff]
    %v7182 = vld [vmem:[#allocation4 + $0x3b8] sm:$0xff]
    %v7183 = vld [vmem:[#allocation4 + $0x3c0] sm:$0xff]
    %v7184 = vld [vmem:[#allocation4 + $0x3c8] sm:$0xff]
    %v7185 = vld [vmem:[#allocation4 + $0x3d0] sm:$0xff]
    %v7186 = vld [vmem:[#allocation4 + $0x3d8] sm:$0xff]
    %v7187 = vld [vmem:[#allocation4 + $0x3e0] sm:$0xff]
    %v7188 = vld [vmem:[#allocation4 + $0x3e8] sm:$0xff]
    %v7189 = vld [vmem:[#allocation4 + $0x3f0] sm:$0xff]
    %v7190 = vld [vmem:[#allocation4 + $0x3f8] sm:$0xff]
    %v7191 = vld [vmem:[#allocation4 + $0x400] sm:$0xff]
    %v7192 = vld [vmem:[#allocation4 + $0x408] sm:$0xff]
    %v7193 = vld [vmem:[#allocation4 + $0x410] sm:$0xff]
    %v7194 = vld [vmem:[#allocation4 + $0x418] sm:$0xff]
    %v7195 = vld [vmem:[#allocation4 + $0x420] sm:$0xff]
    %v7196 = vld [vmem:[#allocation4 + $0x428] sm:$0xff]
    %v7197 = vld [vmem:[#allocation4 + $0x430] sm:$0xff]
    %v7198 = vld [vmem:[#allocation4 + $0x438] sm:$0xff]
    %v7199 = vld [vmem:[#allocation4 + $0x440] sm:$0xff]
    %v7200 = vld [vmem:[#allocation4 + $0x448] sm:$0xff]
    %v7201 = vld [vmem:[#allocation4 + $0x450] sm:$0xff]
    %v7202 = vld [vmem:[#allocation4 + $0x458] sm:$0xff]
    %v7203 = vld [vmem:[#allocation4 + $0x460] sm:$0xff]
    %v7204 = vld [vmem:[#allocation4 + $0x468] sm:$0xff]
    %v7205 = vld [vmem:[#allocation4 + $0x470] sm:$0xff]
    %v7206 = vld [vmem:[#allocation4 + $0x478] sm:$0xff]
    %v7207 = vld [vmem:[#allocation4 + $0x480] sm:$0xff]
    %v7208 = vld [vmem:[#allocation4 + $0x488] sm:$0xff]
    %v7209 = vld [vmem:[#allocation4 + $0x490] sm:$0xff]
    %v7210 = vld [vmem:[#allocation4 + $0x498] sm:$0xff]
    %v7211 = vld [vmem:[#allocation4 + $0x4a0] sm:$0xff]
    %v7212 = vld [vmem:[#allocation4 + $0x4a8] sm:$0xff]
    %v7213 = vld [vmem:[#allocation4 + $0x4b0] sm:$0xff]
    %v7214 = vld [vmem:[#allocation4 + $0x4b8] sm:$0xff]
    %v7215 = vld [vmem:[#allocation4 + $0x4c0] sm:$0xff]
    %v7216 = vld [vmem:[#allocation4 + $0x4c8] sm:$0xff]
    %v7217 = vld [vmem:[#allocation4 + $0x4d0] sm:$0xff]
    %v7218 = vld [vmem:[#allocation4 + $0x4d8] sm:$0xff]
    %v7219 = vld [vmem:[#allocation4 + $0x4e0] sm:$0xff]
    %v7220 = vld [vmem:[#allocation4 + $0x4e8] sm:$0xff]
    %v7221 = vld [vmem:[#allocation4 + $0x4f0] sm:$0xff]
    %v7222 = vld [vmem:[#allocation4 + $0x4f8] sm:$0xff]
    %v7223 = vld [vmem:[#allocation4 + $0x500] sm:$0xff]
    %v7224 = vld [vmem:[#allocation4 + $0x508] sm:$0xff]
    %v7225 = vld [vmem:[#allocation4 + $0x510] sm:$0xff]
    %v7226 = vld [vmem:[#allocation4 + $0x518] sm:$0xff]
    %v7227 = vld [vmem:[#allocation4 + $0x520] sm:$0xff]
    %v7228 = vld [vmem:[#allocation4 + $0x528] sm:$0xff]
    %v7229 = vld [vmem:[#allocation4 + $0x530] sm:$0xff]
    %v7230 = vld [vmem:[#allocation4 + $0x538] sm:$0xff]
    %v7231 = vld [vmem:[#allocation4 + $0x540] sm:$0xff]
    %v7232 = vld [vmem:[#allocation4 + $0x548] sm:$0xff]
    %v7233 = vld [vmem:[#allocation4 + $0x550] sm:$0xff]
    %v7234 = vld [vmem:[#allocation4 + $0x558] sm:$0xff]
    %v7235 = vld [vmem:[#allocation4 + $0x560] sm:$0xff]
    %v7236 = vld [vmem:[#allocation4 + $0x568] sm:$0xff]
    %v7237 = vld [vmem:[#allocation4 + $0x570] sm:$0xff]
    %v7238 = vld [vmem:[#allocation4 + $0x578] sm:$0xff]
    %v7239 = vld [vmem:[#allocation4 + $0x580] sm:$0xff]
    %v7240 = vld [vmem:[#allocation4 + $0x588] sm:$0xff]
    %v7241 = vld [vmem:[#allocation4 + $0x590] sm:$0xff]
    %v7242 = vld [vmem:[#allocation4 + $0x598] sm:$0xff]
    %v7243 = vld [vmem:[#allocation4 + $0x5a0] sm:$0xff]
    %v7244 = vld [vmem:[#allocation4 + $0x5a8] sm:$0xff]
    %v7245 = vld [vmem:[#allocation4 + $0x5b0] sm:$0xff]
    %v7246 = vld [vmem:[#allocation4 + $0x5b8] sm:$0xff]
    %v7247 = vld [vmem:[#allocation4 + $0x5c0] sm:$0xff]
    %v7248 = vld [vmem:[#allocation4 + $0x5c8] sm:$0xff]
    %v7249 = vld [vmem:[#allocation4 + $0x5d0] sm:$0xff]
    %v7250 = vld [vmem:[#allocation4 + $0x5d8] sm:$0xff]
    %v7251 = vld [vmem:[#allocation4 + $0x5e0] sm:$0xff]
    %v7252 = vld [vmem:[#allocation4 + $0x5e8] sm:$0xff]
    %v7253 = vld [vmem:[#allocation4 + $0x5f0] sm:$0xff]
    %v7254 = vld [vmem:[#allocation4 + $0x5f8] sm:$0xff]
    %v7255 = vld [vmem:[#allocation4 + $0x600] sm:$0xff]
    %v7256 = vld [vmem:[#allocation4 + $0x608] sm:$0xff]
    %v7257 = vld [vmem:[#allocation4 + $0x610] sm:$0xff]
    %v7258 = vld [vmem:[#allocation4 + $0x618] sm:$0xff]
    %v7259 = vld [vmem:[#allocation4 + $0x620] sm:$0xff]
    %v7260 = vld [vmem:[#allocation4 + $0x628] sm:$0xff]
    %v7261 = vld [vmem:[#allocation4 + $0x630] sm:$0xff]
    %v7262 = vld [vmem:[#allocation4 + $0x638] sm:$0xff]
    %v7263 = vld [vmem:[#allocation4 + $0x640] sm:$0xff]
    %v7264 = vld [vmem:[#allocation4 + $0x648] sm:$0xff]
    %v7265 = vld [vmem:[#allocation4 + $0x650] sm:$0xff]
    %v7266 = vld [vmem:[#allocation4 + $0x658] sm:$0xff]
    %v7267 = vld [vmem:[#allocation4 + $0x660] sm:$0xff]
    %v7268 = vld [vmem:[#allocation4 + $0x668] sm:$0xff]
    %v7269 = vld [vmem:[#allocation4 + $0x670] sm:$0xff]
    %v7270 = vld [vmem:[#allocation4 + $0x678] sm:$0xff]
    %v7271 = vld [vmem:[#allocation4 + $0x680] sm:$0xff]
    %v7272 = vld [vmem:[#allocation4 + $0x688] sm:$0xff]
    %v7273 = vld [vmem:[#allocation4 + $0x690] sm:$0xff]
    %v7274 = vld [vmem:[#allocation4 + $0x698] sm:$0xff]
    %v7275 = vld [vmem:[#allocation4 + $0x6a0] sm:$0xff]
    %v7276 = vld [vmem:[#allocation4 + $0x6a8] sm:$0xff]
    %v7277 = vld [vmem:[#allocation4 + $0x6b0] sm:$0xff]
    %v7278 = vld [vmem:[#allocation4 + $0x6b8] sm:$0xff]
    %v7279 = vld [vmem:[#allocation4 + $0x6c0] sm:$0xff]
    %v7280 = vld [vmem:[#allocation4 + $0x6c8] sm:$0xff]
    %v7281 = vld [vmem:[#allocation4 + $0x6d0] sm:$0xff]
    %v7282 = vld [vmem:[#allocation4 + $0x6d8] sm:$0xff]
    %v7283 = vld [vmem:[#allocation4 + $0x6e0] sm:$0xff]
    %v7284 = vld [vmem:[#allocation4 + $0x6e8] sm:$0xff]
    %v7285 = vld [vmem:[#allocation4 + $0x6f0] sm:$0xff]
    %v7286 = vld [vmem:[#allocation4 + $0x6f8] sm:$0xff]
    %v7287 = vld [vmem:[#allocation4 + $0x700] sm:$0xff]
    %v7288 = vld [vmem:[#allocation4 + $0x708] sm:$0xff]
    %v7289 = vld [vmem:[#allocation4 + $0x710] sm:$0xff]
    %v7290 = vld [vmem:[#allocation4 + $0x718] sm:$0xff]
    %v7291 = vld [vmem:[#allocation4 + $0x720] sm:$0xff]
    %v7292 = vld [vmem:[#allocation4 + $0x728] sm:$0xff]
    %v7293 = vld [vmem:[#allocation4 + $0x730] sm:$0xff]
    %v7294 = vld [vmem:[#allocation4 + $0x738] sm:$0xff]
    %v7295 = vld [vmem:[#allocation4 + $0x740] sm:$0xff]
    %v7296 = vld [vmem:[#allocation4 + $0x748] sm:$0xff]
    %v7297 = vld [vmem:[#allocation4 + $0x750] sm:$0xff]
    %v7298 = vld [vmem:[#allocation4 + $0x758] sm:$0xff]
    %v7299 = vld [vmem:[#allocation4 + $0x760] sm:$0xff]
    %v7300 = vld [vmem:[#allocation4 + $0x768] sm:$0xff]
    %v7301 = vld [vmem:[#allocation4 + $0x770] sm:$0xff]
    %v7302 = vld [vmem:[#allocation4 + $0x778] sm:$0xff]
    %v7303 = vld [vmem:[#allocation4 + $0x780] sm:$0xff]
    %v7304 = vld [vmem:[#allocation4 + $0x788] sm:$0xff]
    %v7305 = vld [vmem:[#allocation4 + $0x790] sm:$0xff]
    %v7306 = vld [vmem:[#allocation4 + $0x798] sm:$0xff]
    %v7307 = vld [vmem:[#allocation4 + $0x7a0] sm:$0xff]
    %v7308 = vld [vmem:[#allocation4 + $0x7a8] sm:$0xff]
    %v7309 = vld [vmem:[#allocation4 + $0x7b0] sm:$0xff]
    %v7310 = vld [vmem:[#allocation4 + $0x7b8] sm:$0xff]
    %v7311 = vld [vmem:[#allocation4 + $0x7c0] sm:$0xff]
    %v7312 = vld [vmem:[#allocation4 + $0x7c8] sm:$0xff]
    %v7313 = vld [vmem:[#allocation4 + $0x7d0] sm:$0xff]
    %v7314 = vld [vmem:[#allocation4 + $0x7d8] sm:$0xff]
    %v7315 = vld [vmem:[#allocation4 + $0x7e0] sm:$0xff]
    %v7316 = vld [vmem:[#allocation4 + $0x7e8] sm:$0xff]
    %v7317 = vld [vmem:[#allocation4 + $0x7f0] sm:$0xff]
    %v7318 = vld [vmem:[#allocation4 + $0x7f8] sm:$0xff]
    %v7319 = vld [vmem:[#allocation4 + $0x800] sm:$0xff]
    %v7320 = vld [vmem:[#allocation4 + $0x808] sm:$0xff]
    %v7321 = vld [vmem:[#allocation4 + $0x810] sm:$0xff]
    %v7322 = vld [vmem:[#allocation4 + $0x818] sm:$0xff]
    %v7323 = vld [vmem:[#allocation4 + $0x820] sm:$0xff]
    %v7324 = vld [vmem:[#allocation4 + $0x828] sm:$0xff]
    %v7325 = vld [vmem:[#allocation4 + $0x830] sm:$0xff]
    %v7326 = vld [vmem:[#allocation4 + $0x838] sm:$0xff]
    %v7327 = vld [vmem:[#allocation4 + $0x840] sm:$0xff]
    %v7328 = vld [vmem:[#allocation4 + $0x848] sm:$0xff]
    %v7329 = vld [vmem:[#allocation4 + $0x850] sm:$0xff]
    %v7330 = vld [vmem:[#allocation4 + $0x858] sm:$0xff]
    %v7331 = vld [vmem:[#allocation4 + $0x860] sm:$0xff]
    %v7332 = vld [vmem:[#allocation4 + $0x868] sm:$0xff]
    %v7333 = vld [vmem:[#allocation4 + $0x870] sm:$0xff]
    %v7334 = vld [vmem:[#allocation4 + $0x878] sm:$0xff]
    %v7335 = vld [vmem:[#allocation4 + $0x880] sm:$0xff]
    %v7336 = vld [vmem:[#allocation4 + $0x888] sm:$0xff]
    %v7337 = vld [vmem:[#allocation4 + $0x890] sm:$0xff]
    %v7338 = vld [vmem:[#allocation4 + $0x898] sm:$0xff]
    %v7339 = vld [vmem:[#allocation4 + $0x8a0] sm:$0xff]
    %v7340 = vld [vmem:[#allocation4 + $0x8a8] sm:$0xff]
    %v7341 = vld [vmem:[#allocation4 + $0x8b0] sm:$0xff]
    %v7342 = vld [vmem:[#allocation4 + $0x8b8] sm:$0xff]
    %v7343 = vld [vmem:[#allocation4 + $0x8c0] sm:$0xff]
    %v7344 = vld [vmem:[#allocation4 + $0x8c8] sm:$0xff]
    %v7345 = vld [vmem:[#allocation4 + $0x8d0] sm:$0xff]
    %v7346 = vld [vmem:[#allocation4 + $0x8d8] sm:$0xff]
    %v7347 = vld [vmem:[#allocation4 + $0x8e0] sm:$0xff]
    %v7348 = vld [vmem:[#allocation4 + $0x8e8] sm:$0xff]
    %v7349 = vld [vmem:[#allocation4 + $0x8f0] sm:$0xff]
    %v7350 = vld [vmem:[#allocation4 + $0x8f8] sm:$0xff]
    %v7351 = vld [vmem:[#allocation4 + $0x900] sm:$0xff]
    %v7352 = vld [vmem:[#allocation4 + $0x908] sm:$0xff]
    %v7353 = vld [vmem:[#allocation4 + $0x910] sm:$0xff]
    %v7354 = vld [vmem:[#allocation4 + $0x918] sm:$0xff]
    %v7355 = vld [vmem:[#allocation4 + $0x920] sm:$0xff]
    %v7356 = vld [vmem:[#allocation4 + $0x928] sm:$0xff]
    %v7357 = vld [vmem:[#allocation4 + $0x930] sm:$0xff]
    %v7358 = vld [vmem:[#allocation4 + $0x938] sm:$0xff]
    %v7359 = vld [vmem:[#allocation4 + $0x940] sm:$0xff]
    %v7360 = vld [vmem:[#allocation4 + $0x948] sm:$0xff]
    %v7361 = vld [vmem:[#allocation4 + $0x950] sm:$0xff]
    %v7362 = vld [vmem:[#allocation4 + $0x958] sm:$0xff]
    %v7363 = vld [vmem:[#allocation4 + $0x960] sm:$0xff]
    %v7364 = vld [vmem:[#allocation4 + $0x968] sm:$0xff]
    %v7365 = vld [vmem:[#allocation4 + $0x970] sm:$0xff]
    %v7366 = vld [vmem:[#allocation4 + $0x978] sm:$0xff]
    %v7367 = vld [vmem:[#allocation4 + $0x980] sm:$0xff]
    %v7368 = vld [vmem:[#allocation4 + $0x988] sm:$0xff]
    %v7369 = vld [vmem:[#allocation4 + $0x990] sm:$0xff]
    %v7370 = vld [vmem:[#allocation4 + $0x998] sm:$0xff]
    %v7371 = vld [vmem:[#allocation4 + $0x9a0] sm:$0xff]
    %v7372 = vld [vmem:[#allocation4 + $0x9a8] sm:$0xff]
    %v7373 = vld [vmem:[#allocation4 + $0x9b0] sm:$0xff]
    %v7374 = vld [vmem:[#allocation4 + $0x9b8] sm:$0xff]
    %v7375 = vld [vmem:[#allocation4 + $0x9c0] sm:$0xff]
    %v7376 = vld [vmem:[#allocation4 + $0x9c8] sm:$0xff]
    %v7377 = vld [vmem:[#allocation4 + $0x9d0] sm:$0xff]
    %v7378 = vld [vmem:[#allocation4 + $0x9d8] sm:$0xff]
    %v7379 = vld [vmem:[#allocation4 + $0x9e0] sm:$0xff]
    %v7380 = vld [vmem:[#allocation4 + $0x9e8] sm:$0xff]
    %v7381 = vld [vmem:[#allocation4 + $0x9f0] sm:$0xff]
    %v7382 = vld [vmem:[#allocation4 + $0x9f8] sm:$0xff]
    %v7383 = vld [vmem:[#allocation4 + $0xa00] sm:$0xff]
    %v7384 = vld [vmem:[#allocation4 + $0xa08] sm:$0xff]
    %v7385 = vld [vmem:[#allocation4 + $0xa10] sm:$0xff]
    %v7386 = vld [vmem:[#allocation4 + $0xa18] sm:$0xff]
    %v7387 = vld [vmem:[#allocation4 + $0xa20] sm:$0xff]
    %v7388 = vld [vmem:[#allocation4 + $0xa28] sm:$0xff]
    %v7389 = vld [vmem:[#allocation4 + $0xa30] sm:$0xff]
    %v7390 = vld [vmem:[#allocation4 + $0xa38] sm:$0xff]
    %v7391 = vld [vmem:[#allocation4 + $0xa40] sm:$0xff]
    %v7392 = vld [vmem:[#allocation4 + $0xa48] sm:$0xff]
    %v7393 = vld [vmem:[#allocation4 + $0xa50] sm:$0xff]
    %v7394 = vld [vmem:[#allocation4 + $0xa58] sm:$0xff]
    %v7395 = vld [vmem:[#allocation4 + $0xa60] sm:$0xff]
    %v7396 = vld [vmem:[#allocation4 + $0xa68] sm:$0xff]
    %v7397 = vld [vmem:[#allocation4 + $0xa70] sm:$0xff]
    %v7398 = vld [vmem:[#allocation4 + $0xa78] sm:$0xff]
    %v7399 = vld [vmem:[#allocation4 + $0xa80] sm:$0xff]
    %v7400 = vld [vmem:[#allocation4 + $0xa88] sm:$0xff]
    %v7401 = vld [vmem:[#allocation4 + $0xa90] sm:$0xff]
    %v7402 = vld [vmem:[#allocation4 + $0xa98] sm:$0xff]
    %v7403 = vld [vmem:[#allocation4 + $0xaa0] sm:$0xff]
    %v7404 = vld [vmem:[#allocation4 + $0xaa8] sm:$0xff]
    %v7405 = vld [vmem:[#allocation4 + $0xab0] sm:$0xff]
    %v7406 = vld [vmem:[#allocation4 + $0xab8] sm:$0xff]
    %v7407 = vld [vmem:[#allocation4 + $0xac0] sm:$0xff]
    %v7408 = vld [vmem:[#allocation4 + $0xac8] sm:$0xff]
    %v7409 = vld [vmem:[#allocation4 + $0xad0] sm:$0xff]
    %v7410 = vld [vmem:[#allocation4 + $0xad8] sm:$0xff]
    %v7411 = vld [vmem:[#allocation4 + $0xae0] sm:$0xff]
    %v7412 = vld [vmem:[#allocation4 + $0xae8] sm:$0xff]
    %v7413 = vld [vmem:[#allocation4 + $0xaf0] sm:$0xff]
    %v7414 = vld [vmem:[#allocation4 + $0xaf8] sm:$0xff]
    %v7415 = vld [vmem:[#allocation4 + $0xb00] sm:$0xff]
    %v7416 = vld [vmem:[#allocation4 + $0xb08] sm:$0xff]
    %v7417 = vld [vmem:[#allocation4 + $0xb10] sm:$0xff]
    %v7418 = vld [vmem:[#allocation4 + $0xb18] sm:$0xff]
    %v7419 = vld [vmem:[#allocation4 + $0xb20] sm:$0xff]
    %v7420 = vld [vmem:[#allocation4 + $0xb28] sm:$0xff]
    %v7421 = vld [vmem:[#allocation4 + $0xb30] sm:$0xff]
    %v7422 = vld [vmem:[#allocation4 + $0xb38] sm:$0xff]
    %v7423 = vld [vmem:[#allocation4 + $0xb40] sm:$0xff]
    %v7424 = vld [vmem:[#allocation4 + $0xb48] sm:$0xff]
    %v7425 = vld [vmem:[#allocation4 + $0xb50] sm:$0xff]
    %v7426 = vld [vmem:[#allocation4 + $0xb58] sm:$0xff]
    %v7427 = vld [vmem:[#allocation4 + $0xb60] sm:$0xff]
    %v7428 = vld [vmem:[#allocation4 + $0xb68] sm:$0xff]
    %v7429 = vld [vmem:[#allocation4 + $0xb70] sm:$0xff]
    %v7430 = vld [vmem:[#allocation4 + $0xb78] sm:$0xff]
    %v7431 = vld [vmem:[#allocation4 + $0xb80] sm:$0xff]
    %v7432 = vld [vmem:[#allocation4 + $0xb88] sm:$0xff]
    %v7433 = vld [vmem:[#allocation4 + $0xb90] sm:$0xff]
    %v7434 = vld [vmem:[#allocation4 + $0xb98] sm:$0xff]
    %v7435 = vld [vmem:[#allocation4 + $0xba0] sm:$0xff]
    %v7436 = vld [vmem:[#allocation4 + $0xba8] sm:$0xff]
    %v7437 = vld [vmem:[#allocation4 + $0xbb0] sm:$0xff]
    %v7438 = vld [vmem:[#allocation4 + $0xbb8] sm:$0xff]
    %v7439 = vld [vmem:[#allocation4 + $0xbc0] sm:$0xff]
    %v7440 = vld [vmem:[#allocation4 + $0xbc8] sm:$0xff]
    %v7441 = vld [vmem:[#allocation4 + $0xbd0] sm:$0xff]
    %v7442 = vld [vmem:[#allocation4 + $0xbd8] sm:$0xff]
    %v7443 = vld [vmem:[#allocation4 + $0xbe0] sm:$0xff]
    %v7444 = vld [vmem:[#allocation4 + $0xbe8] sm:$0xff]
    %v7445 = vld [vmem:[#allocation4 + $0xbf0] sm:$0xff]
    %v7446 = vld [vmem:[#allocation4 + $0xbf8] sm:$0xff]
    %v7447 = vld [vmem:[#allocation4 + $0xc00] sm:$0xff]
    %v7448 = vld [vmem:[#allocation4 + $0xc08] sm:$0xff]
    %v7449 = vld [vmem:[#allocation4 + $0xc10] sm:$0xff]
    %v7450 = vld [vmem:[#allocation4 + $0xc18] sm:$0xff]
    %v7451 = vld [vmem:[#allocation4 + $0xc20] sm:$0xff]
    %v7452 = vld [vmem:[#allocation4 + $0xc28] sm:$0xff]
    %v7453 = vld [vmem:[#allocation4 + $0xc30] sm:$0xff]
    %v7454 = vld [vmem:[#allocation4 + $0xc38] sm:$0xff]
    %v7455 = vld [vmem:[#allocation4 + $0xc40] sm:$0xff]
    %v7456 = vld [vmem:[#allocation4 + $0xc48] sm:$0xff]
    %v7457 = vld [vmem:[#allocation4 + $0xc50] sm:$0xff]
    %v7458 = vld [vmem:[#allocation4 + $0xc58] sm:$0xff]
    %v7459 = vld [vmem:[#allocation4 + $0xc60] sm:$0xff]
    %v7460 = vld [vmem:[#allocation4 + $0xc68] sm:$0xff]
    %v7461 = vld [vmem:[#allocation4 + $0xc70] sm:$0xff]
    %v7462 = vld [vmem:[#allocation4 + $0xc78] sm:$0xff]
    %v7463 = vld [vmem:[#allocation4 + $0xc80] sm:$0xff]
    %v7464 = vld [vmem:[#allocation4 + $0xc88] sm:$0xff]
    %v7465 = vld [vmem:[#allocation4 + $0xc90] sm:$0xff]
    %v7466 = vld [vmem:[#allocation4 + $0xc98] sm:$0xff]
    %v7467 = vld [vmem:[#allocation4 + $0xca0] sm:$0xff]
    %v7468 = vld [vmem:[#allocation4 + $0xca8] sm:$0xff]
    %v7469 = vld [vmem:[#allocation4 + $0xcb0] sm:$0xff]
    %v7470 = vld [vmem:[#allocation4 + $0xcb8] sm:$0xff]
    %v7471 = vld [vmem:[#allocation4 + $0xcc0] sm:$0xff]
    %v7472 = vld [vmem:[#allocation4 + $0xcc8] sm:$0xff]
    %v7473 = vld [vmem:[#allocation4 + $0xcd0] sm:$0xff]
    %v7474 = vld [vmem:[#allocation4 + $0xcd8] sm:$0xff]
    %v7475 = vld [vmem:[#allocation4 + $0xce0] sm:$0xff]
    %v7476 = vld [vmem:[#allocation4 + $0xce8] sm:$0xff]
    %v7477 = vld [vmem:[#allocation4 + $0xcf0] sm:$0xff]
    %v7478 = vld [vmem:[#allocation4 + $0xcf8] sm:$0xff]
    %v7479 = vld [vmem:[#allocation4 + $0xd00] sm:$0xff]
    %v7480 = vld [vmem:[#allocation4 + $0xd08] sm:$0xff]
    %v7481 = vld [vmem:[#allocation4 + $0xd10] sm:$0xff]
    %v7482 = vld [vmem:[#allocation4 + $0xd18] sm:$0xff]
    %v7483 = vld [vmem:[#allocation4 + $0xd20] sm:$0xff]
    %v7484 = vld [vmem:[#allocation4 + $0xd28] sm:$0xff]
    %v7485 = vld [vmem:[#allocation4 + $0xd30] sm:$0xff]
    %v7486 = vld [vmem:[#allocation4 + $0xd38] sm:$0xff]
    %v7487 = vld [vmem:[#allocation4 + $0xd40] sm:$0xff]
    %v7488 = vld [vmem:[#allocation4 + $0xd48] sm:$0xff]
    %v7489 = vld [vmem:[#allocation4 + $0xd50] sm:$0xff]
    %v7490 = vld [vmem:[#allocation4 + $0xd58] sm:$0xff]
    %v7491 = vld [vmem:[#allocation4 + $0xd60] sm:$0xff]
    %v7492 = vld [vmem:[#allocation4 + $0xd68] sm:$0xff]
    %v7493 = vld [vmem:[#allocation4 + $0xd70] sm:$0xff]
    %v7494 = vld [vmem:[#allocation4 + $0xd78] sm:$0xff]
    %v7495 = vld [vmem:[#allocation4 + $0xd80] sm:$0xff]
    %v7496 = vld [vmem:[#allocation4 + $0xd88] sm:$0xff]
    %v7497 = vld [vmem:[#allocation4 + $0xd90] sm:$0xff]
    %v7498 = vld [vmem:[#allocation4 + $0xd98] sm:$0xff]
    %v7499 = vld [vmem:[#allocation4 + $0xda0] sm:$0xff]
    %v7500 = vld [vmem:[#allocation4 + $0xda8] sm:$0xff]
    %v7501 = vld [vmem:[#allocation4 + $0xdb0] sm:$0xff]
    %v7502 = vld [vmem:[#allocation4 + $0xdb8] sm:$0xff]
    %v7503 = vld [vmem:[#allocation4 + $0xdc0] sm:$0xff]
    %v7504 = vld [vmem:[#allocation4 + $0xdc8] sm:$0xff]
    %v7505 = vld [vmem:[#allocation4 + $0xdd0] sm:$0xff]
    %v7506 = vld [vmem:[#allocation4 + $0xdd8] sm:$0xff]
    %v7507 = vld [vmem:[#allocation4 + $0xde0] sm:$0xff]
    %v7508 = vld [vmem:[#allocation4 + $0xde8] sm:$0xff]
    %v7509 = vld [vmem:[#allocation4 + $0xdf0] sm:$0xff]
    %v7510 = vld [vmem:[#allocation4 + $0xdf8] sm:$0xff]
    %v7511 = vld [vmem:[#allocation4 + $0xe00] sm:$0xff]
    %v7512 = vld [vmem:[#allocation4 + $0xe08] sm:$0xff]
    %v7513 = vld [vmem:[#allocation4 + $0xe10] sm:$0xff]
    %v7514 = vld [vmem:[#allocation4 + $0xe18] sm:$0xff]
    %v7515 = vld [vmem:[#allocation4 + $0xe20] sm:$0xff]
    %v7516 = vld [vmem:[#allocation4 + $0xe28] sm:$0xff]
    %v7517 = vld [vmem:[#allocation4 + $0xe30] sm:$0xff]
    %v7518 = vld [vmem:[#allocation4 + $0xe38] sm:$0xff]
    %v7519 = vld [vmem:[#allocation4 + $0xe40] sm:$0xff]
    %v7520 = vld [vmem:[#allocation4 + $0xe48] sm:$0xff]
    %v7521 = vld [vmem:[#allocation4 + $0xe50] sm:$0xff]
    %v7522 = vld [vmem:[#allocation4 + $0xe58] sm:$0xff]
    %v7523 = vld [vmem:[#allocation4 + $0xe60] sm:$0xff]
    %v7524 = vld [vmem:[#allocation4 + $0xe68] sm:$0xff]
    %v7525 = vld [vmem:[#allocation4 + $0xe70] sm:$0xff]
    %v7526 = vld [vmem:[#allocation4 + $0xe78] sm:$0xff]
    %v7527 = vld [vmem:[#allocation4 + $0xe80] sm:$0xff]
    %v7528 = vld [vmem:[#allocation4 + $0xe88] sm:$0xff]
    %v7529 = vld [vmem:[#allocation4 + $0xe90] sm:$0xff]
    %v7530 = vld [vmem:[#allocation4 + $0xe98] sm:$0xff]
    %v7531 = vld [vmem:[#allocation4 + $0xea0] sm:$0xff]
    %v7532 = vld [vmem:[#allocation4 + $0xea8] sm:$0xff]
    %v7533 = vld [vmem:[#allocation4 + $0xeb0] sm:$0xff]
    %v7534 = vld [vmem:[#allocation4 + $0xeb8] sm:$0xff]
    %v7535 = vld [vmem:[#allocation4 + $0xec0] sm:$0xff]
    %v7536 = vld [vmem:[#allocation4 + $0xec8] sm:$0xff]
    %v7537 = vld [vmem:[#allocation4 + $0xed0] sm:$0xff]
    %v7538 = vld [vmem:[#allocation4 + $0xed8] sm:$0xff]
    %v7539 = vld [vmem:[#allocation4 + $0xee0] sm:$0xff]
    %v7540 = vld [vmem:[#allocation4 + $0xee8] sm:$0xff]
    %v7541 = vld [vmem:[#allocation4 + $0xef0] sm:$0xff]
    %v7542 = vld [vmem:[#allocation4 + $0xef8] sm:$0xff]
    %v7543 = vld [vmem:[#allocation4 + $0xf00] sm:$0xff]
    %v7544 = vld [vmem:[#allocation4 + $0xf08] sm:$0xff]
    %v7545 = vld [vmem:[#allocation4 + $0xf10] sm:$0xff]
    %v7546 = vld [vmem:[#allocation4 + $0xf18] sm:$0xff]
    %v7547 = vld [vmem:[#allocation4 + $0xf20] sm:$0xff]
    %v7548 = vld [vmem:[#allocation4 + $0xf28] sm:$0xff]
    %v7549 = vld [vmem:[#allocation4 + $0xf30] sm:$0xff]
    %v7550 = vld [vmem:[#allocation4 + $0xf38] sm:$0xff]
    %v7551 = vld [vmem:[#allocation4 + $0xf40] sm:$0xff]
    %v7552 = vld [vmem:[#allocation4 + $0xf48] sm:$0xff]
    %v7553 = vld [vmem:[#allocation4 + $0xf50] sm:$0xff]
    %v7554 = vld [vmem:[#allocation4 + $0xf58] sm:$0xff]
    %v7555 = vld [vmem:[#allocation4 + $0xf60] sm:$0xff]
    %v7556 = vld [vmem:[#allocation4 + $0xf68] sm:$0xff]
    %v7557 = vld [vmem:[#allocation4 + $0xf70] sm:$0xff]
    %v7558 = vld [vmem:[#allocation4 + $0xf78] sm:$0xff]
    %v7559 = vld [vmem:[#allocation4 + $0xf80] sm:$0xff]
    %v7560 = vld [vmem:[#allocation4 + $0xf88] sm:$0xff]
    %v7561 = vld [vmem:[#allocation4 + $0xf90] sm:$0xff]
    %v7562 = vld [vmem:[#allocation4 + $0xf98] sm:$0xff]
    %v7563 = vld [vmem:[#allocation4 + $0xfa0] sm:$0xff]
    %v7564 = vld [vmem:[#allocation4 + $0xfa8] sm:$0xff]
    %v7565 = vld [vmem:[#allocation4 + $0xfb0] sm:$0xff]
    %v7566 = vld [vmem:[#allocation4 + $0xfb8] sm:$0xff]
    %v7567 = vld [vmem:[#allocation4 + $0xfc0] sm:$0xff]
    %v7568 = vld [vmem:[#allocation4 + $0xfc8] sm:$0xff]
    %v7569 = vld [vmem:[#allocation4 + $0xfd0] sm:$0xff]
    %v7570 = vld [vmem:[#allocation4 + $0xfd8] sm:$0xff]
    %v7571 = vld [vmem:[#allocation4 + $0xfe0] sm:$0xff]
    %v7572 = vld [vmem:[#allocation4 + $0xfe8] sm:$0xff]
    %v7573 = vld [vmem:[#allocation4 + $0xff0] sm:$0xff]
    %v7574 = vld [vmem:[#allocation4 + $0xff8] sm:$0xff]
    %v7575 = vunpack.c.l.bf16 %v7063
    %v7576 = vunpack.c.l.bf16 %v7064
    %v7577 = vunpack.c.l.bf16 %v7065
    %v7578 = vunpack.c.l.bf16 %v7066
    %v7579 = vunpack.c.l.bf16 %v7067
    %v7580 = vunpack.c.l.bf16 %v7068
    %v7581 = vunpack.c.l.bf16 %v7069
    %v7582 = vunpack.c.l.bf16 %v7070
    %v7583 = vunpack.c.l.bf16 %v7071
    %v7584 = vunpack.c.l.bf16 %v7072
    %v7585 = vunpack.c.l.bf16 %v7073
    %v7586 = vunpack.c.l.bf16 %v7074
    %v7587 = vunpack.c.l.bf16 %v7075
    %v7588 = vunpack.c.l.bf16 %v7076
    %v7589 = vunpack.c.l.bf16 %v7077
    %v7590 = vunpack.c.l.bf16 %v7078
    %v7591 = vunpack.c.l.bf16 %v7079
    %v7592 = vunpack.c.l.bf16 %v7080
    %v7593 = vunpack.c.l.bf16 %v7081
    %v7594 = vunpack.c.l.bf16 %v7082
    %v7595 = vunpack.c.l.bf16 %v7083
    %v7596 = vunpack.c.l.bf16 %v7084
    %v7597 = vunpack.c.l.bf16 %v7085
    %v7598 = vunpack.c.l.bf16 %v7086
    %v7599 = vunpack.c.l.bf16 %v7087
    %v7600 = vunpack.c.l.bf16 %v7088
    %v7601 = vunpack.c.l.bf16 %v7089
    %v7602 = vunpack.c.l.bf16 %v7090
    %v7603 = vunpack.c.l.bf16 %v7091
    %v7604 = vunpack.c.l.bf16 %v7092
    %v7605 = vunpack.c.l.bf16 %v7093
    %v7606 = vunpack.c.l.bf16 %v7094
    %v7607 = vunpack.c.h.bf16 %v7063
    %v7608 = vunpack.c.h.bf16 %v7064
    %v7609 = vunpack.c.h.bf16 %v7065
    %v7610 = vunpack.c.h.bf16 %v7066
    %v7611 = vunpack.c.h.bf16 %v7067
    %v7612 = vunpack.c.h.bf16 %v7068
    %v7613 = vunpack.c.h.bf16 %v7069
    %v7614 = vunpack.c.h.bf16 %v7070
    %v7615 = vunpack.c.h.bf16 %v7071
    %v7616 = vunpack.c.h.bf16 %v7072
    %v7617 = vunpack.c.h.bf16 %v7073
    %v7618 = vunpack.c.h.bf16 %v7074
    %v7619 = vunpack.c.h.bf16 %v7075
    %v7620 = vunpack.c.h.bf16 %v7076
    %v7621 = vunpack.c.h.bf16 %v7077
    %v7622 = vunpack.c.h.bf16 %v7078
    %v7623 = vunpack.c.h.bf16 %v7079
    %v7624 = vunpack.c.h.bf16 %v7080
    %v7625 = vunpack.c.h.bf16 %v7081
    %v7626 = vunpack.c.h.bf16 %v7082
    %v7627 = vunpack.c.h.bf16 %v7083
    %v7628 = vunpack.c.h.bf16 %v7084
    %v7629 = vunpack.c.h.bf16 %v7085
    %v7630 = vunpack.c.h.bf16 %v7086
    %v7631 = vunpack.c.h.bf16 %v7087
    %v7632 = vunpack.c.h.bf16 %v7088
    %v7633 = vunpack.c.h.bf16 %v7089
    %v7634 = vunpack.c.h.bf16 %v7090
    %v7635 = vunpack.c.h.bf16 %v7091
    %v7636 = vunpack.c.h.bf16 %v7092
    %v7637 = vunpack.c.h.bf16 %v7093
    %v7638 = vunpack.c.h.bf16 %v7094
    %v7639 = vunpack.c.l.bf16 %v7095
    %v7640 = vunpack.c.l.bf16 %v7096
    %v7641 = vunpack.c.l.bf16 %v7097
    %v7642 = vunpack.c.l.bf16 %v7098
    %v7643 = vunpack.c.l.bf16 %v7099
    %v7644 = vunpack.c.l.bf16 %v7100
    %v7645 = vunpack.c.l.bf16 %v7101
    %v7646 = vunpack.c.l.bf16 %v7102
    %v7647 = vunpack.c.l.bf16 %v7103
    %v7648 = vunpack.c.l.bf16 %v7104
    %v7649 = vunpack.c.l.bf16 %v7105
    %v7650 = vunpack.c.l.bf16 %v7106
    %v7651 = vunpack.c.l.bf16 %v7107
    %v7652 = vunpack.c.l.bf16 %v7108
    %v7653 = vunpack.c.l.bf16 %v7109
    %v7654 = vunpack.c.l.bf16 %v7110
    %v7655 = vunpack.c.l.bf16 %v7111
    %v7656 = vunpack.c.l.bf16 %v7112
    %v7657 = vunpack.c.l.bf16 %v7113
    %v7658 = vunpack.c.l.bf16 %v7114
    %v7659 = vunpack.c.l.bf16 %v7115
    %v7660 = vunpack.c.l.bf16 %v7116
    %v7661 = vunpack.c.l.bf16 %v7117
    %v7662 = vunpack.c.l.bf16 %v7118
    %v7663 = vunpack.c.l.bf16 %v7119
    %v7664 = vunpack.c.l.bf16 %v7120
    %v7665 = vunpack.c.l.bf16 %v7121
    %v7666 = vunpack.c.l.bf16 %v7122
    %v7667 = vunpack.c.l.bf16 %v7123
    %v7668 = vunpack.c.l.bf16 %v7124
    %v7669 = vunpack.c.l.bf16 %v7125
    %v7670 = vunpack.c.l.bf16 %v7126
    %v7671 = vunpack.c.h.bf16 %v7095
    %v7672 = vunpack.c.h.bf16 %v7096
    %v7673 = vunpack.c.h.bf16 %v7097
    %v7674 = vunpack.c.h.bf16 %v7098
    %v7675 = vunpack.c.h.bf16 %v7099
    %v7676 = vunpack.c.h.bf16 %v7100
    %v7677 = vunpack.c.h.bf16 %v7101
    %v7678 = vunpack.c.h.bf16 %v7102
    %v7679 = vunpack.c.h.bf16 %v7103
    %v7680 = vunpack.c.h.bf16 %v7104
    %v7681 = vunpack.c.h.bf16 %v7105
    %v7682 = vunpack.c.h.bf16 %v7106
    %v7683 = vunpack.c.h.bf16 %v7107
    %v7684 = vunpack.c.h.bf16 %v7108
    %v7685 = vunpack.c.h.bf16 %v7109
    %v7686 = vunpack.c.h.bf16 %v7110
    %v7687 = vunpack.c.h.bf16 %v7111
    %v7688 = vunpack.c.h.bf16 %v7112
    %v7689 = vunpack.c.h.bf16 %v7113
    %v7690 = vunpack.c.h.bf16 %v7114
    %v7691 = vunpack.c.h.bf16 %v7115
    %v7692 = vunpack.c.h.bf16 %v7116
    %v7693 = vunpack.c.h.bf16 %v7117
    %v7694 = vunpack.c.h.bf16 %v7118
    %v7695 = vunpack.c.h.bf16 %v7119
    %v7696 = vunpack.c.h.bf16 %v7120
    %v7697 = vunpack.c.h.bf16 %v7121
    %v7698 = vunpack.c.h.bf16 %v7122
    %v7699 = vunpack.c.h.bf16 %v7123
    %v7700 = vunpack.c.h.bf16 %v7124
    %v7701 = vunpack.c.h.bf16 %v7125
    %v7702 = vunpack.c.h.bf16 %v7126
    %v7703 = vunpack.c.l.bf16 %v7127
    %v7704 = vunpack.c.l.bf16 %v7128
    %v7705 = vunpack.c.l.bf16 %v7129
    %v7706 = vunpack.c.l.bf16 %v7130
    %v7707 = vunpack.c.l.bf16 %v7131
    %v7708 = vunpack.c.l.bf16 %v7132
    %v7709 = vunpack.c.l.bf16 %v7133
    %v7710 = vunpack.c.l.bf16 %v7134
    %v7711 = vunpack.c.l.bf16 %v7135
    %v7712 = vunpack.c.l.bf16 %v7136
    %v7713 = vunpack.c.l.bf16 %v7137
    %v7714 = vunpack.c.l.bf16 %v7138
    %v7715 = vunpack.c.l.bf16 %v7139
    %v7716 = vunpack.c.l.bf16 %v7140
    %v7717 = vunpack.c.l.bf16 %v7141
    %v7718 = vunpack.c.l.bf16 %v7142
    %v7719 = vunpack.c.l.bf16 %v7143
    %v7720 = vunpack.c.l.bf16 %v7144
    %v7721 = vunpack.c.l.bf16 %v7145
    %v7722 = vunpack.c.l.bf16 %v7146
    %v7723 = vunpack.c.l.bf16 %v7147
    %v7724 = vunpack.c.l.bf16 %v7148
    %v7725 = vunpack.c.l.bf16 %v7149
    %v7726 = vunpack.c.l.bf16 %v7150
    %v7727 = vunpack.c.l.bf16 %v7151
    %v7728 = vunpack.c.l.bf16 %v7152
    %v7729 = vunpack.c.l.bf16 %v7153
    %v7730 = vunpack.c.l.bf16 %v7154
    %v7731 = vunpack.c.l.bf16 %v7155
    %v7732 = vunpack.c.l.bf16 %v7156
    %v7733 = vunpack.c.l.bf16 %v7157
    %v7734 = vunpack.c.l.bf16 %v7158
    %v7735 = vunpack.c.h.bf16 %v7127
    %v7736 = vunpack.c.h.bf16 %v7128
    %v7737 = vunpack.c.h.bf16 %v7129
    %v7738 = vunpack.c.h.bf16 %v7130
    %v7739 = vunpack.c.h.bf16 %v7131
    %v7740 = vunpack.c.h.bf16 %v7132
    %v7741 = vunpack.c.h.bf16 %v7133
    %v7742 = vunpack.c.h.bf16 %v7134
    %v7743 = vunpack.c.h.bf16 %v7135
    %v7744 = vunpack.c.h.bf16 %v7136
    %v7745 = vunpack.c.h.bf16 %v7137
    %v7746 = vunpack.c.h.bf16 %v7138
    %v7747 = vunpack.c.h.bf16 %v7139
    %v7748 = vunpack.c.h.bf16 %v7140
    %v7749 = vunpack.c.h.bf16 %v7141
    %v7750 = vunpack.c.h.bf16 %v7142
    %v7751 = vunpack.c.h.bf16 %v7143
    %v7752 = vunpack.c.h.bf16 %v7144
    %v7753 = vunpack.c.h.bf16 %v7145
    %v7754 = vunpack.c.h.bf16 %v7146
    %v7755 = vunpack.c.h.bf16 %v7147
    %v7756 = vunpack.c.h.bf16 %v7148
    %v7757 = vunpack.c.h.bf16 %v7149
    %v7758 = vunpack.c.h.bf16 %v7150
    %v7759 = vunpack.c.h.bf16 %v7151
    %v7760 = vunpack.c.h.bf16 %v7152
    %v7761 = vunpack.c.h.bf16 %v7153
    %v7762 = vunpack.c.h.bf16 %v7154
    %v7763 = vunpack.c.h.bf16 %v7155
    %v7764 = vunpack.c.h.bf16 %v7156
    %v7765 = vunpack.c.h.bf16 %v7157
    %v7766 = vunpack.c.h.bf16 %v7158
    %v7767 = vunpack.c.l.bf16 %v7159
    %v7768 = vunpack.c.l.bf16 %v7160
    %v7769 = vunpack.c.l.bf16 %v7161
    %v7770 = vunpack.c.l.bf16 %v7162
    %v7771 = vunpack.c.l.bf16 %v7163
    %v7772 = vunpack.c.l.bf16 %v7164
    %v7773 = vunpack.c.l.bf16 %v7165
    %v7774 = vunpack.c.l.bf16 %v7166
    %v7775 = vunpack.c.l.bf16 %v7167
    %v7776 = vunpack.c.l.bf16 %v7168
    %v7777 = vunpack.c.l.bf16 %v7169
    %v7778 = vunpack.c.l.bf16 %v7170
    %v7779 = vunpack.c.l.bf16 %v7171
    %v7780 = vunpack.c.l.bf16 %v7172
    %v7781 = vunpack.c.l.bf16 %v7173
    %v7782 = vunpack.c.l.bf16 %v7174
    %v7783 = vunpack.c.l.bf16 %v7175
    %v7784 = vunpack.c.l.bf16 %v7176
    %v7785 = vunpack.c.l.bf16 %v7177
    %v7786 = vunpack.c.l.bf16 %v7178
    %v7787 = vunpack.c.l.bf16 %v7179
    %v7788 = vunpack.c.l.bf16 %v7180
    %v7789 = vunpack.c.l.bf16 %v7181
    %v7790 = vunpack.c.l.bf16 %v7182
    %v7791 = vunpack.c.l.bf16 %v7183
    %v7792 = vunpack.c.l.bf16 %v7184
    %v7793 = vunpack.c.l.bf16 %v7185
    %v7794 = vunpack.c.l.bf16 %v7186
    %v7795 = vunpack.c.l.bf16 %v7187
    %v7796 = vunpack.c.l.bf16 %v7188
    %v7797 = vunpack.c.l.bf16 %v7189
    %v7798 = vunpack.c.l.bf16 %v7190
    %v7799 = vunpack.c.h.bf16 %v7159
    %v7800 = vunpack.c.h.bf16 %v7160
    %v7801 = vunpack.c.h.bf16 %v7161
    %v7802 = vunpack.c.h.bf16 %v7162
    %v7803 = vunpack.c.h.bf16 %v7163
    %v7804 = vunpack.c.h.bf16 %v7164
    %v7805 = vunpack.c.h.bf16 %v7165
    %v7806 = vunpack.c.h.bf16 %v7166
    %v7807 = vunpack.c.h.bf16 %v7167
    %v7808 = vunpack.c.h.bf16 %v7168
    %v7809 = vunpack.c.h.bf16 %v7169
    %v7810 = vunpack.c.h.bf16 %v7170
    %v7811 = vunpack.c.h.bf16 %v7171
    %v7812 = vunpack.c.h.bf16 %v7172
    %v7813 = vunpack.c.h.bf16 %v7173
    %v7814 = vunpack.c.h.bf16 %v7174
    %v7815 = vunpack.c.h.bf16 %v7175
    %v7816 = vunpack.c.h.bf16 %v7176
    %v7817 = vunpack.c.h.bf16 %v7177
    %v7818 = vunpack.c.h.bf16 %v7178
    %v7819 = vunpack.c.h.bf16 %v7179
    %v7820 = vunpack.c.h.bf16 %v7180
    %v7821 = vunpack.c.h.bf16 %v7181
    %v7822 = vunpack.c.h.bf16 %v7182
    %v7823 = vunpack.c.h.bf16 %v7183
    %v7824 = vunpack.c.h.bf16 %v7184
    %v7825 = vunpack.c.h.bf16 %v7185
    %v7826 = vunpack.c.h.bf16 %v7186
    %v7827 = vunpack.c.h.bf16 %v7187
    %v7828 = vunpack.c.h.bf16 %v7188
    %v7829 = vunpack.c.h.bf16 %v7189
    %v7830 = vunpack.c.h.bf16 %v7190
    %v7831 = vunpack.c.l.bf16 %v7191
    %v7832 = vunpack.c.l.bf16 %v7192
    %v7833 = vunpack.c.l.bf16 %v7193
    %v7834 = vunpack.c.l.bf16 %v7194
    %v7835 = vunpack.c.l.bf16 %v7195
    %v7836 = vunpack.c.l.bf16 %v7196
    %v7837 = vunpack.c.l.bf16 %v7197
    %v7838 = vunpack.c.l.bf16 %v7198
    %v7839 = vunpack.c.l.bf16 %v7199
    %v7840 = vunpack.c.l.bf16 %v7200
    %v7841 = vunpack.c.l.bf16 %v7201
    %v7842 = vunpack.c.l.bf16 %v7202
    %v7843 = vunpack.c.l.bf16 %v7203
    %v7844 = vunpack.c.l.bf16 %v7204
    %v7845 = vunpack.c.l.bf16 %v7205
    %v7846 = vunpack.c.l.bf16 %v7206
    %v7847 = vunpack.c.l.bf16 %v7207
    %v7848 = vunpack.c.l.bf16 %v7208
    %v7849 = vunpack.c.l.bf16 %v7209
    %v7850 = vunpack.c.l.bf16 %v7210
    %v7851 = vunpack.c.l.bf16 %v7211
    %v7852 = vunpack.c.l.bf16 %v7212
    %v7853 = vunpack.c.l.bf16 %v7213
    %v7854 = vunpack.c.l.bf16 %v7214
    %v7855 = vunpack.c.l.bf16 %v7215
    %v7856 = vunpack.c.l.bf16 %v7216
    %v7857 = vunpack.c.l.bf16 %v7217
    %v7858 = vunpack.c.l.bf16 %v7218
    %v7859 = vunpack.c.l.bf16 %v7219
    %v7860 = vunpack.c.l.bf16 %v7220
    %v7861 = vunpack.c.l.bf16 %v7221
    %v7862 = vunpack.c.l.bf16 %v7222
    %v7863 = vunpack.c.h.bf16 %v7191
    %v7864 = vunpack.c.h.bf16 %v7192
    %v7865 = vunpack.c.h.bf16 %v7193
    %v7866 = vunpack.c.h.bf16 %v7194
    %v7867 = vunpack.c.h.bf16 %v7195
    %v7868 = vunpack.c.h.bf16 %v7196
    %v7869 = vunpack.c.h.bf16 %v7197
    %v7870 = vunpack.c.h.bf16 %v7198
    %v7871 = vunpack.c.h.bf16 %v7199
    %v7872 = vunpack.c.h.bf16 %v7200
    %v7873 = vunpack.c.h.bf16 %v7201
    %v7874 = vunpack.c.h.bf16 %v7202
    %v7875 = vunpack.c.h.bf16 %v7203
    %v7876 = vunpack.c.h.bf16 %v7204
    %v7877 = vunpack.c.h.bf16 %v7205
    %v7878 = vunpack.c.h.bf16 %v7206
    %v7879 = vunpack.c.h.bf16 %v7207
    %v7880 = vunpack.c.h.bf16 %v7208
    %v7881 = vunpack.c.h.bf16 %v7209
    %v7882 = vunpack.c.h.bf16 %v7210
    %v7883 = vunpack.c.h.bf16 %v7211
    %v7884 = vunpack.c.h.bf16 %v7212
    %v7885 = vunpack.c.h.bf16 %v7213
    %v7886 = vunpack.c.h.bf16 %v7214
    %v7887 = vunpack.c.h.bf16 %v7215
    %v7888 = vunpack.c.h.bf16 %v7216
    %v7889 = vunpack.c.h.bf16 %v7217
    %v7890 = vunpack.c.h.bf16 %v7218
    %v7891 = vunpack.c.h.bf16 %v7219
    %v7892 = vunpack.c.h.bf16 %v7220
    %v7893 = vunpack.c.h.bf16 %v7221
    %v7894 = vunpack.c.h.bf16 %v7222
    %v7895 = vunpack.c.l.bf16 %v7223
    %v7896 = vunpack.c.l.bf16 %v7224
    %v7897 = vunpack.c.l.bf16 %v7225
    %v7898 = vunpack.c.l.bf16 %v7226
    %v7899 = vunpack.c.l.bf16 %v7227
    %v7900 = vunpack.c.l.bf16 %v7228
    %v7901 = vunpack.c.l.bf16 %v7229
    %v7902 = vunpack.c.l.bf16 %v7230
    %v7903 = vunpack.c.l.bf16 %v7231
    %v7904 = vunpack.c.l.bf16 %v7232
    %v7905 = vunpack.c.l.bf16 %v7233
    %v7906 = vunpack.c.l.bf16 %v7234
    %v7907 = vunpack.c.l.bf16 %v7235
    %v7908 = vunpack.c.l.bf16 %v7236
    %v7909 = vunpack.c.l.bf16 %v7237
    %v7910 = vunpack.c.l.bf16 %v7238
    %v7911 = vunpack.c.l.bf16 %v7239
    %v7912 = vunpack.c.l.bf16 %v7240
    %v7913 = vunpack.c.l.bf16 %v7241
    %v7914 = vunpack.c.l.bf16 %v7242
    %v7915 = vunpack.c.l.bf16 %v7243
    %v7916 = vunpack.c.l.bf16 %v7244
    %v7917 = vunpack.c.l.bf16 %v7245
    %v7918 = vunpack.c.l.bf16 %v7246
    %v7919 = vunpack.c.l.bf16 %v7247
    %v7920 = vunpack.c.l.bf16 %v7248
    %v7921 = vunpack.c.l.bf16 %v7249
    %v7922 = vunpack.c.l.bf16 %v7250
    %v7923 = vunpack.c.l.bf16 %v7251
    %v7924 = vunpack.c.l.bf16 %v7252
    %v7925 = vunpack.c.l.bf16 %v7253
    %v7926 = vunpack.c.l.bf16 %v7254
    %v7927 = vunpack.c.h.bf16 %v7223
    %v7928 = vunpack.c.h.bf16 %v7224
    %v7929 = vunpack.c.h.bf16 %v7225
    %v7930 = vunpack.c.h.bf16 %v7226
    %v7931 = vunpack.c.h.bf16 %v7227
    %v7932 = vunpack.c.h.bf16 %v7228
    %v7933 = vunpack.c.h.bf16 %v7229
    %v7934 = vunpack.c.h.bf16 %v7230
    %v7935 = vunpack.c.h.bf16 %v7231
    %v7936 = vunpack.c.h.bf16 %v7232
    %v7937 = vunpack.c.h.bf16 %v7233
    %v7938 = vunpack.c.h.bf16 %v7234
    %v7939 = vunpack.c.h.bf16 %v7235
    %v7940 = vunpack.c.h.bf16 %v7236
    %v7941 = vunpack.c.h.bf16 %v7237
    %v7942 = vunpack.c.h.bf16 %v7238
    %v7943 = vunpack.c.h.bf16 %v7239
    %v7944 = vunpack.c.h.bf16 %v7240
    %v7945 = vunpack.c.h.bf16 %v7241
    %v7946 = vunpack.c.h.bf16 %v7242
    %v7947 = vunpack.c.h.bf16 %v7243
    %v7948 = vunpack.c.h.bf16 %v7244
    %v7949 = vunpack.c.h.bf16 %v7245
    %v7950 = vunpack.c.h.bf16 %v7246
    %v7951 = vunpack.c.h.bf16 %v7247
    %v7952 = vunpack.c.h.bf16 %v7248
    %v7953 = vunpack.c.h.bf16 %v7249
    %v7954 = vunpack.c.h.bf16 %v7250
    %v7955 = vunpack.c.h.bf16 %v7251
    %v7956 = vunpack.c.h.bf16 %v7252
    %v7957 = vunpack.c.h.bf16 %v7253
    %v7958 = vunpack.c.h.bf16 %v7254
    %v7959 = vunpack.c.l.bf16 %v7255
    %v7960 = vunpack.c.l.bf16 %v7256
    %v7961 = vunpack.c.l.bf16 %v7257
    %v7962 = vunpack.c.l.bf16 %v7258
    %v7963 = vunpack.c.l.bf16 %v7259
    %v7964 = vunpack.c.l.bf16 %v7260
    %v7965 = vunpack.c.l.bf16 %v7261
    %v7966 = vunpack.c.l.bf16 %v7262
    %v7967 = vunpack.c.l.bf16 %v7263
    %v7968 = vunpack.c.l.bf16 %v7264
    %v7969 = vunpack.c.l.bf16 %v7265
    %v7970 = vunpack.c.l.bf16 %v7266
    %v7971 = vunpack.c.l.bf16 %v7267
    %v7972 = vunpack.c.l.bf16 %v7268
    %v7973 = vunpack.c.l.bf16 %v7269
    %v7974 = vunpack.c.l.bf16 %v7270
    %v7975 = vunpack.c.l.bf16 %v7271
    %v7976 = vunpack.c.l.bf16 %v7272
    %v7977 = vunpack.c.l.bf16 %v7273
    %v7978 = vunpack.c.l.bf16 %v7274
    %v7979 = vunpack.c.l.bf16 %v7275
    %v7980 = vunpack.c.l.bf16 %v7276
    %v7981 = vunpack.c.l.bf16 %v7277
    %v7982 = vunpack.c.l.bf16 %v7278
    %v7983 = vunpack.c.l.bf16 %v7279
    %v7984 = vunpack.c.l.bf16 %v7280
    %v7985 = vunpack.c.l.bf16 %v7281
    %v7986 = vunpack.c.l.bf16 %v7282
    %v7987 = vunpack.c.l.bf16 %v7283
    %v7988 = vunpack.c.l.bf16 %v7284
    %v7989 = vunpack.c.l.bf16 %v7285
    %v7990 = vunpack.c.l.bf16 %v7286
    %v7991 = vunpack.c.h.bf16 %v7255
    %v7992 = vunpack.c.h.bf16 %v7256
    %v7993 = vunpack.c.h.bf16 %v7257
    %v7994 = vunpack.c.h.bf16 %v7258
    %v7995 = vunpack.c.h.bf16 %v7259
    %v7996 = vunpack.c.h.bf16 %v7260
    %v7997 = vunpack.c.h.bf16 %v7261
    %v7998 = vunpack.c.h.bf16 %v7262
    %v7999 = vunpack.c.h.bf16 %v7263
    %v8000 = vunpack.c.h.bf16 %v7264
    %v8001 = vunpack.c.h.bf16 %v7265
    %v8002 = vunpack.c.h.bf16 %v7266
    %v8003 = vunpack.c.h.bf16 %v7267
    %v8004 = vunpack.c.h.bf16 %v7268
    %v8005 = vunpack.c.h.bf16 %v7269
    %v8006 = vunpack.c.h.bf16 %v7270
    %v8007 = vunpack.c.h.bf16 %v7271
    %v8008 = vunpack.c.h.bf16 %v7272
    %v8009 = vunpack.c.h.bf16 %v7273
    %v8010 = vunpack.c.h.bf16 %v7274
    %v8011 = vunpack.c.h.bf16 %v7275
    %v8012 = vunpack.c.h.bf16 %v7276
    %v8013 = vunpack.c.h.bf16 %v7277
    %v8014 = vunpack.c.h.bf16 %v7278
    %v8015 = vunpack.c.h.bf16 %v7279
    %v8016 = vunpack.c.h.bf16 %v7280
    %v8017 = vunpack.c.h.bf16 %v7281
    %v8018 = vunpack.c.h.bf16 %v7282
    %v8019 = vunpack.c.h.bf16 %v7283
    %v8020 = vunpack.c.h.bf16 %v7284
    %v8021 = vunpack.c.h.bf16 %v7285
    %v8022 = vunpack.c.h.bf16 %v7286
    %v8023 = vunpack.c.l.bf16 %v7287
    %v8024 = vunpack.c.l.bf16 %v7288
    %v8025 = vunpack.c.l.bf16 %v7289
    %v8026 = vunpack.c.l.bf16 %v7290
    %v8027 = vunpack.c.l.bf16 %v7291
    %v8028 = vunpack.c.l.bf16 %v7292
    %v8029 = vunpack.c.l.bf16 %v7293
    %v8030 = vunpack.c.l.bf16 %v7294
    %v8031 = vunpack.c.l.bf16 %v7295
    %v8032 = vunpack.c.l.bf16 %v7296
    %v8033 = vunpack.c.l.bf16 %v7297
    %v8034 = vunpack.c.l.bf16 %v7298
    %v8035 = vunpack.c.l.bf16 %v7299
    %v8036 = vunpack.c.l.bf16 %v7300
    %v8037 = vunpack.c.l.bf16 %v7301
    %v8038 = vunpack.c.l.bf16 %v7302
    %v8039 = vunpack.c.l.bf16 %v7303
    %v8040 = vunpack.c.l.bf16 %v7304
    %v8041 = vunpack.c.l.bf16 %v7305
    %v8042 = vunpack.c.l.bf16 %v7306
    %v8043 = vunpack.c.l.bf16 %v7307
    %v8044 = vunpack.c.l.bf16 %v7308
    %v8045 = vunpack.c.l.bf16 %v7309
    %v8046 = vunpack.c.l.bf16 %v7310
    %v8047 = vunpack.c.l.bf16 %v7311
    %v8048 = vunpack.c.l.bf16 %v7312
    %v8049 = vunpack.c.l.bf16 %v7313
    %v8050 = vunpack.c.l.bf16 %v7314
    %v8051 = vunpack.c.l.bf16 %v7315
    %v8052 = vunpack.c.l.bf16 %v7316
    %v8053 = vunpack.c.l.bf16 %v7317
    %v8054 = vunpack.c.l.bf16 %v7318
    %v8055 = vunpack.c.h.bf16 %v7287
    %v8056 = vunpack.c.h.bf16 %v7288
    %v8057 = vunpack.c.h.bf16 %v7289
    %v8058 = vunpack.c.h.bf16 %v7290
    %v8059 = vunpack.c.h.bf16 %v7291
    %v8060 = vunpack.c.h.bf16 %v7292
    %v8061 = vunpack.c.h.bf16 %v7293
    %v8062 = vunpack.c.h.bf16 %v7294
    %v8063 = vunpack.c.h.bf16 %v7295
    %v8064 = vunpack.c.h.bf16 %v7296
    %v8065 = vunpack.c.h.bf16 %v7297
    %v8066 = vunpack.c.h.bf16 %v7298
    %v8067 = vunpack.c.h.bf16 %v7299
    %v8068 = vunpack.c.h.bf16 %v7300
    %v8069 = vunpack.c.h.bf16 %v7301
    %v8070 = vunpack.c.h.bf16 %v7302
    %v8071 = vunpack.c.h.bf16 %v7303
    %v8072 = vunpack.c.h.bf16 %v7304
    %v8073 = vunpack.c.h.bf16 %v7305
    %v8074 = vunpack.c.h.bf16 %v7306
    %v8075 = vunpack.c.h.bf16 %v7307
    %v8076 = vunpack.c.h.bf16 %v7308
    %v8077 = vunpack.c.h.bf16 %v7309
    %v8078 = vunpack.c.h.bf16 %v7310
    %v8079 = vunpack.c.h.bf16 %v7311
    %v8080 = vunpack.c.h.bf16 %v7312
    %v8081 = vunpack.c.h.bf16 %v7313
    %v8082 = vunpack.c.h.bf16 %v7314
    %v8083 = vunpack.c.h.bf16 %v7315
    %v8084 = vunpack.c.h.bf16 %v7316
    %v8085 = vunpack.c.h.bf16 %v7317
    %v8086 = vunpack.c.h.bf16 %v7318
    %v8087 = vunpack.c.l.bf16 %v7319
    %v8088 = vunpack.c.l.bf16 %v7320
    %v8089 = vunpack.c.l.bf16 %v7321
    %v8090 = vunpack.c.l.bf16 %v7322
    %v8091 = vunpack.c.l.bf16 %v7323
    %v8092 = vunpack.c.l.bf16 %v7324
    %v8093 = vunpack.c.l.bf16 %v7325
    %v8094 = vunpack.c.l.bf16 %v7326
    %v8095 = vunpack.c.l.bf16 %v7327
    %v8096 = vunpack.c.l.bf16 %v7328
    %v8097 = vunpack.c.l.bf16 %v7329
    %v8098 = vunpack.c.l.bf16 %v7330
    %v8099 = vunpack.c.l.bf16 %v7331
    %v8100 = vunpack.c.l.bf16 %v7332
    %v8101 = vunpack.c.l.bf16 %v7333
    %v8102 = vunpack.c.l.bf16 %v7334
    %v8103 = vunpack.c.l.bf16 %v7335
    %v8104 = vunpack.c.l.bf16 %v7336
    %v8105 = vunpack.c.l.bf16 %v7337
    %v8106 = vunpack.c.l.bf16 %v7338
    %v8107 = vunpack.c.l.bf16 %v7339
    %v8108 = vunpack.c.l.bf16 %v7340
    %v8109 = vunpack.c.l.bf16 %v7341
    %v8110 = vunpack.c.l.bf16 %v7342
    %v8111 = vunpack.c.l.bf16 %v7343
    %v8112 = vunpack.c.l.bf16 %v7344
    %v8113 = vunpack.c.l.bf16 %v7345
    %v8114 = vunpack.c.l.bf16 %v7346
    %v8115 = vunpack.c.l.bf16 %v7347
    %v8116 = vunpack.c.l.bf16 %v7348
    %v8117 = vunpack.c.l.bf16 %v7349
    %v8118 = vunpack.c.l.bf16 %v7350
    %v8119 = vunpack.c.h.bf16 %v7319
    %v8120 = vunpack.c.h.bf16 %v7320
    %v8121 = vunpack.c.h.bf16 %v7321
    %v8122 = vunpack.c.h.bf16 %v7322
    %v8123 = vunpack.c.h.bf16 %v7323
    %v8124 = vunpack.c.h.bf16 %v7324
    %v8125 = vunpack.c.h.bf16 %v7325
    %v8126 = vunpack.c.h.bf16 %v7326
    %v8127 = vunpack.c.h.bf16 %v7327
    %v8128 = vunpack.c.h.bf16 %v7328
    %v8129 = vunpack.c.h.bf16 %v7329
    %v8130 = vunpack.c.h.bf16 %v7330
    %v8131 = vunpack.c.h.bf16 %v7331
    %v8132 = vunpack.c.h.bf16 %v7332
    %v8133 = vunpack.c.h.bf16 %v7333
    %v8134 = vunpack.c.h.bf16 %v7334
    %v8135 = vunpack.c.h.bf16 %v7335
    %v8136 = vunpack.c.h.bf16 %v7336
    %v8137 = vunpack.c.h.bf16 %v7337
    %v8138 = vunpack.c.h.bf16 %v7338
    %v8139 = vunpack.c.h.bf16 %v7339
    %v8140 = vunpack.c.h.bf16 %v7340
    %v8141 = vunpack.c.h.bf16 %v7341
    %v8142 = vunpack.c.h.bf16 %v7342
    %v8143 = vunpack.c.h.bf16 %v7343
    %v8144 = vunpack.c.h.bf16 %v7344
    %v8145 = vunpack.c.h.bf16 %v7345
    %v8146 = vunpack.c.h.bf16 %v7346
    %v8147 = vunpack.c.h.bf16 %v7347
    %v8148 = vunpack.c.h.bf16 %v7348
    %v8149 = vunpack.c.h.bf16 %v7349
    %v8150 = vunpack.c.h.bf16 %v7350
    %v8151 = vunpack.c.l.bf16 %v7351
    %v8152 = vunpack.c.l.bf16 %v7352
    %v8153 = vunpack.c.l.bf16 %v7353
    %v8154 = vunpack.c.l.bf16 %v7354
    %v8155 = vunpack.c.l.bf16 %v7355
    %v8156 = vunpack.c.l.bf16 %v7356
    %v8157 = vunpack.c.l.bf16 %v7357
    %v8158 = vunpack.c.l.bf16 %v7358
    %v8159 = vunpack.c.l.bf16 %v7359
    %v8160 = vunpack.c.l.bf16 %v7360
    %v8161 = vunpack.c.l.bf16 %v7361
    %v8162 = vunpack.c.l.bf16 %v7362
    %v8163 = vunpack.c.l.bf16 %v7363
    %v8164 = vunpack.c.l.bf16 %v7364
    %v8165 = vunpack.c.l.bf16 %v7365
    %v8166 = vunpack.c.l.bf16 %v7366
    %v8167 = vunpack.c.l.bf16 %v7367
    %v8168 = vunpack.c.l.bf16 %v7368
    %v8169 = vunpack.c.l.bf16 %v7369
    %v8170 = vunpack.c.l.bf16 %v7370
    %v8171 = vunpack.c.l.bf16 %v7371
    %v8172 = vunpack.c.l.bf16 %v7372
    %v8173 = vunpack.c.l.bf16 %v7373
    %v8174 = vunpack.c.l.bf16 %v7374
    %v8175 = vunpack.c.l.bf16 %v7375
    %v8176 = vunpack.c.l.bf16 %v7376
    %v8177 = vunpack.c.l.bf16 %v7377
    %v8178 = vunpack.c.l.bf16 %v7378
    %v8179 = vunpack.c.l.bf16 %v7379
    %v8180 = vunpack.c.l.bf16 %v7380
    %v8181 = vunpack.c.l.bf16 %v7381
    %v8182 = vunpack.c.l.bf16 %v7382
    %v8183 = vunpack.c.h.bf16 %v7351
    %v8184 = vunpack.c.h.bf16 %v7352
    %v8185 = vunpack.c.h.bf16 %v7353
    %v8186 = vunpack.c.h.bf16 %v7354
    %v8187 = vunpack.c.h.bf16 %v7355
    %v8188 = vunpack.c.h.bf16 %v7356
    %v8189 = vunpack.c.h.bf16 %v7357
    %v8190 = vunpack.c.h.bf16 %v7358
    %v8191 = vunpack.c.h.bf16 %v7359
    %v8192 = vunpack.c.h.bf16 %v7360
    %v8193 = vunpack.c.h.bf16 %v7361
    %v8194 = vunpack.c.h.bf16 %v7362
    %v8195 = vunpack.c.h.bf16 %v7363
    %v8196 = vunpack.c.h.bf16 %v7364
    %v8197 = vunpack.c.h.bf16 %v7365
    %v8198 = vunpack.c.h.bf16 %v7366
    %v8199 = vunpack.c.h.bf16 %v7367
    %v8200 = vunpack.c.h.bf16 %v7368
    %v8201 = vunpack.c.h.bf16 %v7369
    %v8202 = vunpack.c.h.bf16 %v7370
    %v8203 = vunpack.c.h.bf16 %v7371
    %v8204 = vunpack.c.h.bf16 %v7372
    %v8205 = vunpack.c.h.bf16 %v7373
    %v8206 = vunpack.c.h.bf16 %v7374
    %v8207 = vunpack.c.h.bf16 %v7375
    %v8208 = vunpack.c.h.bf16 %v7376
    %v8209 = vunpack.c.h.bf16 %v7377
    %v8210 = vunpack.c.h.bf16 %v7378
    %v8211 = vunpack.c.h.bf16 %v7379
    %v8212 = vunpack.c.h.bf16 %v7380
    %v8213 = vunpack.c.h.bf16 %v7381
    %v8214 = vunpack.c.h.bf16 %v7382
    %v8215 = vunpack.c.l.bf16 %v7383
    %v8216 = vunpack.c.l.bf16 %v7384
    %v8217 = vunpack.c.l.bf16 %v7385
    %v8218 = vunpack.c.l.bf16 %v7386
    %v8219 = vunpack.c.l.bf16 %v7387
    %v8220 = vunpack.c.l.bf16 %v7388
    %v8221 = vunpack.c.l.bf16 %v7389
    %v8222 = vunpack.c.l.bf16 %v7390
    %v8223 = vunpack.c.l.bf16 %v7391
    %v8224 = vunpack.c.l.bf16 %v7392
    %v8225 = vunpack.c.l.bf16 %v7393
    %v8226 = vunpack.c.l.bf16 %v7394
    %v8227 = vunpack.c.l.bf16 %v7395
    %v8228 = vunpack.c.l.bf16 %v7396
    %v8229 = vunpack.c.l.bf16 %v7397
    %v8230 = vunpack.c.l.bf16 %v7398
    %v8231 = vunpack.c.l.bf16 %v7399
    %v8232 = vunpack.c.l.bf16 %v7400
    %v8233 = vunpack.c.l.bf16 %v7401
    %v8234 = vunpack.c.l.bf16 %v7402
    %v8235 = vunpack.c.l.bf16 %v7403
    %v8236 = vunpack.c.l.bf16 %v7404
    %v8237 = vunpack.c.l.bf16 %v7405
    %v8238 = vunpack.c.l.bf16 %v7406
    %v8239 = vunpack.c.l.bf16 %v7407
    %v8240 = vunpack.c.l.bf16 %v7408
    %v8241 = vunpack.c.l.bf16 %v7409
    %v8242 = vunpack.c.l.bf16 %v7410
    %v8243 = vunpack.c.l.bf16 %v7411
    %v8244 = vunpack.c.l.bf16 %v7412
    %v8245 = vunpack.c.l.bf16 %v7413
    %v8246 = vunpack.c.l.bf16 %v7414
    %v8247 = vunpack.c.h.bf16 %v7383
    %v8248 = vunpack.c.h.bf16 %v7384
    %v8249 = vunpack.c.h.bf16 %v7385
    %v8250 = vunpack.c.h.bf16 %v7386
    %v8251 = vunpack.c.h.bf16 %v7387
    %v8252 = vunpack.c.h.bf16 %v7388
    %v8253 = vunpack.c.h.bf16 %v7389
    %v8254 = vunpack.c.h.bf16 %v7390
    %v8255 = vunpack.c.h.bf16 %v7391
    %v8256 = vunpack.c.h.bf16 %v7392
    %v8257 = vunpack.c.h.bf16 %v7393
    %v8258 = vunpack.c.h.bf16 %v7394
    %v8259 = vunpack.c.h.bf16 %v7395
    %v8260 = vunpack.c.h.bf16 %v7396
    %v8261 = vunpack.c.h.bf16 %v7397
    %v8262 = vunpack.c.h.bf16 %v7398
    %v8263 = vunpack.c.h.bf16 %v7399
    %v8264 = vunpack.c.h.bf16 %v7400
    %v8265 = vunpack.c.h.bf16 %v7401
    %v8266 = vunpack.c.h.bf16 %v7402
    %v8267 = vunpack.c.h.bf16 %v7403
    %v8268 = vunpack.c.h.bf16 %v7404
    %v8269 = vunpack.c.h.bf16 %v7405
    %v8270 = vunpack.c.h.bf16 %v7406
    %v8271 = vunpack.c.h.bf16 %v7407
    %v8272 = vunpack.c.h.bf16 %v7408
    %v8273 = vunpack.c.h.bf16 %v7409
    %v8274 = vunpack.c.h.bf16 %v7410
    %v8275 = vunpack.c.h.bf16 %v7411
    %v8276 = vunpack.c.h.bf16 %v7412
    %v8277 = vunpack.c.h.bf16 %v7413
    %v8278 = vunpack.c.h.bf16 %v7414
    %v8279 = vunpack.c.l.bf16 %v7415
    %v8280 = vunpack.c.l.bf16 %v7416
    %v8281 = vunpack.c.l.bf16 %v7417
    %v8282 = vunpack.c.l.bf16 %v7418
    %v8283 = vunpack.c.l.bf16 %v7419
    %v8284 = vunpack.c.l.bf16 %v7420
    %v8285 = vunpack.c.l.bf16 %v7421
    %v8286 = vunpack.c.l.bf16 %v7422
    %v8287 = vunpack.c.l.bf16 %v7423
    %v8288 = vunpack.c.l.bf16 %v7424
    %v8289 = vunpack.c.l.bf16 %v7425
    %v8290 = vunpack.c.l.bf16 %v7426
    %v8291 = vunpack.c.l.bf16 %v7427
    %v8292 = vunpack.c.l.bf16 %v7428
    %v8293 = vunpack.c.l.bf16 %v7429
    %v8294 = vunpack.c.l.bf16 %v7430
    %v8295 = vunpack.c.l.bf16 %v7431
    %v8296 = vunpack.c.l.bf16 %v7432
    %v8297 = vunpack.c.l.bf16 %v7433
    %v8298 = vunpack.c.l.bf16 %v7434
    %v8299 = vunpack.c.l.bf16 %v7435
    %v8300 = vunpack.c.l.bf16 %v7436
    %v8301 = vunpack.c.l.bf16 %v7437
    %v8302 = vunpack.c.l.bf16 %v7438
    %v8303 = vunpack.c.l.bf16 %v7439
    %v8304 = vunpack.c.l.bf16 %v7440
    %v8305 = vunpack.c.l.bf16 %v7441
    %v8306 = vunpack.c.l.bf16 %v7442
    %v8307 = vunpack.c.l.bf16 %v7443
    %v8308 = vunpack.c.l.bf16 %v7444
    %v8309 = vunpack.c.l.bf16 %v7445
    %v8310 = vunpack.c.l.bf16 %v7446
    %v8311 = vunpack.c.h.bf16 %v7415
    %v8312 = vunpack.c.h.bf16 %v7416
    %v8313 = vunpack.c.h.bf16 %v7417
    %v8314 = vunpack.c.h.bf16 %v7418
    %v8315 = vunpack.c.h.bf16 %v7419
    %v8316 = vunpack.c.h.bf16 %v7420
    %v8317 = vunpack.c.h.bf16 %v7421
    %v8318 = vunpack.c.h.bf16 %v7422
    %v8319 = vunpack.c.h.bf16 %v7423
    %v8320 = vunpack.c.h.bf16 %v7424
    %v8321 = vunpack.c.h.bf16 %v7425
    %v8322 = vunpack.c.h.bf16 %v7426
    %v8323 = vunpack.c.h.bf16 %v7427
    %v8324 = vunpack.c.h.bf16 %v7428
    %v8325 = vunpack.c.h.bf16 %v7429
    %v8326 = vunpack.c.h.bf16 %v7430
    %v8327 = vunpack.c.h.bf16 %v7431
    %v8328 = vunpack.c.h.bf16 %v7432
    %v8329 = vunpack.c.h.bf16 %v7433
    %v8330 = vunpack.c.h.bf16 %v7434
    %v8331 = vunpack.c.h.bf16 %v7435
    %v8332 = vunpack.c.h.bf16 %v7436
    %v8333 = vunpack.c.h.bf16 %v7437
    %v8334 = vunpack.c.h.bf16 %v7438
    %v8335 = vunpack.c.h.bf16 %v7439
    %v8336 = vunpack.c.h.bf16 %v7440
    %v8337 = vunpack.c.h.bf16 %v7441
    %v8338 = vunpack.c.h.bf16 %v7442
    %v8339 = vunpack.c.h.bf16 %v7443
    %v8340 = vunpack.c.h.bf16 %v7444
    %v8341 = vunpack.c.h.bf16 %v7445
    %v8342 = vunpack.c.h.bf16 %v7446
    %v8343 = vunpack.c.l.bf16 %v7447
    %v8344 = vunpack.c.l.bf16 %v7448
    %v8345 = vunpack.c.l.bf16 %v7449
    %v8346 = vunpack.c.l.bf16 %v7450
    %v8347 = vunpack.c.l.bf16 %v7451
    %v8348 = vunpack.c.l.bf16 %v7452
    %v8349 = vunpack.c.l.bf16 %v7453
    %v8350 = vunpack.c.l.bf16 %v7454
    %v8351 = vunpack.c.l.bf16 %v7455
    %v8352 = vunpack.c.l.bf16 %v7456
    %v8353 = vunpack.c.l.bf16 %v7457
    %v8354 = vunpack.c.l.bf16 %v7458
    %v8355 = vunpack.c.l.bf16 %v7459
    %v8356 = vunpack.c.l.bf16 %v7460
    %v8357 = vunpack.c.l.bf16 %v7461
    %v8358 = vunpack.c.l.bf16 %v7462
    %v8359 = vunpack.c.l.bf16 %v7463
    %v8360 = vunpack.c.l.bf16 %v7464
    %v8361 = vunpack.c.l.bf16 %v7465
    %v8362 = vunpack.c.l.bf16 %v7466
    %v8363 = vunpack.c.l.bf16 %v7467
    %v8364 = vunpack.c.l.bf16 %v7468
    %v8365 = vunpack.c.l.bf16 %v7469
    %v8366 = vunpack.c.l.bf16 %v7470
    %v8367 = vunpack.c.l.bf16 %v7471
    %v8368 = vunpack.c.l.bf16 %v7472
    %v8369 = vunpack.c.l.bf16 %v7473
    %v8370 = vunpack.c.l.bf16 %v7474
    %v8371 = vunpack.c.l.bf16 %v7475
    %v8372 = vunpack.c.l.bf16 %v7476
    %v8373 = vunpack.c.l.bf16 %v7477
    %v8374 = vunpack.c.l.bf16 %v7478
    %v8375 = vunpack.c.h.bf16 %v7447
    %v8376 = vunpack.c.h.bf16 %v7448
    %v8377 = vunpack.c.h.bf16 %v7449
    %v8378 = vunpack.c.h.bf16 %v7450
    %v8379 = vunpack.c.h.bf16 %v7451
    %v8380 = vunpack.c.h.bf16 %v7452
    %v8381 = vunpack.c.h.bf16 %v7453
    %v8382 = vunpack.c.h.bf16 %v7454
    %v8383 = vunpack.c.h.bf16 %v7455
    %v8384 = vunpack.c.h.bf16 %v7456
    %v8385 = vunpack.c.h.bf16 %v7457
    %v8386 = vunpack.c.h.bf16 %v7458
    %v8387 = vunpack.c.h.bf16 %v7459
    %v8388 = vunpack.c.h.bf16 %v7460
    %v8389 = vunpack.c.h.bf16 %v7461
    %v8390 = vunpack.c.h.bf16 %v7462
    %v8391 = vunpack.c.h.bf16 %v7463
    %v8392 = vunpack.c.h.bf16 %v7464
    %v8393 = vunpack.c.h.bf16 %v7465
    %v8394 = vunpack.c.h.bf16 %v7466
    %v8395 = vunpack.c.h.bf16 %v7467
    %v8396 = vunpack.c.h.bf16 %v7468
    %v8397 = vunpack.c.h.bf16 %v7469
    %v8398 = vunpack.c.h.bf16 %v7470
    %v8399 = vunpack.c.h.bf16 %v7471
    %v8400 = vunpack.c.h.bf16 %v7472
    %v8401 = vunpack.c.h.bf16 %v7473
    %v8402 = vunpack.c.h.bf16 %v7474
    %v8403 = vunpack.c.h.bf16 %v7475
    %v8404 = vunpack.c.h.bf16 %v7476
    %v8405 = vunpack.c.h.bf16 %v7477
    %v8406 = vunpack.c.h.bf16 %v7478
    %v8407 = vunpack.c.l.bf16 %v7479
    %v8408 = vunpack.c.l.bf16 %v7480
    %v8409 = vunpack.c.l.bf16 %v7481
    %v8410 = vunpack.c.l.bf16 %v7482
    %v8411 = vunpack.c.l.bf16 %v7483
    %v8412 = vunpack.c.l.bf16 %v7484
    %v8413 = vunpack.c.l.bf16 %v7485
    %v8414 = vunpack.c.l.bf16 %v7486
    %v8415 = vunpack.c.l.bf16 %v7487
    %v8416 = vunpack.c.l.bf16 %v7488
    %v8417 = vunpack.c.l.bf16 %v7489
    %v8418 = vunpack.c.l.bf16 %v7490
    %v8419 = vunpack.c.l.bf16 %v7491
    %v8420 = vunpack.c.l.bf16 %v7492
    %v8421 = vunpack.c.l.bf16 %v7493
    %v8422 = vunpack.c.l.bf16 %v7494
    %v8423 = vunpack.c.l.bf16 %v7495
    %v8424 = vunpack.c.l.bf16 %v7496
    %v8425 = vunpack.c.l.bf16 %v7497
    %v8426 = vunpack.c.l.bf16 %v7498
    %v8427 = vunpack.c.l.bf16 %v7499
    %v8428 = vunpack.c.l.bf16 %v7500
    %v8429 = vunpack.c.l.bf16 %v7501
    %v8430 = vunpack.c.l.bf16 %v7502
    %v8431 = vunpack.c.l.bf16 %v7503
    %v8432 = vunpack.c.l.bf16 %v7504
    %v8433 = vunpack.c.l.bf16 %v7505
    %v8434 = vunpack.c.l.bf16 %v7506
    %v8435 = vunpack.c.l.bf16 %v7507
    %v8436 = vunpack.c.l.bf16 %v7508
    %v8437 = vunpack.c.l.bf16 %v7509
    %v8438 = vunpack.c.l.bf16 %v7510
    %v8439 = vunpack.c.h.bf16 %v7479
    %v8440 = vunpack.c.h.bf16 %v7480
    %v8441 = vunpack.c.h.bf16 %v7481
    %v8442 = vunpack.c.h.bf16 %v7482
    %v8443 = vunpack.c.h.bf16 %v7483
    %v8444 = vunpack.c.h.bf16 %v7484
    %v8445 = vunpack.c.h.bf16 %v7485
    %v8446 = vunpack.c.h.bf16 %v7486
    %v8447 = vunpack.c.h.bf16 %v7487
    %v8448 = vunpack.c.h.bf16 %v7488
    %v8449 = vunpack.c.h.bf16 %v7489
    %v8450 = vunpack.c.h.bf16 %v7490
    %v8451 = vunpack.c.h.bf16 %v7491
    %v8452 = vunpack.c.h.bf16 %v7492
    %v8453 = vunpack.c.h.bf16 %v7493
    %v8454 = vunpack.c.h.bf16 %v7494
    %v8455 = vunpack.c.h.bf16 %v7495
    %v8456 = vunpack.c.h.bf16 %v7496
    %v8457 = vunpack.c.h.bf16 %v7497
    %v8458 = vunpack.c.h.bf16 %v7498
    %v8459 = vunpack.c.h.bf16 %v7499
    %v8460 = vunpack.c.h.bf16 %v7500
    %v8461 = vunpack.c.h.bf16 %v7501
    %v8462 = vunpack.c.h.bf16 %v7502
    %v8463 = vunpack.c.h.bf16 %v7503
    %v8464 = vunpack.c.h.bf16 %v7504
    %v8465 = vunpack.c.h.bf16 %v7505
    %v8466 = vunpack.c.h.bf16 %v7506
    %v8467 = vunpack.c.h.bf16 %v7507
    %v8468 = vunpack.c.h.bf16 %v7508
    %v8469 = vunpack.c.h.bf16 %v7509
    %v8470 = vunpack.c.h.bf16 %v7510
    %v8471 = vunpack.c.l.bf16 %v7511
    %v8472 = vunpack.c.l.bf16 %v7512
    %v8473 = vunpack.c.l.bf16 %v7513
    %v8474 = vunpack.c.l.bf16 %v7514
    %v8475 = vunpack.c.l.bf16 %v7515
    %v8476 = vunpack.c.l.bf16 %v7516
    %v8477 = vunpack.c.l.bf16 %v7517
    %v8478 = vunpack.c.l.bf16 %v7518
    %v8479 = vunpack.c.l.bf16 %v7519
    %v8480 = vunpack.c.l.bf16 %v7520
    %v8481 = vunpack.c.l.bf16 %v7521
    %v8482 = vunpack.c.l.bf16 %v7522
    %v8483 = vunpack.c.l.bf16 %v7523
    %v8484 = vunpack.c.l.bf16 %v7524
    %v8485 = vunpack.c.l.bf16 %v7525
    %v8486 = vunpack.c.l.bf16 %v7526
    %v8487 = vunpack.c.l.bf16 %v7527
    %v8488 = vunpack.c.l.bf16 %v7528
    %v8489 = vunpack.c.l.bf16 %v7529
    %v8490 = vunpack.c.l.bf16 %v7530
    %v8491 = vunpack.c.l.bf16 %v7531
    %v8492 = vunpack.c.l.bf16 %v7532
    %v8493 = vunpack.c.l.bf16 %v7533
    %v8494 = vunpack.c.l.bf16 %v7534
    %v8495 = vunpack.c.l.bf16 %v7535
    %v8496 = vunpack.c.l.bf16 %v7536
    %v8497 = vunpack.c.l.bf16 %v7537
    %v8498 = vunpack.c.l.bf16 %v7538
    %v8499 = vunpack.c.l.bf16 %v7539
    %v8500 = vunpack.c.l.bf16 %v7540
    %v8501 = vunpack.c.l.bf16 %v7541
    %v8502 = vunpack.c.l.bf16 %v7542
    %v8503 = vunpack.c.h.bf16 %v7511
    %v8504 = vunpack.c.h.bf16 %v7512
    %v8505 = vunpack.c.h.bf16 %v7513
    %v8506 = vunpack.c.h.bf16 %v7514
    %v8507 = vunpack.c.h.bf16 %v7515
    %v8508 = vunpack.c.h.bf16 %v7516
    %v8509 = vunpack.c.h.bf16 %v7517
    %v8510 = vunpack.c.h.bf16 %v7518
    %v8511 = vunpack.c.h.bf16 %v7519
    %v8512 = vunpack.c.h.bf16 %v7520
    %v8513 = vunpack.c.h.bf16 %v7521
    %v8514 = vunpack.c.h.bf16 %v7522
    %v8515 = vunpack.c.h.bf16 %v7523
    %v8516 = vunpack.c.h.bf16 %v7524
    %v8517 = vunpack.c.h.bf16 %v7525
    %v8518 = vunpack.c.h.bf16 %v7526
    %v8519 = vunpack.c.h.bf16 %v7527
    %v8520 = vunpack.c.h.bf16 %v7528
    %v8521 = vunpack.c.h.bf16 %v7529
    %v8522 = vunpack.c.h.bf16 %v7530
    %v8523 = vunpack.c.h.bf16 %v7531
    %v8524 = vunpack.c.h.bf16 %v7532
    %v8525 = vunpack.c.h.bf16 %v7533
    %v8526 = vunpack.c.h.bf16 %v7534
    %v8527 = vunpack.c.h.bf16 %v7535
    %v8528 = vunpack.c.h.bf16 %v7536
    %v8529 = vunpack.c.h.bf16 %v7537
    %v8530 = vunpack.c.h.bf16 %v7538
    %v8531 = vunpack.c.h.bf16 %v7539
    %v8532 = vunpack.c.h.bf16 %v7540
    %v8533 = vunpack.c.h.bf16 %v7541
    %v8534 = vunpack.c.h.bf16 %v7542
    %v8535 = vunpack.c.l.bf16 %v7543
    %v8536 = vunpack.c.l.bf16 %v7544
    %v8537 = vunpack.c.l.bf16 %v7545
    %v8538 = vunpack.c.l.bf16 %v7546
    %v8539 = vunpack.c.l.bf16 %v7547
    %v8540 = vunpack.c.l.bf16 %v7548
    %v8541 = vunpack.c.l.bf16 %v7549
    %v8542 = vunpack.c.l.bf16 %v7550
    %v8543 = vunpack.c.l.bf16 %v7551
    %v8544 = vunpack.c.l.bf16 %v7552
    %v8545 = vunpack.c.l.bf16 %v7553
    %v8546 = vunpack.c.l.bf16 %v7554
    %v8547 = vunpack.c.l.bf16 %v7555
    %v8548 = vunpack.c.l.bf16 %v7556
    %v8549 = vunpack.c.l.bf16 %v7557
    %v8550 = vunpack.c.l.bf16 %v7558
    %v8551 = vunpack.c.l.bf16 %v7559
    %v8552 = vunpack.c.l.bf16 %v7560
    %v8553 = vunpack.c.l.bf16 %v7561
    %v8554 = vunpack.c.l.bf16 %v7562
    %v8555 = vunpack.c.l.bf16 %v7563
    %v8556 = vunpack.c.l.bf16 %v7564
    %v8557 = vunpack.c.l.bf16 %v7565
    %v8558 = vunpack.c.l.bf16 %v7566
    %v8559 = vunpack.c.l.bf16 %v7567
    %v8560 = vunpack.c.l.bf16 %v7568
    %v8561 = vunpack.c.l.bf16 %v7569
    %v8562 = vunpack.c.l.bf16 %v7570
    %v8563 = vunpack.c.l.bf16 %v7571
    %v8564 = vunpack.c.l.bf16 %v7572
    %v8565 = vunpack.c.l.bf16 %v7573
    %v8566 = vunpack.c.l.bf16 %v7574
    %v8567 = vunpack.c.h.bf16 %v7543
    %v8568 = vunpack.c.h.bf16 %v7544
    %v8569 = vunpack.c.h.bf16 %v7545
    %v8570 = vunpack.c.h.bf16 %v7546
    %v8571 = vunpack.c.h.bf16 %v7547
    %v8572 = vunpack.c.h.bf16 %v7548
    %v8573 = vunpack.c.h.bf16 %v7549
    %v8574 = vunpack.c.h.bf16 %v7550
    %v8575 = vunpack.c.h.bf16 %v7551
    %v8576 = vunpack.c.h.bf16 %v7552
    %v8577 = vunpack.c.h.bf16 %v7553
    %v8578 = vunpack.c.h.bf16 %v7554
    %v8579 = vunpack.c.h.bf16 %v7555
    %v8580 = vunpack.c.h.bf16 %v7556
    %v8581 = vunpack.c.h.bf16 %v7557
    %v8582 = vunpack.c.h.bf16 %v7558
    %v8583 = vunpack.c.h.bf16 %v7559
    %v8584 = vunpack.c.h.bf16 %v7560
    %v8585 = vunpack.c.h.bf16 %v7561
    %v8586 = vunpack.c.h.bf16 %v7562
    %v8587 = vunpack.c.h.bf16 %v7563
    %v8588 = vunpack.c.h.bf16 %v7564
    %v8589 = vunpack.c.h.bf16 %v7565
    %v8590 = vunpack.c.h.bf16 %v7566
    %v8591 = vunpack.c.h.bf16 %v7567
    %v8592 = vunpack.c.h.bf16 %v7568
    %v8593 = vunpack.c.h.bf16 %v7569
    %v8594 = vunpack.c.h.bf16 %v7570
    %v8595 = vunpack.c.h.bf16 %v7571
    %v8596 = vunpack.c.h.bf16 %v7572
    %v8597 = vunpack.c.h.bf16 %v7573
    %v8598 = vunpack.c.h.bf16 %v7574
    %v8599 = vld [vmem:[#allocation20] sm:$0xff]
    %v8600 = vld [vmem:[#allocation20 + $0x8] sm:$0xff]
    %v8601 = vld [vmem:[#allocation20 + $0x10] sm:$0xff]
    %v8602 = vld [vmem:[#allocation20 + $0x18] sm:$0xff]
    %v8607 = vlaneseq
    %v8608 = vshrl.u32 %v8607, 7
    %v8609 = vsub.s32 0, %v8608
    %v8610 = vrot.slane %v8599, %v8609
    %v8611 = vlaneseq
    %v8612 = vshrl.u32 %v8611, 7
    %v8613 = vsub.s32 1, %v8612
    %v8614 = vrot.slane %v8599, %v8613
    %v8615 = vlaneseq
    %v8616 = vshrl.u32 %v8615, 7
    %v8617 = vsub.s32 2, %v8616
    %v8618 = vrot.slane %v8599, %v8617
    %v8619 = vlaneseq
    %v8620 = vshrl.u32 %v8619, 7
    %v8621 = vsub.s32 3, %v8620
    %v8622 = vrot.slane %v8599, %v8621
    %v8623 = vlaneseq
    %v8624 = vshrl.u32 %v8623, 7
    %v8625 = vsub.s32 4, %v8624
    %v8626 = vrot.slane %v8599, %v8625
    %v8627 = vlaneseq
    %v8628 = vshrl.u32 %v8627, 7
    %v8629 = vsub.s32 5, %v8628
    %v8630 = vrot.slane %v8599, %v8629
    %v8631 = vlaneseq
    %v8632 = vshrl.u32 %v8631, 7
    %v8633 = vsub.s32 6, %v8632
    %v8634 = vrot.slane %v8599, %v8633
    %v8635 = vlaneseq
    %v8636 = vshrl.u32 %v8635, 7
    %v8637 = vsub.s32 7, %v8636
    %v8638 = vrot.slane %v8599, %v8637
    %v8639 = vlaneseq
    %v8640 = vshrl.u32 %v8639, 7
    %v8641 = vsub.s32 0, %v8640
    %v8642 = vrot.slane %v8600, %v8641
    %v8643 = vlaneseq
    %v8644 = vshrl.u32 %v8643, 7
    %v8645 = vsub.s32 1, %v8644
    %v8646 = vrot.slane %v8600, %v8645
    %v8647 = vlaneseq
    %v8648 = vshrl.u32 %v8647, 7
    %v8649 = vsub.s32 2, %v8648
    %v8650 = vrot.slane %v8600, %v8649
    %v8651 = vlaneseq
    %v8652 = vshrl.u32 %v8651, 7
    %v8653 = vsub.s32 3, %v8652
    %v8654 = vrot.slane %v8600, %v8653
    %v8655 = vlaneseq
    %v8656 = vshrl.u32 %v8655, 7
    %v8657 = vsub.s32 4, %v8656
    %v8658 = vrot.slane %v8600, %v8657
    %v8659 = vlaneseq
    %v8660 = vshrl.u32 %v8659, 7
    %v8661 = vsub.s32 5, %v8660
    %v8662 = vrot.slane %v8600, %v8661
    %v8663 = vlaneseq
    %v8664 = vshrl.u32 %v8663, 7
    %v8665 = vsub.s32 6, %v8664
    %v8666 = vrot.slane %v8600, %v8665
    %v8667 = vlaneseq
    %v8668 = vshrl.u32 %v8667, 7
    %v8669 = vsub.s32 7, %v8668
    %v8670 = vrot.slane %v8600, %v8669
    %v8671 = vlaneseq
    %v8672 = vshrl.u32 %v8671, 7
    %v8673 = vsub.s32 0, %v8672
    %v8674 = vrot.slane %v8601, %v8673
    %v8675 = vlaneseq
    %v8676 = vshrl.u32 %v8675, 7
    %v8677 = vsub.s32 1, %v8676
    %v8678 = vrot.slane %v8601, %v8677
    %v8679 = vlaneseq
    %v8680 = vshrl.u32 %v8679, 7
    %v8681 = vsub.s32 2, %v8680
    %v8682 = vrot.slane %v8601, %v8681
    %v8683 = vlaneseq
    %v8684 = vshrl.u32 %v8683, 7
    %v8685 = vsub.s32 3, %v8684
    %v8686 = vrot.slane %v8601, %v8685
    %v8687 = vlaneseq
    %v8688 = vshrl.u32 %v8687, 7
    %v8689 = vsub.s32 4, %v8688
    %v8690 = vrot.slane %v8601, %v8689
    %v8691 = vlaneseq
    %v8692 = vshrl.u32 %v8691, 7
    %v8693 = vsub.s32 5, %v8692
    %v8694 = vrot.slane %v8601, %v8693
    %v8695 = vlaneseq
    %v8696 = vshrl.u32 %v8695, 7
    %v8697 = vsub.s32 6, %v8696
    %v8698 = vrot.slane %v8601, %v8697
    %v8699 = vlaneseq
    %v8700 = vshrl.u32 %v8699, 7
    %v8701 = vsub.s32 7, %v8700
    %v8702 = vrot.slane %v8601, %v8701
    %v8703 = vlaneseq
    %v8704 = vshrl.u32 %v8703, 7
    %v8705 = vsub.s32 0, %v8704
    %v8706 = vrot.slane %v8602, %v8705
    %v8707 = vlaneseq
    %v8708 = vshrl.u32 %v8707, 7
    %v8709 = vsub.s32 1, %v8708
    %v8710 = vrot.slane %v8602, %v8709
    %v8711 = vlaneseq
    %v8712 = vshrl.u32 %v8711, 7
    %v8713 = vsub.s32 2, %v8712
    %v8714 = vrot.slane %v8602, %v8713
    %v8715 = vlaneseq
    %v8716 = vshrl.u32 %v8715, 7
    %v8717 = vsub.s32 3, %v8716
    %v8718 = vrot.slane %v8602, %v8717
    %v8719 = vlaneseq
    %v8720 = vshrl.u32 %v8719, 7
    %v8721 = vsub.s32 4, %v8720
    %v8722 = vrot.slane %v8602, %v8721
    %v8723 = vlaneseq
    %v8724 = vshrl.u32 %v8723, 7
    %v8725 = vsub.s32 5, %v8724
    %v8726 = vrot.slane %v8602, %v8725
    %v8727 = vlaneseq
    %v8728 = vshrl.u32 %v8727, 7
    %v8729 = vsub.s32 6, %v8728
    %v8730 = vrot.slane %v8602, %v8729
    %v8731 = vlaneseq
    %v8732 = vshrl.u32 %v8731, 7
    %v8733 = vsub.s32 7, %v8732
    %v8734 = vrot.slane %v8602, %v8733
    %8767 = vmatprep.subr.mxu0 %v7576
    %8768 = vmatpush1.msra.mxu0 %v7575
    %8769 = vmatprep.subr.mxu0 %v7608
    %8770 = vmatpush1.msra.mxu0 %v7607
    %8771 = vmatprep.subr.mxu0 %v7640
    %8772 = vmatpush1.msra.mxu0 %v7639
    %8773 = vmatprep.subr.mxu0 %v7672
    %8774 = vmatpush1.msra.mxu0 %v7671
    %8775 = vmatprep.subr.mxu0 %v7704
    %8776 = vmatpush1.msra.mxu0 %v7703
    %8777 = vmatprep.subr.mxu0 %v7736
    %8778 = vmatpush1.msra.mxu0 %v7735
    %8779 = vmatprep.subr.mxu0 %v7768
    %8780 = vmatpush1.msra.mxu0 %v7767
    %8781 = vmatprep.subr.mxu0 %v7800
    %8782 = vmatpush1.msra.mxu0 %v7799
    %8783 = vmatprep.subr.mxu0 %v7832
    %8784 = vmatpush1.msra.mxu0 %v7831
    %8785 = vmatprep.subr.mxu0 %v7864
    %8786 = vmatpush1.msra.mxu0 %v7863
    %8787 = vmatprep.subr.mxu0 %v7896
    %8788 = vmatpush1.msra.mxu0 %v7895
    %8789 = vmatprep.subr.mxu0 %v7928
    %8790 = vmatpush1.msra.mxu0 %v7927
    %8791 = vmatprep.subr.mxu0 %v7960
    %8792 = vmatpush1.msra.mxu0 %v7959
    %8793 = vmatprep.subr.mxu0 %v7992
    %8794 = vmatpush1.msra.mxu0 %v7991
    %8795 = vmatprep.subr.mxu0 %v8024
    %8796 = vmatpush1.msra.mxu0 %v8023
    %8797 = vmatprep.subr.mxu0 %v8056
    %8798 = vmatpush1.msra.mxu0 %v8055
    %8799 = vmatprep.subr.mxu0 %v8088
    %8800 = vmatpush1.msra.mxu0 %v8087
    %8801 = vmatprep.subr.mxu0 %v8120
    %8802 = vmatpush1.msra.mxu0 %v8119
    %8803 = vmatprep.subr.mxu0 %v8152
    %8804 = vmatpush1.msra.mxu0 %v8151
    %8805 = vmatprep.subr.mxu0 %v8184
    %8806 = vmatpush1.msra.mxu0 %v8183
    %8807 = vmatprep.subr.mxu0 %v8216
    %8808 = vmatpush1.msra.mxu0 %v8215
    %8809 = vmatprep.subr.mxu0 %v8248
    %8810 = vmatpush1.msra.mxu0 %v8247
    %8811 = vmatprep.subr.mxu0 %v8280
    %8812 = vmatpush1.msra.mxu0 %v8279
    %8813 = vmatprep.subr.mxu0 %v8312
    %8814 = vmatpush1.msra.mxu0 %v8311
    %8815 = vmatprep.subr.mxu0 %v8344
    %8816 = vmatpush1.msra.mxu0 %v8343
    %8817 = vmatprep.subr.mxu0 %v8376
    %8818 = vmatpush1.msra.mxu0 %v8375
    %8819 = vmatprep.subr.mxu0 %v8408
    %8820 = vmatpush1.msra.mxu0 %v8407
    %8821 = vmatprep.subr.mxu0 %v8440
    %8822 = vmatpush1.msra.mxu0 %v8439
    %8823 = vmatprep.subr.mxu0 %v8472
    %8824 = vmatpush1.msra.mxu0 %v8471
    %8825 = vmatprep.subr.mxu0 %v8504
    %8826 = vmatpush1.msra.mxu0 %v8503
    %8827 = vmatprep.subr.mxu0 %v8536
    %8828 = vmatpush1.msra.mxu0 %v8535
    %8829 = vmatprep.subr.mxu0 %v8568
    %8830 = vmatpush1.msra.mxu0 %v8567
    %8831 = vmatprep.mubr.f32.mxu0 %v7058
    %8832 = vmatmul.mubr.f32.gmra.mrb[0].mxu0 %v7057
    %v8833 = vpop.f32.mrb[0].mxu0
    %v8834 = vadd.f32 %v8610, %v8833
    %v8835 = vpop.f32.mrb[0].mxu0
    %v8836 = vadd.f32 %v8614, %v8835
    %8837 = vdwg.mxu0
    %8838 = vmatprep.subr.mxu0 %v7578
    %8839 = vmatpush1.msra.mxu0 %v7577
    %8840 = vmatprep.subr.mxu0 %v7610
    %8841 = vmatpush1.msra.mxu0 %v7609
    %8842 = vmatprep.subr.mxu0 %v7642
    %8843 = vmatpush1.msra.mxu0 %v7641
    %8844 = vmatprep.subr.mxu0 %v7674
    %8845 = vmatpush1.msra.mxu0 %v7673
    %8846 = vmatprep.subr.mxu0 %v7706
    %8847 = vmatpush1.msra.mxu0 %v7705
    %8848 = vmatprep.subr.mxu0 %v7738
    %8849 = vmatpush1.msra.mxu0 %v7737
    %8850 = vmatprep.subr.mxu0 %v7770
    %8851 = vmatpush1.msra.mxu0 %v7769
    %8852 = vmatprep.subr.mxu0 %v7802
    %8853 = vmatpush1.msra.mxu0 %v7801
    %8854 = vmatprep.subr.mxu0 %v7834
    %8855 = vmatpush1.msra.mxu0 %v7833
    %8856 = vmatprep.subr.mxu0 %v7866
    %8857 = vmatpush1.msra.mxu0 %v7865
    %8858 = vmatprep.subr.mxu0 %v7898
    %8859 = vmatpush1.msra.mxu0 %v7897
    %8860 = vmatprep.subr.mxu0 %v7930
    %8861 = vmatpush1.msra.mxu0 %v7929
    %8862 = vmatprep.subr.mxu0 %v7962
    %8863 = vmatpush1.msra.mxu0 %v7961
    %8864 = vmatprep.subr.mxu0 %v7994
    %8865 = vmatpush1.msra.mxu0 %v7993
    %8866 = vmatprep.subr.mxu0 %v8026
    %8867 = vmatpush1.msra.mxu0 %v8025
    %8868 = vmatprep.subr.mxu0 %v8058
    %8869 = vmatpush1.msra.mxu0 %v8057
    %8870 = vmatprep.subr.mxu0 %v8090
    %8871 = vmatpush1.msra.mxu0 %v8089
    %8872 = vmatprep.subr.mxu0 %v8122
    %8873 = vmatpush1.msra.mxu0 %v8121
    %8874 = vmatprep.subr.mxu0 %v8154
    %8875 = vmatpush1.msra.mxu0 %v8153
    %8876 = vmatprep.subr.mxu0 %v8186
    %8877 = vmatpush1.msra.mxu0 %v8185
    %8878 = vmatprep.subr.mxu0 %v8218
    %8879 = vmatpush1.msra.mxu0 %v8217
    %8880 = vmatprep.subr.mxu0 %v8250
    %8881 = vmatpush1.msra.mxu0 %v8249
    %8882 = vmatprep.subr.mxu0 %v8282
    %8883 = vmatpush1.msra.mxu0 %v8281
    %8884 = vmatprep.subr.mxu0 %v8314
    %8885 = vmatpush1.msra.mxu0 %v8313
    %8886 = vmatprep.subr.mxu0 %v8346
    %8887 = vmatpush1.msra.mxu0 %v8345
    %8888 = vmatprep.subr.mxu0 %v8378
    %8889 = vmatpush1.msra.mxu0 %v8377
    %8890 = vmatprep.subr.mxu0 %v8410
    %8891 = vmatpush1.msra.mxu0 %v8409
    %8892 = vmatprep.subr.mxu0 %v8442
    %8893 = vmatpush1.msra.mxu0 %v8441
    %8894 = vmatprep.subr.mxu0 %v8474
    %8895 = vmatpush1.msra.mxu0 %v8473
    %8896 = vmatprep.subr.mxu0 %v8506
    %8897 = vmatpush1.msra.mxu0 %v8505
    %8898 = vmatprep.subr.mxu0 %v8538
    %8899 = vmatpush1.msra.mxu0 %v8537
    %8900 = vmatprep.subr.mxu0 %v8570
    %8901 = vmatpush1.msra.mxu0 %v8569
    %8902 = vmatprep.mubr.f32.mxu0 %v7058
    %8903 = vmatmul.mubr.f32.gmra.mrb[0].mxu0 %v7057
    %v8904 = vpop.f32.mrb[0].mxu0
    %v8905 = vadd.f32 %v8618, %v8904
    %v8906 = vpop.f32.mrb[0].mxu0
    %v8907 = vadd.f32 %v8622, %v8906
    %8908 = vdwg.mxu0
    %8909 = vmatprep.subr.mxu0 %v7580
    %8910 = vmatpush1.msra.mxu0 %v7579
    %8911 = vmatprep.subr.mxu0 %v7612
    %8912 = vmatpush1.msra.mxu0 %v7611
    %8913 = vmatprep.subr.mxu0 %v7644
    %8914 = vmatpush1.msra.mxu0 %v7643
    %8915 = vmatprep.subr.mxu0 %v7676
    %8916 = vmatpush1.msra.mxu0 %v7675
    %8917 = vmatprep.subr.mxu0 %v7708
    %8918 = vmatpush1.msra.mxu0 %v7707
    %8919 = vmatprep.subr.mxu0 %v7740
    %8920 = vmatpush1.msra.mxu0 %v7739
    %8921 = vmatprep.subr.mxu0 %v7772
    %8922 = vmatpush1.msra.mxu0 %v7771
    %8923 = vmatprep.subr.mxu0 %v7804
    %8924 = vmatpush1.msra.mxu0 %v7803
    %8925 = vmatprep.subr.mxu0 %v7836
    %8926 = vmatpush1.msra.mxu0 %v7835
    %8927 = vmatprep.subr.mxu0 %v7868
    %8928 = vmatpush1.msra.mxu0 %v7867
    %8929 = vmatprep.subr.mxu0 %v7900
    %8930 = vmatpush1.msra.mxu0 %v7899
    %8931 = vmatprep.subr.mxu0 %v7932
    %8932 = vmatpush1.msra.mxu0 %v7931
    %8933 = vmatprep.subr.mxu0 %v7964
    %8934 = vmatpush1.msra.mxu0 %v7963
    %8935 = vmatprep.subr.mxu0 %v7996
    %8936 = vmatpush1.msra.mxu0 %v7995
    %8937 = vmatprep.subr.mxu0 %v8028
    %8938 = vmatpush1.msra.mxu0 %v8027
    %8939 = vmatprep.subr.mxu0 %v8060
    %8940 = vmatpush1.msra.mxu0 %v8059
    %8941 = vmatprep.subr.mxu0 %v8092
    %8942 = vmatpush1.msra.mxu0 %v8091
    %8943 = vmatprep.subr.mxu0 %v8124
    %8944 = vmatpush1.msra.mxu0 %v8123
    %8945 = vmatprep.subr.mxu0 %v8156
    %8946 = vmatpush1.msra.mxu0 %v8155
    %8947 = vmatprep.subr.mxu0 %v8188
    %8948 = vmatpush1.msra.mxu0 %v8187
    %8949 = vmatprep.subr.mxu0 %v8220
    %8950 = vmatpush1.msra.mxu0 %v8219
    %8951 = vmatprep.subr.mxu0 %v8252
    %8952 = vmatpush1.msra.mxu0 %v8251
    %8953 = vmatprep.subr.mxu0 %v8284
    %8954 = vmatpush1.msra.mxu0 %v8283
    %8955 = vmatprep.subr.mxu0 %v8316
    %8956 = vmatpush1.msra.mxu0 %v8315
    %8957 = vmatprep.subr.mxu0 %v8348
    %8958 = vmatpush1.msra.mxu0 %v8347
    %8959 = vmatprep.subr.mxu0 %v8380
    %8960 = vmatpush1.msra.mxu0 %v8379
    %8961 = vmatprep.subr.mxu0 %v8412
    %8962 = vmatpush1.msra.mxu0 %v8411
    %8963 = vmatprep.subr.mxu0 %v8444
    %8964 = vmatpush1.msra.mxu0 %v8443
    %8965 = vmatprep.subr.mxu0 %v8476
    %8966 = vmatpush1.msra.mxu0 %v8475
    %8967 = vmatprep.subr.mxu0 %v8508
    %8968 = vmatpush1.msra.mxu0 %v8507
    %8969 = vmatprep.subr.mxu0 %v8540
    %8970 = vmatpush1.msra.mxu0 %v8539
    %8971 = vmatprep.subr.mxu0 %v8572
    %8972 = vmatpush1.msra.mxu0 %v8571
    %8973 = vmatprep.mubr.f32.mxu0 %v7058
    %8974 = vmatmul.mubr.f32.gmra.mrb[0].mxu0 %v7057
    %v8975 = vpop.f32.mrb[0].mxu0
    %v8976 = vadd.f32 %v8626, %v8975
    %v8977 = vpop.f32.mrb[0].mxu0
    %v8978 = vadd.f32 %v8630, %v8977
    %8979 = vdwg.mxu0
    %8980 = vmatprep.subr.mxu0 %v7582
    %8981 = vmatpush1.msra.mxu0 %v7581
    %8982 = vmatprep.subr.mxu0 %v7614
    %8983 = vmatpush1.msra.mxu0 %v7613
    %8984 = vmatprep.subr.mxu0 %v7646
    %8985 = vmatpush1.msra.mxu0 %v7645
    %8986 = vmatprep.subr.mxu0 %v7678
    %8987 = vmatpush1.msra.mxu0 %v7677
    %8988 = vmatprep.subr.mxu0 %v7710
    %8989 = vmatpush1.msra.mxu0 %v7709
    %8990 = vmatprep.subr.mxu0 %v7742
    %8991 = vmatpush1.msra.mxu0 %v7741
    %8992 = vmatprep.subr.mxu0 %v7774
    %8993 = vmatpush1.msra.mxu0 %v7773
    %8994 = vmatprep.subr.mxu0 %v7806
    %8995 = vmatpush1.msra.mxu0 %v7805
    %8996 = vmatprep.subr.mxu0 %v7838
    %8997 = vmatpush1.msra.mxu0 %v7837
    %8998 = vmatprep.subr.mxu0 %v7870
    %8999 = vmatpush1.msra.mxu0 %v7869
    %9000 = vmatprep.subr.mxu0 %v7902
    %9001 = vmatpush1.msra.mxu0 %v7901
    %9002 = vmatprep.subr.mxu0 %v7934
    %9003 = vmatpush1.msra.mxu0 %v7933
    %9004 = vmatprep.subr.mxu0 %v7966
    %9005 = vmatpush1.msra.mxu0 %v7965
    %9006 = vmatprep.subr.mxu0 %v7998
    %9007 = vmatpush1.msra.mxu0 %v7997
    %9008 = vmatprep.subr.mxu0 %v8030
    %9009 = vmatpush1.msra.mxu0 %v8029
    %9010 = vmatprep.subr.mxu0 %v8062
    %9011 = vmatpush1.msra.mxu0 %v8061
    %9012 = vmatprep.subr.mxu0 %v8094
    %9013 = vmatpush1.msra.mxu0 %v8093
    %9014 = vmatprep.subr.mxu0 %v8126
    %9015 = vmatpush1.msra.mxu0 %v8125
    %9016 = vmatprep.subr.mxu0 %v8158
    %9017 = vmatpush1.msra.mxu0 %v8157
    %9018 = vmatprep.subr.mxu0 %v8190
    %9019 = vmatpush1.msra.mxu0 %v8189
    %9020 = vmatprep.subr.mxu0 %v8222
    %9021 = vmatpush1.msra.mxu0 %v8221
    %9022 = vmatprep.subr.mxu0 %v8254
    %9023 = vmatpush1.msra.mxu0 %v8253
    %9024 = vmatprep.subr.mxu0 %v8286
    %9025 = vmatpush1.msra.mxu0 %v8285
    %9026 = vmatprep.subr.mxu0 %v8318
    %9027 = vmatpush1.msra.mxu0 %v8317
    %9028 = vmatprep.subr.mxu0 %v8350
    %9029 = vmatpush1.msra.mxu0 %v8349
    %9030 = vmatprep.subr.mxu0 %v8382
    %9031 = vmatpush1.msra.mxu0 %v8381
    %9032 = vmatprep.subr.mxu0 %v8414
    %9033 = vmatpush1.msra.mxu0 %v8413
    %9034 = vmatprep.subr.mxu0 %v8446
    %9035 = vmatpush1.msra.mxu0 %v8445
    %9036 = vmatprep.subr.mxu0 %v8478
    %9037 = vmatpush1.msra.mxu0 %v8477
    %9038 = vmatprep.subr.mxu0 %v8510
    %9039 = vmatpush1.msra.mxu0 %v8509
    %9040 = vmatprep.subr.mxu0 %v8542
    %9041 = vmatpush1.msra.mxu0 %v8541
    %9042 = vmatprep.subr.mxu0 %v8574
    %9043 = vmatpush1.msra.mxu0 %v8573
    %9044 = vmatprep.mubr.f32.mxu0 %v7058
    %9045 = vmatmul.mubr.f32.gmra.mrb[0].mxu0 %v7057
    %v9046 = vpop.f32.mrb[0].mxu0
    %v9047 = vadd.f32 %v8634, %v9046
    %v9048 = vpop.f32.mrb[0].mxu0
    %v9049 = vadd.f32 %v8638, %v9048
    %9050 = vdwg.mxu0
    %9051 = vmatprep.subr.mxu0 %v7584
    %9052 = vmatpush1.msra.mxu0 %v7583
    %9053 = vmatprep.subr.mxu0 %v7616
    %9054 = vmatpush1.msra.mxu0 %v7615
    %9055 = vmatprep.subr.mxu0 %v7648
    %9056 = vmatpush1.msra.mxu0 %v7647
    %9057 = vmatprep.subr.mxu0 %v7680
    %9058 = vmatpush1.msra.mxu0 %v7679
    %9059 = vmatprep.subr.mxu0 %v7712
    %9060 = vmatpush1.msra.mxu0 %v7711
    %9061 = vmatprep.subr.mxu0 %v7744
    %9062 = vmatpush1.msra.mxu0 %v7743
    %9063 = vmatprep.subr.mxu0 %v7776
    %9064 = vmatpush1.msra.mxu0 %v7775
    %9065 = vmatprep.subr.mxu0 %v7808
    %9066 = vmatpush1.msra.mxu0 %v7807
    %9067 = vmatprep.subr.mxu0 %v7840
    %9068 = vmatpush1.msra.mxu0 %v7839
    %9069 = vmatprep.subr.mxu0 %v7872
    %9070 = vmatpush1.msra.mxu0 %v7871
    %9071 = vmatprep.subr.mxu0 %v7904
    %9072 = vmatpush1.msra.mxu0 %v7903
    %9073 = vmatprep.subr.mxu0 %v7936
    %9074 = vmatpush1.msra.mxu0 %v7935
    %9075 = vmatprep.subr.mxu0 %v7968
    %9076 = vmatpush1.msra.mxu0 %v7967
    %9077 = vmatprep.subr.mxu0 %v8000
    %9078 = vmatpush1.msra.mxu0 %v7999
    %9079 = vmatprep.subr.mxu0 %v8032
    %9080 = vmatpush1.msra.mxu0 %v8031
    %9081 = vmatprep.subr.mxu0 %v8064
    %9082 = vmatpush1.msra.mxu0 %v8063
    %9083 = vmatprep.subr.mxu0 %v8096
    %9084 = vmatpush1.msra.mxu0 %v8095
    %9085 = vmatprep.subr.mxu0 %v8128
    %9086 = vmatpush1.msra.mxu0 %v8127
    %9087 = vmatprep.subr.mxu0 %v8160
    %9088 = vmatpush1.msra.mxu0 %v8159
    %9089 = vmatprep.subr.mxu0 %v8192
    %9090 = vmatpush1.msra.mxu0 %v8191
    %9091 = vmatprep.subr.mxu0 %v8224
    %9092 = vmatpush1.msra.mxu0 %v8223
    %9093 = vmatprep.subr.mxu0 %v8256
    %9094 = vmatpush1.msra.mxu0 %v8255
    %9095 = vmatprep.subr.mxu0 %v8288
    %9096 = vmatpush1.msra.mxu0 %v8287
    %9097 = vmatprep.subr.mxu0 %v8320
    %9098 = vmatpush1.msra.mxu0 %v8319
    %9099 = vmatprep.subr.mxu0 %v8352
    %9100 = vmatpush1.msra.mxu0 %v8351
    %9101 = vmatprep.subr.mxu0 %v8384
    %9102 = vmatpush1.msra.mxu0 %v8383
    %9103 = vmatprep.subr.mxu0 %v8416
    %9104 = vmatpush1.msra.mxu0 %v8415
    %9105 = vmatprep.subr.mxu0 %v8448
    %9106 = vmatpush1.msra.mxu0 %v8447
    %9107 = vmatprep.subr.mxu0 %v8480
    %9108 = vmatpush1.msra.mxu0 %v8479
    %9109 = vmatprep.subr.mxu0 %v8512
    %9110 = vmatpush1.msra.mxu0 %v8511
    %9111 = vmatprep.subr.mxu0 %v8544
    %9112 = vmatpush1.msra.mxu0 %v8543
    %9113 = vmatprep.subr.mxu0 %v8576
    %9114 = vmatpush1.msra.mxu0 %v8575
    %9115 = vmatprep.mubr.f32.mxu0 %v7058
    %9116 = vmatmul.mubr.f32.gmra.mrb[0].mxu0 %v7057
    %v9117 = vpop.f32.mrb[0].mxu0
    %v9118 = vadd.f32 %v8642, %v9117
    %v9119 = vpop.f32.mrb[0].mxu0
    %v9120 = vadd.f32 %v8646, %v9119
    %9121 = vdwg.mxu0
    %9122 = vmatprep.subr.mxu0 %v7586
    %9123 = vmatpush1.msra.mxu0 %v7585
    %9124 = vmatprep.subr.mxu0 %v7618
    %9125 = vmatpush1.msra.mxu0 %v7617
    %9126 = vmatprep.subr.mxu0 %v7650
    %9127 = vmatpush1.msra.mxu0 %v7649
    %9128 = vmatprep.subr.mxu0 %v7682
    %9129 = vmatpush1.msra.mxu0 %v7681
    %9130 = vmatprep.subr.mxu0 %v7714
    %9131 = vmatpush1.msra.mxu0 %v7713
    %9132 = vmatprep.subr.mxu0 %v7746
    %9133 = vmatpush1.msra.mxu0 %v7745
    %9134 = vmatprep.subr.mxu0 %v7778
    %9135 = vmatpush1.msra.mxu0 %v7777
    %9136 = vmatprep.subr.mxu0 %v7810
    %9137 = vmatpush1.msra.mxu0 %v7809
    %9138 = vmatprep.subr.mxu0 %v7842
    %9139 = vmatpush1.msra.mxu0 %v7841
    %9140 = vmatprep.subr.mxu0 %v7874
    %9141 = vmatpush1.msra.mxu0 %v7873
    %9142 = vmatprep.subr.mxu0 %v7906
    %9143 = vmatpush1.msra.mxu0 %v7905
    %9144 = vmatprep.subr.mxu0 %v7938
    %9145 = vmatpush1.msra.mxu0 %v7937
    %9146 = vmatprep.subr.mxu0 %v7970
    %9147 = vmatpush1.msra.mxu0 %v7969
    %9148 = vmatprep.subr.mxu0 %v8002
    %9149 = vmatpush1.msra.mxu0 %v8001
    %9150 = vmatprep.subr.mxu0 %v8034
    %9151 = vmatpush1.msra.mxu0 %v8033
    %9152 = vmatprep.subr.mxu0 %v8066
    %9153 = vmatpush1.msra.mxu0 %v8065
    %9154 = vmatprep.subr.mxu0 %v8098
    %9155 = vmatpush1.msra.mxu0 %v8097
    %9156 = vmatprep.subr.mxu0 %v8130
    %9157 = vmatpush1.msra.mxu0 %v8129
    %9158 = vmatprep.subr.mxu0 %v8162
    %9159 = vmatpush1.msra.mxu0 %v8161
    %9160 = vmatprep.subr.mxu0 %v8194
    %9161 = vmatpush1.msra.mxu0 %v8193
    %9162 = vmatprep.subr.mxu0 %v8226
    %9163 = vmatpush1.msra.mxu0 %v8225
    %9164 = vmatprep.subr.mxu0 %v8258
    %9165 = vmatpush1.msra.mxu0 %v8257
    %9166 = vmatprep.subr.mxu0 %v8290
    %9167 = vmatpush1.msra.mxu0 %v8289
    %9168 = vmatprep.subr.mxu0 %v8322
    %9169 = vmatpush1.msra.mxu0 %v8321
    %9170 = vmatprep.subr.mxu0 %v8354
    %9171 = vmatpush1.msra.mxu0 %v8353
    %9172 = vmatprep.subr.mxu0 %v8386
    %9173 = vmatpush1.msra.mxu0 %v8385
    %9174 = vmatprep.subr.mxu0 %v8418
    %9175 = vmatpush1.msra.mxu0 %v8417
    %9176 = vmatprep.subr.mxu0 %v8450
    %9177 = vmatpush1.msra.mxu0 %v8449
    %9178 = vmatprep.subr.mxu0 %v8482
    %9179 = vmatpush1.msra.mxu0 %v8481
    %9180 = vmatprep.subr.mxu0 %v8514
    %9181 = vmatpush1.msra.mxu0 %v8513
    %9182 = vmatprep.subr.mxu0 %v8546
    %9183 = vmatpush1.msra.mxu0 %v8545
    %9184 = vmatprep.subr.mxu0 %v8578
    %9185 = vmatpush1.msra.mxu0 %v8577
    %9186 = vmatprep.mubr.f32.mxu0 %v7058
    %9187 = vmatmul.mubr.f32.gmra.mrb[0].mxu0 %v7057
    %v9188 = vpop.f32.mrb[0].mxu0
    %v9189 = vadd.f32 %v8650, %v9188
    %v9190 = vpop.f32.mrb[0].mxu0
    %v9191 = vadd.f32 %v8654, %v9190
    %9192 = vdwg.mxu0
    %9193 = vmatprep.subr.mxu0 %v7588
    %9194 = vmatpush1.msra.mxu0 %v7587
    %9195 = vmatprep.subr.mxu0 %v7620
    %9196 = vmatpush1.msra.mxu0 %v7619
    %9197 = vmatprep.subr.mxu0 %v7652
    %9198 = vmatpush1.msra.mxu0 %v7651
    %9199 = vmatprep.subr.mxu0 %v7684
    %9200 = vmatpush1.msra.mxu0 %v7683
    %9201 = vmatprep.subr.mxu0 %v7716
    %9202 = vmatpush1.msra.mxu0 %v7715
    %9203 = vmatprep.subr.mxu0 %v7748
    %9204 = vmatpush1.msra.mxu0 %v7747
    %9205 = vmatprep.subr.mxu0 %v7780
    %9206 = vmatpush1.msra.mxu0 %v7779
    %9207 = vmatprep.subr.mxu0 %v7812
    %9208 = vmatpush1.msra.mxu0 %v7811
    %9209 = vmatprep.subr.mxu0 %v7844
    %9210 = vmatpush1.msra.mxu0 %v7843
    %9211 = vmatprep.subr.mxu0 %v7876
    %9212 = vmatpush1.msra.mxu0 %v7875
    %9213 = vmatprep.subr.mxu0 %v7908
    %9214 = vmatpush1.msra.mxu0 %v7907
    %9215 = vmatprep.subr.mxu0 %v7940
    %9216 = vmatpush1.msra.mxu0 %v7939
    %9217 = vmatprep.subr.mxu0 %v7972
    %9218 = vmatpush1.msra.mxu0 %v7971
    %9219 = vmatprep.subr.mxu0 %v8004
    %9220 = vmatpush1.msra.mxu0 %v8003
    %9221 = vmatprep.subr.mxu0 %v8036
    %9222 = vmatpush1.msra.mxu0 %v8035
    %9223 = vmatprep.subr.mxu0 %v8068
    %9224 = vmatpush1.msra.mxu0 %v8067
    %9225 = vmatprep.subr.mxu0 %v8100
    %9226 = vmatpush1.msra.mxu0 %v8099
    %9227 = vmatprep.subr.mxu0 %v8132
    %9228 = vmatpush1.msra.mxu0 %v8131
    %9229 = vmatprep.subr.mxu0 %v8164
    %9230 = vmatpush1.msra.mxu0 %v8163
    %9231 = vmatprep.subr.mxu0 %v8196
    %9232 = vmatpush1.msra.mxu0 %v8195
    %9233 = vmatprep.subr.mxu0 %v8228
    %9234 = vmatpush1.msra.mxu0 %v8227
    %9235 = vmatprep.subr.mxu0 %v8260
    %9236 = vmatpush1.msra.mxu0 %v8259
    %9237 = vmatprep.subr.mxu0 %v8292
    %9238 = vmatpush1.msra.mxu0 %v8291
    %9239 = vmatprep.subr.mxu0 %v8324
    %9240 = vmatpush1.msra.mxu0 %v8323
    %9241 = vmatprep.subr.mxu0 %v8356
    %9242 = vmatpush1.msra.mxu0 %v8355
    %9243 = vmatprep.subr.mxu0 %v8388
    %9244 = vmatpush1.msra.mxu0 %v8387
    %9245 = vmatprep.subr.mxu0 %v8420
    %9246 = vmatpush1.msra.mxu0 %v8419
    %9247 = vmatprep.subr.mxu0 %v8452
    %9248 = vmatpush1.msra.mxu0 %v8451
    %9249 = vmatprep.subr.mxu0 %v8484
    %9250 = vmatpush1.msra.mxu0 %v8483
    %9251 = vmatprep.subr.mxu0 %v8516
    %9252 = vmatpush1.msra.mxu0 %v8515
    %9253 = vmatprep.subr.mxu0 %v8548
    %9254 = vmatpush1.msra.mxu0 %v8547
    %9255 = vmatprep.subr.mxu0 %v8580
    %9256 = vmatpush1.msra.mxu0 %v8579
    %9257 = vmatprep.mubr.f32.mxu0 %v7058
    %9258 = vmatmul.mubr.f32.gmra.mrb[0].mxu0 %v7057
    %v9259 = vpop.f32.mrb[0].mxu0
    %v9260 = vadd.f32 %v8658, %v9259
    %v9261 = vpop.f32.mrb[0].mxu0
    %v9262 = vadd.f32 %v8662, %v9261
    %9263 = vdwg.mxu0
    %9264 = vmatprep.subr.mxu0 %v7590
    %9265 = vmatpush1.msra.mxu0 %v7589
    %9266 = vmatprep.subr.mxu0 %v7622
    %9267 = vmatpush1.msra.mxu0 %v7621
    %9268 = vmatprep.subr.mxu0 %v7654
    %9269 = vmatpush1.msra.mxu0 %v7653
    %9270 = vmatprep.subr.mxu0 %v7686
    %9271 = vmatpush1.msra.mxu0 %v7685
    %9272 = vmatprep.subr.mxu0 %v7718
    %9273 = vmatpush1.msra.mxu0 %v7717
    %9274 = vmatprep.subr.mxu0 %v7750
    %9275 = vmatpush1.msra.mxu0 %v7749
    %9276 = vmatprep.subr.mxu0 %v7782
    %9277 = vmatpush1.msra.mxu0 %v7781
    %9278 = vmatprep.subr.mxu0 %v7814
    %9279 = vmatpush1.msra.mxu0 %v7813
    %9280 = vmatprep.subr.mxu0 %v7846
    %9281 = vmatpush1.msra.mxu0 %v7845
    %9282 = vmatprep.subr.mxu0 %v7878
    %9283 = vmatpush1.msra.mxu0 %v7877
    %9284 = vmatprep.subr.mxu0 %v7910
    %9285 = vmatpush1.msra.mxu0 %v7909
    %9286 = vmatprep.subr.mxu0 %v7942
    %9287 = vmatpush1.msra.mxu0 %v7941
    %9288 = vmatprep.subr.mxu0 %v7974
    %9289 = vmatpush1.msra.mxu0 %v7973
    %9290 = vmatprep.subr.mxu0 %v8006
    %9291 = vmatpush1.msra.mxu0 %v8005
    %9292 = vmatprep.subr.mxu0 %v8038
    %9293 = vmatpush1.msra.mxu0 %v8037
    %9294 = vmatprep.subr.mxu0 %v8070
    %9295 = vmatpush1.msra.mxu0 %v8069
    %9296 = vmatprep.subr.mxu0 %v8102
    %9297 = vmatpush1.msra.mxu0 %v8101
    %9298 = vmatprep.subr.mxu0 %v8134
    %9299 = vmatpush1.msra.mxu0 %v8133
    %9300 = vmatprep.subr.mxu0 %v8166
    %9301 = vmatpush1.msra.mxu0 %v8165
    %9302 = vmatprep.subr.mxu0 %v8198
    %9303 = vmatpush1.msra.mxu0 %v8197
    %9304 = vmatprep.subr.mxu0 %v8230
    %9305 = vmatpush1.msra.mxu0 %v8229
    %9306 = vmatprep.subr.mxu0 %v8262
    %9307 = vmatpush1.msra.mxu0 %v8261
    %9308 = vmatprep.subr.mxu0 %v8294
    %9309 = vmatpush1.msra.mxu0 %v8293
    %9310 = vmatprep.subr.mxu0 %v8326
    %9311 = vmatpush1.msra.mxu0 %v8325
    %9312 = vmatprep.subr.mxu0 %v8358
    %9313 = vmatpush1.msra.mxu0 %v8357
    %9314 = vmatprep.subr.mxu0 %v8390
    %9315 = vmatpush1.msra.mxu0 %v8389
    %9316 = vmatprep.subr.mxu0 %v8422
    %9317 = vmatpush1.msra.mxu0 %v8421
    %9318 = vmatprep.subr.mxu0 %v8454
    %9319 = vmatpush1.msra.mxu0 %v8453
    %9320 = vmatprep.subr.mxu0 %v8486
    %9321 = vmatpush1.msra.mxu0 %v8485
    %9322 = vmatprep.subr.mxu0 %v8518
    %9323 = vmatpush1.msra.mxu0 %v8517
    %9324 = vmatprep.subr.mxu0 %v8550
    %9325 = vmatpush1.msra.mxu0 %v8549
    %9326 = vmatprep.subr.mxu0 %v8582
    %9327 = vmatpush1.msra.mxu0 %v8581
    %9328 = vmatprep.mubr.f32.mxu0 %v7058
    %9329 = vmatmul.mubr.f32.gmra.mrb[0].mxu0 %v7057
    %v9330 = vpop.f32.mrb[0].mxu0
    %v9331 = vadd.f32 %v8666, %v9330
    %v9332 = vpop.f32.mrb[0].mxu0
    %v9333 = vadd.f32 %v8670, %v9332
    %9334 = vdwg.mxu0
    %9335 = vmatprep.subr.mxu0 %v7592
    %9336 = vmatpush1.msra.mxu0 %v7591
    %9337 = vmatprep.subr.mxu0 %v7624
    %9338 = vmatpush1.msra.mxu0 %v7623
    %9339 = vmatprep.subr.mxu0 %v7656
    %9340 = vmatpush1.msra.mxu0 %v7655
    %9341 = vmatprep.subr.mxu0 %v7688
    %9342 = vmatpush1.msra.mxu0 %v7687
    %9343 = vmatprep.subr.mxu0 %v7720
    %9344 = vmatpush1.msra.mxu0 %v7719
    %9345 = vmatprep.subr.mxu0 %v7752
    %9346 = vmatpush1.msra.mxu0 %v7751
    %9347 = vmatprep.subr.mxu0 %v7784
    %9348 = vmatpush1.msra.mxu0 %v7783
    %9349 = vmatprep.subr.mxu0 %v7816
    %9350 = vmatpush1.msra.mxu0 %v7815
    %9351 = vmatprep.subr.mxu0 %v7848
    %9352 = vmatpush1.msra.mxu0 %v7847
    %9353 = vmatprep.subr.mxu0 %v7880
    %9354 = vmatpush1.msra.mxu0 %v7879
    %9355 = vmatprep.subr.mxu0 %v7912
    %9356 = vmatpush1.msra.mxu0 %v7911
    %9357 = vmatprep.subr.mxu0 %v7944
    %9358 = vmatpush1.msra.mxu0 %v7943
    %9359 = vmatprep.subr.mxu0 %v7976
    %9360 = vmatpush1.msra.mxu0 %v7975
    %9361 = vmatprep.subr.mxu0 %v8008
    %9362 = vmatpush1.msra.mxu0 %v8007
    %9363 = vmatprep.subr.mxu0 %v8040
    %9364 = vmatpush1.msra.mxu0 %v8039
    %9365 = vmatprep.subr.mxu0 %v8072
    %9366 = vmatpush1.msra.mxu0 %v8071
    %9367 = vmatprep.subr.mxu0 %v8104
    %9368 = vmatpush1.msra.mxu0 %v8103
    %9369 = vmatprep.subr.mxu0 %v8136
    %9370 = vmatpush1.msra.mxu0 %v8135
    %9371 = vmatprep.subr.mxu0 %v8168
    %9372 = vmatpush1.msra.mxu0 %v8167
    %9373 = vmatprep.subr.mxu0 %v8200
    %9374 = vmatpush1.msra.mxu0 %v8199
    %9375 = vmatprep.subr.mxu0 %v8232
    %9376 = vmatpush1.msra.mxu0 %v8231
    %9377 = vmatprep.subr.mxu0 %v8264
    %9378 = vmatpush1.msra.mxu0 %v8263
    %9379 = vmatprep.subr.mxu0 %v8296
    %9380 = vmatpush1.msra.mxu0 %v8295
    %9381 = vmatprep.subr.mxu0 %v8328
    %9382 = vmatpush1.msra.mxu0 %v8327
    %9383 = vmatprep.subr.mxu0 %v8360
    %9384 = vmatpush1.msra.mxu0 %v8359
    %9385 = vmatprep.subr.mxu0 %v8392
    %9386 = vmatpush1.msra.mxu0 %v8391
    %9387 = vmatprep.subr.mxu0 %v8424
    %9388 = vmatpush1.msra.mxu0 %v8423
    %9389 = vmatprep.subr.mxu0 %v8456
    %9390 = vmatpush1.msra.mxu0 %v8455
    %9391 = vmatprep.subr.mxu0 %v8488
    %9392 = vmatpush1.msra.mxu0 %v8487
    %9393 = vmatprep.subr.mxu0 %v8520
    %9394 = vmatpush1.msra.mxu0 %v8519
    %9395 = vmatprep.subr.mxu0 %v8552
    %9396 = vmatpush1.msra.mxu0 %v8551
    %9397 = vmatprep.subr.mxu0 %v8584
    %9398 = vmatpush1.msra.mxu0 %v8583
    %9399 = vmatprep.mubr.f32.mxu0 %v7058
    %9400 = vmatmul.mubr.f32.gmra.mrb[0].mxu0 %v7057
    %v9401 = vpop.f32.mrb[0].mxu0
    %v9402 = vadd.f32 %v8674, %v9401
    %v9403 = vpop.f32.mrb[0].mxu0
    %v9404 = vadd.f32 %v8678, %v9403
    %9405 = vdwg.mxu0
    %9406 = vmatprep.subr.mxu0 %v7594
    %9407 = vmatpush1.msra.mxu0 %v7593
    %9408 = vmatprep.subr.mxu0 %v7626
    %9409 = vmatpush1.msra.mxu0 %v7625
    %9410 = vmatprep.subr.mxu0 %v7658
    %9411 = vmatpush1.msra.mxu0 %v7657
    %9412 = vmatprep.subr.mxu0 %v7690
    %9413 = vmatpush1.msra.mxu0 %v7689
    %9414 = vmatprep.subr.mxu0 %v7722
    %9415 = vmatpush1.msra.mxu0 %v7721
    %9416 = vmatprep.subr.mxu0 %v7754
    %9417 = vmatpush1.msra.mxu0 %v7753
    %9418 = vmatprep.subr.mxu0 %v7786
    %9419 = vmatpush1.msra.mxu0 %v7785
    %9420 = vmatprep.subr.mxu0 %v7818
    %9421 = vmatpush1.msra.mxu0 %v7817
    %9422 = vmatprep.subr.mxu0 %v7850
    %9423 = vmatpush1.msra.mxu0 %v7849
    %9424 = vmatprep.subr.mxu0 %v7882
    %9425 = vmatpush1.msra.mxu0 %v7881
    %9426 = vmatprep.subr.mxu0 %v7914
    %9427 = vmatpush1.msra.mxu0 %v7913
    %9428 = vmatprep.subr.mxu0 %v7946
    %9429 = vmatpush1.msra.mxu0 %v7945
    %9430 = vmatprep.subr.mxu0 %v7978
    %9431 = vmatpush1.msra.mxu0 %v7977
    %9432 = vmatprep.subr.mxu0 %v8010
    %9433 = vmatpush1.msra.mxu0 %v8009
    %9434 = vmatprep.subr.mxu0 %v8042
    %9435 = vmatpush1.msra.mxu0 %v8041
    %9436 = vmatprep.subr.mxu0 %v8074
    %9437 = vmatpush1.msra.mxu0 %v8073
    %9438 = vmatprep.subr.mxu0 %v8106
    %9439 = vmatpush1.msra.mxu0 %v8105
    %9440 = vmatprep.subr.mxu0 %v8138
    %9441 = vmatpush1.msra.mxu0 %v8137
    %9442 = vmatprep.subr.mxu0 %v8170
    %9443 = vmatpush1.msra.mxu0 %v8169
    %9444 = vmatprep.subr.mxu0 %v8202
    %9445 = vmatpush1.msra.mxu0 %v8201
    %9446 = vmatprep.subr.mxu0 %v8234
    %9447 = vmatpush1.msra.mxu0 %v8233
    %9448 = vmatprep.subr.mxu0 %v8266
    %9449 = vmatpush1.msra.mxu0 %v8265
    %9450 = vmatprep.subr.mxu0 %v8298
    %9451 = vmatpush1.msra.mxu0 %v8297
    %9452 = vmatprep.subr.mxu0 %v8330
    %9453 = vmatpush1.msra.mxu0 %v8329
    %9454 = vmatprep.subr.mxu0 %v8362
    %9455 = vmatpush1.msra.mxu0 %v8361
    %9456 = vmatprep.subr.mxu0 %v8394
    %9457 = vmatpush1.msra.mxu0 %v8393
    %9458 = vmatprep.subr.mxu0 %v8426
    %9459 = vmatpush1.msra.mxu0 %v8425
    %9460 = vmatprep.subr.mxu0 %v8458
    %9461 = vmatpush1.msra.mxu0 %v8457
    %9462 = vmatprep.subr.mxu0 %v8490
    %9463 = vmatpush1.msra.mxu0 %v8489
    %9464 = vmatprep.subr.mxu0 %v8522
    %9465 = vmatpush1.msra.mxu0 %v8521
    %9466 = vmatprep.subr.mxu0 %v8554
    %9467 = vmatpush1.msra.mxu0 %v8553
    %9468 = vmatprep.subr.mxu0 %v8586
    %9469 = vmatpush1.msra.mxu0 %v8585
    %9470 = vmatprep.mubr.f32.mxu0 %v7058
    %9471 = vmatmul.mubr.f32.gmra.mrb[0].mxu0 %v7057
    %v9472 = vpop.f32.mrb[0].mxu0
    %v9473 = vadd.f32 %v8682, %v9472
    %v9474 = vpop.f32.mrb[0].mxu0
    %v9475 = vadd.f32 %v8686, %v9474
    %9476 = vdwg.mxu0
    %9477 = vmatprep.subr.mxu0 %v7596
    %9478 = vmatpush1.msra.mxu0 %v7595
    %9479 = vmatprep.subr.mxu0 %v7628
    %9480 = vmatpush1.msra.mxu0 %v7627
    %9481 = vmatprep.subr.mxu0 %v7660
    %9482 = vmatpush1.msra.mxu0 %v7659
    %9483 = vmatprep.subr.mxu0 %v7692
    %9484 = vmatpush1.msra.mxu0 %v7691
    %9485 = vmatprep.subr.mxu0 %v7724
    %9486 = vmatpush1.msra.mxu0 %v7723
    %9487 = vmatprep.subr.mxu0 %v7756
    %9488 = vmatpush1.msra.mxu0 %v7755
    %9489 = vmatprep.subr.mxu0 %v7788
    %9490 = vmatpush1.msra.mxu0 %v7787
    %9491 = vmatprep.subr.mxu0 %v7820
    %9492 = vmatpush1.msra.mxu0 %v7819
    %9493 = vmatprep.subr.mxu0 %v7852
    %9494 = vmatpush1.msra.mxu0 %v7851
    %9495 = vmatprep.subr.mxu0 %v7884
    %9496 = vmatpush1.msra.mxu0 %v7883
    %9497 = vmatprep.subr.mxu0 %v7916
    %9498 = vmatpush1.msra.mxu0 %v7915
    %9499 = vmatprep.subr.mxu0 %v7948
    %9500 = vmatpush1.msra.mxu0 %v7947
    %9501 = vmatprep.subr.mxu0 %v7980
    %9502 = vmatpush1.msra.mxu0 %v7979
    %9503 = vmatprep.subr.mxu0 %v8012
    %9504 = vmatpush1.msra.mxu0 %v8011
    %9505 = vmatprep.subr.mxu0 %v8044
    %9506 = vmatpush1.msra.mxu0 %v8043
    %9507 = vmatprep.subr.mxu0 %v8076
    %9508 = vmatpush1.msra.mxu0 %v8075
    %9509 = vmatprep.subr.mxu0 %v8108
    %9510 = vmatpush1.msra.mxu0 %v8107
    %9511 = vmatprep.subr.mxu0 %v8140
    %9512 = vmatpush1.msra.mxu0 %v8139
    %9513 = vmatprep.subr.mxu0 %v8172
    %9514 = vmatpush1.msra.mxu0 %v8171
    %9515 = vmatprep.subr.mxu0 %v8204
    %9516 = vmatpush1.msra.mxu0 %v8203
    %9517 = vmatprep.subr.mxu0 %v8236
    %9518 = vmatpush1.msra.mxu0 %v8235
    %9519 = vmatprep.subr.mxu0 %v8268
    %9520 = vmatpush1.msra.mxu0 %v8267
    %9521 = vmatprep.subr.mxu0 %v8300
    %9522 = vmatpush1.msra.mxu0 %v8299
    %9523 = vmatprep.subr.mxu0 %v8332
    %9524 = vmatpush1.msra.mxu0 %v8331
    %9525 = vmatprep.subr.mxu0 %v8364
    %9526 = vmatpush1.msra.mxu0 %v8363
    %9527 = vmatprep.subr.mxu0 %v8396
    %9528 = vmatpush1.msra.mxu0 %v8395
    %9529 = vmatprep.subr.mxu0 %v8428
    %9530 = vmatpush1.msra.mxu0 %v8427
    %9531 = vmatprep.subr.mxu0 %v8460
    %9532 = vmatpush1.msra.mxu0 %v8459
    %9533 = vmatprep.subr.mxu0 %v8492
    %9534 = vmatpush1.msra.mxu0 %v8491
    %9535 = vmatprep.subr.mxu0 %v8524
    %9536 = vmatpush1.msra.mxu0 %v8523
    %9537 = vmatprep.subr.mxu0 %v8556
    %9538 = vmatpush1.msra.mxu0 %v8555
    %9539 = vmatprep.subr.mxu0 %v8588
    %9540 = vmatpush1.msra.mxu0 %v8587
    %9541 = vmatprep.mubr.f32.mxu0 %v7058
    %9542 = vmatmul.mubr.f32.gmra.mrb[0].mxu0 %v7057
    %v9543 = vpop.f32.mrb[0].mxu0
    %v9544 = vadd.f32 %v8690, %v9543
    %v9545 = vpop.f32.mrb[0].mxu0
    %v9546 = vadd.f32 %v8694, %v9545
    %9547 = vdwg.mxu0
    %9548 = vmatprep.subr.mxu0 %v7598
    %9549 = vmatpush1.msra.mxu0 %v7597
    %9550 = vmatprep.subr.mxu0 %v7630
    %9551 = vmatpush1.msra.mxu0 %v7629
    %9552 = vmatprep.subr.mxu0 %v7662
    %9553 = vmatpush1.msra.mxu0 %v7661
    %9554 = vmatprep.subr.mxu0 %v7694
    %9555 = vmatpush1.msra.mxu0 %v7693
    %9556 = vmatprep.subr.mxu0 %v7726
    %9557 = vmatpush1.msra.mxu0 %v7725
    %9558 = vmatprep.subr.mxu0 %v7758
    %9559 = vmatpush1.msra.mxu0 %v7757
    %9560 = vmatprep.subr.mxu0 %v7790
    %9561 = vmatpush1.msra.mxu0 %v7789
    %9562 = vmatprep.subr.mxu0 %v7822
    %9563 = vmatpush1.msra.mxu0 %v7821
    %9564 = vmatprep.subr.mxu0 %v7854
    %9565 = vmatpush1.msra.mxu0 %v7853
    %9566 = vmatprep.subr.mxu0 %v7886
    %9567 = vmatpush1.msra.mxu0 %v7885
    %9568 = vmatprep.subr.mxu0 %v7918
    %9569 = vmatpush1.msra.mxu0 %v7917
    %9570 = vmatprep.subr.mxu0 %v7950
    %9571 = vmatpush1.msra.mxu0 %v7949
    %9572 = vmatprep.subr.mxu0 %v7982
    %9573 = vmatpush1.msra.mxu0 %v7981
    %9574 = vmatprep.subr.mxu0 %v8014
    %9575 = vmatpush1.msra.mxu0 %v8013
    %9576 = vmatprep.subr.mxu0 %v8046
    %9577 = vmatpush1.msra.mxu0 %v8045
    %9578 = vmatprep.subr.mxu0 %v8078
    %9579 = vmatpush1.msra.mxu0 %v8077
    %9580 = vmatprep.subr.mxu0 %v8110
    %9581 = vmatpush1.msra.mxu0 %v8109
    %9582 = vmatprep.subr.mxu0 %v8142
    %9583 = vmatpush1.msra.mxu0 %v8141
    %9584 = vmatprep.subr.mxu0 %v8174
    %9585 = vmatpush1.msra.mxu0 %v8173
    %9586 = vmatprep.subr.mxu0 %v8206
    %9587 = vmatpush1.msra.mxu0 %v8205
    %9588 = vmatprep.subr.mxu0 %v8238
    %9589 = vmatpush1.msra.mxu0 %v8237
    %9590 = vmatprep.subr.mxu0 %v8270
    %9591 = vmatpush1.msra.mxu0 %v8269
    %9592 = vmatprep.subr.mxu0 %v8302
    %9593 = vmatpush1.msra.mxu0 %v8301
    %9594 = vmatprep.subr.mxu0 %v8334
    %9595 = vmatpush1.msra.mxu0 %v8333
    %9596 = vmatprep.subr.mxu0 %v8366
    %9597 = vmatpush1.msra.mxu0 %v8365
    %9598 = vmatprep.subr.mxu0 %v8398
    %9599 = vmatpush1.msra.mxu0 %v8397
    %9600 = vmatprep.subr.mxu0 %v8430
    %9601 = vmatpush1.msra.mxu0 %v8429
    %9602 = vmatprep.subr.mxu0 %v8462
    %9603 = vmatpush1.msra.mxu0 %v8461
    %9604 = vmatprep.subr.mxu0 %v8494
    %9605 = vmatpush1.msra.mxu0 %v8493
    %9606 = vmatprep.subr.mxu0 %v8526
    %9607 = vmatpush1.msra.mxu0 %v8525
    %9608 = vmatprep.subr.mxu0 %v8558
    %9609 = vmatpush1.msra.mxu0 %v8557
    %9610 = vmatprep.subr.mxu0 %v8590
    %9611 = vmatpush1.msra.mxu0 %v8589
    %9612 = vmatprep.mubr.f32.mxu0 %v7058
    %9613 = vmatmul.mubr.f32.gmra.mrb[0].mxu0 %v7057
    %v9614 = vpop.f32.mrb[0].mxu0
    %v9615 = vadd.f32 %v8698, %v9614
    %v9616 = vpop.f32.mrb[0].mxu0
    %v9617 = vadd.f32 %v8702, %v9616
    %9618 = vdwg.mxu0
    %9619 = vmatprep.subr.mxu0 %v7600
    %9620 = vmatpush1.msra.mxu0 %v7599
    %9621 = vmatprep.subr.mxu0 %v7632
    %9622 = vmatpush1.msra.mxu0 %v7631
    %9623 = vmatprep.subr.mxu0 %v7664
    %9624 = vmatpush1.msra.mxu0 %v7663
    %9625 = vmatprep.subr.mxu0 %v7696
    %9626 = vmatpush1.msra.mxu0 %v7695
    %9627 = vmatprep.subr.mxu0 %v7728
    %9628 = vmatpush1.msra.mxu0 %v7727
    %9629 = vmatprep.subr.mxu0 %v7760
    %9630 = vmatpush1.msra.mxu0 %v7759
    %9631 = vmatprep.subr.mxu0 %v7792
    %9632 = vmatpush1.msra.mxu0 %v7791
    %9633 = vmatprep.subr.mxu0 %v7824
    %9634 = vmatpush1.msra.mxu0 %v7823
    %9635 = vmatprep.subr.mxu0 %v7856
    %9636 = vmatpush1.msra.mxu0 %v7855
    %9637 = vmatprep.subr.mxu0 %v7888
    %9638 = vmatpush1.msra.mxu0 %v7887
    %9639 = vmatprep.subr.mxu0 %v7920
    %9640 = vmatpush1.msra.mxu0 %v7919
    %9641 = vmatprep.subr.mxu0 %v7952
    %9642 = vmatpush1.msra.mxu0 %v7951
    %9643 = vmatprep.subr.mxu0 %v7984
    %9644 = vmatpush1.msra.mxu0 %v7983
    %9645 = vmatprep.subr.mxu0 %v8016
    %9646 = vmatpush1.msra.mxu0 %v8015
    %9647 = vmatprep.subr.mxu0 %v8048
    %9648 = vmatpush1.msra.mxu0 %v8047
    %9649 = vmatprep.subr.mxu0 %v8080
    %9650 = vmatpush1.msra.mxu0 %v8079
    %9651 = vmatprep.subr.mxu0 %v8112
    %9652 = vmatpush1.msra.mxu0 %v8111
    %9653 = vmatprep.subr.mxu0 %v8144
    %9654 = vmatpush1.msra.mxu0 %v8143
    %9655 = vmatprep.subr.mxu0 %v8176
    %9656 = vmatpush1.msra.mxu0 %v8175
    %9657 = vmatprep.subr.mxu0 %v8208
    %9658 = vmatpush1.msra.mxu0 %v8207
    %9659 = vmatprep.subr.mxu0 %v8240
    %9660 = vmatpush1.msra.mxu0 %v8239
    %9661 = vmatprep.subr.mxu0 %v8272
    %9662 = vmatpush1.msra.mxu0 %v8271
    %9663 = vmatprep.subr.mxu0 %v8304
    %9664 = vmatpush1.msra.mxu0 %v8303
    %9665 = vmatprep.subr.mxu0 %v8336
    %9666 = vmatpush1.msra.mxu0 %v8335
    %9667 = vmatprep.subr.mxu0 %v8368
    %9668 = vmatpush1.msra.mxu0 %v8367
    %9669 = vmatprep.subr.mxu0 %v8400
    %9670 = vmatpush1.msra.mxu0 %v8399
    %9671 = vmatprep.subr.mxu0 %v8432
    %9672 = vmatpush1.msra.mxu0 %v8431
    %9673 = vmatprep.subr.mxu0 %v8464
    %9674 = vmatpush1.msra.mxu0 %v8463
    %9675 = vmatprep.subr.mxu0 %v8496
    %9676 = vmatpush1.msra.mxu0 %v8495
    %9677 = vmatprep.subr.mxu0 %v8528
    %9678 = vmatpush1.msra.mxu0 %v8527
    %9679 = vmatprep.subr.mxu0 %v8560
    %9680 = vmatpush1.msra.mxu0 %v8559
    %9681 = vmatprep.subr.mxu0 %v8592
    %9682 = vmatpush1.msra.mxu0 %v8591
    %9683 = vmatprep.mubr.f32.mxu0 %v7058
    %9684 = vmatmul.mubr.f32.gmra.mrb[0].mxu0 %v7057
    %v9685 = vpop.f32.mrb[0].mxu0
    %v9686 = vadd.f32 %v8706, %v9685
    %v9687 = vpop.f32.mrb[0].mxu0
    %v9688 = vadd.f32 %v8710, %v9687
    %9689 = vdwg.mxu0
    %9690 = vmatprep.subr.mxu0 %v7602
    %9691 = vmatpush1.msra.mxu0 %v7601
    %9692 = vmatprep.subr.mxu0 %v7634
    %9693 = vmatpush1.msra.mxu0 %v7633
    %9694 = vmatprep.subr.mxu0 %v7666
    %9695 = vmatpush1.msra.mxu0 %v7665
    %9696 = vmatprep.subr.mxu0 %v7698
    %9697 = vmatpush1.msra.mxu0 %v7697
    %9698 = vmatprep.subr.mxu0 %v7730
    %9699 = vmatpush1.msra.mxu0 %v7729
    %9700 = vmatprep.subr.mxu0 %v7762
    %9701 = vmatpush1.msra.mxu0 %v7761
    %9702 = vmatprep.subr.mxu0 %v7794
    %9703 = vmatpush1.msra.mxu0 %v7793
    %9704 = vmatprep.subr.mxu0 %v7826
    %9705 = vmatpush1.msra.mxu0 %v7825
    %9706 = vmatprep.subr.mxu0 %v7858
    %9707 = vmatpush1.msra.mxu0 %v7857
    %9708 = vmatprep.subr.mxu0 %v7890
    %9709 = vmatpush1.msra.mxu0 %v7889
    %9710 = vmatprep.subr.mxu0 %v7922
    %9711 = vmatpush1.msra.mxu0 %v7921
    %9712 = vmatprep.subr.mxu0 %v7954
    %9713 = vmatpush1.msra.mxu0 %v7953
    %9714 = vmatprep.subr.mxu0 %v7986
    %9715 = vmatpush1.msra.mxu0 %v7985
    %9716 = vmatprep.subr.mxu0 %v8018
    %9717 = vmatpush1.msra.mxu0 %v8017
    %9718 = vmatprep.subr.mxu0 %v8050
    %9719 = vmatpush1.msra.mxu0 %v8049
    %9720 = vmatprep.subr.mxu0 %v8082
    %9721 = vmatpush1.msra.mxu0 %v8081
    %9722 = vmatprep.subr.mxu0 %v8114
    %9723 = vmatpush1.msra.mxu0 %v8113
    %9724 = vmatprep.subr.mxu0 %v8146
    %9725 = vmatpush1.msra.mxu0 %v8145
    %9726 = vmatprep.subr.mxu0 %v8178
    %9727 = vmatpush1.msra.mxu0 %v8177
    %9728 = vmatprep.subr.mxu0 %v8210
    %9729 = vmatpush1.msra.mxu0 %v8209
    %9730 = vmatprep.subr.mxu0 %v8242
    %9731 = vmatpush1.msra.mxu0 %v8241
    %9732 = vmatprep.subr.mxu0 %v8274
    %9733 = vmatpush1.msra.mxu0 %v8273
    %9734 = vmatprep.subr.mxu0 %v8306
    %9735 = vmatpush1.msra.mxu0 %v8305
    %9736 = vmatprep.subr.mxu0 %v8338
    %9737 = vmatpush1.msra.mxu0 %v8337
    %9738 = vmatprep.subr.mxu0 %v8370
    %9739 = vmatpush1.msra.mxu0 %v8369
    %9740 = vmatprep.subr.mxu0 %v8402
    %9741 = vmatpush1.msra.mxu0 %v8401
    %9742 = vmatprep.subr.mxu0 %v8434
    %9743 = vmatpush1.msra.mxu0 %v8433
    %9744 = vmatprep.subr.mxu0 %v8466
    %9745 = vmatpush1.msra.mxu0 %v8465
    %9746 = vmatprep.subr.mxu0 %v8498
    %9747 = vmatpush1.msra.mxu0 %v8497
    %9748 = vmatprep.subr.mxu0 %v8530
    %9749 = vmatpush1.msra.mxu0 %v8529
    %9750 = vmatprep.subr.mxu0 %v8562
    %9751 = vmatpush1.msra.mxu0 %v8561
    %9752 = vmatprep.subr.mxu0 %v8594
    %9753 = vmatpush1.msra.mxu0 %v8593
    %9754 = vmatprep.mubr.f32.mxu0 %v7058
    %9755 = vmatmul.mubr.f32.gmra.mrb[0].mxu0 %v7057
    %v9756 = vpop.f32.mrb[0].mxu0
    %v9757 = vadd.f32 %v8714, %v9756
    %v9758 = vpop.f32.mrb[0].mxu0
    %v9759 = vadd.f32 %v8718, %v9758
    %9760 = vdwg.mxu0
    %9761 = vmatprep.subr.mxu0 %v7604
    %9762 = vmatpush1.msra.mxu0 %v7603
    %9763 = vmatprep.subr.mxu0 %v7636
    %9764 = vmatpush1.msra.mxu0 %v7635
    %9765 = vmatprep.subr.mxu0 %v7668
    %9766 = vmatpush1.msra.mxu0 %v7667
    %9767 = vmatprep.subr.mxu0 %v7700
    %9768 = vmatpush1.msra.mxu0 %v7699
    %9769 = vmatprep.subr.mxu0 %v7732
    %9770 = vmatpush1.msra.mxu0 %v7731
    %9771 = vmatprep.subr.mxu0 %v7764
    %9772 = vmatpush1.msra.mxu0 %v7763
    %9773 = vmatprep.subr.mxu0 %v7796
    %9774 = vmatpush1.msra.mxu0 %v7795
    %9775 = vmatprep.subr.mxu0 %v7828
    %9776 = vmatpush1.msra.mxu0 %v7827
    %9777 = vmatprep.subr.mxu0 %v7860
    %9778 = vmatpush1.msra.mxu0 %v7859
    %9779 = vmatprep.subr.mxu0 %v7892
    %9780 = vmatpush1.msra.mxu0 %v7891
    %9781 = vmatprep.subr.mxu0 %v7924
    %9782 = vmatpush1.msra.mxu0 %v7923
    %9783 = vmatprep.subr.mxu0 %v7956
    %9784 = vmatpush1.msra.mxu0 %v7955
    %9785 = vmatprep.subr.mxu0 %v7988
    %9786 = vmatpush1.msra.mxu0 %v7987
    %9787 = vmatprep.subr.mxu0 %v8020
    %9788 = vmatpush1.msra.mxu0 %v8019
    %9789 = vmatprep.subr.mxu0 %v8052
    %9790 = vmatpush1.msra.mxu0 %v8051
    %9791 = vmatprep.subr.mxu0 %v8084
    %9792 = vmatpush1.msra.mxu0 %v8083
    %9793 = vmatprep.subr.mxu0 %v8116
    %9794 = vmatpush1.msra.mxu0 %v8115
    %9795 = vmatprep.subr.mxu0 %v8148
    %9796 = vmatpush1.msra.mxu0 %v8147
    %9797 = vmatprep.subr.mxu0 %v8180
    %9798 = vmatpush1.msra.mxu0 %v8179
    %9799 = vmatprep.subr.mxu0 %v8212
    %9800 = vmatpush1.msra.mxu0 %v8211
    %9801 = vmatprep.subr.mxu0 %v8244
    %9802 = vmatpush1.msra.mxu0 %v8243
    %9803 = vmatprep.subr.mxu0 %v8276
    %9804 = vmatpush1.msra.mxu0 %v8275
    %9805 = vmatprep.subr.mxu0 %v8308
    %9806 = vmatpush1.msra.mxu0 %v8307
    %9807 = vmatprep.subr.mxu0 %v8340
    %9808 = vmatpush1.msra.mxu0 %v8339
    %9809 = vmatprep.subr.mxu0 %v8372
    %9810 = vmatpush1.msra.mxu0 %v8371
    %9811 = vmatprep.subr.mxu0 %v8404
    %9812 = vmatpush1.msra.mxu0 %v8403
    %9813 = vmatprep.subr.mxu0 %v8436
    %9814 = vmatpush1.msra.mxu0 %v8435
    %9815 = vmatprep.subr.mxu0 %v8468
    %9816 = vmatpush1.msra.mxu0 %v8467
    %9817 = vmatprep.subr.mxu0 %v8500
    %9818 = vmatpush1.msra.mxu0 %v8499
    %9819 = vmatprep.subr.mxu0 %v8532
    %9820 = vmatpush1.msra.mxu0 %v8531
    %9821 = vmatprep.subr.mxu0 %v8564
    %9822 = vmatpush1.msra.mxu0 %v8563
    %9823 = vmatprep.subr.mxu0 %v8596
    %9824 = vmatpush1.msra.mxu0 %v8595
    %9825 = vmatprep.mubr.f32.mxu0 %v7058
    %9826 = vmatmul.mubr.f32.gmra.mrb[0].mxu0 %v7057
    %v9827 = vpop.f32.mrb[0].mxu0
    %v9828 = vadd.f32 %v8722, %v9827
    %v9829 = vpop.f32.mrb[0].mxu0
    %v9830 = vadd.f32 %v8726, %v9829
    %9831 = vdwg.mxu0
    %9832 = vmatprep.subr.mxu0 %v7606
    %9833 = vmatpush1.msra.mxu0 %v7605
    %9834 = vmatprep.subr.mxu0 %v7638
    %9835 = vmatpush1.msra.mxu0 %v7637
    %9836 = vmatprep.subr.mxu0 %v7670
    %9837 = vmatpush1.msra.mxu0 %v7669
    %9838 = vmatprep.subr.mxu0 %v7702
    %9839 = vmatpush1.msra.mxu0 %v7701
    %9840 = vmatprep.subr.mxu0 %v7734
    %9841 = vmatpush1.msra.mxu0 %v7733
    %9842 = vmatprep.subr.mxu0 %v7766
    %9843 = vmatpush1.msra.mxu0 %v7765
    %9844 = vmatprep.subr.mxu0 %v7798
    %9845 = vmatpush1.msra.mxu0 %v7797
    %9846 = vmatprep.subr.mxu0 %v7830
    %9847 = vmatpush1.msra.mxu0 %v7829
    %9848 = vmatprep.subr.mxu0 %v7862
    %9849 = vmatpush1.msra.mxu0 %v7861
    %9850 = vmatprep.subr.mxu0 %v7894
    %9851 = vmatpush1.msra.mxu0 %v7893
    %9852 = vmatprep.subr.mxu0 %v7926
    %9853 = vmatpush1.msra.mxu0 %v7925
    %9854 = vmatprep.subr.mxu0 %v7958
    %9855 = vmatpush1.msra.mxu0 %v7957
    %9856 = vmatprep.subr.mxu0 %v7990
    %9857 = vmatpush1.msra.mxu0 %v7989
    %9858 = vmatprep.subr.mxu0 %v8022
    %9859 = vmatpush1.msra.mxu0 %v8021
    %9860 = vmatprep.subr.mxu0 %v8054
    %9861 = vmatpush1.msra.mxu0 %v8053
    %9862 = vmatprep.subr.mxu0 %v8086
    %9863 = vmatpush1.msra.mxu0 %v8085
    %9864 = vmatprep.subr.mxu0 %v8118
    %9865 = vmatpush1.msra.mxu0 %v8117
    %9866 = vmatprep.subr.mxu0 %v8150
    %9867 = vmatpush1.msra.mxu0 %v8149
    %9868 = vmatprep.subr.mxu0 %v8182
    %9869 = vmatpush1.msra.mxu0 %v8181
    %9870 = vmatprep.subr.mxu0 %v8214
    %9871 = vmatpush1.msra.mxu0 %v8213
    %9872 = vmatprep.subr.mxu0 %v8246
    %9873 = vmatpush1.msra.mxu0 %v8245
    %9874 = vmatprep.subr.mxu0 %v8278
    %9875 = vmatpush1.msra.mxu0 %v8277
    %9876 = vmatprep.subr.mxu0 %v8310
    %9877 = vmatpush1.msra.mxu0 %v8309
    %9878 = vmatprep.subr.mxu0 %v8342
    %9879 = vmatpush1.msra.mxu0 %v8341
    %9880 = vmatprep.subr.mxu0 %v8374
    %9881 = vmatpush1.msra.mxu0 %v8373
    %9882 = vmatprep.subr.mxu0 %v8406
    %9883 = vmatpush1.msra.mxu0 %v8405
    %9884 = vmatprep.subr.mxu0 %v8438
    %9885 = vmatpush1.msra.mxu0 %v8437
    %9886 = vmatprep.subr.mxu0 %v8470
    %9887 = vmatpush1.msra.mxu0 %v8469
    %9888 = vmatprep.subr.mxu0 %v8502
    %9889 = vmatpush1.msra.mxu0 %v8501
    %9890 = vmatprep.subr.mxu0 %v8534
    %9891 = vmatpush1.msra.mxu0 %v8533
    %9892 = vmatprep.subr.mxu0 %v8566
    %9893 = vmatpush1.msra.mxu0 %v8565
    %9894 = vmatprep.subr.mxu0 %v8598
    %9895 = vmatpush1.msra.mxu0 %v8597
    %9896 = vmatprep.mubr.f32.mxu0 %v7058
    %9897 = vmatmul.mubr.f32.gmra.mrb[0].mxu0 %v7057
    %v9898 = vpop.f32.mrb[0].mxu0
    %v9899 = vadd.f32 %v8730, %v9898
    %v9900 = vpop.f32.mrb[0].mxu0
    %v9901 = vadd.f32 %v8734, %v9900
    %9902 = vdwg.mxu0
    %v9935 = vcombine.low %v8834, %v8836
    %v9936 = vcombine.low %v8905, %v8907
    %v9938 = vunpack.c.l.s4 1983009808
    %v9939 = vunpack.c.0.s8 %v9938
    %v9940 = vlaneseq
    %v9941 = vshrl.u32 %v9940, 7
    %v9942 = vsub.s32 %v9939, %v9941
    %v9943 = vrot.slane %v9935, %v9942
    %v9945 = vunpack.c.l.s4 1983009808
    %v9946 = vunpack.c.0.s8 %v9945
    %v9947 = vlaneseq
    %v9948 = vshrl.u32 %v9947, 7
    %v9949 = vsub.s32 %v9946, %v9948
    %v9950 = vrot.slane %v9936, %v9949
    %v9951 = vcombine.low %v9943, %v9950
    %v9952 = vcombine.low %v8976, %v8978
    %v9953 = vcombine.low %v9047, %v9049
    %v9955 = vunpack.c.l.s4 1983009808
    %v9956 = vunpack.c.0.s8 %v9955
    %v9957 = vlaneseq
    %v9958 = vshrl.u32 %v9957, 7
    %v9959 = vsub.s32 %v9956, %v9958
    %v9960 = vrot.slane %v9952, %v9959
    %v9962 = vunpack.c.l.s4 1983009808
    %v9963 = vunpack.c.0.s8 %v9962
    %v9964 = vlaneseq
    %v9965 = vshrl.u32 %v9964, 7
    %v9966 = vsub.s32 %v9963, %v9965
    %v9967 = vrot.slane %v9953, %v9966
    %v9968 = vcombine.low %v9960, %v9967
    %v9969 = vcombine.low %v9118, %v9120
    %v9970 = vcombine.low %v9189, %v9191
    %v9972 = vunpack.c.l.s4 1983009808
    %v9973 = vunpack.c.0.s8 %v9972
    %v9974 = vlaneseq
    %v9975 = vshrl.u32 %v9974, 7
    %v9976 = vsub.s32 %v9973, %v9975
    %v9977 = vrot.slane %v9969, %v9976
    %v9979 = vunpack.c.l.s4 1983009808
    %v9980 = vunpack.c.0.s8 %v9979
    %v9981 = vlaneseq
    %v9982 = vshrl.u32 %v9981, 7
    %v9983 = vsub.s32 %v9980, %v9982
    %v9984 = vrot.slane %v9970, %v9983
    %v9985 = vcombine.low %v9977, %v9984
    %v9986 = vcombine.low %v9260, %v9262
    %v9987 = vcombine.low %v9331, %v9333
    %v9989 = vunpack.c.l.s4 1983009808
    %v9990 = vunpack.c.0.s8 %v9989
    %v9991 = vlaneseq
    %v9992 = vshrl.u32 %v9991, 7
    %v9993 = vsub.s32 %v9990, %v9992
    %v9994 = vrot.slane %v9986, %v9993
    %v9996 = vunpack.c.l.s4 1983009808
    %v9997 = vunpack.c.0.s8 %v9996
    %v9998 = vlaneseq
    %v9999 = vshrl.u32 %v9998, 7
    %v10000 = vsub.s32 %v9997, %v9999
    %v10001 = vrot.slane %v9987, %v10000
    %v10002 = vcombine.low %v9994, %v10001
    %v10003 = vcombine.low %v9402, %v9404
    %v10004 = vcombine.low %v9473, %v9475
    %v10006 = vunpack.c.l.s4 1983009808
    %v10007 = vunpack.c.0.s8 %v10006
    %v10008 = vlaneseq
    %v10009 = vshrl.u32 %v10008, 7
    %v10010 = vsub.s32 %v10007, %v10009
    %v10011 = vrot.slane %v10003, %v10010
    %v10013 = vunpack.c.l.s4 1983009808
    %v10014 = vunpack.c.0.s8 %v10013
    %v10015 = vlaneseq
    %v10016 = vshrl.u32 %v10015, 7
    %v10017 = vsub.s32 %v10014, %v10016
    %v10018 = vrot.slane %v10004, %v10017
    %v10019 = vcombine.low %v10011, %v10018
    %v10020 = vcombine.low %v9544, %v9546
    %v10021 = vcombine.low %v9615, %v9617
    %v10023 = vunpack.c.l.s4 1983009808
    %v10024 = vunpack.c.0.s8 %v10023
    %v10025 = vlaneseq
    %v10026 = vshrl.u32 %v10025, 7
    %v10027 = vsub.s32 %v10024, %v10026
    %v10028 = vrot.slane %v10020, %v10027
    %v10030 = vunpack.c.l.s4 1983009808
    %v10031 = vunpack.c.0.s8 %v10030
    %v10032 = vlaneseq
    %v10033 = vshrl.u32 %v10032, 7
    %v10034 = vsub.s32 %v10031, %v10033
    %v10035 = vrot.slane %v10021, %v10034
    %v10036 = vcombine.low %v10028, %v10035
    %v10037 = vcombine.low %v9686, %v9688
    %v10038 = vcombine.low %v9757, %v9759
    %v10040 = vunpack.c.l.s4 1983009808
    %v10041 = vunpack.c.0.s8 %v10040
    %v10042 = vlaneseq
    %v10043 = vshrl.u32 %v10042, 7
    %v10044 = vsub.s32 %v10041, %v10043
    %v10045 = vrot.slane %v10037, %v10044
    %v10047 = vunpack.c.l.s4 1983009808
    %v10048 = vunpack.c.0.s8 %v10047
    %v10049 = vlaneseq
    %v10050 = vshrl.u32 %v10049, 7
    %v10051 = vsub.s32 %v10048, %v10050
    %v10052 = vrot.slane %v10038, %v10051
    %v10053 = vcombine.low %v10045, %v10052
    %v10054 = vcombine.low %v9828, %v9830
    %v10055 = vcombine.low %v9899, %v9901
    %v10057 = vunpack.c.l.s4 1983009808
    %v10058 = vunpack.c.0.s8 %v10057
    %v10059 = vlaneseq
    %v10060 = vshrl.u32 %v10059, 7
    %v10061 = vsub.s32 %v10058, %v10060
    %v10062 = vrot.slane %v10054, %v10061
    %v10064 = vunpack.c.l.s4 1983009808
    %v10065 = vunpack.c.0.s8 %v10064
    %v10066 = vlaneseq
    %v10067 = vshrl.u32 %v10066, 7
    %v10068 = vsub.s32 %v10065, %v10067
    %v10069 = vrot.slane %v10055, %v10068
    %v10070 = vcombine.low %v10062, %v10069
    %10079 = vst [vmem:[#allocation21] sm:$0xff] %v9951
    %10080 = vst [vmem:[#allocation21 + $0x8] sm:$0xff] %v9968
    %10081 = vst [vmem:[#allocation21 + $0x10] sm:$0xff] %v9985
    %10082 = vst [vmem:[#allocation21 + $0x18] sm:$0xff] %v10002
    %10083 = vst [vmem:[#allocation21 + $0x20] sm:$0xff] %v10019
    %10084 = vst [vmem:[#allocation21 + $0x28] sm:$0xff] %v10036
    %10085 = vst [vmem:[#allocation21 + $0x30] sm:$0xff] %v10053
    %10086 = vst [vmem:[#allocation21 + $0x38] sm:$0xff] %v10070
    // Predicated region
    $region78: #{tpu_custom_call.1} parent=1 // pred_check
      _
    $region79: #{tpu_custom_call.1} parent=1 // pred_check_branch
      %10088 = sbr.rel (0) target = $region81
    $region80: #{tpu_custom_call.1} parent=1 // pred_region
      %s10090 = ssub.s32 1024, 1024
      %10091 = vsyncadd [#allocation8], %s10090
      %s10093 = sshll.u32 [#allocation21], 4
      %s10094 = int_to_ptr.vmem [resolvable:$true] %s10093
      %10096 = dma.vmem_to_hbm [thread:$0]  %s10094, 1024, %s13, [#allocation8]
    $region81: #{tpu_custom_call.1} parent=1 // pred_fallthru
      _
    // Predicated region
    $region82: #{tpu_custom_call.1} parent=1 // pred_check
      _
    $region83: #{tpu_custom_call.1} parent=1 // pred_check_branch
      %10098 = sbr.rel (0) target = $region85
    $region84: #{tpu_custom_call.1} parent=1 // pred_region
      %10099 = dma.done [#allocation8], 1024
    $region85: #{tpu_custom_call.1} parent=1 // pred_fallthru
      _
    %10100 = vsyncpa [#allocation7], 1
    %10101 = vsyncpa [#allocation10], 1
    %10102 = vsyncpa [#allocation13], 1
    %10103 = vsyncpa [#allocation16], 1
    %10104 = vsyncpa [#allocation19], 1
    %10105 = vsyncpa [#allocation8], 1
  %10106 = vsyncmov [#allocation5]
  %s10107 = vpop.sfrf %10106
  %p10108 = scmp.eq.s32.totalorder %s10107, 0
  %p10109 = pneg %p10108
  %10111 = shalt.err (%p10109)
  %s10112 = scalar_lea.sflag [#allocation5], 1
  %10113 = vsyncmov %s10112
  %s10114 = vpop.sfrf %10113
  %p10115 = scmp.eq.s32.totalorder %s10114, 0
  %p10116 = pneg %p10115
  %10118 = shalt.err (%p10116)
  %s10119 = scalar_lea.sflag [#allocation5], 2
  %10120 = vsyncmov %s10119
  %s10121 = vpop.sfrf %10120
  %p10122 = scmp.eq.s32.totalorder %s10121, 0
  %p10123 = pneg %p10122
  %10125 = shalt.err (%p10123)

</llo_original>
